<compile_context>
chip_gen: v7x
topology: tpu7x:2x2x1
jax: 0.10.0
libtpu: 0.0.40
codegen_flags: <defaults>
</compile_context>

<pallas_src>
import functools

import jax
import jax.numpy as jnp
from jax import lax
from jax.experimental import pallas as pl
from jax.experimental.pallas import tpu as pltpu

K = 4          # conv kernel size
STRIDE = 2     # conv stride
PAD = 1        # conv padding
EPS = 1e-5     # InstanceNorm2d default eps

# kernel-tap rows/cols (kh or kw) whose *input* parity is 0 / 1 for the stride-2, pad-1 conv
_KTAPS_FOR_PARITY = ((1, 3), (0, 2))


# ----------------------------------------------------------------------------
# Capability probe: can BlockSpec single-buffer a grid-invariant input?
# ----------------------------------------------------------------------------
@functools.lru_cache(maxsize=None)
def _single_buffered_weights_supported() -> bool:
    """Probe whether pipeline_mode=pl.Buffered(buffer_count=1) compiles & runs."""
    try:
        def _k(x_ref, w_ref, o_ref):
            o_ref[...] = x_ref[...] + w_ref[...]

        f = pl.pallas_call(
            _k,
            out_shape=jax.ShapeDtypeStruct((2, 8, 128), jnp.float32),
            grid=(2,),
            in_specs=[
                pl.BlockSpec((1, 8, 128), lambda i: (i, 0, 0)),
                pl.BlockSpec((1, 8, 128), lambda i: (0, 0, 0),
                             pipeline_mode=pl.Buffered(buffer_count=1)),
            ],
            out_specs=pl.BlockSpec((1, 8, 128), lambda i: (i, 0, 0)),
        )
        jax.block_until_ready(f(jnp.zeros((2, 8, 128), jnp.float32),
                                jnp.ones((1, 8, 128), jnp.float32)))
        return True
    except Exception:  # noqa: BLE001 - any failure => fall back to default buffering
        return False


# ----------------------------------------------------------------------------
# Fused Pallas kernel (one batch sample per grid step)
# ----------------------------------------------------------------------------
def fused_unet_inner_kernel(xds_ref, wd_ref, bd_ref, wu_ref, bu_ref, o_ref, hpad_ref):
    """xds_ref : (1, 4, ho+2, wo+2, Cin)   parity-decomposed, halo-padded input (compute dtype)
       wd_ref  : (4, 4*Cin, Cinner)        down-conv weights grouped per input parity
       bd_ref  : (1, Cinner)               down-conv bias (f32)
       wu_ref  : (4, 4*Cinner, Cout)       up-conv weights grouped per output parity
       bu_ref  : (1, Cout)                 up-conv bias (f32)
       o_ref   : (1, 4, ho*wo, Cout)       y in parity-packed layout [2r+s, m*wo+n, c]
       hpad_ref: (ho+2, wo+2, Cinner)      VMEM scratch (compute dtype), 1-px zero halo
    """
    _, _, hp, wp, cin = xds_ref.shape
    ho, wo = hp - 2, wp - 2
    cinner = wd_ref.shape[2]
    cout = wu_ref.shape[2]
    cdt = wd_ref.dtype                       # MXU operand dtype (bf16 or f32)

    # Fuse taps along K only when the channel count keeps the minor-dim concat lane-aligned.
    fuse_down = (cin % 128) == 0
    fuse_up = (cinner % 128) == 0

    # ---- down path: LeakyReLU(x) -> Conv2d(k4,s2,p1) -> +bias -> ReLU ------------------
    acc = jnp.zeros((ho * wo, cinner), jnp.float32)
    for dr in (0, 1):
        for dc in (0, 1):
            p = 2 * dr + dc
            # LeakyReLU exactly once per input element (each element is in exactly one parity);
            # compare in f32 (v5e has no bf16 VPU), then ONE downcast to the operand dtype.
            c = xds_ref[0, p].astype(jnp.float32)
            c = jnp.where(c > 0, c, 0.2 * c).astype(cdt)          # (hp, wp, Cin)
            slabs = [c[(kh + 1) // 2:(kh + 1) // 2 + ho,
                       (kw + 1) // 2:(kw + 1) // 2 + wo, :]
                     for kh in _KTAPS_FOR_PARITY[dr]
                     for kw in _KTAPS_FOR_PARITY[dc]]             # 4 x (ho, wo, Cin)
            wg = wd_ref[p]                                        # (4*Cin, Cinner)
            if fuse_down:
                op = jnp.concatenate(slabs, axis=-1).reshape(ho * wo, 4 * cin)
                acc = acc + jnp.dot(op, wg, preferred_element_type=jnp.float32)
            else:
                for t, slab in enumerate(slabs):
                    acc = acc + jnp.dot(slab.reshape(ho * wo, cin),
                                        wg[t * cin:(t + 1) * cin, :],
                                        preferred_element_type=jnp.float32)
    h = jnp.maximum(acc + bd_ref[...], 0.0)                       # up_relu fused here (f32)

    # ---- stage h into the VMEM scratch (compute dtype, one cast); refresh only the halo ----
    zrow = jnp.zeros((1, wp, cinner), cdt)
    zcol = jnp.zeros((hp, 1, cinner), cdt)
    hpad_ref[0:1, :, :] = zrow
    hpad_ref[hp - 1:hp, :, :] = zrow
    hpad_ref[:, 0:1, :] = zcol
    hpad_ref[:, wp - 1:wp, :] = zcol
    hpad_ref[1:1 + ho, 1:1 + wo, :] = h.reshape(ho, wo, cinner).astype(cdt)

    # ---- up path: ConvTranspose2d(k4,s2,p1) via sub-pixel (output-parity) decomposition ----
    # y[2m+r, 2n+s] = sum_{a,b in {0,1}} h_pad[m+r+a, n+s+b] @ W[:, :, 3-r-2a, 3-s-2b]
    bu = bu_ref[...]
    ssum = jnp.zeros((1, cout), jnp.float32)
    ssq = jnp.zeros((1, cout), jnp.float32)
    for r in (0, 1):
        for s in (0, 1):
            p = 2 * r + s
            slabs = [hpad_ref[r + a:r + a + ho, s + b:s + b + wo, :]
                     for a in (0, 1) for b in (0, 1)]             # 4 x (ho, wo, Cinner)
            wg = wu_ref[p]                                        # (4*Cinner, Cout)
            if fuse_up:
                op = jnp.concatenate(slabs, axis=-1).reshape(ho * wo, 4 * cinner)
                yp = jnp.dot(op, wg, preferred_element_type=jnp.float32)
            else:
                yp = jnp.zeros((ho * wo, cout), jnp.float32)
                for t, slab in enumerate(slabs):
                    yp = yp + jnp.dot(slab.reshape(ho * wo, cinner),
                                      wg[t * cinner:(t + 1) * cinner, :],
                                      preferred_element_type=jnp.float32)
            yp = yp + bu                                          # f32 (ho*wo, Cout)
            # accumulate stats in f32, then stage the un-normalized parity straight into the
            # output block (bounds its live range; read back in the epilogue).
            ssum = ssum + jnp.sum(yp, axis=0, keepdims=True)
            ssq = ssq + jnp.sum(yp * yp, axis=0, keepdims=True)
            o_ref[0, p] = yp.astype(o_ref.dtype)

    # ---- InstanceNorm2d (affine=False): single-pass stats, in-place normalize epilogue ----
    cnt = float(4 * ho * wo)                                      # = H*W
    mean = ssum / cnt
    var = jnp.maximum(ssq / cnt - mean * mean, 0.0)               # clamp: guard f32 cancellation
    inv = lax.rsqrt(var + EPS)
    for p in range(4):
        yp = o_ref[0, p].astype(jnp.float32)
        o_ref[0, p] = ((yp - mean) * inv).astype(o_ref.dtype)


# ----------------------------------------------------------------------------
# Wrapper: layout prep (one copy chain), pallas_call, depth-to-space, skip concat
# ----------------------------------------------------------------------------
def unet_innermost_block(x_nchw, wd, bd, wu, bu, *, compute_dtype=jnp.bfloat16):
    """x_nchw: (N, Cin, H, W).  wd: (Cinner, Cin, K, K) Conv2d weights,
    wu: (Cinner, Cout, K, K) ConvTranspose2d weights.  compute_dtype: MXU operand / output dtype."""
    n, cin, h, w = x_nchw.shape
    cinner = wd.shape[0]
    cout = wu.shape[1]
    assert h % 2 == 0 and w % 2 == 0
    ho, wo = h // STRIDE, w // STRIDE
    hp, wp = ho + 2, wo + 2

    # --- input: cast once -> single 6-D transpose (NCHW -> parity-major NHWC) -> halo pad ---
    xp = x_nchw.astype(compute_dtype).reshape(n, cin, ho, 2, wo, 2)
    xp = jnp.transpose(xp, (0, 3, 5, 2, 4, 1)).reshape(n, 4, ho, wo, cin)   # p = 2*dr + dc
    xds = jnp.pad(xp, ((0, 0), (0, 0), (1, 1), (1, 1), (0, 0)))             # (N, 4, hp, wp, Cin)

    # --- weights grouped per parity along the contraction axis ---
    # down: parity p = 2*dr+dc gathers taps (kh in taps[dr]) x (kw in taps[dc]) -> (4*Cin, Cinner)
    wd_groups = []
    for dr in (0, 1):
        for dc in (0, 1):
            taps = [jnp.transpose(wd[:, :, kh, kw], (1, 0))                  # (Cin, Cinner)
                    for kh in _KTAPS_FOR_PARITY[dr] for kw in _KTAPS_FOR_PARITY[dc]]
            wd_groups.append(jnp.concatenate(taps, axis=0))
    wd_g = jnp.stack(wd_groups, axis=0).astype(compute_dtype)               # (4, 4*Cin, Cinner)

    # up: output parity p = 2*r+s gathers taps (a,b) -> W[:, :, 3-r-2a, 3-s-2b] -> (4*Cinner, Cout)
    wu_groups = []
    for r in (0, 1):
        for s in (0, 1):
            taps = [wu[:, :, 3 - r - 2 * a, 3 - s - 2 * b]                   # (Cinner, Cout)
                    for a in (0, 1) for b in (0, 1)]
            wu_groups.append(jnp.concatenate(taps, axis=0))
    wu_g = jnp.stack(wu_groups, axis=0).astype(compute_dtype)               # (4, 4*Cinner, Cout)

    bd_r = bd.reshape(1, cinner).astype(jnp.float32)
    bu_r = bu.reshape(1, cout).astype(jnp.float32)

    # --- single-buffer the grid-invariant operands when supported ---
    single_buf = _single_buffered_weights_supported()

    def wspec(shape):
        idx = lambda b, _r=len(shape): (0,) * _r
        if single_buf:
            return pl.BlockSpec(shape, idx, pipeline_mode=pl.Buffered(buffer_count=1))
        return pl.BlockSpec(shape, idx)

    # --- scoped-VMEM limit sized to the actual working set (+50% margin, 32 MiB floor) ---
    isz = jnp.dtype(compute_dtype).itemsize
    wbuf = 1 if single_buf else 2
    working_set = (
        2 * 4 * hp * wp * cin * isz              # input block (double-buffered)
        + wbuf * 4 * (4 * cin) * cinner * isz    # grouped down-conv weights
        + wbuf * 4 * (4 * cinner) * cout * isz   # grouped up-conv weights
        + 2 * 4 * ho * wo * cout * isz           # output block (double-buffered)
        + hp * wp * cinner * isz                 # hpad scratch
        + ho * wo * 4 * (cin + cinner) * isz     # concat-operand temporaries
        + ho * wo * (cinner + 2 * cout) * 4      # f32 acc / yp temporaries
    )
    vmem_limit = int(min(max(int(working_set * 1.5) + (4 << 20), 32 << 20), 100 << 20))

    y_packed = pl.pallas_call(
        fused_unet_inner_kernel,
        out_shape=jax.ShapeDtypeStruct((n, 4, ho * wo, cout), compute_dtype),
        grid=(n,),
        in_specs=[
            pl.BlockSpec((1, 4, hp, wp, cin), lambda b: (b, 0, 0, 0, 0)),
            wspec((4, 4 * cin, cinner)),
            wspec((1, cinner)),
            wspec((4, 4 * cinner, cout)),
            wspec((1, cout)),
        ],
        out_specs=pl.BlockSpec((1, 4, ho * wo, cout), lambda b: (b, 0, 0, 0)),
        scratch_shapes=[pltpu.VMEM((hp, wp, cinner), compute_dtype)],
        compiler_params=pltpu.CompilerParams(
            dimension_semantics=("parallel",),
            vmem_limit_bytes=vmem_limit),
    )(xds, wd_g, bd_r, wu_g, bu_r)

    # --- depth-to-space: (N, [r,s], ho*wo, Cout) -> (N, Cout, H, W)  (cheap XLA glue) ---
    y = y_packed.reshape(n, 2, 2, ho, wo, cout)
    y = jnp.transpose(y, (0, 5, 3, 1, 4, 2)).reshape(n, cout, h, w).astype(x_nchw.dtype)

    # --- skip connection ---
    return jnp.concatenate([x_nchw, y], axis=1)                             # NCHW out


# ----------------------------------------------------------------------------
# Pure-JAX (XLA conv) reference for verification
# ----------------------------------------------------------------------------
def reference(x_nchw, wd, bd, wu, bu):
    xa = jnp.where(x_nchw > 0, x_nchw, 0.2 * x_nchw)
    hconv = lax.conv_general_dilated(
        xa, wd, window_strides=(2, 2), padding=((1, 1), (1, 1)),
        dimension_numbers=("NCHW", "OIHW", "NCHW"),
        precision=lax.Precision.HIGHEST) + bd.reshape(1, -1, 1, 1)
    hconv = jnp.maximum(hconv, 0.0)
    wu_conv = jnp.transpose(wu, (1, 0, 2, 3))[:, :, ::-1, ::-1]
    y = lax.conv_general_dilated(
        hconv, wu_conv, window_strides=(1, 1), padding=((2, 2), (2, 2)),
        lhs_dilation=(2, 2), dimension_numbers=("NCHW", "OIHW", "NCHW"),
        precision=lax.Precision.HIGHEST) + bu.reshape(1, -1, 1, 1)
    mean = jnp.mean(y, axis=(2, 3), keepdims=True)
    var = jnp.mean((y - mean) ** 2, axis=(2, 3), keepdims=True)
    y = (y - mean) * lax.rsqrt(var + EPS)
    return jnp.concatenate([x_nchw, y], axis=1)


# ----------------------------------------------------------------------------
if __name__ == "__main__":
    def init_params(key, cin, cinner, cout):
        k1, k2, k3, k4 = jax.random.split(key, 4)
        bound_d = 1.0 / (cin * K * K) ** 0.5
        wd = jax.random.uniform(k1, (cinner, cin, K, K), jnp.float32, -bound_d, bound_d)
        bd = jax.random.uniform(k2, (cinner,), jnp.float32, -bound_d, bound_d)
        bound_u = 1.0 / (cinner * K * K) ** 0.5
        wu = jax.random.uniform(k3, (cinner, cout, K, K), jnp.float32, -bound_u, bound_u)
        bu = jax.random.uniform(k4, (cout,), jnp.float32, -bound_u, bound_u)
        return wd, bd, wu, bu

    # Resolve (and cache) the single-buffering capability before tracing the real kernels.
    _single_buffered_weights_supported()

    run_f32 = jax.jit(functools.partial(unet_innermost_block, compute_dtype=jnp.float32))
    run_bf16 = jax.jit(functools.partial(unet_innermost_block, compute_dtype=jnp.bfloat16))

    key = jax.random.PRNGKey(0)

    # ---- toy shapes (lane-masked, per-tap dot path): exactness + loose bf16 sanity ----
    N, CIN, CINNER, COUT, H, W = 2, 4, 8, 4, 16, 16
    kx, kp = jax.random.split(key)
    x = jax.random.normal(kx, (N, CIN, H, W), jnp.float32)
    wd, bd, wu, bu = init_params(kp, CIN, CINNER, COUT)
    ref = reference(x, wd, bd, wu, bu)

    out = jax.block_until_ready(run_f32(x, wd, bd, wu, bu))
    assert out.shape == (N, CIN + COUT, H, W), out.shape
    assert jnp.allclose(out, ref, atol=1e-4, rtol=1e-4), float(jnp.max(jnp.abs(out - ref)))

    out = jax.block_until_ready(run_bf16(x, wd, bd, wu, bu))
    assert out.shape == (N, CIN + COUT, H, W), out.shape
    assert jnp.allclose(out, ref, atol=1e-1, rtol=1e-1), float(jnp.max(jnp.abs(out - ref)))

    # ---- realistic channel counts (lane-dense, fused-K path; still small spatial) ----
    N, CIN, CINNER, COUT, H, W = 2, 128, 256, 128, 16, 16
    kx, kp = jax.random.split(kp)
    x = jax.random.normal(kx, (N, CIN, H, W), jnp.float32)
    wd, bd, wu, bu = init_params(kp, CIN, CINNER, COUT)
    ref = reference(x, wd, bd, wu, bu)

    out = jax.block_until_ready(run_f32(x, wd, bd, wu, bu))
    assert out.shape == (N, CIN + COUT, H, W), out.shape
    assert jnp.allclose(out, ref, atol=2e-3, rtol=2e-3), float(jnp.max(jnp.abs(out - ref)))

    # bf16-operand / bf16-output perf path: loose check (bf16 rounding dominates the diff).
    out = jax.block_until_ready(run_bf16(x, wd, bd, wu, bu))
    assert out.shape == (N, CIN + COUT, H, W), out.shape
    assert jnp.allclose(out, ref, atol=2e-1, rtol=2e-1), float(jnp.max(jnp.abs(out - ref)))

    print("KERNEL_OK")
</pallas_src>

<mosaic_0001>
module attributes {stable_mosaic.version = 11 : i64} {
  func.func @_k(%arg0: i32, %arg1: memref<1x8x128xf32, #tpu.memory_space<vmem>>, %arg2: memref<1x8x128xf32, #tpu.memory_space<vmem>>, %arg3: memref<1x8x128xf32, #tpu.memory_space<vmem>>) attributes {dimension_semantics = [#tpu.dimension_semantics<arbitrary>], iteration_bounds = array<i64: 2>, scalar_prefetch = 0 : i64, scratch_operands = 0 : i64, tpu.core_type = #tpu.core_type<tc>, window_params = [{transform_indices = @transform_0, window_bounds = array<i64: 1, 8, 128>}, {pipeline_mode = #tpu.pipeline_mode<synchronous>, transform_indices = @transform_1, window_bounds = array<i64: 1, 8, 128>}, {transform_indices = @transform_2, window_bounds = array<i64: 1, 8, 128>}]} {
    %c0 = arith.constant 0 : index
    %c0_0 = arith.constant 0 : index
    %c0_1 = arith.constant 0 : index
    %0 = vector.load %arg1[%c0, %c0_0, %c0_1] : memref<1x8x128xf32, #tpu.memory_space<vmem>>, vector<1x8x128xf32>
    %c0_2 = arith.constant 0 : index
    %c0_3 = arith.constant 0 : index
    %c0_4 = arith.constant 0 : index
    %1 = vector.load %arg2[%c0_2, %c0_3, %c0_4] : memref<1x8x128xf32, #tpu.memory_space<vmem>>, vector<1x8x128xf32>
    %2 = arith.addf %0, %1 : vector<1x8x128xf32>
    %c0_5 = arith.constant 0 : index
    %c0_6 = arith.constant 0 : index
    %c0_7 = arith.constant 0 : index
    %3 = vector.load %arg3[%c0_5, %c0_6, %c0_7] : memref<1x8x128xf32, #tpu.memory_space<vmem>>, vector<1x8x128xf32>
    tpu.vector_store %arg3[%c0_5, %c0_6, %c0_7], %2 {strides = array<i32>} : memref<1x8x128xf32, #tpu.memory_space<vmem>>, vector<1x8x128xf32>,
    return
  }
  func.func @transform_0(%arg0: i32) -> (i32, i32, i32) {
    %c0_i32 = arith.constant 0 : i32
    %c0_i32_0 = arith.constant 0 : i32
    %c0_i32_1 = arith.constant 0 : i32
    return %arg0, %c0_i32, %c0_i32_0 : i32, i32, i32
  }
  func.func @transform_1(%arg0: i32) -> (i32, i32, i32) {
    %c0_i32 = arith.constant 0 : i32
    %c0_i32_0 = arith.constant 0 : i32
    %c0_i32_1 = arith.constant 0 : i32
    %c0_i32_2 = arith.constant 0 : i32
    return %c0_i32, %c0_i32_0, %c0_i32_1 : i32, i32, i32
  }
  func.func @transform_2(%arg0: i32) -> (i32, i32, i32) {
    %c0_i32 = arith.constant 0 : i32
    %c0_i32_0 = arith.constant 0 : i32
    %c0_i32_1 = arith.constant 0 : i32
    return %arg0, %c0_i32, %c0_i32_0 : i32, i32, i32
  }
}

module attributes {stable_mosaic.version = 11 : i64} {
  func.func @fused_unet_inner_kernel(%arg0: i32, %arg1: memref<1x4x10x10x4xf32, #tpu.memory_space<vmem>>, %arg2: memref<4x16x8xf32, #tpu.memory_space<vmem>>, %arg3: memref<1x8xf32, #tpu.memory_space<vmem>>, %arg4: memref<4x32x4xf32, #tpu.memory_space<vmem>>, %arg5: memref<1x4xf32, #tpu.memory_space<vmem>>, %arg6: memref<1x4x64x4xf32, #tpu.memory_space<vmem>>, %arg7: memref<10x10x8xf32, #tpu.memory_space<vmem>>) attributes {dimension_semantics = [#tpu.dimension_semantics<parallel>], iteration_bounds = array<i64: 2>, scalar_prefetch = 0 : i64, scratch_operands = 1 : i64, tpu.core_type = #tpu.core_type<tc>, window_params = [{transform_indices = @transform_0, window_bounds = array<i64: 1, 4, 10, 10, 4>}, {pipeline_mode = #tpu.pipeline_mode<synchronous>, transform_indices = @transform_1, window_bounds = array<i64: 4, 16, 8>}, {pipeline_mode = #tpu.pipeline_mode<synchronous>, transform_indices = @transform_2, window_bounds = array<i64: 1, 8>}, {pipeline_mode = #tpu.pipeline_mode<synchronous>, transform_indices = @transform_3, window_bounds = array<i64: 4, 32, 4>}, {pipeline_mode = #tpu.pipeline_mode<synchronous>, transform_indices = @transform_4, window_bounds = array<i64: 1, 4>}, {transform_indices = @transform_5, window_bounds = array<i64: 1, 4, 64, 4>}]} {
    %cst = arith.constant 0.000000e+00 : f32
    %0 = vector.broadcast %cst : f32 to vector<64x8xf32>
    %c0 = arith.constant 0 : index
    %c0_0 = arith.constant 0 : index
    %c0_1 = arith.constant 0 : index
    %c0_2 = arith.constant 0 : index
    %c0_3 = arith.constant 0 : index
    %1 = vector.load %arg1[%c0, %c0_0, %c0_1, %c0_2, %c0_3] : memref<1x4x10x10x4xf32, #tpu.memory_space<vmem>>, vector<1x1x10x10x4xf32>
    %2 = vector.shape_cast %1 : vector<1x1x10x10x4xf32> to vector<10x10x4xf32>
    %cst_4 = arith.constant 0.000000e+00 : f32
    %3 = vector.broadcast %cst_4 : f32 to vector<10x10x4xf32>
    %4 = arith.cmpf ogt, %2, %3 : vector<10x10x4xf32>
    %cst_5 = arith.constant 2.000000e-01 : f32
    %5 = vector.broadcast %cst_5 : f32 to vector<10x10x4xf32>
    %6 = arith.mulf %5, %2 : vector<10x10x4xf32>
    %7 = arith.select %4, %2, %6 : vector<10x10x4xi1>, vector<10x10x4xf32>
    %8 = vector.extract_strided_slice %7 {offsets = [1, 1, 0], sizes = [8, 8, 4], strides = [1, 1, 1]} : vector<10x10x4xf32> to vector<8x8x4xf32>
    %9 = vector.extract_strided_slice %7 {offsets = [1, 2, 0], sizes = [8, 8, 4], strides = [1, 1, 1]} : vector<10x10x4xf32> to vector<8x8x4xf32>
    %10 = vector.extract_strided_slice %7 {offsets = [2, 1, 0], sizes = [8, 8, 4], strides = [1, 1, 1]} : vector<10x10x4xf32> to vector<8x8x4xf32>
    %11 = vector.extract_strided_slice %7 {offsets = [2, 2, 0], sizes = [8, 8, 4], strides = [1, 1, 1]} : vector<10x10x4xf32> to vector<8x8x4xf32>
    %c0_6 = arith.constant 0 : index
    %c0_7 = arith.constant 0 : index
    %c0_8 = arith.constant 0 : index
    %12 = vector.load %arg2[%c0_6, %c0_7, %c0_8] : memref<4x16x8xf32, #tpu.memory_space<vmem>>, vector<1x16x8xf32>
    %13 = vector.shape_cast %12 : vector<1x16x8xf32> to vector<16x8xf32>
    %14 = vector.shape_cast %8 : vector<8x8x4xf32> to vector<64x4xf32>
    %15 = vector.extract_strided_slice %13 {offsets = [0, 0], sizes = [4, 8], strides = [1, 1]} : vector<16x8xf32> to vector<4x8xf32>
    %cst_9 = arith.constant dense<0.000000e+00> : vector<64x8xf32>
    %16 = tpu.matmul %14, %15, %cst_9 {dimension_numbers = #tpu.dot_dimension_numbers<[1], [0], [0], [1], [0, 0, 1, 1], [], []>} : vector<64x4xf32>, vector<4x8xf32>, vector<64x8xf32> -> vector<64x8xf32>
    %17 = arith.addf %0, %16 : vector<64x8xf32>
    %18 = vector.shape_cast %9 : vector<8x8x4xf32> to vector<64x4xf32>
    %19 = vector.extract_strided_slice %13 {offsets = [4, 0], sizes = [4, 8], strides = [1, 1]} : vector<16x8xf32> to vector<4x8xf32>
    %cst_10 = arith.constant dense<0.000000e+00> : vector<64x8xf32>
    %20 = tpu.matmul %18, %19, %cst_10 {dimension_numbers = #tpu.dot_dimension_numbers<[1], [0], [0], [1], [0, 0, 1, 1], [], []>} : vector<64x4xf32>, vector<4x8xf32>, vector<64x8xf32> -> vector<64x8xf32>
    %21 = arith.addf %17, %20 : vector<64x8xf32>
    %22 = vector.shape_cast %10 : vector<8x8x4xf32> to vector<64x4xf32>
    %23 = vector.extract_strided_slice %13 {offsets = [8, 0], sizes = [4, 8], strides = [1, 1]} : vector<16x8xf32> to vector<4x8xf32>
    %cst_11 = arith.constant dense<0.000000e+00> : vector<64x8xf32>
    %24 = tpu.matmul %22, %23, %cst_11 {dimension_numbers = #tpu.dot_dimension_numbers<[1], [0], [0], [1], [0, 0, 1, 1], [], []>} : vector<64x4xf32>, vector<4x8xf32>, vector<64x8xf32> -> vector<64x8xf32>
    %25 = arith.addf %21, %24 : vector<64x8xf32>
    %26 = vector.shape_cast %11 : vector<8x8x4xf32> to vector<64x4xf32>
    %27 = vector.extract_strided_slice %13 {offsets = [12, 0], sizes = [4, 8], strides = [1, 1]} : vector<16x8xf32> to vector<4x8xf32>
    %cst_12 = arith.constant dense<0.000000e+00> : vector<64x8xf32>
    %28 = tpu.matmul %26, %27, %cst_12 {dimension_numbers = #tpu.dot_dimension_numbers<[1], [0], [0], [1], [0, 0, 1, 1], [], []>} : vector<64x4xf32>, vector<4x8xf32>, vector<64x8xf32> -> vector<64x8xf32>
    %29 = arith.addf %25, %28 : vector<64x8xf32>
    %c0_13 = arith.constant 0 : index
    %c1 = arith.constant 1 : index
    %c0_14 = arith.constant 0 : index
    %c0_15 = arith.constant 0 : index
    %c0_16 = arith.constant 0 : index
    %30 = vector.load %arg1[%c0_13, %c1, %c0_14, %c0_15, %c0_16] : memref<1x4x10x10x4xf32, #tpu.memory_space<vmem>>, vector<1x1x10x10x4xf32>
    %31 = vector.shape_cast %30 : vector<1x1x10x10x4xf32> to vector<10x10x4xf32>
    %cst_17 = arith.constant 0.000000e+00 : f32
    %32 = vector.broadcast %cst_17 : f32 to vector<10x10x4xf32>
    %33 = arith.cmpf ogt, %31, %32 : vector<10x10x4xf32>
    %cst_18 = arith.constant 2.000000e-01 : f32
    %34 = vector.broadcast %cst_18 : f32 to vector<10x10x4xf32>
    %35 = arith.mulf %34, %31 : vector<10x10x4xf32>
    %36 = arith.select %33, %31, %35 : vector<10x10x4xi1>, vector<10x10x4xf32>
    %37 = vector.extract_strided_slice %36 {offsets = [1, 0, 0], sizes = [8, 8, 4], strides = [1, 1, 1]} : vector<10x10x4xf32> to vector<8x8x4xf32>
    %38 = vector.extract_strided_slice %36 {offsets = [1, 1, 0], sizes = [8, 8, 4], strides = [1, 1, 1]} : vector<10x10x4xf32> to vector<8x8x4xf32>
    %39 = vector.extract_strided_slice %36 {offsets = [2, 0, 0], sizes = [8, 8, 4], strides = [1, 1, 1]} : vector<10x10x4xf32> to vector<8x8x4xf32>
    %40 = vector.extract_strided_slice %36 {offsets = [2, 1, 0], sizes = [8, 8, 4], strides = [1, 1, 1]} : vector<10x10x4xf32> to vector<8x8x4xf32>
    %c1_19 = arith.constant 1 : index
    %c0_20 = arith.constant 0 : index
    %c0_21 = arith.constant 0 : index
    %41 = vector.load %arg2[%c1_19, %c0_20, %c0_21] : memref<4x16x8xf32, #tpu.memory_space<vmem>>, vector<1x16x8xf32>
    %42 = vector.shape_cast %41 : vector<1x16x8xf32> to vector<16x8xf32>
    %43 = vector.shape_cast %37 : vector<8x8x4xf32> to vector<64x4xf32>
    %44 = vector.extract_strided_slice %42 {offsets = [0, 0], sizes = [4, 8], strides = [1, 1]} : vector<16x8xf32> to vector<4x8xf32>
    %cst_22 = arith.constant dense<0.000000e+00> : vector<64x8xf32>
    %45 = tpu.matmul %43, %44, %cst_22 {dimension_numbers = #tpu.dot_dimension_numbers<[1], [0], [0], [1], [0, 0, 1, 1], [], []>} : vector<64x4xf32>, vector<4x8xf32>, vector<64x8xf32> -> vector<64x8xf32>
    %46 = arith.addf %29, %45 : vector<64x8xf32>
    %47 = vector.shape_cast %38 : vector<8x8x4xf32> to vector<64x4xf32>
    %48 = vector.extract_strided_slice %42 {offsets = [4, 0], sizes = [4, 8], strides = [1, 1]} : vector<16x8xf32> to vector<4x8xf32>
    %cst_23 = arith.constant dense<0.000000e+00> : vector<64x8xf32>
    %49 = tpu.matmul %47, %48, %cst_23 {dimension_numbers = #tpu.dot_dimension_numbers<[1], [0], [0], [1], [0, 0, 1, 1], [], []>} : vector<64x4xf32>, vector<4x8xf32>, vector<64x8xf32> -> vector<64x8xf32>
    %50 = arith.addf %46, %49 : vector<64x8xf32>
    %51 = vector.shape_cast %39 : vector<8x8x4xf32> to vector<64x4xf32>
    %52 = vector.extract_strided_slice %42 {offsets = [8, 0], sizes = [4, 8], strides = [1, 1]} : vector<16x8xf32> to vector<4x8xf32>
    %cst_24 = arith.constant dense<0.000000e+00> : vector<64x8xf32>
    %53 = tpu.matmul %51, %52, %cst_24 {dimension_numbers = #tpu.dot_dimension_numbers<[1], [0], [0], [1], [0, 0, 1, 1], [], []>} : vector<64x4xf32>, vector<4x8xf32>, vector<64x8xf32> -> vector<64x8xf32>
    %54 = arith.addf %50, %53 : vector<64x8xf32>
    %55 = vector.shape_cast %40 : vector<8x8x4xf32> to vector<64x4xf32>
    %56 = vector.extract_strided_slice %42 {offsets = [12, 0], sizes = [4, 8], strides = [1, 1]} : vector<16x8xf32> to vector<4x8xf32>
    %cst_25 = arith.constant dense<0.000000e+00> : vector<64x8xf32>
    %57 = tpu.matmul %55, %56, %cst_25 {dimension_numbers = #tpu.dot_dimension_numbers<[1], [0], [0], [1], [0, 0, 1, 1], [], []>} : vector<64x4xf32>, vector<4x8xf32>, vector<64x8xf32> -> vector<64x8xf32>
    %58 = arith.addf %54, %57 : vector<64x8xf32>
    %c0_26 = arith.constant 0 : index
    %c2 = arith.constant 2 : index
    %c0_27 = arith.constant 0 : index
    %c0_28 = arith.constant 0 : index
    %c0_29 = arith.constant 0 : index
    %59 = vector.load %arg1[%c0_26, %c2, %c0_27, %c0_28, %c0_29] : memref<1x4x10x10x4xf32, #tpu.memory_space<vmem>>, vector<1x1x10x10x4xf32>
    %60 = vector.shape_cast %59 : vector<1x1x10x10x4xf32> to vector<10x10x4xf32>
    %cst_30 = arith.constant 0.000000e+00 : f32
    %61 = vector.broadcast %cst_30 : f32 to vector<10x10x4xf32>
    %62 = arith.cmpf ogt, %60, %61 : vector<10x10x4xf32>
    %cst_31 = arith.constant 2.000000e-01 : f32
    %63 = vector.broadcast %cst_31 : f32 to vector<10x10x4xf32>
    %64 = arith.mulf %63, %60 : vector<10x10x4xf32>
    %65 = arith.select %62, %60, %64 : vector<10x10x4xi1>, vector<10x10x4xf32>
    %66 = vector.extract_strided_slice %65 {offsets = [0, 1, 0], sizes = [8, 8, 4], strides = [1, 1, 1]} : vector<10x10x4xf32> to vector<8x8x4xf32>
    %67 = vector.extract_strided_slice %65 {offsets = [0, 2, 0], sizes = [8, 8, 4], strides = [1, 1, 1]} : vector<10x10x4xf32> to vector<8x8x4xf32>
    %68 = vector.extract_strided_slice %65 {offsets = [1, 1, 0], sizes = [8, 8, 4], strides = [1, 1, 1]} : vector<10x10x4xf32> to vector<8x8x4xf32>
    %69 = vector.extract_strided_slice %65 {offsets = [1, 2, 0], sizes = [8, 8, 4], strides = [1, 1, 1]} : vector<10x10x4xf32> to vector<8x8x4xf32>
    %c2_32 = arith.constant 2 : index
    %c0_33 = arith.constant 0 : index
    %c0_34 = arith.constant 0 : index
    %70 = vector.load %arg2[%c2_32, %c0_33, %c0_34] : memref<4x16x8xf32, #tpu.memory_space<vmem>>, vector<1x16x8xf32>
    %71 = vector.shape_cast %70 : vector<1x16x8xf32> to vector<16x8xf32>
    %72 = vector.shape_cast %66 : vector<8x8x4xf32> to vector<64x4xf32>
    %73 = vector.extract_strided_slice %71 {offsets = [0, 0], sizes = [4, 8], strides = [1, 1]} : vector<16x8xf32> to vector<4x8xf32>
    %cst_35 = arith.constant dense<0.000000e+00> : vector<64x8xf32>
    %74 = tpu.matmul %72, %73, %cst_35 {dimension_numbers = #tpu.dot_dimension_numbers<[1], [0], [0], [1], [0, 0, 1, 1], [], []>} : vector<64x4xf32>, vector<4x8xf32>, vector<64x8xf32> -> vector<64x8xf32>
    %75 = arith.addf %58, %74 : vector<64x8xf32>
    %76 = vector.shape_cast %67 : vector<8x8x4xf32> to vector<64x4xf32>
    %77 = vector.extract_strided_slice %71 {offsets = [4, 0], sizes = [4, 8], strides = [1, 1]} : vector<16x8xf32> to vector<4x8xf32>
    %cst_36 = arith.constant dense<0.000000e+00> : vector<64x8xf32>
    %78 = tpu.matmul %76, %77, %cst_36 {dimension_numbers = #tpu.dot_dimension_numbers<[1], [0], [0], [1], [0, 0, 1, 1], [], []>} : vector<64x4xf32>, vector<4x8xf32>, vector<64x8xf32> -> vector<64x8xf32>
    %79 = arith.addf %75, %78 : vector<64x8xf32>
    %80 = vector.shape_cast %68 : vector<8x8x4xf32> to vector<64x4xf32>
    %81 = vector.extract_strided_slice %71 {offsets = [8, 0], sizes = [4, 8], strides = [1, 1]} : vector<16x8xf32> to vector<4x8xf32>
    %cst_37 = arith.constant dense<0.000000e+00> : vector<64x8xf32>
    %82 = tpu.matmul %80, %81, %cst_37 {dimension_numbers = #tpu.dot_dimension_numbers<[1], [0], [0], [1], [0, 0, 1, 1], [], []>} : vector<64x4xf32>, vector<4x8xf32>, vector<64x8xf32> -> vector<64x8xf32>
    %83 = arith.addf %79, %82 : vector<64x8xf32>
    %84 = vector.shape_cast %69 : vector<8x8x4xf32> to vector<64x4xf32>
    %85 = vector.extract_strided_slice %71 {offsets = [12, 0], sizes = [4, 8], strides = [1, 1]} : vector<16x8xf32> to vector<4x8xf32>
    %cst_38 = arith.constant dense<0.000000e+00> : vector<64x8xf32>
    %86 = tpu.matmul %84, %85, %cst_38 {dimension_numbers = #tpu.dot_dimension_numbers<[1], [0], [0], [1], [0, 0, 1, 1], [], []>} : vector<64x4xf32>, vector<4x8xf32>, vector<64x8xf32> -> vector<64x8xf32>
    %87 = arith.addf %83, %86 : vector<64x8xf32>
    %c0_39 = arith.constant 0 : index
    %c3 = arith.constant 3 : index
    %c0_40 = arith.constant 0 : index
    %c0_41 = arith.constant 0 : index
    %c0_42 = arith.constant 0 : index
    %88 = vector.load %arg1[%c0_39, %c3, %c0_40, %c0_41, %c0_42] : memref<1x4x10x10x4xf32, #tpu.memory_space<vmem>>, vector<1x1x10x10x4xf32>
    %89 = vector.shape_cast %88 : vector<1x1x10x10x4xf32> to vector<10x10x4xf32>
    %cst_43 = arith.constant 0.000000e+00 : f32
    %90 = vector.broadcast %cst_43 : f32 to vector<10x10x4xf32>
    %91 = arith.cmpf ogt, %89, %90 : vector<10x10x4xf32>
    %cst_44 = arith.constant 2.000000e-01 : f32
    %92 = vector.broadcast %cst_44 : f32 to vector<10x10x4xf32>
    %93 = arith.mulf %92, %89 : vector<10x10x4xf32>
    %94 = arith.select %91, %89, %93 : vector<10x10x4xi1>, vector<10x10x4xf32>
    %95 = vector.extract_strided_slice %94 {offsets = [0, 0, 0], sizes = [8, 8, 4], strides = [1, 1, 1]} : vector<10x10x4xf32> to vector<8x8x4xf32>
    %96 = vector.extract_strided_slice %94 {offsets = [0, 1, 0], sizes = [8, 8, 4], strides = [1, 1, 1]} : vector<10x10x4xf32> to vector<8x8x4xf32>
    %97 = vector.extract_strided_slice %94 {offsets = [1, 0, 0], sizes = [8, 8, 4], strides = [1, 1, 1]} : vector<10x10x4xf32> to vector<8x8x4xf32>
    %98 = vector.extract_strided_slice %94 {offsets = [1, 1, 0], sizes = [8, 8, 4], strides = [1, 1, 1]} : vector<10x10x4xf32> to vector<8x8x4xf32>
    %c3_45 = arith.constant 3 : index
    %c0_46 = arith.constant 0 : index
    %c0_47 = arith.constant 0 : index
    %99 = vector.load %arg2[%c3_45, %c0_46, %c0_47] : memref<4x16x8xf32, #tpu.memory_space<vmem>>, vector<1x16x8xf32>
    %100 = vector.shape_cast %99 : vector<1x16x8xf32> to vector<16x8xf32>
    %101 = vector.shape_cast %95 : vector<8x8x4xf32> to vector<64x4xf32>
    %102 = vector.extract_strided_slice %100 {offsets = [0, 0], sizes = [4, 8], strides = [1, 1]} : vector<16x8xf32> to vector<4x8xf32>
    %cst_48 = arith.constant dense<0.000000e+00> : vector<64x8xf32>
    %103 = tpu.matmul %101, %102, %cst_48 {dimension_numbers = #tpu.dot_dimension_numbers<[1], [0], [0], [1], [0, 0, 1, 1], [], []>} : vector<64x4xf32>, vector<4x8xf32>, vector<64x8xf32> -> vector<64x8xf32>
    %104 = arith.addf %87, %103 : vector<64x8xf32>
    %105 = vector.shape_cast %96 : vector<8x8x4xf32> to vector<64x4xf32>
    %106 = vector.extract_strided_slice %100 {offsets = [4, 0], sizes = [4, 8], strides = [1, 1]} : vector<16x8xf32> to vector<4x8xf32>
    %cst_49 = arith.constant dense<0.000000e+00> : vector<64x8xf32>
    %107 = tpu.matmul %105, %106, %cst_49 {dimension_numbers = #tpu.dot_dimension_numbers<[1], [0], [0], [1], [0, 0, 1, 1], [], []>} : vector<64x4xf32>, vector<4x8xf32>, vector<64x8xf32> -> vector<64x8xf32>
    %108 = arith.addf %104, %107 : vector<64x8xf32>
    %109 = vector.shape_cast %97 : vector<8x8x4xf32> to vector<64x4xf32>
    %110 = vector.extract_strided_slice %100 {offsets = [8, 0], sizes = [4, 8], strides = [1, 1]} : vector<16x8xf32> to vector<4x8xf32>
    %cst_50 = arith.constant dense<0.000000e+00> : vector<64x8xf32>
    %111 = tpu.matmul %109, %110, %cst_50 {dimension_numbers = #tpu.dot_dimension_numbers<[1], [0], [0], [1], [0, 0, 1, 1], [], []>} : vector<64x4xf32>, vector<4x8xf32>, vector<64x8xf32> -> vector<64x8xf32>
    %112 = arith.addf %108, %111 : vector<64x8xf32>
    %113 = vector.shape_cast %98 : vector<8x8x4xf32> to vector<64x4xf32>
    %114 = vector.extract_strided_slice %100 {offsets = [12, 0], sizes = [4, 8], strides = [1, 1]} : vector<16x8xf32> to vector<4x8xf32>
    %cst_51 = arith.constant dense<0.000000e+00> : vector<64x8xf32>
    %115 = tpu.matmul %113, %114, %cst_51 {dimension_numbers = #tpu.dot_dimension_numbers<[1], [0], [0], [1], [0, 0, 1, 1], [], []>} : vector<64x4xf32>, vector<4x8xf32>, vector<64x8xf32> -> vector<64x8xf32>
    %116 = arith.addf %112, %115 : vector<64x8xf32>
    %c0_52 = arith.constant 0 : index
    %c0_53 = arith.constant 0 : index
    %117 = vector.load %arg3[%c0_52, %c0_53] : memref<1x8xf32, #tpu.memory_space<vmem>>, vector<1x8xf32>
    %118 = vector.broadcast %117 : vector<1x8xf32> to vector<64x8xf32>
    %119 = arith.addf %116, %118 : vector<64x8xf32>
    %cst_54 = arith.constant 0.000000e+00 : f32
    %120 = vector.broadcast %cst_54 : f32 to vector<64x8xf32>
    %121 = arith.maximumf %119, %120 : vector<64x8xf32>
    %cst_55 = arith.constant 0.000000e+00 : f32
    %122 = vector.broadcast %cst_55 : f32 to vector<1x10x8xf32>
    %cst_56 = arith.constant 0.000000e+00 : f32
    %123 = vector.broadcast %cst_56 : f32 to vector<10x1x8xf32>
    %c0_57 = arith.constant 0 : index
    %c0_58 = arith.constant 0 : index
    %c0_59 = arith.constant 0 : index
    %124 = vector.load %arg7[%c0_57, %c0_58, %c0_59] : memref<10x10x8xf32, #tpu.memory_space<vmem>>, vector<1x10x8xf32>
    tpu.vector_store %arg7[%c0_57, %c0_58, %c0_59], %122 {strides = array<i32>} : memref<10x10x8xf32, #tpu.memory_space<vmem>>, vector<1x10x8xf32>,
    %c9 = arith.constant 9 : index
    %c0_60 = arith.constant 0 : index
    %c0_61 = arith.constant 0 : index
    %125 = vector.load %arg7[%c9, %c0_60, %c0_61] : memref<10x10x8xf32, #tpu.memory_space<vmem>>, vector<1x10x8xf32>
    tpu.vector_store %arg7[%c9, %c0_60, %c0_61], %122 {strides = array<i32>} : memref<10x10x8xf32, #tpu.memory_space<vmem>>, vector<1x10x8xf32>,
    %c0_62 = arith.constant 0 : index
    %c0_63 = arith.constant 0 : index
    %c0_64 = arith.constant 0 : index
    %126 = vector.load %arg7[%c0_62, %c0_63, %c0_64] : memref<10x10x8xf32, #tpu.memory_space<vmem>>, vector<10x1x8xf32>
    tpu.vector_store %arg7[%c0_62, %c0_63, %c0_64], %123 {strides = array<i32>} : memref<10x10x8xf32, #tpu.memory_space<vmem>>, vector<10x1x8xf32>,
    %c0_65 = arith.constant 0 : index
    %c9_66 = arith.constant 9 : index
    %c0_67 = arith.constant 0 : index
    %127 = vector.load %arg7[%c0_65, %c9_66, %c0_67] : memref<10x10x8xf32, #tpu.memory_space<vmem>>, vector<10x1x8xf32>
    tpu.vector_store %arg7[%c0_65, %c9_66, %c0_67], %123 {strides = array<i32>} : memref<10x10x8xf32, #tpu.memory_space<vmem>>, vector<10x1x8xf32>,
    %128 = vector.shape_cast %121 : vector<64x8xf32> to vector<8x8x8xf32>
    %c1_68 = arith.constant 1 : index
    %c1_69 = arith.constant 1 : index
    %c0_70 = arith.constant 0 : index
    %129 = vector.load %arg7[%c1_68, %c1_69, %c0_70] : memref<10x10x8xf32, #tpu.memory_space<vmem>>, vector<8x8x8xf32>
    tpu.vector_store %arg7[%c1_68, %c1_69, %c0_70], %128 {strides = array<i32>} : memref<10x10x8xf32, #tpu.memory_space<vmem>>, vector<8x8x8xf32>,
    %c0_71 = arith.constant 0 : index
    %c0_72 = arith.constant 0 : index
    %130 = vector.load %arg5[%c0_71, %c0_72] : memref<1x4xf32, #tpu.memory_space<vmem>>, vector<1x4xf32>
    %cst_73 = arith.constant 0.000000e+00 : f32
    %131 = vector.broadcast %cst_73 : f32 to vector<1x4xf32>
    %cst_74 = arith.constant 0.000000e+00 : f32
    %132 = vector.broadcast %cst_74 : f32 to vector<1x4xf32>
    %c0_75 = arith.constant 0 : index
    %c0_76 = arith.constant 0 : index
    %c0_77 = arith.constant 0 : index
    %133 = vector.load %arg7[%c0_75, %c0_76, %c0_77] : memref<10x10x8xf32, #tpu.memory_space<vmem>>, vector<8x8x8xf32>
    %c0_78 = arith.constant 0 : index
    %c1_79 = arith.constant 1 : index
    %c0_80 = arith.constant 0 : index
    %134 = vector.load %arg7[%c0_78, %c1_79, %c0_80] : memref<10x10x8xf32, #tpu.memory_space<vmem>>, vector<8x8x8xf32>
    %c1_81 = arith.constant 1 : index
    %c0_82 = arith.constant 0 : index
    %c0_83 = arith.constant 0 : index
    %135 = vector.load %arg7[%c1_81, %c0_82, %c0_83] : memref<10x10x8xf32, #tpu.memory_space<vmem>>, vector<8x8x8xf32>
    %c1_84 = arith.constant 1 : index
    %c1_85 = arith.constant 1 : index
    %c0_86 = arith.constant 0 : index
    %136 = vector.load %arg7[%c1_84, %c1_85, %c0_86] : memref<10x10x8xf32, #tpu.memory_space<vmem>>, vector<8x8x8xf32>
    %c0_87 = arith.constant 0 : index
    %c0_88 = arith.constant 0 : index
    %c0_89 = arith.constant 0 : index
    %137 = vector.load %arg4[%c0_87, %c0_88, %c0_89] : memref<4x32x4xf32, #tpu.memory_space<vmem>>, vector<1x32x4xf32>
    %138 = vector.shape_cast %137 : vector<1x32x4xf32> to vector<32x4xf32>
    %cst_90 = arith.constant 0.000000e+00 : f32
    %139 = vector.broadcast %cst_90 : f32 to vector<64x4xf32>
    %140 = vector.shape_cast %133 : vector<8x8x8xf32> to vector<64x8xf32>
    %141 = vector.extract_strided_slice %138 {offsets = [0, 0], sizes = [8, 4], strides = [1, 1]} : vector<32x4xf32> to vector<8x4xf32>
    %cst_91 = arith.constant dense<0.000000e+00> : vector<64x4xf32>
    %142 = tpu.matmul %140, %141, %cst_91 {dimension_numbers = #tpu.dot_dimension_numbers<[1], [0], [0], [1], [0, 0, 1, 1], [], []>} : vector<64x8xf32>, vector<8x4xf32>, vector<64x4xf32> -> vector<64x4xf32>
    %143 = arith.addf %139, %142 : vector<64x4xf32>
    %144 = vector.shape_cast %134 : vector<8x8x8xf32> to vector<64x8xf32>
    %145 = vector.extract_strided_slice %138 {offsets = [8, 0], sizes = [8, 4], strides = [1, 1]} : vector<32x4xf32> to vector<8x4xf32>
    %cst_92 = arith.constant dense<0.000000e+00> : vector<64x4xf32>
    %146 = tpu.matmul %144, %145, %cst_92 {dimension_numbers = #tpu.dot_dimension_numbers<[1], [0], [0], [1], [0, 0, 1, 1], [], []>} : vector<64x8xf32>, vector<8x4xf32>, vector<64x4xf32> -> vector<64x4xf32>
    %147 = arith.addf %143, %146 : vector<64x4xf32>
    %148 = vector.shape_cast %135 : vector<8x8x8xf32> to vector<64x8xf32>
    %149 = vector.extract_strided_slice %138 {offsets = [16, 0], sizes = [8, 4], strides = [1, 1]} : vector<32x4xf32> to vector<8x4xf32>
    %cst_93 = arith.constant dense<0.000000e+00> : vector<64x4xf32>
    %150 = tpu.matmul %148, %149, %cst_93 {dimension_numbers = #tpu.dot_dimension_numbers<[1], [0], [0], [1], [0, 0, 1, 1], [], []>} : vector<64x8xf32>, vector<8x4xf32>, vector<64x4xf32> -> vector<64x4xf32>
    %151 = arith.addf %147, %150 : vector<64x4xf32>
    %152 = vector.shape_cast %136 : vector<8x8x8xf32> to vector<64x8xf32>
    %153 = vector.extract_strided_slice %138 {offsets = [24, 0], sizes = [8, 4], strides = [1, 1]} : vector<32x4xf32> to vector<8x4xf32>
    %cst_94 = arith.constant dense<0.000000e+00> : vector<64x4xf32>
    %154 = tpu.matmul %152, %153, %cst_94 {dimension_numbers = #tpu.dot_dimension_numbers<[1], [0], [0], [1], [0, 0, 1, 1], [], []>} : vector<64x8xf32>, vector<8x4xf32>, vector<64x4xf32> -> vector<64x4xf32>
    %155 = arith.addf %151, %154 : vector<64x4xf32>
    %156 = vector.broadcast %130 : vector<1x4xf32> to vector<64x4xf32>
    %157 = arith.addf %155, %156 : vector<64x4xf32>
    %cst_95 = arith.constant dense<0.000000e+00> : vector<4xf32>
    %158 = vector.multi_reduction <add>, %157, %cst_95 [0] : vector<64x4xf32> to vector<4xf32>
    %159 = vector.shape_cast %158 : vector<4xf32> to vector<1x4xf32>
    %160 = arith.addf %131, %159 : vector<1x4xf32>
    %161 = arith.mulf %157, %157 : vector<64x4xf32>
    %cst_96 = arith.constant dense<0.000000e+00> : vector<4xf32>
    %162 = vector.multi_reduction <add>, %161, %cst_96 [0] : vector<64x4xf32> to vector<4xf32>
    %163 = vector.shape_cast %162 : vector<4xf32> to vector<1x4xf32>
    %164 = arith.addf %132, %163 : vector<1x4xf32>
    %c0_97 = arith.constant 0 : index
    %c0_98 = arith.constant 0 : index
    %c0_99 = arith.constant 0 : index
    %c0_100 = arith.constant 0 : index
    %165 = vector.load %arg6[%c0_97, %c0_98, %c0_99, %c0_100] : memref<1x4x64x4xf32, #tpu.memory_space<vmem>>, vector<1x1x64x4xf32>
    %166 = vector.shape_cast %165 : vector<1x1x64x4xf32> to vector<64x4xf32>
    %167 = vector.shape_cast %157 : vector<64x4xf32> to vector<1x1x64x4xf32>
    tpu.vector_store %arg6[%c0_97, %c0_98, %c0_99, %c0_100], %167 {strides = array<i32>} : memref<1x4x64x4xf32, #tpu.memory_space<vmem>>, vector<1x1x64x4xf32>,
    %c0_101 = arith.constant 0 : index
    %c1_102 = arith.constant 1 : index
    %c0_103 = arith.constant 0 : index
    %168 = vector.load %arg7[%c0_101, %c1_102, %c0_103] : memref<10x10x8xf32, #tpu.memory_space<vmem>>, vector<8x8x8xf32>
    %c0_104 = arith.constant 0 : index
    %c2_105 = arith.constant 2 : index
    %c0_106 = arith.constant 0 : index
    %169 = vector.load %arg7[%c0_104, %c2_105, %c0_106] : memref<10x10x8xf32, #tpu.memory_space<vmem>>, vector<8x8x8xf32>
    %c1_107 = arith.constant 1 : index
    %c1_108 = arith.constant 1 : index
    %c0_109 = arith.constant 0 : index
    %170 = vector.load %arg7[%c1_107, %c1_108, %c0_109] : memref<10x10x8xf32, #tpu.memory_space<vmem>>, vector<8x8x8xf32>
    %c1_110 = arith.constant 1 : index
    %c2_111 = arith.constant 2 : index
    %c0_112 = arith.constant 0 : index
    %171 = vector.load %arg7[%c1_110, %c2_111, %c0_112] : memref<10x10x8xf32, #tpu.memory_space<vmem>>, vector<8x8x8xf32>
    %c1_113 = arith.constant 1 : index
    %c0_114 = arith.constant 0 : index
    %c0_115 = arith.constant 0 : index
    %172 = vector.load %arg4[%c1_113, %c0_114, %c0_115] : memref<4x32x4xf32, #tpu.memory_space<vmem>>, vector<1x32x4xf32>
    %173 = vector.shape_cast %172 : vector<1x32x4xf32> to vector<32x4xf32>
    %cst_116 = arith.constant 0.000000e+00 : f32
    %174 = vector.broadcast %cst_116 : f32 to vector<64x4xf32>
    %175 = vector.shape_cast %168 : vector<8x8x8xf32> to vector<64x8xf32>
    %176 = vector.extract_strided_slice %173 {offsets = [0, 0], sizes = [8, 4], strides = [1, 1]} : vector<32x4xf32> to vector<8x4xf32>
    %cst_117 = arith.constant dense<0.000000e+00> : vector<64x4xf32>
    %177 = tpu.matmul %175, %176, %cst_117 {dimension_numbers = #tpu.dot_dimension_numbers<[1], [0], [0], [1], [0, 0, 1, 1], [], []>} : vector<64x8xf32>, vector<8x4xf32>, vector<64x4xf32> -> vector<64x4xf32>
    %178 = arith.addf %174, %177 : vector<64x4xf32>
    %179 = vector.shape_cast %169 : vector<8x8x8xf32> to vector<64x8xf32>
    %180 = vector.extract_strided_slice %173 {offsets = [8, 0], sizes = [8, 4], strides = [1, 1]} : vector<32x4xf32> to vector<8x4xf32>
    %cst_118 = arith.constant dense<0.000000e+00> : vector<64x4xf32>
    %181 = tpu.matmul %179, %180, %cst_118 {dimension_numbers = #tpu.dot_dimension_numbers<[1], [0], [0], [1], [0, 0, 1, 1], [], []>} : vector<64x8xf32>, vector<8x4xf32>, vector<64x4xf32> -> vector<64x4xf32>
    %182 = arith.addf %178, %181 : vector<64x4xf32>
    %183 = vector.shape_cast %170 : vector<8x8x8xf32> to vector<64x8xf32>
    %184 = vector.extract_strided_slice %173 {offsets = [16, 0], sizes = [8, 4], strides = [1, 1]} : vector<32x4xf32> to vector<8x4xf32>
    %cst_119 = arith.constant dense<0.000000e+00> : vector<64x4xf32>
    %185 = tpu.matmul %183, %184, %cst_119 {dimension_numbers = #tpu.dot_dimension_numbers<[1], [0], [0], [1], [0, 0, 1, 1], [], []>} : vector<64x8xf32>, vector<8x4xf32>, vector<64x4xf32> -> vector<64x4xf32>
    %186 = arith.addf %182, %185 : vector<64x4xf32>
    %187 = vector.shape_cast %171 : vector<8x8x8xf32> to vector<64x8xf32>
    %188 = vector.extract_strided_slice %173 {offsets = [24, 0], sizes = [8, 4], strides = [1, 1]} : vector<32x4xf32> to vector<8x4xf32>
    %cst_120 = arith.constant dense<0.000000e+00> : vector<64x4xf32>
    %189 = tpu.matmul %187, %188, %cst_120 {dimension_numbers = #tpu.dot_dimension_numbers<[1], [0], [0], [1], [0, 0, 1, 1], [], []>} : vector<64x8xf32>, vector<8x4xf32>, vector<64x4xf32> -> vector<64x4xf32>
    %190 = arith.addf %186, %189 : vector<64x4xf32>
    %191 = vector.broadcast %130 : vector<1x4xf32> to vector<64x4xf32>
    %192 = arith.addf %190, %191 : vector<64x4xf32>
    %cst_121 = arith.constant dense<0.000000e+00> : vector<4xf32>
    %193 = vector.multi_reduction <add>, %192, %cst_121 [0] : vector<64x4xf32> to vector<4xf32>
    %194 = vector.shape_cast %193 : vector<4xf32> to vector<1x4xf32>
    %195 = arith.addf %160, %194 : vector<1x4xf32>
    %196 = arith.mulf %192, %192 : vector<64x4xf32>
    %cst_122 = arith.constant dense<0.000000e+00> : vector<4xf32>
    %197 = vector.multi_reduction <add>, %196, %cst_122 [0] : vector<64x4xf32> to vector<4xf32>
    %198 = vector.shape_cast %197 : vector<4xf32> to vector<1x4xf32>
    %199 = arith.addf %164, %198 : vector<1x4xf32>
    %c0_123 = arith.constant 0 : index
    %c1_124 = arith.constant 1 : index
    %c0_125 = arith.constant 0 : index
    %c0_126 = arith.constant 0 : index
    %200 = vector.load %arg6[%c0_123, %c1_124, %c0_125, %c0_126] : memref<1x4x64x4xf32, #tpu.memory_space<vmem>>, vector<1x1x64x4xf32>
    %201 = vector.shape_cast %200 : vector<1x1x64x4xf32> to vector<64x4xf32>
    %202 = vector.shape_cast %192 : vector<64x4xf32> to vector<1x1x64x4xf32>
    tpu.vector_store %arg6[%c0_123, %c1_124, %c0_125, %c0_126], %202 {strides = array<i32>} : memref<1x4x64x4xf32, #tpu.memory_space<vmem>>, vector<1x1x64x4xf32>,
    %c1_127 = arith.constant 1 : index
    %c0_128 = arith.constant 0 : index
    %c0_129 = arith.constant 0 : index
    %203 = vector.load %arg7[%c1_127, %c0_128, %c0_129] : memref<10x10x8xf32, #tpu.memory_space<vmem>>, vector<8x8x8xf32>
    %c1_130 = arith.constant 1 : index
    %c1_131 = arith.constant 1 : index
    %c0_132 = arith.constant 0 : index
    %204 = vector.load %arg7[%c1_130, %c1_131, %c0_132] : memref<10x10x8xf32, #tpu.memory_space<vmem>>, vector<8x8x8xf32>
    %c2_133 = arith.constant 2 : index
    %c0_134 = arith.constant 0 : index
    %c0_135 = arith.constant 0 : index
    %205 = vector.load %arg7[%c2_133, %c0_134, %c0_135] : memref<10x10x8xf32, #tpu.memory_space<vmem>>, vector<8x8x8xf32>
    %c2_136 = arith.constant 2 : index
    %c1_137 = arith.constant 1 : index
    %c0_138 = arith.constant 0 : index
    %206 = vector.load %arg7[%c2_136, %c1_137, %c0_138] : memref<10x10x8xf32, #tpu.memory_space<vmem>>, vector<8x8x8xf32>
    %c2_139 = arith.constant 2 : index
    %c0_140 = arith.constant 0 : index
    %c0_141 = arith.constant 0 : index
    %207 = vector.load %arg4[%c2_139, %c0_140, %c0_141] : memref<4x32x4xf32, #tpu.memory_space<vmem>>, vector<1x32x4xf32>
    %208 = vector.shape_cast %207 : vector<1x32x4xf32> to vector<32x4xf32>
    %cst_142 = arith.constant 0.000000e+00 : f32
    %209 = vector.broadcast %cst_142 : f32 to vector<64x4xf32>
    %210 = vector.shape_cast %203 : vector<8x8x8xf32> to vector<64x8xf32>
    %211 = vector.extract_strided_slice %208 {offsets = [0, 0], sizes = [8, 4], strides = [1, 1]} : vector<32x4xf32> to vector<8x4xf32>
    %cst_143 = arith.constant dense<0.000000e+00> : vector<64x4xf32>
    %212 = tpu.matmul %210, %211, %cst_143 {dimension_numbers = #tpu.dot_dimension_numbers<[1], [0], [0], [1], [0, 0, 1, 1], [], []>} : vector<64x8xf32>, vector<8x4xf32>, vector<64x4xf32> -> vector<64x4xf32>
    %213 = arith.addf %209, %212 : vector<64x4xf32>
    %214 = vector.shape_cast %204 : vector<8x8x8xf32> to vector<64x8xf32>
    %215 = vector.extract_strided_slice %208 {offsets = [8, 0], sizes = [8, 4], strides = [1, 1]} : vector<32x4xf32> to vector<8x4xf32>
    %cst_144 = arith.constant dense<0.000000e+00> : vector<64x4xf32>
    %216 = tpu.matmul %214, %215, %cst_144 {dimension_numbers = #tpu.dot_dimension_numbers<[1], [0], [0], [1], [0, 0, 1, 1], [], []>} : vector<64x8xf32>, vector<8x4xf32>, vector<64x4xf32> -> vector<64x4xf32>
    %217 = arith.addf %213, %216 : vector<64x4xf32>
    %218 = vector.shape_cast %205 : vector<8x8x8xf32> to vector<64x8xf32>
    %219 = vector.extract_strided_slice %208 {offsets = [16, 0], sizes = [8, 4], strides = [1, 1]} : vector<32x4xf32> to vector<8x4xf32>
    %cst_145 = arith.constant dense<0.000000e+00> : vector<64x4xf32>
    %220 = tpu.matmul %218, %219, %cst_145 {dimension_numbers = #tpu.dot_dimension_numbers<[1], [0], [0], [1], [0, 0, 1, 1], [], []>} : vector<64x8xf32>, vector<8x4xf32>, vector<64x4xf32> -> vector<64x4xf32>
    %221 = arith.addf %217, %220 : vector<64x4xf32>
    %222 = vector.shape_cast %206 : vector<8x8x8xf32> to vector<64x8xf32>
    %223 = vector.extract_strided_slice %208 {offsets = [24, 0], sizes = [8, 4], strides = [1, 1]} : vector<32x4xf32> to vector<8x4xf32>
    %cst_146 = arith.constant dense<0.000000e+00> : vector<64x4xf32>
    %224 = tpu.matmul %222, %223, %cst_146 {dimension_numbers = #tpu.dot_dimension_numbers<[1], [0], [0], [1], [0, 0, 1, 1], [], []>} : vector<64x8xf32>, vector<8x4xf32>, vector<64x4xf32> -> vector<64x4xf32>
    %225 = arith.addf %221, %224 : vector<64x4xf32>
    %226 = vector.broadcast %130 : vector<1x4xf32> to vector<64x4xf32>
    %227 = arith.addf %225, %226 : vector<64x4xf32>
    %cst_147 = arith.constant dense<0.000000e+00> : vector<4xf32>
    %228 = vector.multi_reduction <add>, %227, %cst_147 [0] : vector<64x4xf32> to vector<4xf32>
    %229 = vector.shape_cast %228 : vector<4xf32> to vector<1x4xf32>
    %230 = arith.addf %195, %229 : vector<1x4xf32>
    %231 = arith.mulf %227, %227 : vector<64x4xf32>
    %cst_148 = arith.constant dense<0.000000e+00> : vector<4xf32>
    %232 = vector.multi_reduction <add>, %231, %cst_148 [0] : vector<64x4xf32> to vector<4xf32>
    %233 = vector.shape_cast %232 : vector<4xf32> to vector<1x4xf32>
    %234 = arith.addf %199, %233 : vector<1x4xf32>
    %c0_149 = arith.constant 0 : index
    %c2_150 = arith.constant 2 : index
    %c0_151 = arith.constant 0 : index
    %c0_152 = arith.constant 0 : index
    %235 = vector.load %arg6[%c0_149, %c2_150, %c0_151, %c0_152] : memref<1x4x64x4xf32, #tpu.memory_space<vmem>>, vector<1x1x64x4xf32>
    %236 = vector.shape_cast %235 : vector<1x1x64x4xf32> to vector<64x4xf32>
    %237 = vector.shape_cast %227 : vector<64x4xf32> to vector<1x1x64x4xf32>
    tpu.vector_store %arg6[%c0_149, %c2_150, %c0_151, %c0_152], %237 {strides = array<i32>} : memref<1x4x64x4xf32, #tpu.memory_space<vmem>>, vector<1x1x64x4xf32>,
    %c1_153 = arith.constant 1 : index
    %c1_154 = arith.constant 1 : index
    %c0_155 = arith.constant 0 : index
    %238 = vector.load %arg7[%c1_153, %c1_154, %c0_155] : memref<10x10x8xf32, #tpu.memory_space<vmem>>, vector<8x8x8xf32>
    %c1_156 = arith.constant 1 : index
    %c2_157 = arith.constant 2 : index
    %c0_158 = arith.constant 0 : index
    %239 = vector.load %arg7[%c1_156, %c2_157, %c0_158] : memref<10x10x8xf32, #tpu.memory_space<vmem>>, vector<8x8x8xf32>
    %c2_159 = arith.constant 2 : index
    %c1_160 = arith.constant 1 : index
    %c0_161 = arith.constant 0 : index
    %240 = vector.load %arg7[%c2_159, %c1_160, %c0_161] : memref<10x10x8xf32, #tpu.memory_space<vmem>>, vector<8x8x8xf32>
    %c2_162 = arith.constant 2 : index
    %c2_163 = arith.constant 2 : index
    %c0_164 = arith.constant 0 : index
    %241 = vector.load %arg7[%c2_162, %c2_163, %c0_164] : memref<10x10x8xf32, #tpu.memory_space<vmem>>, vector<8x8x8xf32>
    %c3_165 = arith.constant 3 : index
    %c0_166 = arith.constant 0 : index
    %c0_167 = arith.constant 0 : index
    %242 = vector.load %arg4[%c3_165, %c0_166, %c0_167] : memref<4x32x4xf32, #tpu.memory_space<vmem>>, vector<1x32x4xf32>
    %243 = vector.shape_cast %242 : vector<1x32x4xf32> to vector<32x4xf32>
    %cst_168 = arith.constant 0.000000e+00 : f32
    %244 = vector.broadcast %cst_168 : f32 to vector<64x4xf32>
    %245 = vector.shape_cast %238 : vector<8x8x8xf32> to vector<64x8xf32>
    %246 = vector.extract_strided_slice %243 {offsets = [0, 0], sizes = [8, 4], strides = [1, 1]} : vector<32x4xf32> to vector<8x4xf32>
    %cst_169 = arith.constant dense<0.000000e+00> : vector<64x4xf32>
    %247 = tpu.matmul %245, %246, %cst_169 {dimension_numbers = #tpu.dot_dimension_numbers<[1], [0], [0], [1], [0, 0, 1, 1], [], []>} : vector<64x8xf32>, vector<8x4xf32>, vector<64x4xf32> -> vector<64x4xf32>
    %248 = arith.addf %244, %247 : vector<64x4xf32>
    %249 = vector.shape_cast %239 : vector<8x8x8xf32> to vector<64x8xf32>
    %250 = vector.extract_strided_slice %243 {offsets = [8, 0], sizes = [8, 4], strides = [1, 1]} : vector<32x4xf32> to vector<8x4xf32>
    %cst_170 = arith.constant dense<0.000000e+00> : vector<64x4xf32>
    %251 = tpu.matmul %249, %250, %cst_170 {dimension_numbers = #tpu.dot_dimension_numbers<[1], [0], [0], [1], [0, 0, 1, 1], [], []>} : vector<64x8xf32>, vector<8x4xf32>, vector<64x4xf32> -> vector<64x4xf32>
    %252 = arith.addf %248, %251 : vector<64x4xf32>
    %253 = vector.shape_cast %240 : vector<8x8x8xf32> to vector<64x8xf32>
    %254 = vector.extract_strided_slice %243 {offsets = [16, 0], sizes = [8, 4], strides = [1, 1]} : vector<32x4xf32> to vector<8x4xf32>
    %cst_171 = arith.constant dense<0.000000e+00> : vector<64x4xf32>
    %255 = tpu.matmul %253, %254, %cst_171 {dimension_numbers = #tpu.dot_dimension_numbers<[1], [0], [0], [1], [0, 0, 1, 1], [], []>} : vector<64x8xf32>, vector<8x4xf32>, vector<64x4xf32> -> vector<64x4xf32>
    %256 = arith.addf %252, %255 : vector<64x4xf32>
    %257 = vector.shape_cast %241 : vector<8x8x8xf32> to vector<64x8xf32>
    %258 = vector.extract_strided_slice %243 {offsets = [24, 0], sizes = [8, 4], strides = [1, 1]} : vector<32x4xf32> to vector<8x4xf32>
    %cst_172 = arith.constant dense<0.000000e+00> : vector<64x4xf32>
    %259 = tpu.matmul %257, %258, %cst_172 {dimension_numbers = #tpu.dot_dimension_numbers<[1], [0], [0], [1], [0, 0, 1, 1], [], []>} : vector<64x8xf32>, vector<8x4xf32>, vector<64x4xf32> -> vector<64x4xf32>
    %260 = arith.addf %256, %259 : vector<64x4xf32>
    %261 = vector.broadcast %130 : vector<1x4xf32> to vector<64x4xf32>
    %262 = arith.addf %260, %261 : vector<64x4xf32>
    %cst_173 = arith.constant dense<0.000000e+00> : vector<4xf32>
    %263 = vector.multi_reduction <add>, %262, %cst_173 [0] : vector<64x4xf32> to vector<4xf32>
    %264 = vector.shape_cast %263 : vector<4xf32> to vector<1x4xf32>
    %265 = arith.addf %230, %264 : vector<1x4xf32>
    %266 = arith.mulf %262, %262 : vector<64x4xf32>
    %cst_174 = arith.constant dense<0.000000e+00> : vector<4xf32>
    %267 = vector.multi_reduction <add>, %266, %cst_174 [0] : vector<64x4xf32> to vector<4xf32>
    %268 = vector.shape_cast %267 : vector<4xf32> to vector<1x4xf32>
    %269 = arith.addf %234, %268 : vector<1x4xf32>
    %c0_175 = arith.constant 0 : index
    %c3_176 = arith.constant 3 : index
    %c0_177 = arith.constant 0 : index
    %c0_178 = arith.constant 0 : index
    %270 = vector.load %arg6[%c0_175, %c3_176, %c0_177, %c0_178] : memref<1x4x64x4xf32, #tpu.memory_space<vmem>>, vector<1x1x64x4xf32>
    %271 = vector.shape_cast %270 : vector<1x1x64x4xf32> to vector<64x4xf32>
    %272 = vector.shape_cast %262 : vector<64x4xf32> to vector<1x1x64x4xf32>
    tpu.vector_store %arg6[%c0_175, %c3_176, %c0_177, %c0_178], %272 {strides = array<i32>} : memref<1x4x64x4xf32, #tpu.memory_space<vmem>>, vector<1x1x64x4xf32>,
    %cst_179 = arith.constant 2.560000e+02 : f32
    %273 = vector.broadcast %cst_179 : f32 to vector<1x4xf32>
    %274 = arith.divf %265, %273 : vector<1x4xf32>
    %cst_180 = arith.constant 2.560000e+02 : f32
    %275 = vector.broadcast %cst_180 : f32 to vector<1x4xf32>
    %276 = arith.divf %269, %275 : vector<1x4xf32>
    %277 = arith.mulf %274, %274 : vector<1x4xf32>
    %278 = arith.subf %276, %277 : vector<1x4xf32>
    %cst_181 = arith.constant 0.000000e+00 : f32
    %279 = vector.broadcast %cst_181 : f32 to vector<1x4xf32>
    %280 = arith.maximumf %278, %279 : vector<1x4xf32>
    %cst_182 = arith.constant 9.99999974E-6 : f32
    %281 = vector.broadcast %cst_182 : f32 to vector<1x4xf32>
    %282 = arith.addf %280, %281 : vector<1x4xf32>
    %283 = math.rsqrt %282 : vector<1x4xf32>
    %c0_183 = arith.constant 0 : index
    %c0_184 = arith.constant 0 : index
    %c0_185 = arith.constant 0 : index
    %c0_186 = arith.constant 0 : index
    %284 = vector.load %arg6[%c0_183, %c0_184, %c0_185, %c0_186] : memref<1x4x64x4xf32, #tpu.memory_space<vmem>>, vector<1x1x64x4xf32>
    %285 = vector.shape_cast %284 : vector<1x1x64x4xf32> to vector<64x4xf32>
    %286 = vector.broadcast %274 : vector<1x4xf32> to vector<64x4xf32>
    %287 = arith.subf %285, %286 : vector<64x4xf32>
    %288 = vector.broadcast %283 : vector<1x4xf32> to vector<64x4xf32>
    %289 = arith.mulf %287, %288 : vector<64x4xf32>
    %c0_187 = arith.constant 0 : index
    %c0_188 = arith.constant 0 : index
    %c0_189 = arith.constant 0 : index
    %c0_190 = arith.constant 0 : index
    %290 = vector.load %arg6[%c0_187, %c0_188, %c0_189, %c0_190] : memref<1x4x64x4xf32, #tpu.memory_space<vmem>>, vector<1x1x64x4xf32>
    %291 = vector.shape_cast %290 : vector<1x1x64x4xf32> to vector<64x4xf32>
    %292 = vector.shape_cast %289 : vector<64x4xf32> to vector<1x1x64x4xf32>
    tpu.vector_store %arg6[%c0_187, %c0_188, %c0_189, %c0_190], %292 {strides = array<i32>} : memref<1x4x64x4xf32, #tpu.memory_space<vmem>>, vector<1x1x64x4xf32>,
    %c0_191 = arith.constant 0 : index
    %c1_192 = arith.constant 1 : index
    %c0_193 = arith.constant 0 : index
    %c0_194 = arith.constant 0 : index
    %293 = vector.load %arg6[%c0_191, %c1_192, %c0_193, %c0_194] : memref<1x4x64x4xf32, #tpu.memory_space<vmem>>, vector<1x1x64x4xf32>
    %294 = vector.shape_cast %293 : vector<1x1x64x4xf32> to vector<64x4xf32>
    %295 = vector.broadcast %274 : vector<1x4xf32> to vector<64x4xf32>
    %296 = arith.subf %294, %295 : vector<64x4xf32>
    %297 = vector.broadcast %283 : vector<1x4xf32> to vector<64x4xf32>
    %298 = arith.mulf %296, %297 : vector<64x4xf32>
    %c0_195 = arith.constant 0 : index
    %c1_196 = arith.constant 1 : index
    %c0_197 = arith.constant 0 : index
    %c0_198 = arith.constant 0 : index
    %299 = vector.load %arg6[%c0_195, %c1_196, %c0_197, %c0_198] : memref<1x4x64x4xf32, #tpu.memory_space<vmem>>, vector<1x1x64x4xf32>
    %300 = vector.shape_cast %299 : vector<1x1x64x4xf32> to vector<64x4xf32>
    %301 = vector.shape_cast %298 : vector<64x4xf32> to vector<1x1x64x4xf32>
    tpu.vector_store %arg6[%c0_195, %c1_196, %c0_197, %c0_198], %301 {strides = array<i32>} : memref<1x4x64x4xf32, #tpu.memory_space<vmem>>, vector<1x1x64x4xf32>,
    %c0_199 = arith.constant 0 : index
    %c2_200 = arith.constant 2 : index
    %c0_201 = arith.constant 0 : index
    %c0_202 = arith.constant 0 : index
    %302 = vector.load %arg6[%c0_199, %c2_200, %c0_201, %c0_202] : memref<1x4x64x4xf32, #tpu.memory_space<vmem>>, vector<1x1x64x4xf32>
    %303 = vector.shape_cast %302 : vector<1x1x64x4xf32> to vector<64x4xf32>
    %304 = vector.broadcast %274 : vector<1x4xf32> to vector<64x4xf32>
    %305 = arith.subf %303, %304 : vector<64x4xf32>
    %306 = vector.broadcast %283 : vector<1x4xf32> to vector<64x4xf32>
    %307 = arith.mulf %305, %306 : vector<64x4xf32>
    %c0_203 = arith.constant 0 : index
    %c2_204 = arith.constant 2 : index
    %c0_205 = arith.constant 0 : index
    %c0_206 = arith.constant 0 : index
    %308 = vector.load %arg6[%c0_203, %c2_204, %c0_205, %c0_206] : memref<1x4x64x4xf32, #tpu.memory_space<vmem>>, vector<1x1x64x4xf32>
    %309 = vector.shape_cast %308 : vector<1x1x64x4xf32> to vector<64x4xf32>
    %310 = vector.shape_cast %307 : vector<64x4xf32> to vector<1x1x64x4xf32>
    tpu.vector_store %arg6[%c0_203, %c2_204, %c0_205, %c0_206], %310 {strides = array<i32>} : memref<1x4x64x4xf32, #tpu.memory_space<vmem>>, vector<1x1x64x4xf32>,
    %c0_207 = arith.constant 0 : index
    %c3_208 = arith.constant 3 : index
    %c0_209 = arith.constant 0 : index
    %c0_210 = arith.constant 0 : index
    %311 = vector.load %arg6[%c0_207, %c3_208, %c0_209, %c0_210] : memref<1x4x64x4xf32, #tpu.memory_space<vmem>>, vector<1x1x64x4xf32>
    %312 = vector.shape_cast %311 : vector<1x1x64x4xf32> to vector<64x4xf32>
    %313 = vector.broadcast %274 : vector<1x4xf32> to vector<64x4xf32>
    %314 = arith.subf %312, %313 : vector<64x4xf32>
    %315 = vector.broadcast %283 : vector<1x4xf32> to vector<64x4xf32>
    %316 = arith.mulf %314, %315 : vector<64x4xf32>
    %c0_211 = arith.constant 0 : index
    %c3_212 = arith.constant 3 : index
    %c0_213 = arith.constant 0 : index
    %c0_214 = arith.constant 0 : index
    %317 = vector.load %arg6[%c0_211, %c3_212, %c0_213, %c0_214] : memref<1x4x64x4xf32, #tpu.memory_space<vmem>>, vector<1x1x64x4xf32>
    %318 = vector.shape_cast %317 : vector<1x1x64x4xf32> to vector<64x4xf32>
    %319 = vector.shape_cast %316 : vector<64x4xf32> to vector<1x1x64x4xf32>
    tpu.vector_store %arg6[%c0_211, %c3_212, %c0_213, %c0_214], %319 {strides = array<i32>} : memref<1x4x64x4xf32, #tpu.memory_space<vmem>>, vector<1x1x64x4xf32>,
    return
  }
  func.func @transform_0(%arg0: i32) -> (i32, i32, i32, i32, i32) {
    %c0_i32 = arith.constant 0 : i32
    %c0_i32_0 = arith.constant 0 : i32
    %c0_i32_1 = arith.constant 0 : i32
    %c0_i32_2 = arith.constant 0 : i32
    %c0_i32_3 = arith.constant 0 : i32
    return %arg0, %c0_i32, %c0_i32_0, %c0_i32_1, %c0_i32_2 : i32, i32, i32, i32, i32
  }
  func.func @transform_1(%arg0: i32) -> (i32, i32, i32) {
    %c0_i32 = arith.constant 0 : i32
    %c0_i32_0 = arith.constant 0 : i32
    %c0_i32_1 = arith.constant 0 : i32
    %c0_i32_2 = arith.constant 0 : i32
    return %c0_i32, %c0_i32_0, %c0_i32_1 : i32, i32, i32
  }
  func.func @transform_2(%arg0: i32) -> (i32, i32) {
    %c0_i32 = arith.constant 0 : i32
    %c0_i32_0 = arith.constant 0 : i32
    %c0_i32_1 = arith.constant 0 : i32
    return %c0_i32, %c0_i32_0 : i32, i32
  }
  func.func @transform_3(%arg0: i32) -> (i32, i32, i32) {
    %c0_i32 = arith.constant 0 : i32
    %c0_i32_0 = arith.constant 0 : i32
    %c0_i32_1 = arith.constant 0 : i32
    %c0_i32_2 = arith.constant 0 : i32
    return %c0_i32, %c0_i32_0, %c0_i32_1 : i32, i32, i32
  }
  func.func @transform_4(%arg0: i32) -> (i32, i32) {
    %c0_i32 = arith.constant 0 : i32
    %c0_i32_0 = arith.constant 0 : i32
    %c0_i32_1 = arith.constant 0 : i32
    return %c0_i32, %c0_i32_0 : i32, i32
  }
  func.func @transform_5(%arg0: i32) -> (i32, i32, i32, i32) {
    %c0_i32 = arith.constant 0 : i32
    %c0_i32_0 = arith.constant 0 : i32
    %c0_i32_1 = arith.constant 0 : i32
    %c0_i32_2 = arith.constant 0 : i32
    return %arg0, %c0_i32, %c0_i32_0, %c0_i32_1 : i32, i32, i32, i32
  }
}

</mosaic_0001>

<llo_original>
// kernel: tpu_custom_call.1
$region0: #{tpu_custom_call.1}
  #allocation0 [shape = 'u32[]', space=smem, size = 0x4, offset = 0x4, fixed_abs, tag = 'smem constant byte address 0x4 - core index']
  #allocation1 [shape = 'u32[144,128]{1,0:T(1,128)}', space=vmem, size = 0x12000, scoped, tag = 'internal scratch']
  %s0 = inlined_call_operand.hbm [shape: f32[2,8,128], index: 0, kind: input, shape index: {}]
  %s1 = inlined_call_operand.hbm [shape: f32[1,8,128], index: 1, kind: input, shape index: {}]
  %s2 = inlined_call_operand.hbm [shape: f32[2,8,128], index: 2, kind: output, shape index: {}]
  %s3 = sld [smem:[#allocation0]]
  $region49: #{tpu_custom_call.1} parent=0
    _
  %s5 = ssub.s32 1, %s3
  %s6 = scalar_select 0, %s5, %s3
  $region1: #{tpu_custom_call.1} parent=0
    #allocation2 [shape = 'u8[8192]{0}', space=vmem, size = 0x2000, scoped, tag = 'input window, operand 0']
    #allocation3 [shape = 's32[2]{0}', space=sflag, size = 0x8, scoped, tag = 'scoped memory for tpu_custom_call.1']
    #allocation4 [shape = 's32[2]{0}', space=sflag, size = 0x8, scoped, tag = 'scoped memory for tpu_custom_call.1']
    #allocation5 [shape = 'u8[4096]{0}', space=vmem, size = 0x1000, scoped, tag = 'input window, operand 1, single buffered']
    #allocation6 [shape = 's32[1]{0}', space=sflag, size = 0x4, scoped, tag = 'scoped memory for tpu_custom_call.1']
    #allocation7 [shape = 'u8[8192]{0}', space=vmem, size = 0x2000, scoped, tag = 'output window, operand 0']
    %7 = vsyncpa [#allocation3], 0
    %s8 = scalar_lea.sflag [#allocation3], 1
    %9 = vsyncpa %s8, 0
    %10 = vsyncpa [#allocation6], 0
    %11 = vsyncpa [#allocation4], 0
    %s12 = scalar_lea.sflag [#allocation4], 1
    %13 = vsyncpa %s12, 0
    loop: start=0, step=1, limit=4
    $region2: #{tpu_custom_call.1} parent=1 // loop_pre_header
      _
    $region3: #{tpu_custom_call.1} parent=1 // loop_header
      %s15 = sphi 0, %s19
      %p16 = scmp.ge.s32.totalorder %s15, 4
      %s25 = sphi 0, %s27
      %s28 = sphi 0, %s25
      %s29 = sphi 0, %s28
      %s45 = sphi 0, %s29
      %s49 = sphi 0, %s49
      %s51 = sphi 0, %s49
      %s52 = sphi 0, %s51
      %s66 = sphi 0, %s52
      %s72 = sphi 0, %s74
      %s75 = sphi 0, %s72
      %s76 = sphi 0, %s75
      %s92 = sphi 0, %s76
    $region4: #{tpu_custom_call.1} parent=1 // loop_header_branch
      %18 = sbr.rel (%p16) target = $region8
    $region5: #{tpu_custom_call.1} parent=1 // loop_body
      %s20 = ssub.s32 %s15, 1
      %s21 = ssub.s32 %s15, 2
      %s22 = sadd.s32 %s15, 1
      %s23 = ssub.s32 %s15, %s22
      %p24 = scmp.eq.s32.totalorder %s23, 0
      %s26 = sadd.s32 %s25, 1
      %s27 = scalar_select %p24, %s25, %s26
      %p30 = pneg %p24
      %p31 = scmp.eq.s32.totalorder %s15, 1
      %p32 = por %p30, %p31
      %p33 = scmp.ne.s32.totalorder %s25, %s28
      %p34 = scmp.eq.s32.totalorder %s15, 0
      %p35 = por %p33, %p34
      %p36 = scmp.ne.s32.totalorder %s25, %s28
      %p37 = scmp.eq.s32.totalorder %s20, 1
      %p38 = por %p36, %p37
      %p39 = scmp.ne.s32.totalorder %s28, %s29
      %p40 = scmp.eq.s32.totalorder %s20, 0
      %p41 = por %p39, %p40
      %p42 = scmp.ne.s32.totalorder %s28, %s29
      %p43 = scmp.eq.s32.totalorder %s21, 1
      %p44 = por %p42, %p43
      %p46 = scmp.ne.s32.totalorder %s29, %s45
      %p47 = scmp.eq.s32.totalorder %s21, 0
      %p48 = por %p46, %p47
      %s50 = sadd.s32 %s49, 1
      %p53 = scmp.eq.s32.totalorder %s15, 1
      %p54 = scmp.ne.s32.totalorder %s49, %s51
      %p55 = scmp.eq.s32.totalorder %s15, 0
      %p56 = por %p54, %p55
      %p57 = scmp.ne.s32.totalorder %s49, %s51
      %p58 = scmp.eq.s32.totalorder %s20, 1
      %p59 = por %p57, %p58
      %p60 = scmp.ne.s32.totalorder %s51, %s52
      %p61 = scmp.eq.s32.totalorder %s20, 0
      %p62 = por %p60, %p61
      %p63 = scmp.ne.s32.totalorder %s51, %s52
      %p64 = scmp.eq.s32.totalorder %s21, 1
      %p65 = por %p63, %p64
      %p67 = scmp.ne.s32.totalorder %s52, %s66
      %p68 = scmp.eq.s32.totalorder %s21, 0
      %p69 = por %p67, %p68
      %s70 = ssub.s32 %s15, %s22
      %p71 = scmp.eq.s32.totalorder %s70, 0
      %s73 = sadd.s32 %s72, 1
      %s74 = scalar_select %p71, %s72, %s73
      %p77 = pneg %p71
      %p78 = scmp.eq.s32.totalorder %s15, 1
      %p79 = por %p77, %p78
      %p80 = scmp.ne.s32.totalorder %s72, %s75
      %p81 = scmp.eq.s32.totalorder %s15, 0
      %p82 = por %p80, %p81
      %p83 = scmp.ne.s32.totalorder %s72, %s75
      %p84 = scmp.eq.s32.totalorder %s20, 1
      %p85 = por %p83, %p84
      %p86 = scmp.ne.s32.totalorder %s75, %s76
      %p87 = scmp.eq.s32.totalorder %s20, 0
      %p88 = por %p86, %p87
      %p89 = scmp.ne.s32.totalorder %s75, %s76
      %p90 = scmp.eq.s32.totalorder %s21, 1
      %p91 = por %p89, %p90
      %p93 = scmp.ne.s32.totalorder %s76, %s92
      %p94 = scmp.eq.s32.totalorder %s21, 0
      %p95 = por %p93, %p94
      %p96 = scmp.le.s32.totalorder 1, %s15
      %p97 = scmp.lt.s32.totalorder %s15, 3
      %p98 = pnand %p96, %p97
      %p99 = pneg %p98
      // Predicated region
      $region9: #{tpu_custom_call.1} parent=5 // pred_check
        _
      $region10: #{tpu_custom_call.1} parent=5 // pred_check_branch
        %101 = sbr.rel (%p98) target = $region12
      $region11: #{tpu_custom_call.1} parent=5 // pred_region
        %s102 = ssub.s32 %s15, 1
        // Predicated region
        $region13: #{tpu_custom_call.1} parent=11 // pred_check
          %p103 = pneg %p62
        $region14: #{tpu_custom_call.1} parent=11 // pred_check_branch
          %105 = sbr.rel (%p103) target = $region16
        $region15: #{tpu_custom_call.1} parent=11 // pred_region
          %s107 = ssub.s32 128, 128
          %108 = vsyncadd [#allocation6], %s107
          %s110 = sshll.u32 [#allocation5], 4
          %s111 = int_to_ptr.vmem [resolvable:$true] %s110
          %113 = dma.hbm_to_vmem [thread:$0]  %s1, 128, %s111, [#allocation6]
        $region16: #{tpu_custom_call.1} parent=11 // pred_fallthru
          _
      $region12: #{tpu_custom_call.1} parent=5 // pred_fallthru
        _
      %p114 = scmp.lt.s32.totalorder %s15, 2
      // Predicated region
      $region17: #{tpu_custom_call.1} parent=5 // pred_check
        %p115 = pneg %p114
      $region18: #{tpu_custom_call.1} parent=5 // pred_check_branch
        %117 = sbr.rel (%p115) target = $region20
      $region19: #{tpu_custom_call.1} parent=5 // pred_region
        // Predicated region
        $region21: #{tpu_custom_call.1} parent=19 // pred_check
          %p118 = pneg %p35
        $region22: #{tpu_custom_call.1} parent=19 // pred_check_branch
          %120 = sbr.rel (%p118) target = $region24
        $region23: #{tpu_custom_call.1} parent=19 // pred_region
          %s121 = sand.u32 %s25, 1
          %s122 = scalar_lea.sflag [#allocation3], %s121
          %s123 = sand.u32 %s25, 1
          %s124 = smul.addr %s123, 8
          %s125 = scalar_lea.vmem [#allocation2], %s124
          %s127 = ssub.s32 128, 128
          %128 = vsyncadd %s122, %s127
          %s129 = smul.addr %s15, 128
          %s130 = scalar_lea.hbm %s0, %s129
          %s132 = sshll.u32 %s125, 4
          %s133 = int_to_ptr.vmem [resolvable:$true] %s132
          %135 = dma.hbm_to_vmem [thread:$0]  %s130, 128, %s133, %s122
        $region24: #{tpu_custom_call.1} parent=19 // pred_fallthru
          _
      $region20: #{tpu_custom_call.1} parent=5 // pred_fallthru
        _
      %p136 = scmp.le.s32.totalorder 1, %s15
      %p137 = scmp.lt.s32.totalorder %s15, 3
      %p138 = pnand %p136, %p137
      %p139 = pneg %p138
      // Predicated region
      $region25: #{tpu_custom_call.1} parent=5 // pred_check
        _
      $region26: #{tpu_custom_call.1} parent=5 // pred_check_branch
        %141 = sbr.rel (%p138) target = $region28
      $region27: #{tpu_custom_call.1} parent=5 // pred_region
        %s142 = ssub.s32 %s15, 1
        %s143 = sand.u32 %s28, 1
        %s144 = scalar_lea.sflag [#allocation3], %s143
        %s145 = sand.u32 %s28, 1
        %s146 = smul.addr %s145, 8
        %s147 = scalar_lea.vmem [#allocation2], %s146
        // Predicated region
        $region29: #{tpu_custom_call.1} parent=27 // pred_check
          %p148 = pneg %p41
        $region30: #{tpu_custom_call.1} parent=27 // pred_check_branch
          %150 = sbr.rel (%p148) target = $region32
        $region31: #{tpu_custom_call.1} parent=27 // pred_region
          %151 = dma.done %s144, 128
        $region32: #{tpu_custom_call.1} parent=27 // pred_fallthru
          _
        // Predicated region
        $region33: #{tpu_custom_call.1} parent=27 // pred_check
          %p152 = pneg %p62
        $region34: #{tpu_custom_call.1} parent=27 // pred_check_branch
          %154 = sbr.rel (%p152) target = $region36
        $region35: #{tpu_custom_call.1} parent=27 // pred_region
          %155 = dma.done [#allocation6], 128
        $region36: #{tpu_custom_call.1} parent=27 // pred_fallthru
          _
        %s156 = sand.u32 %s28, 1
        %s157 = scalar_lea.sflag [#allocation3], %s156
        %s158 = sand.u32 %s28, 1
        %s159 = smul.addr %s158, 8
        %s160 = scalar_lea.vmem [#allocation2], %s159
        %p161 = pneg %p41
        %p162 = pneg %p38
        %p163 = pneg %p62
        %p164 = pneg %p59
        %p165 = pneg %p88
        %p166 = pneg %p85
        %s167 = sand.u32 %s75, 1
        %s168 = scalar_lea.sflag [#allocation4], %s167
        %s169 = sand.u32 %s75, 1
        %s170 = smul.addr %s169, 8
        %s171 = scalar_lea.vmem [#allocation7], %s170
        %v172 = vld [vmem:[%s147] sm:$0xff]
        %v173 = vld [vmem:[#allocation5] sm:$0xff]
        %v174 = vadd.f32 %v172, %v173
        %175 = vst [vmem:[%s171] sm:$0xff] %v174
        %s176 = sand.u32 %s75, 1
        %s177 = scalar_lea.sflag [#allocation4], %s176
        %s178 = sand.u32 %s75, 1
        %s179 = smul.addr %s178, 8
        %s180 = scalar_lea.vmem [#allocation7], %s179
        // Predicated region
        $region37: #{tpu_custom_call.1} parent=27 // pred_check
          %p181 = pneg %p85
        $region38: #{tpu_custom_call.1} parent=27 // pred_check_branch
          %183 = sbr.rel (%p181) target = $region40
        $region39: #{tpu_custom_call.1} parent=27 // pred_region
          %s185 = ssub.s32 128, 128
          %186 = vsyncadd %s177, %s185
          %s187 = smul.addr %s20, 128
          %s188 = scalar_lea.hbm %s2, %s187
          %s190 = sshll.u32 %s180, 4
          %s191 = int_to_ptr.vmem [resolvable:$true] %s190
          %193 = dma.vmem_to_hbm [thread:$0]  %s191, 128, %s188, %s177
        $region40: #{tpu_custom_call.1} parent=27 // pred_fallthru
          _
      $region28: #{tpu_custom_call.1} parent=5 // pred_fallthru
        _
      %p194 = scmp.le.s32.totalorder 2, %s15
      // Predicated region
      $region41: #{tpu_custom_call.1} parent=5 // pred_check
        %p195 = pneg %p194
      $region42: #{tpu_custom_call.1} parent=5 // pred_check_branch
        %197 = sbr.rel (%p195) target = $region44
      $region43: #{tpu_custom_call.1} parent=5 // pred_region
        %s198 = ssub.s32 %s15, 2
        // Predicated region
        $region45: #{tpu_custom_call.1} parent=43 // pred_check
          %p199 = pneg %p91
        $region46: #{tpu_custom_call.1} parent=43 // pred_check_branch
          %201 = sbr.rel (%p199) target = $region48
        $region47: #{tpu_custom_call.1} parent=43 // pred_region
          %s202 = sand.u32 %s76, 1
          %s203 = scalar_lea.sflag [#allocation4], %s202
          %s204 = sand.u32 %s76, 1
          %s205 = smul.addr %s204, 8
          %s206 = scalar_lea.vmem [#allocation7], %s205
          %207 = dma.done %s203, 128
        $region48: #{tpu_custom_call.1} parent=43 // pred_fallthru
          _
      $region44: #{tpu_custom_call.1} parent=5 // pred_fallthru
        _
    $region6: #{tpu_custom_call.1} parent=1 // loop_footer
      %s19 = sadd.s32 1, %s15
    $region7: #{tpu_custom_call.1} parent=1 // loop_footer_branch
      %14 = sbr.rel target = $region3
    $region8: #{tpu_custom_call.1} parent=1 // loop_exit
      _
    %208 = vsyncpa [#allocation3], 1
    %s209 = scalar_lea.sflag [#allocation3], 1
    %210 = vsyncpa %s209, 1
    %211 = vsyncpa [#allocation6], 1
    %212 = vsyncpa [#allocation4], 1
    %s213 = scalar_lea.sflag [#allocation4], 1
    %214 = vsyncpa %s213, 1

// kernel: unet_innermost_block.1
$region0: #{unet_innermost_block.1}
  #allocation0 [shape = 'u32[]', space=smem, size = 0x4, offset = 0x4, fixed_abs, tag = 'smem constant byte address 0x4 - core index']
  #allocation1 [shape = 'u32[144,128]{1,0:T(1,128)}', space=vmem, size = 0x12000, scoped, tag = 'internal scratch']
  #allocation2 [shape = 'f32[10,10,8]{2,1,0:T(8,128)}', space=vmem, size = 0x14000, scoped, tag = 'scratch operand']
  %s0 = inlined_call_operand.vmem [shape: f32[2,4,10,10,4], index: 0, kind: input, shape index: {}]
  %s1 = inlined_call_operand.vmem [shape: f32[4,16,8], index: 1, kind: input, shape index: {}]
  %s2 = inlined_call_operand.vmem [shape: f32[1,8], index: 2, kind: input, shape index: {}]
  %s3 = inlined_call_operand.vmem [shape: f32[4,32,4], index: 3, kind: input, shape index: {}]
  %s4 = inlined_call_operand.vmem [shape: f32[1,4], index: 4, kind: input, shape index: {}]
  %s5 = inlined_call_operand.vmem [shape: f32[2,4,64,4], index: 5, kind: output, shape index: {}]
  %s6 = sld [smem:[#allocation0]]
  $region53: #{unet_innermost_block.1} parent=0
    _
  %s8 = ssub.s32 1, %s6
  %s9 = scalar_select 0, %s8, %s6
  loop: start=0, step=1, limit=4
  $region2: #{unet_innermost_block.1} parent=0 // loop_pre_header
    _
  $region3: #{unet_innermost_block.1} parent=0 // loop_header
    %s11 = sphi 0, %s15
    %p12 = scmp.ge.s32.totalorder %s11, 4
    %s21 = sphi 0, %s23
    %s24 = sphi 0, %s21
    %s25 = sphi 0, %s24
    %s41 = sphi 0, %s25
    %s45 = sphi 0, %s45
    %s47 = sphi 0, %s45
    %s48 = sphi 0, %s47
    %s62 = sphi 0, %s48
    %s66 = sphi 0, %s66
    %s68 = sphi 0, %s66
    %s69 = sphi 0, %s68
    %s83 = sphi 0, %s69
    %s87 = sphi 0, %s87
    %s89 = sphi 0, %s87
    %s90 = sphi 0, %s89
    %s104 = sphi 0, %s90
    %s108 = sphi 0, %s108
    %s110 = sphi 0, %s108
    %s111 = sphi 0, %s110
    %s125 = sphi 0, %s111
    %s131 = sphi 0, %s133
    %s134 = sphi 0, %s131
    %s135 = sphi 0, %s134
    %s151 = sphi 0, %s135
  $region4: #{unet_innermost_block.1} parent=0 // loop_header_branch
    %14 = sbr.rel (%p12) target = $region8
  $region5: #{unet_innermost_block.1} parent=0 // loop_body
    %s16 = ssub.s32 %s11, 1
    %s17 = ssub.s32 %s11, 2
    %s18 = sadd.s32 %s11, 1
    %s19 = ssub.s32 %s11, %s18
    %p20 = scmp.eq.s32.totalorder %s19, 0
    %s22 = sadd.s32 %s21, 1
    %s23 = scalar_select %p20, %s21, %s22
    %p26 = pneg %p20
    %p27 = scmp.eq.s32.totalorder %s11, 1
    %p28 = por %p26, %p27
    %p29 = scmp.ne.s32.totalorder %s21, %s24
    %p30 = scmp.eq.s32.totalorder %s11, 0
    %p31 = por %p29, %p30
    %p32 = scmp.ne.s32.totalorder %s21, %s24
    %p33 = scmp.eq.s32.totalorder %s16, 1
    %p34 = por %p32, %p33
    %p35 = scmp.ne.s32.totalorder %s24, %s25
    %p36 = scmp.eq.s32.totalorder %s16, 0
    %p37 = por %p35, %p36
    %p38 = scmp.ne.s32.totalorder %s24, %s25
    %p39 = scmp.eq.s32.totalorder %s17, 1
    %p40 = por %p38, %p39
    %p42 = scmp.ne.s32.totalorder %s25, %s41
    %p43 = scmp.eq.s32.totalorder %s17, 0
    %p44 = por %p42, %p43
    %s46 = sadd.s32 %s45, 1
    %p49 = scmp.eq.s32.totalorder %s11, 1
    %p50 = scmp.ne.s32.totalorder %s45, %s47
    %p51 = scmp.eq.s32.totalorder %s11, 0
    %p52 = por %p50, %p51
    %p53 = scmp.ne.s32.totalorder %s45, %s47
    %p54 = scmp.eq.s32.totalorder %s16, 1
    %p55 = por %p53, %p54
    %p56 = scmp.ne.s32.totalorder %s47, %s48
    %p57 = scmp.eq.s32.totalorder %s16, 0
    %p58 = por %p56, %p57
    %p59 = scmp.ne.s32.totalorder %s47, %s48
    %p60 = scmp.eq.s32.totalorder %s17, 1
    %p61 = por %p59, %p60
    %p63 = scmp.ne.s32.totalorder %s48, %s62
    %p64 = scmp.eq.s32.totalorder %s17, 0
    %p65 = por %p63, %p64
    %s67 = sadd.s32 %s66, 1
    %p70 = scmp.eq.s32.totalorder %s11, 1
    %p71 = scmp.ne.s32.totalorder %s66, %s68
    %p72 = scmp.eq.s32.totalorder %s11, 0
    %p73 = por %p71, %p72
    %p74 = scmp.ne.s32.totalorder %s66, %s68
    %p75 = scmp.eq.s32.totalorder %s16, 1
    %p76 = por %p74, %p75
    %p77 = scmp.ne.s32.totalorder %s68, %s69
    %p78 = scmp.eq.s32.totalorder %s16, 0
    %p79 = por %p77, %p78
    %p80 = scmp.ne.s32.totalorder %s68, %s69
    %p81 = scmp.eq.s32.totalorder %s17, 1
    %p82 = por %p80, %p81
    %p84 = scmp.ne.s32.totalorder %s69, %s83
    %p85 = scmp.eq.s32.totalorder %s17, 0
    %p86 = por %p84, %p85
    %s88 = sadd.s32 %s87, 1
    %p91 = scmp.eq.s32.totalorder %s11, 1
    %p92 = scmp.ne.s32.totalorder %s87, %s89
    %p93 = scmp.eq.s32.totalorder %s11, 0
    %p94 = por %p92, %p93
    %p95 = scmp.ne.s32.totalorder %s87, %s89
    %p96 = scmp.eq.s32.totalorder %s16, 1
    %p97 = por %p95, %p96
    %p98 = scmp.ne.s32.totalorder %s89, %s90
    %p99 = scmp.eq.s32.totalorder %s16, 0
    %p100 = por %p98, %p99
    %p101 = scmp.ne.s32.totalorder %s89, %s90
    %p102 = scmp.eq.s32.totalorder %s17, 1
    %p103 = por %p101, %p102
    %p105 = scmp.ne.s32.totalorder %s90, %s104
    %p106 = scmp.eq.s32.totalorder %s17, 0
    %p107 = por %p105, %p106
    %s109 = sadd.s32 %s108, 1
    %p112 = scmp.eq.s32.totalorder %s11, 1
    %p113 = scmp.ne.s32.totalorder %s108, %s110
    %p114 = scmp.eq.s32.totalorder %s11, 0
    %p115 = por %p113, %p114
    %p116 = scmp.ne.s32.totalorder %s108, %s110
    %p117 = scmp.eq.s32.totalorder %s16, 1
    %p118 = por %p116, %p117
    %p119 = scmp.ne.s32.totalorder %s110, %s111
    %p120 = scmp.eq.s32.totalorder %s16, 0
    %p121 = por %p119, %p120
    %p122 = scmp.ne.s32.totalorder %s110, %s111
    %p123 = scmp.eq.s32.totalorder %s17, 1
    %p124 = por %p122, %p123
    %p126 = scmp.ne.s32.totalorder %s111, %s125
    %p127 = scmp.eq.s32.totalorder %s17, 0
    %p128 = por %p126, %p127
    %s129 = ssub.s32 %s11, %s18
    %p130 = scmp.eq.s32.totalorder %s129, 0
    %s132 = sadd.s32 %s131, 1
    %s133 = scalar_select %p130, %s131, %s132
    %p136 = pneg %p130
    %p137 = scmp.eq.s32.totalorder %s11, 1
    %p138 = por %p136, %p137
    %p139 = scmp.ne.s32.totalorder %s131, %s134
    %p140 = scmp.eq.s32.totalorder %s11, 0
    %p141 = por %p139, %p140
    %p142 = scmp.ne.s32.totalorder %s131, %s134
    %p143 = scmp.eq.s32.totalorder %s16, 1
    %p144 = por %p142, %p143
    %p145 = scmp.ne.s32.totalorder %s134, %s135
    %p146 = scmp.eq.s32.totalorder %s16, 0
    %p147 = por %p145, %p146
    %p148 = scmp.ne.s32.totalorder %s134, %s135
    %p149 = scmp.eq.s32.totalorder %s17, 1
    %p150 = por %p148, %p149
    %p152 = scmp.ne.s32.totalorder %s135, %s151
    %p153 = scmp.eq.s32.totalorder %s17, 0
    %p154 = por %p152, %p153
    %p155 = scmp.le.s32.totalorder 1, %s11
    %p156 = scmp.lt.s32.totalorder %s11, 3
    %p157 = pnand %p155, %p156
    %p158 = pneg %p157
    // Predicated region
    $region9: #{unet_innermost_block.1} parent=5 // pred_check
      _
    $region10: #{unet_innermost_block.1} parent=5 // pred_check_branch
      %160 = sbr.rel (%p157) target = $region12
    $region11: #{unet_innermost_block.1} parent=5 // pred_region
      %s161 = ssub.s32 %s11, 1
      // Predicated region
      $region13: #{unet_innermost_block.1} parent=11 // pred_check
        %p162 = pneg %p58
      $region14: #{unet_innermost_block.1} parent=11 // pred_check_branch
        %164 = sbr.rel (%p162) target = $region16
      $region15: #{unet_innermost_block.1} parent=11 // pred_region
        _
      $region16: #{unet_innermost_block.1} parent=11 // pred_fallthru
        _
      // Predicated region
      $region17: #{unet_innermost_block.1} parent=11 // pred_check
        %p165 = pneg %p79
      $region18: #{unet_innermost_block.1} parent=11 // pred_check_branch
        %167 = sbr.rel (%p165) target = $region20
      $region19: #{unet_innermost_block.1} parent=11 // pred_region
        _
      $region20: #{unet_innermost_block.1} parent=11 // pred_fallthru
        _
      // Predicated region
      $region21: #{unet_innermost_block.1} parent=11 // pred_check
        %p168 = pneg %p100
      $region22: #{unet_innermost_block.1} parent=11 // pred_check_branch
        %170 = sbr.rel (%p168) target = $region24
      $region23: #{unet_innermost_block.1} parent=11 // pred_region
        _
      $region24: #{unet_innermost_block.1} parent=11 // pred_fallthru
        _
      // Predicated region
      $region25: #{unet_innermost_block.1} parent=11 // pred_check
        %p171 = pneg %p121
      $region26: #{unet_innermost_block.1} parent=11 // pred_check_branch
        %173 = sbr.rel (%p171) target = $region28
      $region27: #{unet_innermost_block.1} parent=11 // pred_region
        _
      $region28: #{unet_innermost_block.1} parent=11 // pred_fallthru
        _
    $region12: #{unet_innermost_block.1} parent=5 // pred_fallthru
      _
    %p174 = scmp.lt.s32.totalorder %s11, 2
    // Predicated region
    $region29: #{unet_innermost_block.1} parent=5 // pred_check
      %p175 = pneg %p174
    $region30: #{unet_innermost_block.1} parent=5 // pred_check_branch
      %177 = sbr.rel (%p175) target = $region32
    $region31: #{unet_innermost_block.1} parent=5 // pred_region
      // Predicated region
      $region33: #{unet_innermost_block.1} parent=31 // pred_check
        %p178 = pneg %p31
      $region34: #{unet_innermost_block.1} parent=31 // pred_check_branch
        %180 = sbr.rel (%p178) target = $region36
      $region35: #{unet_innermost_block.1} parent=31 // pred_region
        %p181 = scmp.lt.s32.totalorder %s11, 1
        %s182 = scalar_select %p181, %s11, 1
        %s183 = smul.addr %s182, 80
        %s184 = smul.addr %s183, 8
        %s185 = scalar_lea.vmem %s0, %s184
      $region36: #{unet_innermost_block.1} parent=31 // pred_fallthru
        _
    $region32: #{unet_innermost_block.1} parent=5 // pred_fallthru
      _
    %p186 = scmp.le.s32.totalorder 1, %s11
    %p187 = scmp.lt.s32.totalorder %s11, 3
    %p188 = pnand %p186, %p187
    %p189 = pneg %p188
    // Predicated region
    $region37: #{unet_innermost_block.1} parent=5 // pred_check
      _
    $region38: #{unet_innermost_block.1} parent=5 // pred_check_branch
      %191 = sbr.rel (%p188) target = $region40
    $region39: #{unet_innermost_block.1} parent=5 // pred_region
      %s192 = ssub.s32 %s11, 1
      %p193 = scmp.lt.s32.totalorder %s16, 1
      %s194 = scalar_select %p193, %s16, 1
      %s195 = smul.addr %s194, 80
      %s196 = smul.addr %s195, 8
      %s197 = scalar_lea.vmem %s0, %s196
      %p198 = pneg %p37
      %p199 = pneg %p34
      %p200 = pneg %p58
      %p201 = pneg %p55
      %p202 = pneg %p79
      %p203 = pneg %p76
      %p204 = pneg %p100
      %p205 = pneg %p97
      %p206 = pneg %p121
      %p207 = pneg %p118
      %p208 = pneg %p147
      %p209 = pneg %p144
      %p210 = scmp.lt.s32.totalorder %s16, 1
      %s211 = scalar_select %p210, %s16, 1
      %s212 = smul.addr %s211, 32
      %s213 = smul.addr %s212, 8
      %s214 = scalar_lea.vmem %s5, %s213
      %p215 = scmp.lt.s32.totalorder %s16, 1
      %s216 = scalar_select %p215, %s16, 1
      %s217 = smul.addr %s216, 80
      %s218 = smul.addr %s217, 8
      %s219 = scalar_lea.vmem %s0, %s218
      %p220 = scmp.lt.s32.totalorder %s16, 1
      %s221 = scalar_select %p220, %s16, 1
      %s222 = smul.addr %s221, 32
      %s223 = smul.addr %s222, 8
      %s224 = scalar_lea.vmem %s5, %s223
      %v225 = vld [vmem:[%s219 + $0x10] sm:$0xff]
      %v226 = vld [vmem:[%s219 + $0x18] sm:$0x3]
      %v227 = vld [vmem:[%s219 + $0x20] sm:$0xff]
      %v228 = vld [vmem:[%s219 + $0x28] sm:$0x3]
      %v229 = vld [vmem:[%s219 + $0x30] sm:$0xff]
      %v230 = vld [vmem:[%s219 + $0x38] sm:$0x3]
      %v231 = vld [vmem:[%s219 + $0x40] sm:$0xff]
      %v232 = vld [vmem:[%s219 + $0x48] sm:$0x3]
      %v233 = vld [vmem:[%s219 + $0x50] sm:$0xff]
      %v234 = vld [vmem:[%s219 + $0x58] sm:$0x3]
      %v235 = vld [vmem:[%s219 + $0x60] sm:$0xff]
      %v236 = vld [vmem:[%s219 + $0x68] sm:$0x3]
      %v237 = vld [vmem:[%s219 + $0x70] sm:$0xff]
      %v238 = vld [vmem:[%s219 + $0x78] sm:$0x3]
      %v239 = vld [vmem:[%s219 + $0x80] sm:$0xff]
      %v240 = vld [vmem:[%s219 + $0x88] sm:$0x3]
      %v241 = vld [vmem:[%s219 + $0x90] sm:$0xff]
      %v242 = vld [vmem:[%s219 + $0x98] sm:$0x3]
      %vm243 = vcmp.gt.f32.partialorder %v225, 0.0
      %vm244 = vcmp.gt.f32.partialorder %v226, 0.0
      %vm245 = vcmp.gt.f32.partialorder %v227, 0.0
      %vm246 = vcmp.gt.f32.partialorder %v228, 0.0
      %vm247 = vcmp.gt.f32.partialorder %v229, 0.0
      %vm248 = vcmp.gt.f32.partialorder %v230, 0.0
      %vm249 = vcmp.gt.f32.partialorder %v231, 0.0
      %vm250 = vcmp.gt.f32.partialorder %v232, 0.0
      %vm251 = vcmp.gt.f32.partialorder %v233, 0.0
      %vm252 = vcmp.gt.f32.partialorder %v234, 0.0
      %vm253 = vcmp.gt.f32.partialorder %v235, 0.0
      %vm254 = vcmp.gt.f32.partialorder %v236, 0.0
      %vm255 = vcmp.gt.f32.partialorder %v237, 0.0
      %vm256 = vcmp.gt.f32.partialorder %v238, 0.0
      %vm257 = vcmp.gt.f32.partialorder %v239, 0.0
      %vm258 = vcmp.gt.f32.partialorder %v240, 0.0
      %vm259 = vcmp.gt.f32.partialorder %v241, 0.0
      %vm260 = vcmp.gt.f32.partialorder %v242, 0.0
      %v261 = vmul.f32 %v225, 0.2
      %v262 = vmul.f32 %v226, 0.2
      %v263 = vmul.f32 %v227, 0.2
      %v264 = vmul.f32 %v228, 0.2
      %v265 = vmul.f32 %v229, 0.2
      %v266 = vmul.f32 %v230, 0.2
      %v267 = vmul.f32 %v231, 0.2
      %v268 = vmul.f32 %v232, 0.2
      %v269 = vmul.f32 %v233, 0.2
      %v270 = vmul.f32 %v234, 0.2
      %v271 = vmul.f32 %v235, 0.2
      %v272 = vmul.f32 %v236, 0.2
      %v273 = vmul.f32 %v237, 0.2
      %v274 = vmul.f32 %v238, 0.2
      %v275 = vmul.f32 %v239, 0.2
      %v276 = vmul.f32 %v240, 0.2
      %v277 = vmul.f32 %v241, 0.2
      %v278 = vmul.f32 %v242, 0.2
      %v279 = vsel %vm243, %v225, %v261
      %v280 = vsel %vm244, %v226, %v262
      %v281 = vsel %vm245, %v227, %v263
      %v282 = vsel %vm246, %v228, %v264
      %v283 = vsel %vm247, %v229, %v265
      %v284 = vsel %vm248, %v230, %v266
      %v285 = vsel %vm249, %v231, %v267
      %v286 = vsel %vm250, %v232, %v268
      %v287 = vsel %vm251, %v233, %v269
      %v288 = vsel %vm252, %v234, %v270
      %v289 = vsel %vm253, %v235, %v271
      %v290 = vsel %vm254, %v236, %v272
      %v291 = vsel %vm255, %v237, %v273
      %v292 = vsel %vm256, %v238, %v274
      %v293 = vsel %vm257, %v239, %v275
      %v294 = vsel %vm258, %v240, %v276
      %v295 = vsel %vm259, %v241, %v277
      %v296 = vsel %vm260, %v242, %v278
      %v297 = vld [vmem:[%s1] sm:$0xff]
      %v298 = vld [vmem:[%s1 + $0x8] sm:$0xff]
      %vm315 = vcmask 1046528
      %v316 = vrot.slane %v279, 1
      %v317 = vrot.slane %v280, 1
      %v318 = vsel %vm315, %v316, %v317
      %v319 = vrot.slane %v281, 1
      %v320 = vrot.slane %v282, 1
      %v321 = vsel %vm315, %v319, %v320
      %v322 = vrot.slane %v283, 1
      %v323 = vrot.slane %v284, 1
      %v324 = vsel %vm315, %v322, %v323
      %v325 = vrot.slane %v285, 1
      %v326 = vrot.slane %v286, 1
      %v327 = vsel %vm315, %v325, %v326
      %v328 = vrot.slane %v287, 1
      %v329 = vrot.slane %v288, 1
      %v330 = vsel %vm315, %v328, %v329
      %v331 = vrot.slane %v289, 1
      %v332 = vrot.slane %v290, 1
      %v333 = vsel %vm315, %v331, %v332
      %v334 = vrot.slane %v291, 1
      %v335 = vrot.slane %v292, 1
      %v336 = vsel %vm315, %v334, %v335
      %v337 = vrot.slane %v293, 1
      %v338 = vrot.slane %v294, 1
      %v339 = vsel %vm315, %v337, %v338
      %vm340 = vcmask 1045504
      %v341 = vrot.slane %v279, 2
      %v342 = vrot.slane %v280, 2
      %v343 = vsel %vm340, %v341, %v342
      %v344 = vrot.slane %v281, 2
      %v345 = vrot.slane %v282, 2
      %v346 = vsel %vm340, %v344, %v345
      %v347 = vrot.slane %v283, 2
      %v348 = vrot.slane %v284, 2
      %v349 = vsel %vm340, %v347, %v348
      %v350 = vrot.slane %v285, 2
      %v351 = vrot.slane %v286, 2
      %v352 = vsel %vm340, %v350, %v351
      %v353 = vrot.slane %v287, 2
      %v354 = vrot.slane %v288, 2
      %v355 = vsel %vm340, %v353, %v354
      %v356 = vrot.slane %v289, 2
      %v357 = vrot.slane %v290, 2
      %v358 = vsel %vm340, %v356, %v357
      %v359 = vrot.slane %v291, 2
      %v360 = vrot.slane %v292, 2
      %v361 = vsel %vm340, %v359, %v360
      %v362 = vrot.slane %v293, 2
      %v363 = vrot.slane %v294, 2
      %v364 = vsel %vm340, %v362, %v363
      %v366 = vrot.slane %v297, 4
      %vm367 = vcmask 31744
      %v368 = vsel %vm367, %v343, 0
      %v370 = vsel %vm367, %v346, 0
      %v372 = vsel %vm367, %v349, 0
      %v374 = vsel %vm367, %v352, 0
      %v376 = vsel %vm367, %v355, 0
      %v378 = vsel %vm367, %v358, 0
      %v380 = vsel %vm367, %v361, 0
      %v382 = vsel %vm367, %v364, 0
      %vm384 = vcmask 1043456
      %v385 = vsel %vm384, %v366, 0
      %387 = vmatprep.subr.mxu0 0.0
      %388 = vmatpush1.msra.mxu0 %v385
      %389 = vmatprep.subr.mxu0 0.0
      %390 = vmatpush1.msra.mxu0 0.0
      %391 = vmatprep.subr.mxu0 0.0
      %392 = vmatpush1.msra.mxu0 0.0
      %393 = vmatprep.subr.mxu0 0.0
      %394 = vmatpush1.msra.mxu0 0.0
      %395 = vmatprep.subr.mxu0 0.0
      %396 = vmatpush1.msra.mxu0 0.0
      %397 = vmatprep.subr.mxu0 0.0
      %398 = vmatpush1.msra.mxu0 0.0
      %399 = vmatprep.subr.mxu0 0.0
      %400 = vmatpush1.msra.mxu0 0.0
      %401 = vmatprep.subr.mxu0 0.0
      %402 = vmatpush1.msra.mxu0 0.0
      %403 = vmatprep.subr.mxu0 0.0
      %404 = vmatpush1.msra.mxu0 0.0
      %405 = vmatprep.subr.mxu0 0.0
      %406 = vmatpush1.msra.mxu0 0.0
      %407 = vmatprep.subr.mxu0 0.0
      %408 = vmatpush1.msra.mxu0 0.0
      %409 = vmatprep.subr.mxu0 0.0
      %410 = vmatpush1.msra.mxu0 0.0
      %411 = vmatprep.subr.mxu0 0.0
      %412 = vmatpush1.msra.mxu0 0.0
      %413 = vmatprep.subr.mxu0 0.0
      %414 = vmatpush1.msra.mxu0 0.0
      %415 = vmatprep.subr.mxu0 0.0
      %416 = vmatpush1.msra.mxu0 0.0
      %417 = vmatprep.subr.mxu0 0.0
      %418 = vmatpush1.msra.mxu0 0.0
      %419 = vmatprep.subr.mxu0 0.0
      %420 = vmatpush1.msra.mxu0 0.0
      %421 = vmatprep.subr.mxu0 0.0
      %422 = vmatpush1.msra.mxu0 0.0
      %423 = vmatprep.subr.mxu0 0.0
      %424 = vmatpush1.msra.mxu0 0.0
      %425 = vmatprep.subr.mxu0 0.0
      %426 = vmatpush1.msra.mxu0 0.0
      %427 = vmatprep.subr.mxu0 0.0
      %428 = vmatpush1.msra.mxu0 0.0
      %429 = vmatprep.subr.mxu0 0.0
      %430 = vmatpush1.msra.mxu0 0.0
      %431 = vmatprep.subr.mxu0 0.0
      %432 = vmatpush1.msra.mxu0 0.0
      %433 = vmatprep.subr.mxu0 0.0
      %434 = vmatpush1.msra.mxu0 0.0
      %435 = vmatprep.subr.mxu0 0.0
      %436 = vmatpush1.msra.mxu0 0.0
      %437 = vmatprep.subr.mxu0 0.0
      %438 = vmatpush1.msra.mxu0 0.0
      %439 = vmatprep.subr.mxu0 0.0
      %440 = vmatpush1.msra.mxu0 0.0
      %441 = vmatprep.subr.mxu0 0.0
      %442 = vmatpush1.msra.mxu0 0.0
      %443 = vmatprep.subr.mxu0 0.0
      %444 = vmatpush1.msra.mxu0 0.0
      %445 = vmatprep.subr.mxu0 0.0
      %446 = vmatpush1.msra.mxu0 0.0
      %447 = vmatprep.subr.mxu0 0.0
      %448 = vmatpush1.msra.mxu0 0.0
      %449 = vmatprep.subr.mxu0 0.0
      %450 = vmatpush1.msra.mxu0 0.0
      %451 = vmatprep.mubr.f32.mxu0 0.0
      %452 = vmatmul.mubr.f32.gmra.mrb[0].mxu0 %v368
      %v453 = vpop.f32.mrb[0].mxu0
      %v454 = vadd.f32 0.0, %v453
      %v455 = vpop.f32.mrb[0].mxu0
      %456 = vmatprep.mubr.f32.mxu0 0.0
      %457 = vmatmul.mubr.f32.gmra.mrb[0].mxu0 %v370
      %v458 = vpop.f32.mrb[0].mxu0
      %v459 = vadd.f32 0.0, %v458
      %v460 = vpop.f32.mrb[0].mxu0
      %461 = vmatprep.mubr.f32.mxu0 0.0
      %462 = vmatmul.mubr.f32.gmra.mrb[0].mxu0 %v372
      %v463 = vpop.f32.mrb[0].mxu0
      %v464 = vadd.f32 0.0, %v463
      %v465 = vpop.f32.mrb[0].mxu0
      %466 = vmatprep.mubr.f32.mxu0 0.0
      %467 = vmatmul.mubr.f32.gmra.mrb[0].mxu0 %v374
      %v468 = vpop.f32.mrb[0].mxu0
      %v469 = vadd.f32 0.0, %v468
      %v470 = vpop.f32.mrb[0].mxu0
      %471 = vmatprep.mubr.f32.mxu0 0.0
      %472 = vmatmul.mubr.f32.gmra.mrb[0].mxu0 %v376
      %v473 = vpop.f32.mrb[0].mxu0
      %v474 = vadd.f32 0.0, %v473
      %v475 = vpop.f32.mrb[0].mxu0
      %476 = vmatprep.mubr.f32.mxu0 0.0
      %477 = vmatmul.mubr.f32.gmra.mrb[0].mxu0 %v378
      %v478 = vpop.f32.mrb[0].mxu0
      %v479 = vadd.f32 0.0, %v478
      %v480 = vpop.f32.mrb[0].mxu0
      %481 = vmatprep.mubr.f32.mxu0 0.0
      %482 = vmatmul.mubr.f32.gmra.mrb[0].mxu0 %v380
      %v483 = vpop.f32.mrb[0].mxu0
      %v484 = vadd.f32 0.0, %v483
      %v485 = vpop.f32.mrb[0].mxu0
      %486 = vmatprep.mubr.f32.mxu0 0.0
      %487 = vmatmul.mubr.f32.gmra.mrb[0].mxu0 %v382
      %v488 = vpop.f32.mrb[0].mxu0
      %v489 = vadd.f32 0.0, %v488
      %v490 = vpop.f32.mrb[0].mxu0
      %491 = vdwg.mxu0
      %v492 = vsel %vm367, %v318, 0
      %v494 = vsel %vm367, %v321, 0
      %v496 = vsel %vm367, %v324, 0
      %v498 = vsel %vm367, %v327, 0
      %v500 = vsel %vm367, %v330, 0
      %v502 = vsel %vm367, %v333, 0
      %v504 = vsel %vm367, %v336, 0
      %v506 = vsel %vm367, %v339, 0
      %v508 = vsel %vm384, %v297, 0
      %510 = vmatprep.subr.mxu0 0.0
      %511 = vmatpush1.msra.mxu0 %v508
      %512 = vmatprep.subr.mxu0 0.0
      %513 = vmatpush1.msra.mxu0 0.0
      %514 = vmatprep.subr.mxu0 0.0
      %515 = vmatpush1.msra.mxu0 0.0
      %516 = vmatprep.subr.mxu0 0.0
      %517 = vmatpush1.msra.mxu0 0.0
      %518 = vmatprep.subr.mxu0 0.0
      %519 = vmatpush1.msra.mxu0 0.0
      %520 = vmatprep.subr.mxu0 0.0
      %521 = vmatpush1.msra.mxu0 0.0
      %522 = vmatprep.subr.mxu0 0.0
      %523 = vmatpush1.msra.mxu0 0.0
      %524 = vmatprep.subr.mxu0 0.0
      %525 = vmatpush1.msra.mxu0 0.0
      %526 = vmatprep.subr.mxu0 0.0
      %527 = vmatpush1.msra.mxu0 0.0
      %528 = vmatprep.subr.mxu0 0.0
      %529 = vmatpush1.msra.mxu0 0.0
      %530 = vmatprep.subr.mxu0 0.0
      %531 = vmatpush1.msra.mxu0 0.0
      %532 = vmatprep.subr.mxu0 0.0
      %533 = vmatpush1.msra.mxu0 0.0
      %534 = vmatprep.subr.mxu0 0.0
      %535 = vmatpush1.msra.mxu0 0.0
      %536 = vmatprep.subr.mxu0 0.0
      %537 = vmatpush1.msra.mxu0 0.0
      %538 = vmatprep.subr.mxu0 0.0
      %539 = vmatpush1.msra.mxu0 0.0
      %540 = vmatprep.subr.mxu0 0.0
      %541 = vmatpush1.msra.mxu0 0.0
      %542 = vmatprep.subr.mxu0 0.0
      %543 = vmatpush1.msra.mxu0 0.0
      %544 = vmatprep.subr.mxu0 0.0
      %545 = vmatpush1.msra.mxu0 0.0
      %546 = vmatprep.subr.mxu0 0.0
      %547 = vmatpush1.msra.mxu0 0.0
      %548 = vmatprep.subr.mxu0 0.0
      %549 = vmatpush1.msra.mxu0 0.0
      %550 = vmatprep.subr.mxu0 0.0
      %551 = vmatpush1.msra.mxu0 0.0
      %552 = vmatprep.subr.mxu0 0.0
      %553 = vmatpush1.msra.mxu0 0.0
      %554 = vmatprep.subr.mxu0 0.0
      %555 = vmatpush1.msra.mxu0 0.0
      %556 = vmatprep.subr.mxu0 0.0
      %557 = vmatpush1.msra.mxu0 0.0
      %558 = vmatprep.subr.mxu0 0.0
      %559 = vmatpush1.msra.mxu0 0.0
      %560 = vmatprep.subr.mxu0 0.0
      %561 = vmatpush1.msra.mxu0 0.0
      %562 = vmatprep.subr.mxu0 0.0
      %563 = vmatpush1.msra.mxu0 0.0
      %564 = vmatprep.subr.mxu0 0.0
      %565 = vmatpush1.msra.mxu0 0.0
      %566 = vmatprep.subr.mxu0 0.0
      %567 = vmatpush1.msra.mxu0 0.0
      %568 = vmatprep.subr.mxu0 0.0
      %569 = vmatpush1.msra.mxu0 0.0
      %570 = vmatprep.subr.mxu0 0.0
      %571 = vmatpush1.msra.mxu0 0.0
      %572 = vmatprep.subr.mxu0 0.0
      %573 = vmatpush1.msra.mxu0 0.0
      %574 = vmatprep.mubr.f32.mxu0 0.0
      %575 = vmatmul.mubr.f32.gmra.mrb[0].mxu0 %v492
      %v576 = vpop.f32.mrb[0].mxu0
      %v577 = vadd.f32 %v454, %v576
      %v578 = vpop.f32.mrb[0].mxu0
      %579 = vmatprep.mubr.f32.mxu0 0.0
      %580 = vmatmul.mubr.f32.gmra.mrb[0].mxu0 %v494
      %v581 = vpop.f32.mrb[0].mxu0
      %v582 = vadd.f32 %v459, %v581
      %v583 = vpop.f32.mrb[0].mxu0
      %584 = vmatprep.mubr.f32.mxu0 0.0
      %585 = vmatmul.mubr.f32.gmra.mrb[0].mxu0 %v496
      %v586 = vpop.f32.mrb[0].mxu0
      %v587 = vadd.f32 %v464, %v586
      %v588 = vpop.f32.mrb[0].mxu0
      %589 = vmatprep.mubr.f32.mxu0 0.0
      %590 = vmatmul.mubr.f32.gmra.mrb[0].mxu0 %v498
      %v591 = vpop.f32.mrb[0].mxu0
      %v592 = vadd.f32 %v469, %v591
      %v593 = vpop.f32.mrb[0].mxu0
      %594 = vmatprep.mubr.f32.mxu0 0.0
      %595 = vmatmul.mubr.f32.gmra.mrb[0].mxu0 %v500
      %v596 = vpop.f32.mrb[0].mxu0
      %v597 = vadd.f32 %v474, %v596
      %v598 = vpop.f32.mrb[0].mxu0
      %599 = vmatprep.mubr.f32.mxu0 0.0
      %600 = vmatmul.mubr.f32.gmra.mrb[0].mxu0 %v502
      %v601 = vpop.f32.mrb[0].mxu0
      %v602 = vadd.f32 %v479, %v601
      %v603 = vpop.f32.mrb[0].mxu0
      %604 = vmatprep.mubr.f32.mxu0 0.0
      %605 = vmatmul.mubr.f32.gmra.mrb[0].mxu0 %v504
      %v606 = vpop.f32.mrb[0].mxu0
      %v607 = vadd.f32 %v484, %v606
      %v608 = vpop.f32.mrb[0].mxu0
      %609 = vmatprep.mubr.f32.mxu0 0.0
      %610 = vmatmul.mubr.f32.gmra.mrb[0].mxu0 %v506
      %v611 = vpop.f32.mrb[0].mxu0
      %v612 = vadd.f32 %v489, %v611
      %v613 = vpop.f32.mrb[0].mxu0
      %614 = vdwg.mxu0
      %v617 = vrot.slane %v295, 1
      %v618 = vrot.slane %v296, 1
      %v619 = vsel %vm315, %v617, %v618
      %v620 = vsel %vm367, %v619, 0
      %v623 = vsel %vm384, %v298, 0
      %625 = vmatprep.subr.mxu0 0.0
      %626 = vmatpush1.msra.mxu0 %v623
      %627 = vmatprep.subr.mxu0 0.0
      %628 = vmatpush1.msra.mxu0 0.0
      %629 = vmatprep.subr.mxu0 0.0
      %630 = vmatpush1.msra.mxu0 0.0
      %631 = vmatprep.subr.mxu0 0.0
      %632 = vmatpush1.msra.mxu0 0.0
      %633 = vmatprep.subr.mxu0 0.0
      %634 = vmatpush1.msra.mxu0 0.0
      %635 = vmatprep.subr.mxu0 0.0
      %636 = vmatpush1.msra.mxu0 0.0
      %637 = vmatprep.subr.mxu0 0.0
      %638 = vmatpush1.msra.mxu0 0.0
      %639 = vmatprep.subr.mxu0 0.0
      %640 = vmatpush1.msra.mxu0 0.0
      %641 = vmatprep.subr.mxu0 0.0
      %642 = vmatpush1.msra.mxu0 0.0
      %643 = vmatprep.subr.mxu0 0.0
      %644 = vmatpush1.msra.mxu0 0.0
      %645 = vmatprep.subr.mxu0 0.0
      %646 = vmatpush1.msra.mxu0 0.0
      %647 = vmatprep.subr.mxu0 0.0
      %648 = vmatpush1.msra.mxu0 0.0
      %649 = vmatprep.subr.mxu0 0.0
      %650 = vmatpush1.msra.mxu0 0.0
      %651 = vmatprep.subr.mxu0 0.0
      %652 = vmatpush1.msra.mxu0 0.0
      %653 = vmatprep.subr.mxu0 0.0
      %654 = vmatpush1.msra.mxu0 0.0
      %655 = vmatprep.subr.mxu0 0.0
      %656 = vmatpush1.msra.mxu0 0.0
      %657 = vmatprep.subr.mxu0 0.0
      %658 = vmatpush1.msra.mxu0 0.0
      %659 = vmatprep.subr.mxu0 0.0
      %660 = vmatpush1.msra.mxu0 0.0
      %661 = vmatprep.subr.mxu0 0.0
      %662 = vmatpush1.msra.mxu0 0.0
      %663 = vmatprep.subr.mxu0 0.0
      %664 = vmatpush1.msra.mxu0 0.0
      %665 = vmatprep.subr.mxu0 0.0
      %666 = vmatpush1.msra.mxu0 0.0
      %667 = vmatprep.subr.mxu0 0.0
      %668 = vmatpush1.msra.mxu0 0.0
      %669 = vmatprep.subr.mxu0 0.0
      %670 = vmatpush1.msra.mxu0 0.0
      %671 = vmatprep.subr.mxu0 0.0
      %672 = vmatpush1.msra.mxu0 0.0
      %673 = vmatprep.subr.mxu0 0.0
      %674 = vmatpush1.msra.mxu0 0.0
      %675 = vmatprep.subr.mxu0 0.0
      %676 = vmatpush1.msra.mxu0 0.0
      %677 = vmatprep.subr.mxu0 0.0
      %678 = vmatpush1.msra.mxu0 0.0
      %679 = vmatprep.subr.mxu0 0.0
      %680 = vmatpush1.msra.mxu0 0.0
      %681 = vmatprep.subr.mxu0 0.0
      %682 = vmatpush1.msra.mxu0 0.0
      %683 = vmatprep.subr.mxu0 0.0
      %684 = vmatpush1.msra.mxu0 0.0
      %685 = vmatprep.subr.mxu0 0.0
      %686 = vmatpush1.msra.mxu0 0.0
      %687 = vmatprep.subr.mxu0 0.0
      %688 = vmatpush1.msra.mxu0 0.0
      %689 = vmatprep.mubr.f32.mxu0 0.0
      %690 = vmatmul.mubr.f32.gmra.mrb[0].mxu0 %v494
      %v691 = vpop.f32.mrb[0].mxu0
      %v692 = vadd.f32 0.0, %v691
      %v693 = vpop.f32.mrb[0].mxu0
      %694 = vmatprep.mubr.f32.mxu0 0.0
      %695 = vmatmul.mubr.f32.gmra.mrb[0].mxu0 %v496
      %v696 = vpop.f32.mrb[0].mxu0
      %v697 = vadd.f32 0.0, %v696
      %v698 = vpop.f32.mrb[0].mxu0
      %699 = vmatprep.mubr.f32.mxu0 0.0
      %700 = vmatmul.mubr.f32.gmra.mrb[0].mxu0 %v498
      %v701 = vpop.f32.mrb[0].mxu0
      %v702 = vadd.f32 0.0, %v701
      %v703 = vpop.f32.mrb[0].mxu0
      %704 = vmatprep.mubr.f32.mxu0 0.0
      %705 = vmatmul.mubr.f32.gmra.mrb[0].mxu0 %v500
      %v706 = vpop.f32.mrb[0].mxu0
      %v707 = vadd.f32 0.0, %v706
      %v708 = vpop.f32.mrb[0].mxu0
      %709 = vmatprep.mubr.f32.mxu0 0.0
      %710 = vmatmul.mubr.f32.gmra.mrb[0].mxu0 %v502
      %v711 = vpop.f32.mrb[0].mxu0
      %v712 = vadd.f32 0.0, %v711
      %v713 = vpop.f32.mrb[0].mxu0
      %714 = vmatprep.mubr.f32.mxu0 0.0
      %715 = vmatmul.mubr.f32.gmra.mrb[0].mxu0 %v504
      %v716 = vpop.f32.mrb[0].mxu0
      %v717 = vadd.f32 0.0, %v716
      %v718 = vpop.f32.mrb[0].mxu0
      %719 = vmatprep.mubr.f32.mxu0 0.0
      %720 = vmatmul.mubr.f32.gmra.mrb[0].mxu0 %v506
      %v721 = vpop.f32.mrb[0].mxu0
      %v722 = vadd.f32 0.0, %v721
      %v723 = vpop.f32.mrb[0].mxu0
      %724 = vmatprep.mubr.f32.mxu0 0.0
      %725 = vmatmul.mubr.f32.gmra.mrb[0].mxu0 %v620
      %v726 = vpop.f32.mrb[0].mxu0
      %v727 = vadd.f32 0.0, %v726
      %v728 = vpop.f32.mrb[0].mxu0
      %729 = vdwg.mxu0
      %v730 = vadd.f32 %v577, %v692
      %v731 = vadd.f32 %v582, %v697
      %v732 = vadd.f32 %v587, %v702
      %v733 = vadd.f32 %v592, %v707
      %v734 = vadd.f32 %v597, %v712
      %v735 = vadd.f32 %v602, %v717
      %v736 = vadd.f32 %v607, %v722
      %v737 = vadd.f32 %v612, %v727
      %v738 = vrot.slane %v295, 2
      %v739 = vrot.slane %v296, 2
      %v740 = vsel %vm340, %v738, %v739
      %v741 = vrot.slane %v298, 4
      %v742 = vsel %vm367, %v740, 0
      %v744 = vsel %vm384, %v741, 0
      %746 = vmatprep.subr.mxu0 0.0
      %747 = vmatpush1.msra.mxu0 %v744
      %748 = vmatprep.subr.mxu0 0.0
      %749 = vmatpush1.msra.mxu0 0.0
      %750 = vmatprep.subr.mxu0 0.0
      %751 = vmatpush1.msra.mxu0 0.0
      %752 = vmatprep.subr.mxu0 0.0
      %753 = vmatpush1.msra.mxu0 0.0
      %754 = vmatprep.subr.mxu0 0.0
      %755 = vmatpush1.msra.mxu0 0.0
      %756 = vmatprep.subr.mxu0 0.0
      %757 = vmatpush1.msra.mxu0 0.0
      %758 = vmatprep.subr.mxu0 0.0
      %759 = vmatpush1.msra.mxu0 0.0
      %760 = vmatprep.subr.mxu0 0.0
      %761 = vmatpush1.msra.mxu0 0.0
      %762 = vmatprep.subr.mxu0 0.0
      %763 = vmatpush1.msra.mxu0 0.0
      %764 = vmatprep.subr.mxu0 0.0
      %765 = vmatpush1.msra.mxu0 0.0
      %766 = vmatprep.subr.mxu0 0.0
      %767 = vmatpush1.msra.mxu0 0.0
      %768 = vmatprep.subr.mxu0 0.0
      %769 = vmatpush1.msra.mxu0 0.0
      %770 = vmatprep.subr.mxu0 0.0
      %771 = vmatpush1.msra.mxu0 0.0
      %772 = vmatprep.subr.mxu0 0.0
      %773 = vmatpush1.msra.mxu0 0.0
      %774 = vmatprep.subr.mxu0 0.0
      %775 = vmatpush1.msra.mxu0 0.0
      %776 = vmatprep.subr.mxu0 0.0
      %777 = vmatpush1.msra.mxu0 0.0
      %778 = vmatprep.subr.mxu0 0.0
      %779 = vmatpush1.msra.mxu0 0.0
      %780 = vmatprep.subr.mxu0 0.0
      %781 = vmatpush1.msra.mxu0 0.0
      %782 = vmatprep.subr.mxu0 0.0
      %783 = vmatpush1.msra.mxu0 0.0
      %784 = vmatprep.subr.mxu0 0.0
      %785 = vmatpush1.msra.mxu0 0.0
      %786 = vmatprep.subr.mxu0 0.0
      %787 = vmatpush1.msra.mxu0 0.0
      %788 = vmatprep.subr.mxu0 0.0
      %789 = vmatpush1.msra.mxu0 0.0
      %790 = vmatprep.subr.mxu0 0.0
      %791 = vmatpush1.msra.mxu0 0.0
      %792 = vmatprep.subr.mxu0 0.0
      %793 = vmatpush1.msra.mxu0 0.0
      %794 = vmatprep.subr.mxu0 0.0
      %795 = vmatpush1.msra.mxu0 0.0
      %796 = vmatprep.subr.mxu0 0.0
      %797 = vmatpush1.msra.mxu0 0.0
      %798 = vmatprep.subr.mxu0 0.0
      %799 = vmatpush1.msra.mxu0 0.0
      %800 = vmatprep.subr.mxu0 0.0
      %801 = vmatpush1.msra.mxu0 0.0
      %802 = vmatprep.subr.mxu0 0.0
      %803 = vmatpush1.msra.mxu0 0.0
      %804 = vmatprep.subr.mxu0 0.0
      %805 = vmatpush1.msra.mxu0 0.0
      %806 = vmatprep.subr.mxu0 0.0
      %807 = vmatpush1.msra.mxu0 0.0
      %808 = vmatprep.subr.mxu0 0.0
      %809 = vmatpush1.msra.mxu0 0.0
      %810 = vmatprep.mubr.f32.mxu0 0.0
      %811 = vmatmul.mubr.f32.gmra.mrb[0].mxu0 %v370
      %v812 = vpop.f32.mrb[0].mxu0
      %v813 = vadd.f32 0.0, %v812
      %v814 = vpop.f32.mrb[0].mxu0
      %815 = vmatprep.mubr.f32.mxu0 0.0
      %816 = vmatmul.mubr.f32.gmra.mrb[0].mxu0 %v372
      %v817 = vpop.f32.mrb[0].mxu0
      %v818 = vadd.f32 0.0, %v817
      %v819 = vpop.f32.mrb[0].mxu0
      %820 = vmatprep.mubr.f32.mxu0 0.0
      %821 = vmatmul.mubr.f32.gmra.mrb[0].mxu0 %v374
      %v822 = vpop.f32.mrb[0].mxu0
      %v823 = vadd.f32 0.0, %v822
      %v824 = vpop.f32.mrb[0].mxu0
      %825 = vmatprep.mubr.f32.mxu0 0.0
      %826 = vmatmul.mubr.f32.gmra.mrb[0].mxu0 %v376
      %v827 = vpop.f32.mrb[0].mxu0
      %v828 = vadd.f32 0.0, %v827
      %v829 = vpop.f32.mrb[0].mxu0
      %830 = vmatprep.mubr.f32.mxu0 0.0
      %831 = vmatmul.mubr.f32.gmra.mrb[0].mxu0 %v378
      %v832 = vpop.f32.mrb[0].mxu0
      %v833 = vadd.f32 0.0, %v832
      %v834 = vpop.f32.mrb[0].mxu0
      %835 = vmatprep.mubr.f32.mxu0 0.0
      %836 = vmatmul.mubr.f32.gmra.mrb[0].mxu0 %v380
      %v837 = vpop.f32.mrb[0].mxu0
      %v838 = vadd.f32 0.0, %v837
      %v839 = vpop.f32.mrb[0].mxu0
      %840 = vmatprep.mubr.f32.mxu0 0.0
      %841 = vmatmul.mubr.f32.gmra.mrb[0].mxu0 %v382
      %v842 = vpop.f32.mrb[0].mxu0
      %v843 = vadd.f32 0.0, %v842
      %v844 = vpop.f32.mrb[0].mxu0
      %845 = vmatprep.mubr.f32.mxu0 0.0
      %846 = vmatmul.mubr.f32.gmra.mrb[0].mxu0 %v742
      %v847 = vpop.f32.mrb[0].mxu0
      %v848 = vadd.f32 0.0, %v847
      %v849 = vpop.f32.mrb[0].mxu0
      %850 = vdwg.mxu0
      %v851 = vadd.f32 %v730, %v813
      %v852 = vadd.f32 %v731, %v818
      %v853 = vadd.f32 %v732, %v823
      %v854 = vadd.f32 %v733, %v828
      %v855 = vadd.f32 %v734, %v833
      %v856 = vadd.f32 %v735, %v838
      %v857 = vadd.f32 %v736, %v843
      %v858 = vadd.f32 %v737, %v848
      %s859 = scalar_lea.vmem %s219, 160
      %v860 = vld [vmem:[%s859 + $0x10] sm:$0xff]
      %v861 = vld [vmem:[%s859 + $0x18] sm:$0x3]
      %v862 = vld [vmem:[%s859 + $0x20] sm:$0xff]
      %v863 = vld [vmem:[%s859 + $0x28] sm:$0x3]
      %v864 = vld [vmem:[%s859 + $0x30] sm:$0xff]
      %v865 = vld [vmem:[%s859 + $0x38] sm:$0x3]
      %v866 = vld [vmem:[%s859 + $0x40] sm:$0xff]
      %v867 = vld [vmem:[%s859 + $0x48] sm:$0x3]
      %v868 = vld [vmem:[%s859 + $0x50] sm:$0xff]
      %v869 = vld [vmem:[%s859 + $0x58] sm:$0x3]
      %v870 = vld [vmem:[%s859 + $0x60] sm:$0xff]
      %v871 = vld [vmem:[%s859 + $0x68] sm:$0x3]
      %v872 = vld [vmem:[%s859 + $0x70] sm:$0xff]
      %v873 = vld [vmem:[%s859 + $0x78] sm:$0x3]
      %v874 = vld [vmem:[%s859 + $0x80] sm:$0xff]
      %v875 = vld [vmem:[%s859 + $0x88] sm:$0x3]
      %v876 = vld [vmem:[%s859 + $0x90] sm:$0xff]
      %v877 = vld [vmem:[%s859 + $0x98] sm:$0x3]
      %vm878 = vcmp.gt.f32.partialorder %v860, 0.0
      %vm879 = vcmp.gt.f32.partialorder %v861, 0.0
      %vm880 = vcmp.gt.f32.partialorder %v862, 0.0
      %vm881 = vcmp.gt.f32.partialorder %v863, 0.0
      %vm882 = vcmp.gt.f32.partialorder %v864, 0.0
      %vm883 = vcmp.gt.f32.partialorder %v865, 0.0
      %vm884 = vcmp.gt.f32.partialorder %v866, 0.0
      %vm885 = vcmp.gt.f32.partialorder %v867, 0.0
      %vm886 = vcmp.gt.f32.partialorder %v868, 0.0
      %vm887 = vcmp.gt.f32.partialorder %v869, 0.0
      %vm888 = vcmp.gt.f32.partialorder %v870, 0.0
      %vm889 = vcmp.gt.f32.partialorder %v871, 0.0
      %vm890 = vcmp.gt.f32.partialorder %v872, 0.0
      %vm891 = vcmp.gt.f32.partialorder %v873, 0.0
      %vm892 = vcmp.gt.f32.partialorder %v874, 0.0
      %vm893 = vcmp.gt.f32.partialorder %v875, 0.0
      %vm894 = vcmp.gt.f32.partialorder %v876, 0.0
      %vm895 = vcmp.gt.f32.partialorder %v877, 0.0
      %v896 = vmul.f32 %v860, 0.2
      %v897 = vmul.f32 %v861, 0.2
      %v898 = vmul.f32 %v862, 0.2
      %v899 = vmul.f32 %v863, 0.2
      %v900 = vmul.f32 %v864, 0.2
      %v901 = vmul.f32 %v865, 0.2
      %v902 = vmul.f32 %v866, 0.2
      %v903 = vmul.f32 %v867, 0.2
      %v904 = vmul.f32 %v868, 0.2
      %v905 = vmul.f32 %v869, 0.2
      %v906 = vmul.f32 %v870, 0.2
      %v907 = vmul.f32 %v871, 0.2
      %v908 = vmul.f32 %v872, 0.2
      %v909 = vmul.f32 %v873, 0.2
      %v910 = vmul.f32 %v874, 0.2
      %v911 = vmul.f32 %v875, 0.2
      %v912 = vmul.f32 %v876, 0.2
      %v913 = vmul.f32 %v877, 0.2
      %v914 = vsel %vm878, %v860, %v896
      %v915 = vsel %vm879, %v861, %v897
      %v916 = vsel %vm880, %v862, %v898
      %v917 = vsel %vm881, %v863, %v899
      %v918 = vsel %vm882, %v864, %v900
      %v919 = vsel %vm883, %v865, %v901
      %v920 = vsel %vm884, %v866, %v902
      %v921 = vsel %vm885, %v867, %v903
      %v922 = vsel %vm886, %v868, %v904
      %v923 = vsel %vm887, %v869, %v905
      %v924 = vsel %vm888, %v870, %v906
      %v925 = vsel %vm889, %v871, %v907
      %v926 = vsel %vm890, %v872, %v908
      %v927 = vsel %vm891, %v873, %v909
      %v928 = vsel %vm892, %v874, %v910
      %v929 = vsel %vm893, %v875, %v911
      %v930 = vsel %vm894, %v876, %v912
      %v931 = vsel %vm895, %v877, %v913
      %s932 = scalar_lea.vmem %s1, 16
      %v933 = vld [vmem:[%s932] sm:$0xff]
      %v934 = vld [vmem:[%s932 + $0x8] sm:$0xff]
      %v936 = vsel %vm367, %v914, 0
      %v939 = vsel %vm367, %v916, 0
      %v942 = vsel %vm367, %v918, 0
      %v945 = vsel %vm367, %v920, 0
      %v948 = vsel %vm367, %v922, 0
      %v951 = vsel %vm367, %v924, 0
      %v954 = vsel %vm367, %v926, 0
      %v957 = vsel %vm367, %v928, 0
      %v960 = vsel %vm384, %v933, 0
      %962 = vmatprep.subr.mxu0 0.0
      %963 = vmatpush1.msra.mxu0 %v960
      %964 = vmatprep.subr.mxu0 0.0
      %965 = vmatpush1.msra.mxu0 0.0
      %966 = vmatprep.subr.mxu0 0.0
      %967 = vmatpush1.msra.mxu0 0.0
      %968 = vmatprep.subr.mxu0 0.0
      %969 = vmatpush1.msra.mxu0 0.0
      %970 = vmatprep.subr.mxu0 0.0
      %971 = vmatpush1.msra.mxu0 0.0
      %972 = vmatprep.subr.mxu0 0.0
      %973 = vmatpush1.msra.mxu0 0.0
      %974 = vmatprep.subr.mxu0 0.0
      %975 = vmatpush1.msra.mxu0 0.0
      %976 = vmatprep.subr.mxu0 0.0
      %977 = vmatpush1.msra.mxu0 0.0
      %978 = vmatprep.subr.mxu0 0.0
      %979 = vmatpush1.msra.mxu0 0.0
      %980 = vmatprep.subr.mxu0 0.0
      %981 = vmatpush1.msra.mxu0 0.0
      %982 = vmatprep.subr.mxu0 0.0
      %983 = vmatpush1.msra.mxu0 0.0
      %984 = vmatprep.subr.mxu0 0.0
      %985 = vmatpush1.msra.mxu0 0.0
      %986 = vmatprep.subr.mxu0 0.0
      %987 = vmatpush1.msra.mxu0 0.0
      %988 = vmatprep.subr.mxu0 0.0
      %989 = vmatpush1.msra.mxu0 0.0
      %990 = vmatprep.subr.mxu0 0.0
      %991 = vmatpush1.msra.mxu0 0.0
      %992 = vmatprep.subr.mxu0 0.0
      %993 = vmatpush1.msra.mxu0 0.0
      %994 = vmatprep.subr.mxu0 0.0
      %995 = vmatpush1.msra.mxu0 0.0
      %996 = vmatprep.subr.mxu0 0.0
      %997 = vmatpush1.msra.mxu0 0.0
      %998 = vmatprep.subr.mxu0 0.0
      %999 = vmatpush1.msra.mxu0 0.0
      %1000 = vmatprep.subr.mxu0 0.0
      %1001 = vmatpush1.msra.mxu0 0.0
      %1002 = vmatprep.subr.mxu0 0.0
      %1003 = vmatpush1.msra.mxu0 0.0
      %1004 = vmatprep.subr.mxu0 0.0
      %1005 = vmatpush1.msra.mxu0 0.0
      %1006 = vmatprep.subr.mxu0 0.0
      %1007 = vmatpush1.msra.mxu0 0.0
      %1008 = vmatprep.subr.mxu0 0.0
      %1009 = vmatpush1.msra.mxu0 0.0
      %1010 = vmatprep.subr.mxu0 0.0
      %1011 = vmatpush1.msra.mxu0 0.0
      %1012 = vmatprep.subr.mxu0 0.0
      %1013 = vmatpush1.msra.mxu0 0.0
      %1014 = vmatprep.subr.mxu0 0.0
      %1015 = vmatpush1.msra.mxu0 0.0
      %1016 = vmatprep.subr.mxu0 0.0
      %1017 = vmatpush1.msra.mxu0 0.0
      %1018 = vmatprep.subr.mxu0 0.0
      %1019 = vmatpush1.msra.mxu0 0.0
      %1020 = vmatprep.subr.mxu0 0.0
      %1021 = vmatpush1.msra.mxu0 0.0
      %1022 = vmatprep.subr.mxu0 0.0
      %1023 = vmatpush1.msra.mxu0 0.0
      %1024 = vmatprep.subr.mxu0 0.0
      %1025 = vmatpush1.msra.mxu0 0.0
      %1026 = vmatprep.mubr.f32.mxu0 0.0
      %1027 = vmatmul.mubr.f32.gmra.mrb[0].mxu0 %v936
      %v1028 = vpop.f32.mrb[0].mxu0
      %v1029 = vadd.f32 0.0, %v1028
      %v1030 = vpop.f32.mrb[0].mxu0
      %1031 = vmatprep.mubr.f32.mxu0 0.0
      %1032 = vmatmul.mubr.f32.gmra.mrb[0].mxu0 %v939
      %v1033 = vpop.f32.mrb[0].mxu0
      %v1034 = vadd.f32 0.0, %v1033
      %v1035 = vpop.f32.mrb[0].mxu0
      %1036 = vmatprep.mubr.f32.mxu0 0.0
      %1037 = vmatmul.mubr.f32.gmra.mrb[0].mxu0 %v942
      %v1038 = vpop.f32.mrb[0].mxu0
      %v1039 = vadd.f32 0.0, %v1038
      %v1040 = vpop.f32.mrb[0].mxu0
      %1041 = vmatprep.mubr.f32.mxu0 0.0
      %1042 = vmatmul.mubr.f32.gmra.mrb[0].mxu0 %v945
      %v1043 = vpop.f32.mrb[0].mxu0
      %v1044 = vadd.f32 0.0, %v1043
      %v1045 = vpop.f32.mrb[0].mxu0
      %1046 = vmatprep.mubr.f32.mxu0 0.0
      %1047 = vmatmul.mubr.f32.gmra.mrb[0].mxu0 %v948
      %v1048 = vpop.f32.mrb[0].mxu0
      %v1049 = vadd.f32 0.0, %v1048
      %v1050 = vpop.f32.mrb[0].mxu0
      %1051 = vmatprep.mubr.f32.mxu0 0.0
      %1052 = vmatmul.mubr.f32.gmra.mrb[0].mxu0 %v951
      %v1053 = vpop.f32.mrb[0].mxu0
      %v1054 = vadd.f32 0.0, %v1053
      %v1055 = vpop.f32.mrb[0].mxu0
      %1056 = vmatprep.mubr.f32.mxu0 0.0
      %1057 = vmatmul.mubr.f32.gmra.mrb[0].mxu0 %v954
      %v1058 = vpop.f32.mrb[0].mxu0
      %v1059 = vadd.f32 0.0, %v1058
      %v1060 = vpop.f32.mrb[0].mxu0
      %1061 = vmatprep.mubr.f32.mxu0 0.0
      %1062 = vmatmul.mubr.f32.gmra.mrb[0].mxu0 %v957
      %v1063 = vpop.f32.mrb[0].mxu0
      %v1064 = vadd.f32 0.0, %v1063
      %v1065 = vpop.f32.mrb[0].mxu0
      %1066 = vdwg.mxu0
      %v1067 = vadd.f32 %v851, %v1029
      %v1068 = vadd.f32 %v852, %v1034
      %v1069 = vadd.f32 %v853, %v1039
      %v1070 = vadd.f32 %v854, %v1044
      %v1071 = vadd.f32 %v855, %v1049
      %v1072 = vadd.f32 %v856, %v1054
      %v1073 = vadd.f32 %v857, %v1059
      %v1074 = vadd.f32 %v858, %v1064
      %v1083 = vrot.slane %v914, 1
      %v1084 = vrot.slane %v915, 1
      %v1085 = vsel %vm315, %v1083, %v1084
      %v1086 = vrot.slane %v916, 1
      %v1087 = vrot.slane %v917, 1
      %v1088 = vsel %vm315, %v1086, %v1087
      %v1089 = vrot.slane %v918, 1
      %v1090 = vrot.slane %v919, 1
      %v1091 = vsel %vm315, %v1089, %v1090
      %v1092 = vrot.slane %v920, 1
      %v1093 = vrot.slane %v921, 1
      %v1094 = vsel %vm315, %v1092, %v1093
      %v1095 = vrot.slane %v922, 1
      %v1096 = vrot.slane %v923, 1
      %v1097 = vsel %vm315, %v1095, %v1096
      %v1098 = vrot.slane %v924, 1
      %v1099 = vrot.slane %v925, 1
      %v1100 = vsel %vm315, %v1098, %v1099
      %v1101 = vrot.slane %v926, 1
      %v1102 = vrot.slane %v927, 1
      %v1103 = vsel %vm315, %v1101, %v1102
      %v1104 = vrot.slane %v928, 1
      %v1105 = vrot.slane %v929, 1
      %v1106 = vsel %vm315, %v1104, %v1105
      %v1107 = vrot.slane %v933, 4
      %v1108 = vsel %vm367, %v1085, 0
      %v1110 = vsel %vm367, %v1088, 0
      %v1112 = vsel %vm367, %v1091, 0
      %v1114 = vsel %vm367, %v1094, 0
      %v1116 = vsel %vm367, %v1097, 0
      %v1118 = vsel %vm367, %v1100, 0
      %v1120 = vsel %vm367, %v1103, 0
      %v1122 = vsel %vm367, %v1106, 0
      %v1124 = vsel %vm384, %v1107, 0
      %1126 = vmatprep.subr.mxu0 0.0
      %1127 = vmatpush1.msra.mxu0 %v1124
      %1128 = vmatprep.subr.mxu0 0.0
      %1129 = vmatpush1.msra.mxu0 0.0
      %1130 = vmatprep.subr.mxu0 0.0
      %1131 = vmatpush1.msra.mxu0 0.0
      %1132 = vmatprep.subr.mxu0 0.0
      %1133 = vmatpush1.msra.mxu0 0.0
      %1134 = vmatprep.subr.mxu0 0.0
      %1135 = vmatpush1.msra.mxu0 0.0
      %1136 = vmatprep.subr.mxu0 0.0
      %1137 = vmatpush1.msra.mxu0 0.0
      %1138 = vmatprep.subr.mxu0 0.0
      %1139 = vmatpush1.msra.mxu0 0.0
      %1140 = vmatprep.subr.mxu0 0.0
      %1141 = vmatpush1.msra.mxu0 0.0
      %1142 = vmatprep.subr.mxu0 0.0
      %1143 = vmatpush1.msra.mxu0 0.0
      %1144 = vmatprep.subr.mxu0 0.0
      %1145 = vmatpush1.msra.mxu0 0.0
      %1146 = vmatprep.subr.mxu0 0.0
      %1147 = vmatpush1.msra.mxu0 0.0
      %1148 = vmatprep.subr.mxu0 0.0
      %1149 = vmatpush1.msra.mxu0 0.0
      %1150 = vmatprep.subr.mxu0 0.0
      %1151 = vmatpush1.msra.mxu0 0.0
      %1152 = vmatprep.subr.mxu0 0.0
      %1153 = vmatpush1.msra.mxu0 0.0
      %1154 = vmatprep.subr.mxu0 0.0
      %1155 = vmatpush1.msra.mxu0 0.0
      %1156 = vmatprep.subr.mxu0 0.0
      %1157 = vmatpush1.msra.mxu0 0.0
      %1158 = vmatprep.subr.mxu0 0.0
      %1159 = vmatpush1.msra.mxu0 0.0
      %1160 = vmatprep.subr.mxu0 0.0
      %1161 = vmatpush1.msra.mxu0 0.0
      %1162 = vmatprep.subr.mxu0 0.0
      %1163 = vmatpush1.msra.mxu0 0.0
      %1164 = vmatprep.subr.mxu0 0.0
      %1165 = vmatpush1.msra.mxu0 0.0
      %1166 = vmatprep.subr.mxu0 0.0
      %1167 = vmatpush1.msra.mxu0 0.0
      %1168 = vmatprep.subr.mxu0 0.0
      %1169 = vmatpush1.msra.mxu0 0.0
      %1170 = vmatprep.subr.mxu0 0.0
      %1171 = vmatpush1.msra.mxu0 0.0
      %1172 = vmatprep.subr.mxu0 0.0
      %1173 = vmatpush1.msra.mxu0 0.0
      %1174 = vmatprep.subr.mxu0 0.0
      %1175 = vmatpush1.msra.mxu0 0.0
      %1176 = vmatprep.subr.mxu0 0.0
      %1177 = vmatpush1.msra.mxu0 0.0
      %1178 = vmatprep.subr.mxu0 0.0
      %1179 = vmatpush1.msra.mxu0 0.0
      %1180 = vmatprep.subr.mxu0 0.0
      %1181 = vmatpush1.msra.mxu0 0.0
      %1182 = vmatprep.subr.mxu0 0.0
      %1183 = vmatpush1.msra.mxu0 0.0
      %1184 = vmatprep.subr.mxu0 0.0
      %1185 = vmatpush1.msra.mxu0 0.0
      %1186 = vmatprep.subr.mxu0 0.0
      %1187 = vmatpush1.msra.mxu0 0.0
      %1188 = vmatprep.subr.mxu0 0.0
      %1189 = vmatpush1.msra.mxu0 0.0
      %1190 = vmatprep.mubr.f32.mxu0 0.0
      %1191 = vmatmul.mubr.f32.gmra.mrb[0].mxu0 %v1108
      %v1192 = vpop.f32.mrb[0].mxu0
      %v1193 = vadd.f32 0.0, %v1192
      %v1194 = vpop.f32.mrb[0].mxu0
      %1195 = vmatprep.mubr.f32.mxu0 0.0
      %1196 = vmatmul.mubr.f32.gmra.mrb[0].mxu0 %v1110
      %v1197 = vpop.f32.mrb[0].mxu0
      %v1198 = vadd.f32 0.0, %v1197
      %v1199 = vpop.f32.mrb[0].mxu0
      %1200 = vmatprep.mubr.f32.mxu0 0.0
      %1201 = vmatmul.mubr.f32.gmra.mrb[0].mxu0 %v1112
      %v1202 = vpop.f32.mrb[0].mxu0
      %v1203 = vadd.f32 0.0, %v1202
      %v1204 = vpop.f32.mrb[0].mxu0
      %1205 = vmatprep.mubr.f32.mxu0 0.0
      %1206 = vmatmul.mubr.f32.gmra.mrb[0].mxu0 %v1114
      %v1207 = vpop.f32.mrb[0].mxu0
      %v1208 = vadd.f32 0.0, %v1207
      %v1209 = vpop.f32.mrb[0].mxu0
      %1210 = vmatprep.mubr.f32.mxu0 0.0
      %1211 = vmatmul.mubr.f32.gmra.mrb[0].mxu0 %v1116
      %v1212 = vpop.f32.mrb[0].mxu0
      %v1213 = vadd.f32 0.0, %v1212
      %v1214 = vpop.f32.mrb[0].mxu0
      %1215 = vmatprep.mubr.f32.mxu0 0.0
      %1216 = vmatmul.mubr.f32.gmra.mrb[0].mxu0 %v1118
      %v1217 = vpop.f32.mrb[0].mxu0
      %v1218 = vadd.f32 0.0, %v1217
      %v1219 = vpop.f32.mrb[0].mxu0
      %1220 = vmatprep.mubr.f32.mxu0 0.0
      %1221 = vmatmul.mubr.f32.gmra.mrb[0].mxu0 %v1120
      %v1222 = vpop.f32.mrb[0].mxu0
      %v1223 = vadd.f32 0.0, %v1222
      %v1224 = vpop.f32.mrb[0].mxu0
      %1225 = vmatprep.mubr.f32.mxu0 0.0
      %1226 = vmatmul.mubr.f32.gmra.mrb[0].mxu0 %v1122
      %v1227 = vpop.f32.mrb[0].mxu0
      %v1228 = vadd.f32 0.0, %v1227
      %v1229 = vpop.f32.mrb[0].mxu0
      %1230 = vdwg.mxu0
      %v1231 = vadd.f32 %v1067, %v1193
      %v1232 = vadd.f32 %v1068, %v1198
      %v1233 = vadd.f32 %v1069, %v1203
      %v1234 = vadd.f32 %v1070, %v1208
      %v1235 = vadd.f32 %v1071, %v1213
      %v1236 = vadd.f32 %v1072, %v1218
      %v1237 = vadd.f32 %v1073, %v1223
      %v1238 = vadd.f32 %v1074, %v1228
      %v1240 = vsel %vm367, %v930, 0
      %v1243 = vsel %vm384, %v934, 0
      %1245 = vmatprep.subr.mxu0 0.0
      %1246 = vmatpush1.msra.mxu0 %v1243
      %1247 = vmatprep.subr.mxu0 0.0
      %1248 = vmatpush1.msra.mxu0 0.0
      %1249 = vmatprep.subr.mxu0 0.0
      %1250 = vmatpush1.msra.mxu0 0.0
      %1251 = vmatprep.subr.mxu0 0.0
      %1252 = vmatpush1.msra.mxu0 0.0
      %1253 = vmatprep.subr.mxu0 0.0
      %1254 = vmatpush1.msra.mxu0 0.0
      %1255 = vmatprep.subr.mxu0 0.0
      %1256 = vmatpush1.msra.mxu0 0.0
      %1257 = vmatprep.subr.mxu0 0.0
      %1258 = vmatpush1.msra.mxu0 0.0
      %1259 = vmatprep.subr.mxu0 0.0
      %1260 = vmatpush1.msra.mxu0 0.0
      %1261 = vmatprep.subr.mxu0 0.0
      %1262 = vmatpush1.msra.mxu0 0.0
      %1263 = vmatprep.subr.mxu0 0.0
      %1264 = vmatpush1.msra.mxu0 0.0
      %1265 = vmatprep.subr.mxu0 0.0
      %1266 = vmatpush1.msra.mxu0 0.0
      %1267 = vmatprep.subr.mxu0 0.0
      %1268 = vmatpush1.msra.mxu0 0.0
      %1269 = vmatprep.subr.mxu0 0.0
      %1270 = vmatpush1.msra.mxu0 0.0
      %1271 = vmatprep.subr.mxu0 0.0
      %1272 = vmatpush1.msra.mxu0 0.0
      %1273 = vmatprep.subr.mxu0 0.0
      %1274 = vmatpush1.msra.mxu0 0.0
      %1275 = vmatprep.subr.mxu0 0.0
      %1276 = vmatpush1.msra.mxu0 0.0
      %1277 = vmatprep.subr.mxu0 0.0
      %1278 = vmatpush1.msra.mxu0 0.0
      %1279 = vmatprep.subr.mxu0 0.0
      %1280 = vmatpush1.msra.mxu0 0.0
      %1281 = vmatprep.subr.mxu0 0.0
      %1282 = vmatpush1.msra.mxu0 0.0
      %1283 = vmatprep.subr.mxu0 0.0
      %1284 = vmatpush1.msra.mxu0 0.0
      %1285 = vmatprep.subr.mxu0 0.0
      %1286 = vmatpush1.msra.mxu0 0.0
      %1287 = vmatprep.subr.mxu0 0.0
      %1288 = vmatpush1.msra.mxu0 0.0
      %1289 = vmatprep.subr.mxu0 0.0
      %1290 = vmatpush1.msra.mxu0 0.0
      %1291 = vmatprep.subr.mxu0 0.0
      %1292 = vmatpush1.msra.mxu0 0.0
      %1293 = vmatprep.subr.mxu0 0.0
      %1294 = vmatpush1.msra.mxu0 0.0
      %1295 = vmatprep.subr.mxu0 0.0
      %1296 = vmatpush1.msra.mxu0 0.0
      %1297 = vmatprep.subr.mxu0 0.0
      %1298 = vmatpush1.msra.mxu0 0.0
      %1299 = vmatprep.subr.mxu0 0.0
      %1300 = vmatpush1.msra.mxu0 0.0
      %1301 = vmatprep.subr.mxu0 0.0
      %1302 = vmatpush1.msra.mxu0 0.0
      %1303 = vmatprep.subr.mxu0 0.0
      %1304 = vmatpush1.msra.mxu0 0.0
      %1305 = vmatprep.subr.mxu0 0.0
      %1306 = vmatpush1.msra.mxu0 0.0
      %1307 = vmatprep.subr.mxu0 0.0
      %1308 = vmatpush1.msra.mxu0 0.0
      %1309 = vmatprep.mubr.f32.mxu0 0.0
      %1310 = vmatmul.mubr.f32.gmra.mrb[0].mxu0 %v939
      %v1311 = vpop.f32.mrb[0].mxu0
      %v1312 = vadd.f32 0.0, %v1311
      %v1313 = vpop.f32.mrb[0].mxu0
      %1314 = vmatprep.mubr.f32.mxu0 0.0
      %1315 = vmatmul.mubr.f32.gmra.mrb[0].mxu0 %v942
      %v1316 = vpop.f32.mrb[0].mxu0
      %v1317 = vadd.f32 0.0, %v1316
      %v1318 = vpop.f32.mrb[0].mxu0
      %1319 = vmatprep.mubr.f32.mxu0 0.0
      %1320 = vmatmul.mubr.f32.gmra.mrb[0].mxu0 %v945
      %v1321 = vpop.f32.mrb[0].mxu0
      %v1322 = vadd.f32 0.0, %v1321
      %v1323 = vpop.f32.mrb[0].mxu0
      %1324 = vmatprep.mubr.f32.mxu0 0.0
      %1325 = vmatmul.mubr.f32.gmra.mrb[0].mxu0 %v948
      %v1326 = vpop.f32.mrb[0].mxu0
      %v1327 = vadd.f32 0.0, %v1326
      %v1328 = vpop.f32.mrb[0].mxu0
      %1329 = vmatprep.mubr.f32.mxu0 0.0
      %1330 = vmatmul.mubr.f32.gmra.mrb[0].mxu0 %v951
      %v1331 = vpop.f32.mrb[0].mxu0
      %v1332 = vadd.f32 0.0, %v1331
      %v1333 = vpop.f32.mrb[0].mxu0
      %1334 = vmatprep.mubr.f32.mxu0 0.0
      %1335 = vmatmul.mubr.f32.gmra.mrb[0].mxu0 %v954
      %v1336 = vpop.f32.mrb[0].mxu0
      %v1337 = vadd.f32 0.0, %v1336
      %v1338 = vpop.f32.mrb[0].mxu0
      %1339 = vmatprep.mubr.f32.mxu0 0.0
      %1340 = vmatmul.mubr.f32.gmra.mrb[0].mxu0 %v957
      %v1341 = vpop.f32.mrb[0].mxu0
      %v1342 = vadd.f32 0.0, %v1341
      %v1343 = vpop.f32.mrb[0].mxu0
      %1344 = vmatprep.mubr.f32.mxu0 0.0
      %1345 = vmatmul.mubr.f32.gmra.mrb[0].mxu0 %v1240
      %v1346 = vpop.f32.mrb[0].mxu0
      %v1347 = vadd.f32 0.0, %v1346
      %v1348 = vpop.f32.mrb[0].mxu0
      %1349 = vdwg.mxu0
      %v1350 = vadd.f32 %v1231, %v1312
      %v1351 = vadd.f32 %v1232, %v1317
      %v1352 = vadd.f32 %v1233, %v1322
      %v1353 = vadd.f32 %v1234, %v1327
      %v1354 = vadd.f32 %v1235, %v1332
      %v1355 = vadd.f32 %v1236, %v1337
      %v1356 = vadd.f32 %v1237, %v1342
      %v1357 = vadd.f32 %v1238, %v1347
      %v1359 = vrot.slane %v930, 1
      %v1360 = vrot.slane %v931, 1
      %v1361 = vsel %vm315, %v1359, %v1360
      %v1362 = vrot.slane %v934, 4
      %v1363 = vsel %vm367, %v1361, 0
      %v1365 = vsel %vm384, %v1362, 0
      %1367 = vmatprep.subr.mxu0 0.0
      %1368 = vmatpush1.msra.mxu0 %v1365
      %1369 = vmatprep.subr.mxu0 0.0
      %1370 = vmatpush1.msra.mxu0 0.0
      %1371 = vmatprep.subr.mxu0 0.0
      %1372 = vmatpush1.msra.mxu0 0.0
      %1373 = vmatprep.subr.mxu0 0.0
      %1374 = vmatpush1.msra.mxu0 0.0
      %1375 = vmatprep.subr.mxu0 0.0
      %1376 = vmatpush1.msra.mxu0 0.0
      %1377 = vmatprep.subr.mxu0 0.0
      %1378 = vmatpush1.msra.mxu0 0.0
      %1379 = vmatprep.subr.mxu0 0.0
      %1380 = vmatpush1.msra.mxu0 0.0
      %1381 = vmatprep.subr.mxu0 0.0
      %1382 = vmatpush1.msra.mxu0 0.0
      %1383 = vmatprep.subr.mxu0 0.0
      %1384 = vmatpush1.msra.mxu0 0.0
      %1385 = vmatprep.subr.mxu0 0.0
      %1386 = vmatpush1.msra.mxu0 0.0
      %1387 = vmatprep.subr.mxu0 0.0
      %1388 = vmatpush1.msra.mxu0 0.0
      %1389 = vmatprep.subr.mxu0 0.0
      %1390 = vmatpush1.msra.mxu0 0.0
      %1391 = vmatprep.subr.mxu0 0.0
      %1392 = vmatpush1.msra.mxu0 0.0
      %1393 = vmatprep.subr.mxu0 0.0
      %1394 = vmatpush1.msra.mxu0 0.0
      %1395 = vmatprep.subr.mxu0 0.0
      %1396 = vmatpush1.msra.mxu0 0.0
      %1397 = vmatprep.subr.mxu0 0.0
      %1398 = vmatpush1.msra.mxu0 0.0
      %1399 = vmatprep.subr.mxu0 0.0
      %1400 = vmatpush1.msra.mxu0 0.0
      %1401 = vmatprep.subr.mxu0 0.0
      %1402 = vmatpush1.msra.mxu0 0.0
      %1403 = vmatprep.subr.mxu0 0.0
      %1404 = vmatpush1.msra.mxu0 0.0
      %1405 = vmatprep.subr.mxu0 0.0
      %1406 = vmatpush1.msra.mxu0 0.0
      %1407 = vmatprep.subr.mxu0 0.0
      %1408 = vmatpush1.msra.mxu0 0.0
      %1409 = vmatprep.subr.mxu0 0.0
      %1410 = vmatpush1.msra.mxu0 0.0
      %1411 = vmatprep.subr.mxu0 0.0
      %1412 = vmatpush1.msra.mxu0 0.0
      %1413 = vmatprep.subr.mxu0 0.0
      %1414 = vmatpush1.msra.mxu0 0.0
      %1415 = vmatprep.subr.mxu0 0.0
      %1416 = vmatpush1.msra.mxu0 0.0
      %1417 = vmatprep.subr.mxu0 0.0
      %1418 = vmatpush1.msra.mxu0 0.0
      %1419 = vmatprep.subr.mxu0 0.0
      %1420 = vmatpush1.msra.mxu0 0.0
      %1421 = vmatprep.subr.mxu0 0.0
      %1422 = vmatpush1.msra.mxu0 0.0
      %1423 = vmatprep.subr.mxu0 0.0
      %1424 = vmatpush1.msra.mxu0 0.0
      %1425 = vmatprep.subr.mxu0 0.0
      %1426 = vmatpush1.msra.mxu0 0.0
      %1427 = vmatprep.subr.mxu0 0.0
      %1428 = vmatpush1.msra.mxu0 0.0
      %1429 = vmatprep.subr.mxu0 0.0
      %1430 = vmatpush1.msra.mxu0 0.0
      %1431 = vmatprep.mubr.f32.mxu0 0.0
      %1432 = vmatmul.mubr.f32.gmra.mrb[0].mxu0 %v1110
      %v1433 = vpop.f32.mrb[0].mxu0
      %v1434 = vadd.f32 0.0, %v1433
      %v1435 = vpop.f32.mrb[0].mxu0
      %1436 = vmatprep.mubr.f32.mxu0 0.0
      %1437 = vmatmul.mubr.f32.gmra.mrb[0].mxu0 %v1112
      %v1438 = vpop.f32.mrb[0].mxu0
      %v1439 = vadd.f32 0.0, %v1438
      %v1440 = vpop.f32.mrb[0].mxu0
      %1441 = vmatprep.mubr.f32.mxu0 0.0
      %1442 = vmatmul.mubr.f32.gmra.mrb[0].mxu0 %v1114
      %v1443 = vpop.f32.mrb[0].mxu0
      %v1444 = vadd.f32 0.0, %v1443
      %v1445 = vpop.f32.mrb[0].mxu0
      %1446 = vmatprep.mubr.f32.mxu0 0.0
      %1447 = vmatmul.mubr.f32.gmra.mrb[0].mxu0 %v1116
      %v1448 = vpop.f32.mrb[0].mxu0
      %v1449 = vadd.f32 0.0, %v1448
      %v1450 = vpop.f32.mrb[0].mxu0
      %1451 = vmatprep.mubr.f32.mxu0 0.0
      %1452 = vmatmul.mubr.f32.gmra.mrb[0].mxu0 %v1118
      %v1453 = vpop.f32.mrb[0].mxu0
      %v1454 = vadd.f32 0.0, %v1453
      %v1455 = vpop.f32.mrb[0].mxu0
      %1456 = vmatprep.mubr.f32.mxu0 0.0
      %1457 = vmatmul.mubr.f32.gmra.mrb[0].mxu0 %v1120
      %v1458 = vpop.f32.mrb[0].mxu0
      %v1459 = vadd.f32 0.0, %v1458
      %v1460 = vpop.f32.mrb[0].mxu0
      %1461 = vmatprep.mubr.f32.mxu0 0.0
      %1462 = vmatmul.mubr.f32.gmra.mrb[0].mxu0 %v1122
      %v1463 = vpop.f32.mrb[0].mxu0
      %v1464 = vadd.f32 0.0, %v1463
      %v1465 = vpop.f32.mrb[0].mxu0
      %1466 = vmatprep.mubr.f32.mxu0 0.0
      %1467 = vmatmul.mubr.f32.gmra.mrb[0].mxu0 %v1363
      %v1468 = vpop.f32.mrb[0].mxu0
      %v1469 = vadd.f32 0.0, %v1468
      %v1470 = vpop.f32.mrb[0].mxu0
      %1471 = vdwg.mxu0
      %v1472 = vadd.f32 %v1350, %v1434
      %v1473 = vadd.f32 %v1351, %v1439
      %v1474 = vadd.f32 %v1352, %v1444
      %v1475 = vadd.f32 %v1353, %v1449
      %v1476 = vadd.f32 %v1354, %v1454
      %v1477 = vadd.f32 %v1355, %v1459
      %v1478 = vadd.f32 %v1356, %v1464
      %v1479 = vadd.f32 %v1357, %v1469
      %s1480 = scalar_lea.vmem %s219, 320
      %v1481 = vld [vmem:[%s1480] sm:$0xff]
      %v1482 = vld [vmem:[%s1480 + $0x8] sm:$0x3]
      %v1483 = vld [vmem:[%s1480 + $0x10] sm:$0xff]
      %v1484 = vld [vmem:[%s1480 + $0x18] sm:$0x3]
      %v1485 = vld [vmem:[%s1480 + $0x20] sm:$0xff]
      %v1486 = vld [vmem:[%s1480 + $0x28] sm:$0x3]
      %v1487 = vld [vmem:[%s1480 + $0x30] sm:$0xff]
      %v1488 = vld [vmem:[%s1480 + $0x38] sm:$0x3]
      %v1489 = vld [vmem:[%s1480 + $0x40] sm:$0xff]
      %v1490 = vld [vmem:[%s1480 + $0x48] sm:$0x3]
      %v1491 = vld [vmem:[%s1480 + $0x50] sm:$0xff]
      %v1492 = vld [vmem:[%s1480 + $0x58] sm:$0x3]
      %v1493 = vld [vmem:[%s1480 + $0x60] sm:$0xff]
      %v1494 = vld [vmem:[%s1480 + $0x68] sm:$0x3]
      %v1495 = vld [vmem:[%s1480 + $0x70] sm:$0xff]
      %v1496 = vld [vmem:[%s1480 + $0x78] sm:$0x3]
      %v1497 = vld [vmem:[%s1480 + $0x80] sm:$0xff]
      %v1498 = vld [vmem:[%s1480 + $0x88] sm:$0x3]
      %vm1499 = vcmp.gt.f32.partialorder %v1481, 0.0
      %vm1500 = vcmp.gt.f32.partialorder %v1482, 0.0
      %vm1501 = vcmp.gt.f32.partialorder %v1483, 0.0
      %vm1502 = vcmp.gt.f32.partialorder %v1484, 0.0
      %vm1503 = vcmp.gt.f32.partialorder %v1485, 0.0
      %vm1504 = vcmp.gt.f32.partialorder %v1486, 0.0
      %vm1505 = vcmp.gt.f32.partialorder %v1487, 0.0
      %vm1506 = vcmp.gt.f32.partialorder %v1488, 0.0
      %vm1507 = vcmp.gt.f32.partialorder %v1489, 0.0
      %vm1508 = vcmp.gt.f32.partialorder %v1490, 0.0
      %vm1509 = vcmp.gt.f32.partialorder %v1491, 0.0
      %vm1510 = vcmp.gt.f32.partialorder %v1492, 0.0
      %vm1511 = vcmp.gt.f32.partialorder %v1493, 0.0
      %vm1512 = vcmp.gt.f32.partialorder %v1494, 0.0
      %vm1513 = vcmp.gt.f32.partialorder %v1495, 0.0
      %vm1514 = vcmp.gt.f32.partialorder %v1496, 0.0
      %vm1515 = vcmp.gt.f32.partialorder %v1497, 0.0
      %vm1516 = vcmp.gt.f32.partialorder %v1498, 0.0
      %v1517 = vmul.f32 %v1481, 0.2
      %v1518 = vmul.f32 %v1482, 0.2
      %v1519 = vmul.f32 %v1483, 0.2
      %v1520 = vmul.f32 %v1484, 0.2
      %v1521 = vmul.f32 %v1485, 0.2
      %v1522 = vmul.f32 %v1486, 0.2
      %v1523 = vmul.f32 %v1487, 0.2
      %v1524 = vmul.f32 %v1488, 0.2
      %v1525 = vmul.f32 %v1489, 0.2
      %v1526 = vmul.f32 %v1490, 0.2
      %v1527 = vmul.f32 %v1491, 0.2
      %v1528 = vmul.f32 %v1492, 0.2
      %v1529 = vmul.f32 %v1493, 0.2
      %v1530 = vmul.f32 %v1494, 0.2
      %v1531 = vmul.f32 %v1495, 0.2
      %v1532 = vmul.f32 %v1496, 0.2
      %v1533 = vmul.f32 %v1497, 0.2
      %v1534 = vmul.f32 %v1498, 0.2
      %v1535 = vsel %vm1499, %v1481, %v1517
      %v1536 = vsel %vm1500, %v1482, %v1518
      %v1537 = vsel %vm1501, %v1483, %v1519
      %v1538 = vsel %vm1502, %v1484, %v1520
      %v1539 = vsel %vm1503, %v1485, %v1521
      %v1540 = vsel %vm1504, %v1486, %v1522
      %v1541 = vsel %vm1505, %v1487, %v1523
      %v1542 = vsel %vm1506, %v1488, %v1524
      %v1543 = vsel %vm1507, %v1489, %v1525
      %v1544 = vsel %vm1508, %v1490, %v1526
      %v1545 = vsel %vm1509, %v1491, %v1527
      %v1546 = vsel %vm1510, %v1492, %v1528
      %v1547 = vsel %vm1511, %v1493, %v1529
      %v1548 = vsel %vm1512, %v1494, %v1530
      %v1549 = vsel %vm1513, %v1495, %v1531
      %v1550 = vsel %vm1514, %v1496, %v1532
      %v1551 = vsel %vm1515, %v1497, %v1533
      %v1552 = vsel %vm1516, %v1498, %v1534
      %s1553 = scalar_lea.vmem %s1, 32
      %v1554 = vld [vmem:[%s1553] sm:$0xff]
      %v1555 = vld [vmem:[%s1553 + $0x8] sm:$0xff]
      %v1572 = vrot.slane %v1535, 1
      %v1573 = vrot.slane %v1536, 1
      %v1574 = vsel %vm315, %v1572, %v1573
      %v1575 = vrot.slane %v1537, 1
      %v1576 = vrot.slane %v1538, 1
      %v1577 = vsel %vm315, %v1575, %v1576
      %v1578 = vrot.slane %v1539, 1
      %v1579 = vrot.slane %v1540, 1
      %v1580 = vsel %vm315, %v1578, %v1579
      %v1581 = vrot.slane %v1541, 1
      %v1582 = vrot.slane %v1542, 1
      %v1583 = vsel %vm315, %v1581, %v1582
      %v1584 = vrot.slane %v1543, 1
      %v1585 = vrot.slane %v1544, 1
      %v1586 = vsel %vm315, %v1584, %v1585
      %v1587 = vrot.slane %v1545, 1
      %v1588 = vrot.slane %v1546, 1
      %v1589 = vsel %vm315, %v1587, %v1588
      %v1590 = vrot.slane %v1547, 1
      %v1591 = vrot.slane %v1548, 1
      %v1592 = vsel %vm315, %v1590, %v1591
      %v1593 = vrot.slane %v1549, 1
      %v1594 = vrot.slane %v1550, 1
      %v1595 = vsel %vm315, %v1593, %v1594
      %v1596 = vsel %vm367, %v1574, 0
      %v1598 = vsel %vm367, %v1577, 0
      %v1600 = vsel %vm367, %v1580, 0
      %v1602 = vsel %vm367, %v1583, 0
      %v1604 = vsel %vm367, %v1586, 0
      %v1606 = vsel %vm367, %v1589, 0
      %v1608 = vsel %vm367, %v1592, 0
      %v1610 = vsel %vm367, %v1595, 0
      %v1613 = vsel %vm384, %v1554, 0
      %1615 = vmatprep.subr.mxu0 0.0
      %1616 = vmatpush1.msra.mxu0 %v1613
      %1617 = vmatprep.subr.mxu0 0.0
      %1618 = vmatpush1.msra.mxu0 0.0
      %1619 = vmatprep.subr.mxu0 0.0
      %1620 = vmatpush1.msra.mxu0 0.0
      %1621 = vmatprep.subr.mxu0 0.0
      %1622 = vmatpush1.msra.mxu0 0.0
      %1623 = vmatprep.subr.mxu0 0.0
      %1624 = vmatpush1.msra.mxu0 0.0
      %1625 = vmatprep.subr.mxu0 0.0
      %1626 = vmatpush1.msra.mxu0 0.0
      %1627 = vmatprep.subr.mxu0 0.0
      %1628 = vmatpush1.msra.mxu0 0.0
      %1629 = vmatprep.subr.mxu0 0.0
      %1630 = vmatpush1.msra.mxu0 0.0
      %1631 = vmatprep.subr.mxu0 0.0
      %1632 = vmatpush1.msra.mxu0 0.0
      %1633 = vmatprep.subr.mxu0 0.0
      %1634 = vmatpush1.msra.mxu0 0.0
      %1635 = vmatprep.subr.mxu0 0.0
      %1636 = vmatpush1.msra.mxu0 0.0
      %1637 = vmatprep.subr.mxu0 0.0
      %1638 = vmatpush1.msra.mxu0 0.0
      %1639 = vmatprep.subr.mxu0 0.0
      %1640 = vmatpush1.msra.mxu0 0.0
      %1641 = vmatprep.subr.mxu0 0.0
      %1642 = vmatpush1.msra.mxu0 0.0
      %1643 = vmatprep.subr.mxu0 0.0
      %1644 = vmatpush1.msra.mxu0 0.0
      %1645 = vmatprep.subr.mxu0 0.0
      %1646 = vmatpush1.msra.mxu0 0.0
      %1647 = vmatprep.subr.mxu0 0.0
      %1648 = vmatpush1.msra.mxu0 0.0
      %1649 = vmatprep.subr.mxu0 0.0
      %1650 = vmatpush1.msra.mxu0 0.0
      %1651 = vmatprep.subr.mxu0 0.0
      %1652 = vmatpush1.msra.mxu0 0.0
      %1653 = vmatprep.subr.mxu0 0.0
      %1654 = vmatpush1.msra.mxu0 0.0
      %1655 = vmatprep.subr.mxu0 0.0
      %1656 = vmatpush1.msra.mxu0 0.0
      %1657 = vmatprep.subr.mxu0 0.0
      %1658 = vmatpush1.msra.mxu0 0.0
      %1659 = vmatprep.subr.mxu0 0.0
      %1660 = vmatpush1.msra.mxu0 0.0
      %1661 = vmatprep.subr.mxu0 0.0
      %1662 = vmatpush1.msra.mxu0 0.0
      %1663 = vmatprep.subr.mxu0 0.0
      %1664 = vmatpush1.msra.mxu0 0.0
      %1665 = vmatprep.subr.mxu0 0.0
      %1666 = vmatpush1.msra.mxu0 0.0
      %1667 = vmatprep.subr.mxu0 0.0
      %1668 = vmatpush1.msra.mxu0 0.0
      %1669 = vmatprep.subr.mxu0 0.0
      %1670 = vmatpush1.msra.mxu0 0.0
      %1671 = vmatprep.subr.mxu0 0.0
      %1672 = vmatpush1.msra.mxu0 0.0
      %1673 = vmatprep.subr.mxu0 0.0
      %1674 = vmatpush1.msra.mxu0 0.0
      %1675 = vmatprep.subr.mxu0 0.0
      %1676 = vmatpush1.msra.mxu0 0.0
      %1677 = vmatprep.subr.mxu0 0.0
      %1678 = vmatpush1.msra.mxu0 0.0
      %1679 = vmatprep.mubr.f32.mxu0 0.0
      %1680 = vmatmul.mubr.f32.gmra.mrb[0].mxu0 %v1596
      %v1681 = vpop.f32.mrb[0].mxu0
      %v1682 = vadd.f32 0.0, %v1681
      %v1683 = vpop.f32.mrb[0].mxu0
      %1684 = vmatprep.mubr.f32.mxu0 0.0
      %1685 = vmatmul.mubr.f32.gmra.mrb[0].mxu0 %v1598
      %v1686 = vpop.f32.mrb[0].mxu0
      %v1687 = vadd.f32 0.0, %v1686
      %v1688 = vpop.f32.mrb[0].mxu0
      %1689 = vmatprep.mubr.f32.mxu0 0.0
      %1690 = vmatmul.mubr.f32.gmra.mrb[0].mxu0 %v1600
      %v1691 = vpop.f32.mrb[0].mxu0
      %v1692 = vadd.f32 0.0, %v1691
      %v1693 = vpop.f32.mrb[0].mxu0
      %1694 = vmatprep.mubr.f32.mxu0 0.0
      %1695 = vmatmul.mubr.f32.gmra.mrb[0].mxu0 %v1602
      %v1696 = vpop.f32.mrb[0].mxu0
      %v1697 = vadd.f32 0.0, %v1696
      %v1698 = vpop.f32.mrb[0].mxu0
      %1699 = vmatprep.mubr.f32.mxu0 0.0
      %1700 = vmatmul.mubr.f32.gmra.mrb[0].mxu0 %v1604
      %v1701 = vpop.f32.mrb[0].mxu0
      %v1702 = vadd.f32 0.0, %v1701
      %v1703 = vpop.f32.mrb[0].mxu0
      %1704 = vmatprep.mubr.f32.mxu0 0.0
      %1705 = vmatmul.mubr.f32.gmra.mrb[0].mxu0 %v1606
      %v1706 = vpop.f32.mrb[0].mxu0
      %v1707 = vadd.f32 0.0, %v1706
      %v1708 = vpop.f32.mrb[0].mxu0
      %1709 = vmatprep.mubr.f32.mxu0 0.0
      %1710 = vmatmul.mubr.f32.gmra.mrb[0].mxu0 %v1608
      %v1711 = vpop.f32.mrb[0].mxu0
      %v1712 = vadd.f32 0.0, %v1711
      %v1713 = vpop.f32.mrb[0].mxu0
      %1714 = vmatprep.mubr.f32.mxu0 0.0
      %1715 = vmatmul.mubr.f32.gmra.mrb[0].mxu0 %v1610
      %v1716 = vpop.f32.mrb[0].mxu0
      %v1717 = vadd.f32 0.0, %v1716
      %v1718 = vpop.f32.mrb[0].mxu0
      %1719 = vdwg.mxu0
      %v1720 = vadd.f32 %v1472, %v1682
      %v1721 = vadd.f32 %v1473, %v1687
      %v1722 = vadd.f32 %v1474, %v1692
      %v1723 = vadd.f32 %v1475, %v1697
      %v1724 = vadd.f32 %v1476, %v1702
      %v1725 = vadd.f32 %v1477, %v1707
      %v1726 = vadd.f32 %v1478, %v1712
      %v1727 = vadd.f32 %v1479, %v1717
      %v1728 = vrot.slane %v1535, 2
      %v1729 = vrot.slane %v1536, 2
      %v1730 = vsel %vm340, %v1728, %v1729
      %v1731 = vrot.slane %v1537, 2
      %v1732 = vrot.slane %v1538, 2
      %v1733 = vsel %vm340, %v1731, %v1732
      %v1734 = vrot.slane %v1539, 2
      %v1735 = vrot.slane %v1540, 2
      %v1736 = vsel %vm340, %v1734, %v1735
      %v1737 = vrot.slane %v1541, 2
      %v1738 = vrot.slane %v1542, 2
      %v1739 = vsel %vm340, %v1737, %v1738
      %v1740 = vrot.slane %v1543, 2
      %v1741 = vrot.slane %v1544, 2
      %v1742 = vsel %vm340, %v1740, %v1741
      %v1743 = vrot.slane %v1545, 2
      %v1744 = vrot.slane %v1546, 2
      %v1745 = vsel %vm340, %v1743, %v1744
      %v1746 = vrot.slane %v1547, 2
      %v1747 = vrot.slane %v1548, 2
      %v1748 = vsel %vm340, %v1746, %v1747
      %v1749 = vrot.slane %v1549, 2
      %v1750 = vrot.slane %v1550, 2
      %v1751 = vsel %vm340, %v1749, %v1750
      %v1752 = vrot.slane %v1554, 4
      %v1753 = vsel %vm367, %v1730, 0
      %v1755 = vsel %vm367, %v1733, 0
      %v1757 = vsel %vm367, %v1736, 0
      %v1759 = vsel %vm367, %v1739, 0
      %v1761 = vsel %vm367, %v1742, 0
      %v1763 = vsel %vm367, %v1745, 0
      %v1765 = vsel %vm367, %v1748, 0
      %v1767 = vsel %vm367, %v1751, 0
      %v1769 = vsel %vm384, %v1752, 0
      %1771 = vmatprep.subr.mxu0 0.0
      %1772 = vmatpush1.msra.mxu0 %v1769
      %1773 = vmatprep.subr.mxu0 0.0
      %1774 = vmatpush1.msra.mxu0 0.0
      %1775 = vmatprep.subr.mxu0 0.0
      %1776 = vmatpush1.msra.mxu0 0.0
      %1777 = vmatprep.subr.mxu0 0.0
      %1778 = vmatpush1.msra.mxu0 0.0
      %1779 = vmatprep.subr.mxu0 0.0
      %1780 = vmatpush1.msra.mxu0 0.0
      %1781 = vmatprep.subr.mxu0 0.0
      %1782 = vmatpush1.msra.mxu0 0.0
      %1783 = vmatprep.subr.mxu0 0.0
      %1784 = vmatpush1.msra.mxu0 0.0
      %1785 = vmatprep.subr.mxu0 0.0
      %1786 = vmatpush1.msra.mxu0 0.0
      %1787 = vmatprep.subr.mxu0 0.0
      %1788 = vmatpush1.msra.mxu0 0.0
      %1789 = vmatprep.subr.mxu0 0.0
      %1790 = vmatpush1.msra.mxu0 0.0
      %1791 = vmatprep.subr.mxu0 0.0
      %1792 = vmatpush1.msra.mxu0 0.0
      %1793 = vmatprep.subr.mxu0 0.0
      %1794 = vmatpush1.msra.mxu0 0.0
      %1795 = vmatprep.subr.mxu0 0.0
      %1796 = vmatpush1.msra.mxu0 0.0
      %1797 = vmatprep.subr.mxu0 0.0
      %1798 = vmatpush1.msra.mxu0 0.0
      %1799 = vmatprep.subr.mxu0 0.0
      %1800 = vmatpush1.msra.mxu0 0.0
      %1801 = vmatprep.subr.mxu0 0.0
      %1802 = vmatpush1.msra.mxu0 0.0
      %1803 = vmatprep.subr.mxu0 0.0
      %1804 = vmatpush1.msra.mxu0 0.0
      %1805 = vmatprep.subr.mxu0 0.0
      %1806 = vmatpush1.msra.mxu0 0.0
      %1807 = vmatprep.subr.mxu0 0.0
      %1808 = vmatpush1.msra.mxu0 0.0
      %1809 = vmatprep.subr.mxu0 0.0
      %1810 = vmatpush1.msra.mxu0 0.0
      %1811 = vmatprep.subr.mxu0 0.0
      %1812 = vmatpush1.msra.mxu0 0.0
      %1813 = vmatprep.subr.mxu0 0.0
      %1814 = vmatpush1.msra.mxu0 0.0
      %1815 = vmatprep.subr.mxu0 0.0
      %1816 = vmatpush1.msra.mxu0 0.0
      %1817 = vmatprep.subr.mxu0 0.0
      %1818 = vmatpush1.msra.mxu0 0.0
      %1819 = vmatprep.subr.mxu0 0.0
      %1820 = vmatpush1.msra.mxu0 0.0
      %1821 = vmatprep.subr.mxu0 0.0
      %1822 = vmatpush1.msra.mxu0 0.0
      %1823 = vmatprep.subr.mxu0 0.0
      %1824 = vmatpush1.msra.mxu0 0.0
      %1825 = vmatprep.subr.mxu0 0.0
      %1826 = vmatpush1.msra.mxu0 0.0
      %1827 = vmatprep.subr.mxu0 0.0
      %1828 = vmatpush1.msra.mxu0 0.0
      %1829 = vmatprep.subr.mxu0 0.0
      %1830 = vmatpush1.msra.mxu0 0.0
      %1831 = vmatprep.subr.mxu0 0.0
      %1832 = vmatpush1.msra.mxu0 0.0
      %1833 = vmatprep.subr.mxu0 0.0
      %1834 = vmatpush1.msra.mxu0 0.0
      %1835 = vmatprep.mubr.f32.mxu0 0.0
      %1836 = vmatmul.mubr.f32.gmra.mrb[0].mxu0 %v1753
      %v1837 = vpop.f32.mrb[0].mxu0
      %v1838 = vadd.f32 0.0, %v1837
      %v1839 = vpop.f32.mrb[0].mxu0
      %1840 = vmatprep.mubr.f32.mxu0 0.0
      %1841 = vmatmul.mubr.f32.gmra.mrb[0].mxu0 %v1755
      %v1842 = vpop.f32.mrb[0].mxu0
      %v1843 = vadd.f32 0.0, %v1842
      %v1844 = vpop.f32.mrb[0].mxu0
      %1845 = vmatprep.mubr.f32.mxu0 0.0
      %1846 = vmatmul.mubr.f32.gmra.mrb[0].mxu0 %v1757
      %v1847 = vpop.f32.mrb[0].mxu0
      %v1848 = vadd.f32 0.0, %v1847
      %v1849 = vpop.f32.mrb[0].mxu0
      %1850 = vmatprep.mubr.f32.mxu0 0.0
      %1851 = vmatmul.mubr.f32.gmra.mrb[0].mxu0 %v1759
      %v1852 = vpop.f32.mrb[0].mxu0
      %v1853 = vadd.f32 0.0, %v1852
      %v1854 = vpop.f32.mrb[0].mxu0
      %1855 = vmatprep.mubr.f32.mxu0 0.0
      %1856 = vmatmul.mubr.f32.gmra.mrb[0].mxu0 %v1761
      %v1857 = vpop.f32.mrb[0].mxu0
      %v1858 = vadd.f32 0.0, %v1857
      %v1859 = vpop.f32.mrb[0].mxu0
      %1860 = vmatprep.mubr.f32.mxu0 0.0
      %1861 = vmatmul.mubr.f32.gmra.mrb[0].mxu0 %v1763
      %v1862 = vpop.f32.mrb[0].mxu0
      %v1863 = vadd.f32 0.0, %v1862
      %v1864 = vpop.f32.mrb[0].mxu0
      %1865 = vmatprep.mubr.f32.mxu0 0.0
      %1866 = vmatmul.mubr.f32.gmra.mrb[0].mxu0 %v1765
      %v1867 = vpop.f32.mrb[0].mxu0
      %v1868 = vadd.f32 0.0, %v1867
      %v1869 = vpop.f32.mrb[0].mxu0
      %1870 = vmatprep.mubr.f32.mxu0 0.0
      %1871 = vmatmul.mubr.f32.gmra.mrb[0].mxu0 %v1767
      %v1872 = vpop.f32.mrb[0].mxu0
      %v1873 = vadd.f32 0.0, %v1872
      %v1874 = vpop.f32.mrb[0].mxu0
      %1875 = vdwg.mxu0
      %v1876 = vadd.f32 %v1720, %v1838
      %v1877 = vadd.f32 %v1721, %v1843
      %v1878 = vadd.f32 %v1722, %v1848
      %v1879 = vadd.f32 %v1723, %v1853
      %v1880 = vadd.f32 %v1724, %v1858
      %v1881 = vadd.f32 %v1725, %v1863
      %v1882 = vadd.f32 %v1726, %v1868
      %v1883 = vadd.f32 %v1727, %v1873
      %v1886 = vrot.slane %v1551, 1
      %v1887 = vrot.slane %v1552, 1
      %v1888 = vsel %vm315, %v1886, %v1887
      %v1889 = vsel %vm367, %v1888, 0
      %v1892 = vsel %vm384, %v1555, 0
      %1894 = vmatprep.subr.mxu0 0.0
      %1895 = vmatpush1.msra.mxu0 %v1892
      %1896 = vmatprep.subr.mxu0 0.0
      %1897 = vmatpush1.msra.mxu0 0.0
      %1898 = vmatprep.subr.mxu0 0.0
      %1899 = vmatpush1.msra.mxu0 0.0
      %1900 = vmatprep.subr.mxu0 0.0
      %1901 = vmatpush1.msra.mxu0 0.0
      %1902 = vmatprep.subr.mxu0 0.0
      %1903 = vmatpush1.msra.mxu0 0.0
      %1904 = vmatprep.subr.mxu0 0.0
      %1905 = vmatpush1.msra.mxu0 0.0
      %1906 = vmatprep.subr.mxu0 0.0
      %1907 = vmatpush1.msra.mxu0 0.0
      %1908 = vmatprep.subr.mxu0 0.0
      %1909 = vmatpush1.msra.mxu0 0.0
      %1910 = vmatprep.subr.mxu0 0.0
      %1911 = vmatpush1.msra.mxu0 0.0
      %1912 = vmatprep.subr.mxu0 0.0
      %1913 = vmatpush1.msra.mxu0 0.0
      %1914 = vmatprep.subr.mxu0 0.0
      %1915 = vmatpush1.msra.mxu0 0.0
      %1916 = vmatprep.subr.mxu0 0.0
      %1917 = vmatpush1.msra.mxu0 0.0
      %1918 = vmatprep.subr.mxu0 0.0
      %1919 = vmatpush1.msra.mxu0 0.0
      %1920 = vmatprep.subr.mxu0 0.0
      %1921 = vmatpush1.msra.mxu0 0.0
      %1922 = vmatprep.subr.mxu0 0.0
      %1923 = vmatpush1.msra.mxu0 0.0
      %1924 = vmatprep.subr.mxu0 0.0
      %1925 = vmatpush1.msra.mxu0 0.0
      %1926 = vmatprep.subr.mxu0 0.0
      %1927 = vmatpush1.msra.mxu0 0.0
      %1928 = vmatprep.subr.mxu0 0.0
      %1929 = vmatpush1.msra.mxu0 0.0
      %1930 = vmatprep.subr.mxu0 0.0
      %1931 = vmatpush1.msra.mxu0 0.0
      %1932 = vmatprep.subr.mxu0 0.0
      %1933 = vmatpush1.msra.mxu0 0.0
      %1934 = vmatprep.subr.mxu0 0.0
      %1935 = vmatpush1.msra.mxu0 0.0
      %1936 = vmatprep.subr.mxu0 0.0
      %1937 = vmatpush1.msra.mxu0 0.0
      %1938 = vmatprep.subr.mxu0 0.0
      %1939 = vmatpush1.msra.mxu0 0.0
      %1940 = vmatprep.subr.mxu0 0.0
      %1941 = vmatpush1.msra.mxu0 0.0
      %1942 = vmatprep.subr.mxu0 0.0
      %1943 = vmatpush1.msra.mxu0 0.0
      %1944 = vmatprep.subr.mxu0 0.0
      %1945 = vmatpush1.msra.mxu0 0.0
      %1946 = vmatprep.subr.mxu0 0.0
      %1947 = vmatpush1.msra.mxu0 0.0
      %1948 = vmatprep.subr.mxu0 0.0
      %1949 = vmatpush1.msra.mxu0 0.0
      %1950 = vmatprep.subr.mxu0 0.0
      %1951 = vmatpush1.msra.mxu0 0.0
      %1952 = vmatprep.subr.mxu0 0.0
      %1953 = vmatpush1.msra.mxu0 0.0
      %1954 = vmatprep.subr.mxu0 0.0
      %1955 = vmatpush1.msra.mxu0 0.0
      %1956 = vmatprep.subr.mxu0 0.0
      %1957 = vmatpush1.msra.mxu0 0.0
      %1958 = vmatprep.mubr.f32.mxu0 0.0
      %1959 = vmatmul.mubr.f32.gmra.mrb[0].mxu0 %v1598
      %v1960 = vpop.f32.mrb[0].mxu0
      %v1961 = vadd.f32 0.0, %v1960
      %v1962 = vpop.f32.mrb[0].mxu0
      %1963 = vmatprep.mubr.f32.mxu0 0.0
      %1964 = vmatmul.mubr.f32.gmra.mrb[0].mxu0 %v1600
      %v1965 = vpop.f32.mrb[0].mxu0
      %v1966 = vadd.f32 0.0, %v1965
      %v1967 = vpop.f32.mrb[0].mxu0
      %1968 = vmatprep.mubr.f32.mxu0 0.0
      %1969 = vmatmul.mubr.f32.gmra.mrb[0].mxu0 %v1602
      %v1970 = vpop.f32.mrb[0].mxu0
      %v1971 = vadd.f32 0.0, %v1970
      %v1972 = vpop.f32.mrb[0].mxu0
      %1973 = vmatprep.mubr.f32.mxu0 0.0
      %1974 = vmatmul.mubr.f32.gmra.mrb[0].mxu0 %v1604
      %v1975 = vpop.f32.mrb[0].mxu0
      %v1976 = vadd.f32 0.0, %v1975
      %v1977 = vpop.f32.mrb[0].mxu0
      %1978 = vmatprep.mubr.f32.mxu0 0.0
      %1979 = vmatmul.mubr.f32.gmra.mrb[0].mxu0 %v1606
      %v1980 = vpop.f32.mrb[0].mxu0
      %v1981 = vadd.f32 0.0, %v1980
      %v1982 = vpop.f32.mrb[0].mxu0
      %1983 = vmatprep.mubr.f32.mxu0 0.0
      %1984 = vmatmul.mubr.f32.gmra.mrb[0].mxu0 %v1608
      %v1985 = vpop.f32.mrb[0].mxu0
      %v1986 = vadd.f32 0.0, %v1985
      %v1987 = vpop.f32.mrb[0].mxu0
      %1988 = vmatprep.mubr.f32.mxu0 0.0
      %1989 = vmatmul.mubr.f32.gmra.mrb[0].mxu0 %v1610
      %v1990 = vpop.f32.mrb[0].mxu0
      %v1991 = vadd.f32 0.0, %v1990
      %v1992 = vpop.f32.mrb[0].mxu0
      %1993 = vmatprep.mubr.f32.mxu0 0.0
      %1994 = vmatmul.mubr.f32.gmra.mrb[0].mxu0 %v1889
      %v1995 = vpop.f32.mrb[0].mxu0
      %v1996 = vadd.f32 0.0, %v1995
      %v1997 = vpop.f32.mrb[0].mxu0
      %1998 = vdwg.mxu0
      %v1999 = vadd.f32 %v1876, %v1961
      %v2000 = vadd.f32 %v1877, %v1966
      %v2001 = vadd.f32 %v1878, %v1971
      %v2002 = vadd.f32 %v1879, %v1976
      %v2003 = vadd.f32 %v1880, %v1981
      %v2004 = vadd.f32 %v1881, %v1986
      %v2005 = vadd.f32 %v1882, %v1991
      %v2006 = vadd.f32 %v1883, %v1996
      %v2007 = vrot.slane %v1551, 2
      %v2008 = vrot.slane %v1552, 2
      %v2009 = vsel %vm340, %v2007, %v2008
      %v2010 = vrot.slane %v1555, 4
      %v2011 = vsel %vm367, %v2009, 0
      %v2013 = vsel %vm384, %v2010, 0
      %2015 = vmatprep.subr.mxu0 0.0
      %2016 = vmatpush1.msra.mxu0 %v2013
      %2017 = vmatprep.subr.mxu0 0.0
      %2018 = vmatpush1.msra.mxu0 0.0
      %2019 = vmatprep.subr.mxu0 0.0
      %2020 = vmatpush1.msra.mxu0 0.0
      %2021 = vmatprep.subr.mxu0 0.0
      %2022 = vmatpush1.msra.mxu0 0.0
      %2023 = vmatprep.subr.mxu0 0.0
      %2024 = vmatpush1.msra.mxu0 0.0
      %2025 = vmatprep.subr.mxu0 0.0
      %2026 = vmatpush1.msra.mxu0 0.0
      %2027 = vmatprep.subr.mxu0 0.0
      %2028 = vmatpush1.msra.mxu0 0.0
      %2029 = vmatprep.subr.mxu0 0.0
      %2030 = vmatpush1.msra.mxu0 0.0
      %2031 = vmatprep.subr.mxu0 0.0
      %2032 = vmatpush1.msra.mxu0 0.0
      %2033 = vmatprep.subr.mxu0 0.0
      %2034 = vmatpush1.msra.mxu0 0.0
      %2035 = vmatprep.subr.mxu0 0.0
      %2036 = vmatpush1.msra.mxu0 0.0
      %2037 = vmatprep.subr.mxu0 0.0
      %2038 = vmatpush1.msra.mxu0 0.0
      %2039 = vmatprep.subr.mxu0 0.0
      %2040 = vmatpush1.msra.mxu0 0.0
      %2041 = vmatprep.subr.mxu0 0.0
      %2042 = vmatpush1.msra.mxu0 0.0
      %2043 = vmatprep.subr.mxu0 0.0
      %2044 = vmatpush1.msra.mxu0 0.0
      %2045 = vmatprep.subr.mxu0 0.0
      %2046 = vmatpush1.msra.mxu0 0.0
      %2047 = vmatprep.subr.mxu0 0.0
      %2048 = vmatpush1.msra.mxu0 0.0
      %2049 = vmatprep.subr.mxu0 0.0
      %2050 = vmatpush1.msra.mxu0 0.0
      %2051 = vmatprep.subr.mxu0 0.0
      %2052 = vmatpush1.msra.mxu0 0.0
      %2053 = vmatprep.subr.mxu0 0.0
      %2054 = vmatpush1.msra.mxu0 0.0
      %2055 = vmatprep.subr.mxu0 0.0
      %2056 = vmatpush1.msra.mxu0 0.0
      %2057 = vmatprep.subr.mxu0 0.0
      %2058 = vmatpush1.msra.mxu0 0.0
      %2059 = vmatprep.subr.mxu0 0.0
      %2060 = vmatpush1.msra.mxu0 0.0
      %2061 = vmatprep.subr.mxu0 0.0
      %2062 = vmatpush1.msra.mxu0 0.0
      %2063 = vmatprep.subr.mxu0 0.0
      %2064 = vmatpush1.msra.mxu0 0.0
      %2065 = vmatprep.subr.mxu0 0.0
      %2066 = vmatpush1.msra.mxu0 0.0
      %2067 = vmatprep.subr.mxu0 0.0
      %2068 = vmatpush1.msra.mxu0 0.0
      %2069 = vmatprep.subr.mxu0 0.0
      %2070 = vmatpush1.msra.mxu0 0.0
      %2071 = vmatprep.subr.mxu0 0.0
      %2072 = vmatpush1.msra.mxu0 0.0
      %2073 = vmatprep.subr.mxu0 0.0
      %2074 = vmatpush1.msra.mxu0 0.0
      %2075 = vmatprep.subr.mxu0 0.0
      %2076 = vmatpush1.msra.mxu0 0.0
      %2077 = vmatprep.subr.mxu0 0.0
      %2078 = vmatpush1.msra.mxu0 0.0
      %2079 = vmatprep.mubr.f32.mxu0 0.0
      %2080 = vmatmul.mubr.f32.gmra.mrb[0].mxu0 %v1755
      %v2081 = vpop.f32.mrb[0].mxu0
      %v2082 = vadd.f32 0.0, %v2081
      %v2083 = vpop.f32.mrb[0].mxu0
      %2084 = vmatprep.mubr.f32.mxu0 0.0
      %2085 = vmatmul.mubr.f32.gmra.mrb[0].mxu0 %v1757
      %v2086 = vpop.f32.mrb[0].mxu0
      %v2087 = vadd.f32 0.0, %v2086
      %v2088 = vpop.f32.mrb[0].mxu0
      %2089 = vmatprep.mubr.f32.mxu0 0.0
      %2090 = vmatmul.mubr.f32.gmra.mrb[0].mxu0 %v1759
      %v2091 = vpop.f32.mrb[0].mxu0
      %v2092 = vadd.f32 0.0, %v2091
      %v2093 = vpop.f32.mrb[0].mxu0
      %2094 = vmatprep.mubr.f32.mxu0 0.0
      %2095 = vmatmul.mubr.f32.gmra.mrb[0].mxu0 %v1761
      %v2096 = vpop.f32.mrb[0].mxu0
      %v2097 = vadd.f32 0.0, %v2096
      %v2098 = vpop.f32.mrb[0].mxu0
      %2099 = vmatprep.mubr.f32.mxu0 0.0
      %2100 = vmatmul.mubr.f32.gmra.mrb[0].mxu0 %v1763
      %v2101 = vpop.f32.mrb[0].mxu0
      %v2102 = vadd.f32 0.0, %v2101
      %v2103 = vpop.f32.mrb[0].mxu0
      %2104 = vmatprep.mubr.f32.mxu0 0.0
      %2105 = vmatmul.mubr.f32.gmra.mrb[0].mxu0 %v1765
      %v2106 = vpop.f32.mrb[0].mxu0
      %v2107 = vadd.f32 0.0, %v2106
      %v2108 = vpop.f32.mrb[0].mxu0
      %2109 = vmatprep.mubr.f32.mxu0 0.0
      %2110 = vmatmul.mubr.f32.gmra.mrb[0].mxu0 %v1767
      %v2111 = vpop.f32.mrb[0].mxu0
      %v2112 = vadd.f32 0.0, %v2111
      %v2113 = vpop.f32.mrb[0].mxu0
      %2114 = vmatprep.mubr.f32.mxu0 0.0
      %2115 = vmatmul.mubr.f32.gmra.mrb[0].mxu0 %v2011
      %v2116 = vpop.f32.mrb[0].mxu0
      %v2117 = vadd.f32 0.0, %v2116
      %v2118 = vpop.f32.mrb[0].mxu0
      %2119 = vdwg.mxu0
      %v2120 = vadd.f32 %v1999, %v2082
      %v2121 = vadd.f32 %v2000, %v2087
      %v2122 = vadd.f32 %v2001, %v2092
      %v2123 = vadd.f32 %v2002, %v2097
      %v2124 = vadd.f32 %v2003, %v2102
      %v2125 = vadd.f32 %v2004, %v2107
      %v2126 = vadd.f32 %v2005, %v2112
      %v2127 = vadd.f32 %v2006, %v2117
      %s2128 = scalar_lea.vmem %s219, 480
      %v2129 = vld [vmem:[%s2128] sm:$0xff]
      %v2130 = vld [vmem:[%s2128 + $0x8] sm:$0x3]
      %v2131 = vld [vmem:[%s2128 + $0x10] sm:$0xff]
      %v2132 = vld [vmem:[%s2128 + $0x18] sm:$0x3]
      %v2133 = vld [vmem:[%s2128 + $0x20] sm:$0xff]
      %v2134 = vld [vmem:[%s2128 + $0x28] sm:$0x3]
      %v2135 = vld [vmem:[%s2128 + $0x30] sm:$0xff]
      %v2136 = vld [vmem:[%s2128 + $0x38] sm:$0x3]
      %v2137 = vld [vmem:[%s2128 + $0x40] sm:$0xff]
      %v2138 = vld [vmem:[%s2128 + $0x48] sm:$0x3]
      %v2139 = vld [vmem:[%s2128 + $0x50] sm:$0xff]
      %v2140 = vld [vmem:[%s2128 + $0x58] sm:$0x3]
      %v2141 = vld [vmem:[%s2128 + $0x60] sm:$0xff]
      %v2142 = vld [vmem:[%s2128 + $0x68] sm:$0x3]
      %v2143 = vld [vmem:[%s2128 + $0x70] sm:$0xff]
      %v2144 = vld [vmem:[%s2128 + $0x78] sm:$0x3]
      %v2145 = vld [vmem:[%s2128 + $0x80] sm:$0xff]
      %v2146 = vld [vmem:[%s2128 + $0x88] sm:$0x3]
      %vm2147 = vcmp.gt.f32.partialorder %v2129, 0.0
      %vm2148 = vcmp.gt.f32.partialorder %v2130, 0.0
      %vm2149 = vcmp.gt.f32.partialorder %v2131, 0.0
      %vm2150 = vcmp.gt.f32.partialorder %v2132, 0.0
      %vm2151 = vcmp.gt.f32.partialorder %v2133, 0.0
      %vm2152 = vcmp.gt.f32.partialorder %v2134, 0.0
      %vm2153 = vcmp.gt.f32.partialorder %v2135, 0.0
      %vm2154 = vcmp.gt.f32.partialorder %v2136, 0.0
      %vm2155 = vcmp.gt.f32.partialorder %v2137, 0.0
      %vm2156 = vcmp.gt.f32.partialorder %v2138, 0.0
      %vm2157 = vcmp.gt.f32.partialorder %v2139, 0.0
      %vm2158 = vcmp.gt.f32.partialorder %v2140, 0.0
      %vm2159 = vcmp.gt.f32.partialorder %v2141, 0.0
      %vm2160 = vcmp.gt.f32.partialorder %v2142, 0.0
      %vm2161 = vcmp.gt.f32.partialorder %v2143, 0.0
      %vm2162 = vcmp.gt.f32.partialorder %v2144, 0.0
      %vm2163 = vcmp.gt.f32.partialorder %v2145, 0.0
      %vm2164 = vcmp.gt.f32.partialorder %v2146, 0.0
      %v2165 = vmul.f32 %v2129, 0.2
      %v2166 = vmul.f32 %v2130, 0.2
      %v2167 = vmul.f32 %v2131, 0.2
      %v2168 = vmul.f32 %v2132, 0.2
      %v2169 = vmul.f32 %v2133, 0.2
      %v2170 = vmul.f32 %v2134, 0.2
      %v2171 = vmul.f32 %v2135, 0.2
      %v2172 = vmul.f32 %v2136, 0.2
      %v2173 = vmul.f32 %v2137, 0.2
      %v2174 = vmul.f32 %v2138, 0.2
      %v2175 = vmul.f32 %v2139, 0.2
      %v2176 = vmul.f32 %v2140, 0.2
      %v2177 = vmul.f32 %v2141, 0.2
      %v2178 = vmul.f32 %v2142, 0.2
      %v2179 = vmul.f32 %v2143, 0.2
      %v2180 = vmul.f32 %v2144, 0.2
      %v2181 = vmul.f32 %v2145, 0.2
      %v2182 = vmul.f32 %v2146, 0.2
      %v2183 = vsel %vm2147, %v2129, %v2165
      %v2184 = vsel %vm2148, %v2130, %v2166
      %v2185 = vsel %vm2149, %v2131, %v2167
      %v2186 = vsel %vm2150, %v2132, %v2168
      %v2187 = vsel %vm2151, %v2133, %v2169
      %v2188 = vsel %vm2152, %v2134, %v2170
      %v2189 = vsel %vm2153, %v2135, %v2171
      %v2190 = vsel %vm2154, %v2136, %v2172
      %v2191 = vsel %vm2155, %v2137, %v2173
      %v2192 = vsel %vm2156, %v2138, %v2174
      %v2193 = vsel %vm2157, %v2139, %v2175
      %v2194 = vsel %vm2158, %v2140, %v2176
      %v2195 = vsel %vm2159, %v2141, %v2177
      %v2196 = vsel %vm2160, %v2142, %v2178
      %v2197 = vsel %vm2161, %v2143, %v2179
      %v2198 = vsel %vm2162, %v2144, %v2180
      %v2199 = vsel %vm2163, %v2145, %v2181
      %v2200 = vsel %vm2164, %v2146, %v2182
      %s2201 = scalar_lea.vmem %s1, 48
      %v2202 = vld [vmem:[%s2201] sm:$0xff]
      %v2203 = vld [vmem:[%s2201 + $0x8] sm:$0xff]
      %v2205 = vsel %vm367, %v2183, 0
      %v2208 = vsel %vm367, %v2185, 0
      %v2211 = vsel %vm367, %v2187, 0
      %v2214 = vsel %vm367, %v2189, 0
      %v2217 = vsel %vm367, %v2191, 0
      %v2220 = vsel %vm367, %v2193, 0
      %v2223 = vsel %vm367, %v2195, 0
      %v2226 = vsel %vm367, %v2197, 0
      %v2229 = vsel %vm384, %v2202, 0
      %2231 = vmatprep.subr.mxu0 0.0
      %2232 = vmatpush1.msra.mxu0 %v2229
      %2233 = vmatprep.subr.mxu0 0.0
      %2234 = vmatpush1.msra.mxu0 0.0
      %2235 = vmatprep.subr.mxu0 0.0
      %2236 = vmatpush1.msra.mxu0 0.0
      %2237 = vmatprep.subr.mxu0 0.0
      %2238 = vmatpush1.msra.mxu0 0.0
      %2239 = vmatprep.subr.mxu0 0.0
      %2240 = vmatpush1.msra.mxu0 0.0
      %2241 = vmatprep.subr.mxu0 0.0
      %2242 = vmatpush1.msra.mxu0 0.0
      %2243 = vmatprep.subr.mxu0 0.0
      %2244 = vmatpush1.msra.mxu0 0.0
      %2245 = vmatprep.subr.mxu0 0.0
      %2246 = vmatpush1.msra.mxu0 0.0
      %2247 = vmatprep.subr.mxu0 0.0
      %2248 = vmatpush1.msra.mxu0 0.0
      %2249 = vmatprep.subr.mxu0 0.0
      %2250 = vmatpush1.msra.mxu0 0.0
      %2251 = vmatprep.subr.mxu0 0.0
      %2252 = vmatpush1.msra.mxu0 0.0
      %2253 = vmatprep.subr.mxu0 0.0
      %2254 = vmatpush1.msra.mxu0 0.0
      %2255 = vmatprep.subr.mxu0 0.0
      %2256 = vmatpush1.msra.mxu0 0.0
      %2257 = vmatprep.subr.mxu0 0.0
      %2258 = vmatpush1.msra.mxu0 0.0
      %2259 = vmatprep.subr.mxu0 0.0
      %2260 = vmatpush1.msra.mxu0 0.0
      %2261 = vmatprep.subr.mxu0 0.0
      %2262 = vmatpush1.msra.mxu0 0.0
      %2263 = vmatprep.subr.mxu0 0.0
      %2264 = vmatpush1.msra.mxu0 0.0
      %2265 = vmatprep.subr.mxu0 0.0
      %2266 = vmatpush1.msra.mxu0 0.0
      %2267 = vmatprep.subr.mxu0 0.0
      %2268 = vmatpush1.msra.mxu0 0.0
      %2269 = vmatprep.subr.mxu0 0.0
      %2270 = vmatpush1.msra.mxu0 0.0
      %2271 = vmatprep.subr.mxu0 0.0
      %2272 = vmatpush1.msra.mxu0 0.0
      %2273 = vmatprep.subr.mxu0 0.0
      %2274 = vmatpush1.msra.mxu0 0.0
      %2275 = vmatprep.subr.mxu0 0.0
      %2276 = vmatpush1.msra.mxu0 0.0
      %2277 = vmatprep.subr.mxu0 0.0
      %2278 = vmatpush1.msra.mxu0 0.0
      %2279 = vmatprep.subr.mxu0 0.0
      %2280 = vmatpush1.msra.mxu0 0.0
      %2281 = vmatprep.subr.mxu0 0.0
      %2282 = vmatpush1.msra.mxu0 0.0
      %2283 = vmatprep.subr.mxu0 0.0
      %2284 = vmatpush1.msra.mxu0 0.0
      %2285 = vmatprep.subr.mxu0 0.0
      %2286 = vmatpush1.msra.mxu0 0.0
      %2287 = vmatprep.subr.mxu0 0.0
      %2288 = vmatpush1.msra.mxu0 0.0
      %2289 = vmatprep.subr.mxu0 0.0
      %2290 = vmatpush1.msra.mxu0 0.0
      %2291 = vmatprep.subr.mxu0 0.0
      %2292 = vmatpush1.msra.mxu0 0.0
      %2293 = vmatprep.subr.mxu0 0.0
      %2294 = vmatpush1.msra.mxu0 0.0
      %2295 = vmatprep.mubr.f32.mxu0 0.0
      %2296 = vmatmul.mubr.f32.gmra.mrb[0].mxu0 %v2205
      %v2297 = vpop.f32.mrb[0].mxu0
      %v2298 = vadd.f32 0.0, %v2297
      %v2299 = vpop.f32.mrb[0].mxu0
      %2300 = vmatprep.mubr.f32.mxu0 0.0
      %2301 = vmatmul.mubr.f32.gmra.mrb[0].mxu0 %v2208
      %v2302 = vpop.f32.mrb[0].mxu0
      %v2303 = vadd.f32 0.0, %v2302
      %v2304 = vpop.f32.mrb[0].mxu0
      %2305 = vmatprep.mubr.f32.mxu0 0.0
      %2306 = vmatmul.mubr.f32.gmra.mrb[0].mxu0 %v2211
      %v2307 = vpop.f32.mrb[0].mxu0
      %v2308 = vadd.f32 0.0, %v2307
      %v2309 = vpop.f32.mrb[0].mxu0
      %2310 = vmatprep.mubr.f32.mxu0 0.0
      %2311 = vmatmul.mubr.f32.gmra.mrb[0].mxu0 %v2214
      %v2312 = vpop.f32.mrb[0].mxu0
      %v2313 = vadd.f32 0.0, %v2312
      %v2314 = vpop.f32.mrb[0].mxu0
      %2315 = vmatprep.mubr.f32.mxu0 0.0
      %2316 = vmatmul.mubr.f32.gmra.mrb[0].mxu0 %v2217
      %v2317 = vpop.f32.mrb[0].mxu0
      %v2318 = vadd.f32 0.0, %v2317
      %v2319 = vpop.f32.mrb[0].mxu0
      %2320 = vmatprep.mubr.f32.mxu0 0.0
      %2321 = vmatmul.mubr.f32.gmra.mrb[0].mxu0 %v2220
      %v2322 = vpop.f32.mrb[0].mxu0
      %v2323 = vadd.f32 0.0, %v2322
      %v2324 = vpop.f32.mrb[0].mxu0
      %2325 = vmatprep.mubr.f32.mxu0 0.0
      %2326 = vmatmul.mubr.f32.gmra.mrb[0].mxu0 %v2223
      %v2327 = vpop.f32.mrb[0].mxu0
      %v2328 = vadd.f32 0.0, %v2327
      %v2329 = vpop.f32.mrb[0].mxu0
      %2330 = vmatprep.mubr.f32.mxu0 0.0
      %2331 = vmatmul.mubr.f32.gmra.mrb[0].mxu0 %v2226
      %v2332 = vpop.f32.mrb[0].mxu0
      %v2333 = vadd.f32 0.0, %v2332
      %v2334 = vpop.f32.mrb[0].mxu0
      %2335 = vdwg.mxu0
      %v2336 = vadd.f32 %v2120, %v2298
      %v2337 = vadd.f32 %v2121, %v2303
      %v2338 = vadd.f32 %v2122, %v2308
      %v2339 = vadd.f32 %v2123, %v2313
      %v2340 = vadd.f32 %v2124, %v2318
      %v2341 = vadd.f32 %v2125, %v2323
      %v2342 = vadd.f32 %v2126, %v2328
      %v2343 = vadd.f32 %v2127, %v2333
      %v2352 = vrot.slane %v2183, 1
      %v2353 = vrot.slane %v2184, 1
      %v2354 = vsel %vm315, %v2352, %v2353
      %v2355 = vrot.slane %v2185, 1
      %v2356 = vrot.slane %v2186, 1
      %v2357 = vsel %vm315, %v2355, %v2356
      %v2358 = vrot.slane %v2187, 1
      %v2359 = vrot.slane %v2188, 1
      %v2360 = vsel %vm315, %v2358, %v2359
      %v2361 = vrot.slane %v2189, 1
      %v2362 = vrot.slane %v2190, 1
      %v2363 = vsel %vm315, %v2361, %v2362
      %v2364 = vrot.slane %v2191, 1
      %v2365 = vrot.slane %v2192, 1
      %v2366 = vsel %vm315, %v2364, %v2365
      %v2367 = vrot.slane %v2193, 1
      %v2368 = vrot.slane %v2194, 1
      %v2369 = vsel %vm315, %v2367, %v2368
      %v2370 = vrot.slane %v2195, 1
      %v2371 = vrot.slane %v2196, 1
      %v2372 = vsel %vm315, %v2370, %v2371
      %v2373 = vrot.slane %v2197, 1
      %v2374 = vrot.slane %v2198, 1
      %v2375 = vsel %vm315, %v2373, %v2374
      %v2376 = vrot.slane %v2202, 4
      %v2377 = vsel %vm367, %v2354, 0
      %v2379 = vsel %vm367, %v2357, 0
      %v2381 = vsel %vm367, %v2360, 0
      %v2383 = vsel %vm367, %v2363, 0
      %v2385 = vsel %vm367, %v2366, 0
      %v2387 = vsel %vm367, %v2369, 0
      %v2389 = vsel %vm367, %v2372, 0
      %v2391 = vsel %vm367, %v2375, 0
      %v2393 = vsel %vm384, %v2376, 0
      %2395 = vmatprep.subr.mxu0 0.0
      %2396 = vmatpush1.msra.mxu0 %v2393
      %2397 = vmatprep.subr.mxu0 0.0
      %2398 = vmatpush1.msra.mxu0 0.0
      %2399 = vmatprep.subr.mxu0 0.0
      %2400 = vmatpush1.msra.mxu0 0.0
      %2401 = vmatprep.subr.mxu0 0.0
      %2402 = vmatpush1.msra.mxu0 0.0
      %2403 = vmatprep.subr.mxu0 0.0
      %2404 = vmatpush1.msra.mxu0 0.0
      %2405 = vmatprep.subr.mxu0 0.0
      %2406 = vmatpush1.msra.mxu0 0.0
      %2407 = vmatprep.subr.mxu0 0.0
      %2408 = vmatpush1.msra.mxu0 0.0
      %2409 = vmatprep.subr.mxu0 0.0
      %2410 = vmatpush1.msra.mxu0 0.0
      %2411 = vmatprep.subr.mxu0 0.0
      %2412 = vmatpush1.msra.mxu0 0.0
      %2413 = vmatprep.subr.mxu0 0.0
      %2414 = vmatpush1.msra.mxu0 0.0
      %2415 = vmatprep.subr.mxu0 0.0
      %2416 = vmatpush1.msra.mxu0 0.0
      %2417 = vmatprep.subr.mxu0 0.0
      %2418 = vmatpush1.msra.mxu0 0.0
      %2419 = vmatprep.subr.mxu0 0.0
      %2420 = vmatpush1.msra.mxu0 0.0
      %2421 = vmatprep.subr.mxu0 0.0
      %2422 = vmatpush1.msra.mxu0 0.0
      %2423 = vmatprep.subr.mxu0 0.0
      %2424 = vmatpush1.msra.mxu0 0.0
      %2425 = vmatprep.subr.mxu0 0.0
      %2426 = vmatpush1.msra.mxu0 0.0
      %2427 = vmatprep.subr.mxu0 0.0
      %2428 = vmatpush1.msra.mxu0 0.0
      %2429 = vmatprep.subr.mxu0 0.0
      %2430 = vmatpush1.msra.mxu0 0.0
      %2431 = vmatprep.subr.mxu0 0.0
      %2432 = vmatpush1.msra.mxu0 0.0
      %2433 = vmatprep.subr.mxu0 0.0
      %2434 = vmatpush1.msra.mxu0 0.0
      %2435 = vmatprep.subr.mxu0 0.0
      %2436 = vmatpush1.msra.mxu0 0.0
      %2437 = vmatprep.subr.mxu0 0.0
      %2438 = vmatpush1.msra.mxu0 0.0
      %2439 = vmatprep.subr.mxu0 0.0
      %2440 = vmatpush1.msra.mxu0 0.0
      %2441 = vmatprep.subr.mxu0 0.0
      %2442 = vmatpush1.msra.mxu0 0.0
      %2443 = vmatprep.subr.mxu0 0.0
      %2444 = vmatpush1.msra.mxu0 0.0
      %2445 = vmatprep.subr.mxu0 0.0
      %2446 = vmatpush1.msra.mxu0 0.0
      %2447 = vmatprep.subr.mxu0 0.0
      %2448 = vmatpush1.msra.mxu0 0.0
      %2449 = vmatprep.subr.mxu0 0.0
      %2450 = vmatpush1.msra.mxu0 0.0
      %2451 = vmatprep.subr.mxu0 0.0
      %2452 = vmatpush1.msra.mxu0 0.0
      %2453 = vmatprep.subr.mxu0 0.0
      %2454 = vmatpush1.msra.mxu0 0.0
      %2455 = vmatprep.subr.mxu0 0.0
      %2456 = vmatpush1.msra.mxu0 0.0
      %2457 = vmatprep.subr.mxu0 0.0
      %2458 = vmatpush1.msra.mxu0 0.0
      %2459 = vmatprep.mubr.f32.mxu0 0.0
      %2460 = vmatmul.mubr.f32.gmra.mrb[0].mxu0 %v2377
      %v2461 = vpop.f32.mrb[0].mxu0
      %v2462 = vadd.f32 0.0, %v2461
      %v2463 = vpop.f32.mrb[0].mxu0
      %2464 = vmatprep.mubr.f32.mxu0 0.0
      %2465 = vmatmul.mubr.f32.gmra.mrb[0].mxu0 %v2379
      %v2466 = vpop.f32.mrb[0].mxu0
      %v2467 = vadd.f32 0.0, %v2466
      %v2468 = vpop.f32.mrb[0].mxu0
      %2469 = vmatprep.mubr.f32.mxu0 0.0
      %2470 = vmatmul.mubr.f32.gmra.mrb[0].mxu0 %v2381
      %v2471 = vpop.f32.mrb[0].mxu0
      %v2472 = vadd.f32 0.0, %v2471
      %v2473 = vpop.f32.mrb[0].mxu0
      %2474 = vmatprep.mubr.f32.mxu0 0.0
      %2475 = vmatmul.mubr.f32.gmra.mrb[0].mxu0 %v2383
      %v2476 = vpop.f32.mrb[0].mxu0
      %v2477 = vadd.f32 0.0, %v2476
      %v2478 = vpop.f32.mrb[0].mxu0
      %2479 = vmatprep.mubr.f32.mxu0 0.0
      %2480 = vmatmul.mubr.f32.gmra.mrb[0].mxu0 %v2385
      %v2481 = vpop.f32.mrb[0].mxu0
      %v2482 = vadd.f32 0.0, %v2481
      %v2483 = vpop.f32.mrb[0].mxu0
      %2484 = vmatprep.mubr.f32.mxu0 0.0
      %2485 = vmatmul.mubr.f32.gmra.mrb[0].mxu0 %v2387
      %v2486 = vpop.f32.mrb[0].mxu0
      %v2487 = vadd.f32 0.0, %v2486
      %v2488 = vpop.f32.mrb[0].mxu0
      %2489 = vmatprep.mubr.f32.mxu0 0.0
      %2490 = vmatmul.mubr.f32.gmra.mrb[0].mxu0 %v2389
      %v2491 = vpop.f32.mrb[0].mxu0
      %v2492 = vadd.f32 0.0, %v2491
      %v2493 = vpop.f32.mrb[0].mxu0
      %2494 = vmatprep.mubr.f32.mxu0 0.0
      %2495 = vmatmul.mubr.f32.gmra.mrb[0].mxu0 %v2391
      %v2496 = vpop.f32.mrb[0].mxu0
      %v2497 = vadd.f32 0.0, %v2496
      %v2498 = vpop.f32.mrb[0].mxu0
      %2499 = vdwg.mxu0
      %v2500 = vadd.f32 %v2336, %v2462
      %v2501 = vadd.f32 %v2337, %v2467
      %v2502 = vadd.f32 %v2338, %v2472
      %v2503 = vadd.f32 %v2339, %v2477
      %v2504 = vadd.f32 %v2340, %v2482
      %v2505 = vadd.f32 %v2341, %v2487
      %v2506 = vadd.f32 %v2342, %v2492
      %v2507 = vadd.f32 %v2343, %v2497
      %v2509 = vsel %vm367, %v2199, 0
      %v2512 = vsel %vm384, %v2203, 0
      %2514 = vmatprep.subr.mxu0 0.0
      %2515 = vmatpush1.msra.mxu0 %v2512
      %2516 = vmatprep.subr.mxu0 0.0
      %2517 = vmatpush1.msra.mxu0 0.0
      %2518 = vmatprep.subr.mxu0 0.0
      %2519 = vmatpush1.msra.mxu0 0.0
      %2520 = vmatprep.subr.mxu0 0.0
      %2521 = vmatpush1.msra.mxu0 0.0
      %2522 = vmatprep.subr.mxu0 0.0
      %2523 = vmatpush1.msra.mxu0 0.0
      %2524 = vmatprep.subr.mxu0 0.0
      %2525 = vmatpush1.msra.mxu0 0.0
      %2526 = vmatprep.subr.mxu0 0.0
      %2527 = vmatpush1.msra.mxu0 0.0
      %2528 = vmatprep.subr.mxu0 0.0
      %2529 = vmatpush1.msra.mxu0 0.0
      %2530 = vmatprep.subr.mxu0 0.0
      %2531 = vmatpush1.msra.mxu0 0.0
      %2532 = vmatprep.subr.mxu0 0.0
      %2533 = vmatpush1.msra.mxu0 0.0
      %2534 = vmatprep.subr.mxu0 0.0
      %2535 = vmatpush1.msra.mxu0 0.0
      %2536 = vmatprep.subr.mxu0 0.0
      %2537 = vmatpush1.msra.mxu0 0.0
      %2538 = vmatprep.subr.mxu0 0.0
      %2539 = vmatpush1.msra.mxu0 0.0
      %2540 = vmatprep.subr.mxu0 0.0
      %2541 = vmatpush1.msra.mxu0 0.0
      %2542 = vmatprep.subr.mxu0 0.0
      %2543 = vmatpush1.msra.mxu0 0.0
      %2544 = vmatprep.subr.mxu0 0.0
      %2545 = vmatpush1.msra.mxu0 0.0
      %2546 = vmatprep.subr.mxu0 0.0
      %2547 = vmatpush1.msra.mxu0 0.0
      %2548 = vmatprep.subr.mxu0 0.0
      %2549 = vmatpush1.msra.mxu0 0.0
      %2550 = vmatprep.subr.mxu0 0.0
      %2551 = vmatpush1.msra.mxu0 0.0
      %2552 = vmatprep.subr.mxu0 0.0
      %2553 = vmatpush1.msra.mxu0 0.0
      %2554 = vmatprep.subr.mxu0 0.0
      %2555 = vmatpush1.msra.mxu0 0.0
      %2556 = vmatprep.subr.mxu0 0.0
      %2557 = vmatpush1.msra.mxu0 0.0
      %2558 = vmatprep.subr.mxu0 0.0
      %2559 = vmatpush1.msra.mxu0 0.0
      %2560 = vmatprep.subr.mxu0 0.0
      %2561 = vmatpush1.msra.mxu0 0.0
      %2562 = vmatprep.subr.mxu0 0.0
      %2563 = vmatpush1.msra.mxu0 0.0
      %2564 = vmatprep.subr.mxu0 0.0
      %2565 = vmatpush1.msra.mxu0 0.0
      %2566 = vmatprep.subr.mxu0 0.0
      %2567 = vmatpush1.msra.mxu0 0.0
      %2568 = vmatprep.subr.mxu0 0.0
      %2569 = vmatpush1.msra.mxu0 0.0
      %2570 = vmatprep.subr.mxu0 0.0
      %2571 = vmatpush1.msra.mxu0 0.0
      %2572 = vmatprep.subr.mxu0 0.0
      %2573 = vmatpush1.msra.mxu0 0.0
      %2574 = vmatprep.subr.mxu0 0.0
      %2575 = vmatpush1.msra.mxu0 0.0
      %2576 = vmatprep.subr.mxu0 0.0
      %2577 = vmatpush1.msra.mxu0 0.0
      %2578 = vmatprep.mubr.f32.mxu0 0.0
      %2579 = vmatmul.mubr.f32.gmra.mrb[0].mxu0 %v2208
      %v2580 = vpop.f32.mrb[0].mxu0
      %v2581 = vadd.f32 0.0, %v2580
      %v2582 = vpop.f32.mrb[0].mxu0
      %2583 = vmatprep.mubr.f32.mxu0 0.0
      %2584 = vmatmul.mubr.f32.gmra.mrb[0].mxu0 %v2211
      %v2585 = vpop.f32.mrb[0].mxu0
      %v2586 = vadd.f32 0.0, %v2585
      %v2587 = vpop.f32.mrb[0].mxu0
      %2588 = vmatprep.mubr.f32.mxu0 0.0
      %2589 = vmatmul.mubr.f32.gmra.mrb[0].mxu0 %v2214
      %v2590 = vpop.f32.mrb[0].mxu0
      %v2591 = vadd.f32 0.0, %v2590
      %v2592 = vpop.f32.mrb[0].mxu0
      %2593 = vmatprep.mubr.f32.mxu0 0.0
      %2594 = vmatmul.mubr.f32.gmra.mrb[0].mxu0 %v2217
      %v2595 = vpop.f32.mrb[0].mxu0
      %v2596 = vadd.f32 0.0, %v2595
      %v2597 = vpop.f32.mrb[0].mxu0
      %2598 = vmatprep.mubr.f32.mxu0 0.0
      %2599 = vmatmul.mubr.f32.gmra.mrb[0].mxu0 %v2220
      %v2600 = vpop.f32.mrb[0].mxu0
      %v2601 = vadd.f32 0.0, %v2600
      %v2602 = vpop.f32.mrb[0].mxu0
      %2603 = vmatprep.mubr.f32.mxu0 0.0
      %2604 = vmatmul.mubr.f32.gmra.mrb[0].mxu0 %v2223
      %v2605 = vpop.f32.mrb[0].mxu0
      %v2606 = vadd.f32 0.0, %v2605
      %v2607 = vpop.f32.mrb[0].mxu0
      %2608 = vmatprep.mubr.f32.mxu0 0.0
      %2609 = vmatmul.mubr.f32.gmra.mrb[0].mxu0 %v2226
      %v2610 = vpop.f32.mrb[0].mxu0
      %v2611 = vadd.f32 0.0, %v2610
      %v2612 = vpop.f32.mrb[0].mxu0
      %2613 = vmatprep.mubr.f32.mxu0 0.0
      %2614 = vmatmul.mubr.f32.gmra.mrb[0].mxu0 %v2509
      %v2615 = vpop.f32.mrb[0].mxu0
      %v2616 = vadd.f32 0.0, %v2615
      %v2617 = vpop.f32.mrb[0].mxu0
      %2618 = vdwg.mxu0
      %v2619 = vadd.f32 %v2500, %v2581
      %v2620 = vadd.f32 %v2501, %v2586
      %v2621 = vadd.f32 %v2502, %v2591
      %v2622 = vadd.f32 %v2503, %v2596
      %v2623 = vadd.f32 %v2504, %v2601
      %v2624 = vadd.f32 %v2505, %v2606
      %v2625 = vadd.f32 %v2506, %v2611
      %v2626 = vadd.f32 %v2507, %v2616
      %v2628 = vrot.slane %v2199, 1
      %v2629 = vrot.slane %v2200, 1
      %v2630 = vsel %vm315, %v2628, %v2629
      %v2631 = vrot.slane %v2203, 4
      %v2632 = vsel %vm367, %v2630, 0
      %v2634 = vsel %vm384, %v2631, 0
      %2636 = vmatprep.subr.mxu0 0.0
      %2637 = vmatpush1.msra.mxu0 %v2634
      %2638 = vmatprep.subr.mxu0 0.0
      %2639 = vmatpush1.msra.mxu0 0.0
      %2640 = vmatprep.subr.mxu0 0.0
      %2641 = vmatpush1.msra.mxu0 0.0
      %2642 = vmatprep.subr.mxu0 0.0
      %2643 = vmatpush1.msra.mxu0 0.0
      %2644 = vmatprep.subr.mxu0 0.0
      %2645 = vmatpush1.msra.mxu0 0.0
      %2646 = vmatprep.subr.mxu0 0.0
      %2647 = vmatpush1.msra.mxu0 0.0
      %2648 = vmatprep.subr.mxu0 0.0
      %2649 = vmatpush1.msra.mxu0 0.0
      %2650 = vmatprep.subr.mxu0 0.0
      %2651 = vmatpush1.msra.mxu0 0.0
      %2652 = vmatprep.subr.mxu0 0.0
      %2653 = vmatpush1.msra.mxu0 0.0
      %2654 = vmatprep.subr.mxu0 0.0
      %2655 = vmatpush1.msra.mxu0 0.0
      %2656 = vmatprep.subr.mxu0 0.0
      %2657 = vmatpush1.msra.mxu0 0.0
      %2658 = vmatprep.subr.mxu0 0.0
      %2659 = vmatpush1.msra.mxu0 0.0
      %2660 = vmatprep.subr.mxu0 0.0
      %2661 = vmatpush1.msra.mxu0 0.0
      %2662 = vmatprep.subr.mxu0 0.0
      %2663 = vmatpush1.msra.mxu0 0.0
      %2664 = vmatprep.subr.mxu0 0.0
      %2665 = vmatpush1.msra.mxu0 0.0
      %2666 = vmatprep.subr.mxu0 0.0
      %2667 = vmatpush1.msra.mxu0 0.0
      %2668 = vmatprep.subr.mxu0 0.0
      %2669 = vmatpush1.msra.mxu0 0.0
      %2670 = vmatprep.subr.mxu0 0.0
      %2671 = vmatpush1.msra.mxu0 0.0
      %2672 = vmatprep.subr.mxu0 0.0
      %2673 = vmatpush1.msra.mxu0 0.0
      %2674 = vmatprep.subr.mxu0 0.0
      %2675 = vmatpush1.msra.mxu0 0.0
      %2676 = vmatprep.subr.mxu0 0.0
      %2677 = vmatpush1.msra.mxu0 0.0
      %2678 = vmatprep.subr.mxu0 0.0
      %2679 = vmatpush1.msra.mxu0 0.0
      %2680 = vmatprep.subr.mxu0 0.0
      %2681 = vmatpush1.msra.mxu0 0.0
      %2682 = vmatprep.subr.mxu0 0.0
      %2683 = vmatpush1.msra.mxu0 0.0
      %2684 = vmatprep.subr.mxu0 0.0
      %2685 = vmatpush1.msra.mxu0 0.0
      %2686 = vmatprep.subr.mxu0 0.0
      %2687 = vmatpush1.msra.mxu0 0.0
      %2688 = vmatprep.subr.mxu0 0.0
      %2689 = vmatpush1.msra.mxu0 0.0
      %2690 = vmatprep.subr.mxu0 0.0
      %2691 = vmatpush1.msra.mxu0 0.0
      %2692 = vmatprep.subr.mxu0 0.0
      %2693 = vmatpush1.msra.mxu0 0.0
      %2694 = vmatprep.subr.mxu0 0.0
      %2695 = vmatpush1.msra.mxu0 0.0
      %2696 = vmatprep.subr.mxu0 0.0
      %2697 = vmatpush1.msra.mxu0 0.0
      %2698 = vmatprep.subr.mxu0 0.0
      %2699 = vmatpush1.msra.mxu0 0.0
      %2700 = vmatprep.mubr.f32.mxu0 0.0
      %2701 = vmatmul.mubr.f32.gmra.mrb[0].mxu0 %v2379
      %v2702 = vpop.f32.mrb[0].mxu0
      %v2703 = vadd.f32 0.0, %v2702
      %v2704 = vpop.f32.mrb[0].mxu0
      %2705 = vmatprep.mubr.f32.mxu0 0.0
      %2706 = vmatmul.mubr.f32.gmra.mrb[0].mxu0 %v2381
      %v2707 = vpop.f32.mrb[0].mxu0
      %v2708 = vadd.f32 0.0, %v2707
      %v2709 = vpop.f32.mrb[0].mxu0
      %2710 = vmatprep.mubr.f32.mxu0 0.0
      %2711 = vmatmul.mubr.f32.gmra.mrb[0].mxu0 %v2383
      %v2712 = vpop.f32.mrb[0].mxu0
      %v2713 = vadd.f32 0.0, %v2712
      %v2714 = vpop.f32.mrb[0].mxu0
      %2715 = vmatprep.mubr.f32.mxu0 0.0
      %2716 = vmatmul.mubr.f32.gmra.mrb[0].mxu0 %v2385
      %v2717 = vpop.f32.mrb[0].mxu0
      %v2718 = vadd.f32 0.0, %v2717
      %v2719 = vpop.f32.mrb[0].mxu0
      %2720 = vmatprep.mubr.f32.mxu0 0.0
      %2721 = vmatmul.mubr.f32.gmra.mrb[0].mxu0 %v2387
      %v2722 = vpop.f32.mrb[0].mxu0
      %v2723 = vadd.f32 0.0, %v2722
      %v2724 = vpop.f32.mrb[0].mxu0
      %2725 = vmatprep.mubr.f32.mxu0 0.0
      %2726 = vmatmul.mubr.f32.gmra.mrb[0].mxu0 %v2389
      %v2727 = vpop.f32.mrb[0].mxu0
      %v2728 = vadd.f32 0.0, %v2727
      %v2729 = vpop.f32.mrb[0].mxu0
      %2730 = vmatprep.mubr.f32.mxu0 0.0
      %2731 = vmatmul.mubr.f32.gmra.mrb[0].mxu0 %v2391
      %v2732 = vpop.f32.mrb[0].mxu0
      %v2733 = vadd.f32 0.0, %v2732
      %v2734 = vpop.f32.mrb[0].mxu0
      %2735 = vmatprep.mubr.f32.mxu0 0.0
      %2736 = vmatmul.mubr.f32.gmra.mrb[0].mxu0 %v2632
      %v2737 = vpop.f32.mrb[0].mxu0
      %v2738 = vadd.f32 0.0, %v2737
      %v2739 = vpop.f32.mrb[0].mxu0
      %2740 = vdwg.mxu0
      %v2741 = vadd.f32 %v2619, %v2703
      %v2742 = vadd.f32 %v2620, %v2708
      %v2743 = vadd.f32 %v2621, %v2713
      %v2744 = vadd.f32 %v2622, %v2718
      %v2745 = vadd.f32 %v2623, %v2723
      %v2746 = vadd.f32 %v2624, %v2728
      %v2747 = vadd.f32 %v2625, %v2733
      %v2748 = vadd.f32 %v2626, %v2738
      %v2749 = vld [vmem:[%s2] sm:$0x1]
      %v2751 = vlaneseq
      %v2752 = vshrl.u32 %v2751, 7
      %v2753 = vsub.s32 0, %v2752
      %v2754 = vrot.slane %v2749, %v2753
      %v2756 = vadd.f32 %v2741, %v2754
      %v2757 = vadd.f32 %v2742, %v2754
      %v2758 = vadd.f32 %v2743, %v2754
      %v2759 = vadd.f32 %v2744, %v2754
      %v2760 = vadd.f32 %v2745, %v2754
      %v2761 = vadd.f32 %v2746, %v2754
      %v2762 = vadd.f32 %v2747, %v2754
      %v2763 = vadd.f32 %v2748, %v2754
      %v2764 = vmax.f32 %v2756, 0.0
      %v2765 = vmax.f32 %v2757, 0.0
      %v2766 = vmax.f32 %v2758, 0.0
      %v2767 = vmax.f32 %v2759, 0.0
      %v2768 = vmax.f32 %v2760, 0.0
      %v2769 = vmax.f32 %v2761, 0.0
      %v2770 = vmax.f32 %v2762, 0.0
      %v2771 = vmax.f32 %v2763, 0.0
      %vm2772 = vcmask 64512
      %2773 = vst.msk [vmem:[#allocation2] sm:$0xff] %vm2772, 0.0
      %vm2774 = vcmask 58368
      %2775 = vst.msk [vmem:[#allocation2 + $0x8] sm:$0x3] %vm2774, 0.0
      %s2776 = scalar_lea.vmem [#allocation2], 144
      %2777 = vst.msk [vmem:[%s2776] sm:$0xff] %vm2772, 0.0
      %2778 = vst.msk [vmem:[%s2776 + $0x8] sm:$0x3] %vm2774, 0.0
      %vm2779 = vcmask 57344
      %2780 = vst.msk [vmem:[#allocation2] sm:$0x1] %vm2779, 0.0
      %2781 = vst.msk [vmem:[#allocation2 + $0x10] sm:$0x1] %vm2779, 0.0
      %2782 = vst.msk [vmem:[#allocation2 + $0x20] sm:$0x1] %vm2779, 0.0
      %2783 = vst.msk [vmem:[#allocation2 + $0x30] sm:$0x1] %vm2779, 0.0
      %2784 = vst.msk [vmem:[#allocation2 + $0x40] sm:$0x1] %vm2779, 0.0
      %2785 = vst.msk [vmem:[#allocation2 + $0x50] sm:$0x1] %vm2779, 0.0
      %2786 = vst.msk [vmem:[#allocation2 + $0x60] sm:$0x1] %vm2779, 0.0
      %2787 = vst.msk [vmem:[#allocation2 + $0x70] sm:$0x1] %vm2779, 0.0
      %2788 = vst.msk [vmem:[#allocation2 + $0x80] sm:$0x1] %vm2779, 0.0
      %2789 = vst.msk [vmem:[#allocation2 + $0x90] sm:$0x1] %vm2779, 0.0
      %2790 = vst.msk [vmem:[#allocation2 + $0x9] sm:$0x1] %vm2779, 0.0
      %2791 = vst.msk [vmem:[#allocation2 + $0x19] sm:$0x1] %vm2779, 0.0
      %2792 = vst.msk [vmem:[#allocation2 + $0x29] sm:$0x1] %vm2779, 0.0
      %2793 = vst.msk [vmem:[#allocation2 + $0x39] sm:$0x1] %vm2779, 0.0
      %2794 = vst.msk [vmem:[#allocation2 + $0x49] sm:$0x1] %vm2779, 0.0
      %2795 = vst.msk [vmem:[#allocation2 + $0x59] sm:$0x1] %vm2779, 0.0
      %2796 = vst.msk [vmem:[#allocation2 + $0x69] sm:$0x1] %vm2779, 0.0
      %2797 = vst.msk [vmem:[#allocation2 + $0x79] sm:$0x1] %vm2779, 0.0
      %2798 = vst.msk [vmem:[#allocation2 + $0x89] sm:$0x1] %vm2779, 0.0
      %2799 = vst.msk [vmem:[#allocation2 + $0x99] sm:$0x1] %vm2779, 0.0
      %s2800 = scalar_lea.vmem [#allocation2], 16
      %2801 = vst.msk [vmem:[%s2800 + $0x1] sm:$0xff] %vm2772, %v2764
      %2802 = vst.msk [vmem:[%s2800 + $0x11] sm:$0xff] %vm2772, %v2765
      %2803 = vst.msk [vmem:[%s2800 + $0x21] sm:$0xff] %vm2772, %v2766
      %2804 = vst.msk [vmem:[%s2800 + $0x31] sm:$0xff] %vm2772, %v2767
      %2805 = vst.msk [vmem:[%s2800 + $0x41] sm:$0xff] %vm2772, %v2768
      %2806 = vst.msk [vmem:[%s2800 + $0x51] sm:$0xff] %vm2772, %v2769
      %2807 = vst.msk [vmem:[%s2800 + $0x61] sm:$0xff] %vm2772, %v2770
      %2808 = vst.msk [vmem:[%s2800 + $0x71] sm:$0xff] %vm2772, %v2771
      %v2809 = vld [vmem:[%s4] sm:$0x1]
      %v2810 = vld [vmem:[#allocation2] sm:$0xff]
      %v2811 = vld [vmem:[#allocation2 + $0x10] sm:$0xff]
      %v2812 = vld [vmem:[#allocation2 + $0x20] sm:$0xff]
      %v2813 = vld [vmem:[#allocation2 + $0x30] sm:$0xff]
      %v2814 = vld [vmem:[#allocation2 + $0x40] sm:$0xff]
      %v2815 = vld [vmem:[#allocation2 + $0x50] sm:$0xff]
      %v2816 = vld [vmem:[#allocation2 + $0x60] sm:$0xff]
      %v2817 = vld [vmem:[#allocation2 + $0x70] sm:$0xff]
      %v2818 = vld [vmem:[#allocation2 + $0x1] sm:$0xff]
      %v2819 = vld [vmem:[#allocation2 + $0x11] sm:$0xff]
      %v2820 = vld [vmem:[#allocation2 + $0x21] sm:$0xff]
      %v2821 = vld [vmem:[#allocation2 + $0x31] sm:$0xff]
      %v2822 = vld [vmem:[#allocation2 + $0x41] sm:$0xff]
      %v2823 = vld [vmem:[#allocation2 + $0x51] sm:$0xff]
      %v2824 = vld [vmem:[#allocation2 + $0x61] sm:$0xff]
      %v2825 = vld [vmem:[#allocation2 + $0x71] sm:$0xff]
      %v2826 = vld [vmem:[%s2800] sm:$0xff]
      %v2827 = vld [vmem:[%s2800 + $0x10] sm:$0xff]
      %v2828 = vld [vmem:[%s2800 + $0x20] sm:$0xff]
      %v2829 = vld [vmem:[%s2800 + $0x30] sm:$0xff]
      %v2830 = vld [vmem:[%s2800 + $0x40] sm:$0xff]
      %v2831 = vld [vmem:[%s2800 + $0x50] sm:$0xff]
      %v2832 = vld [vmem:[%s2800 + $0x60] sm:$0xff]
      %v2833 = vld [vmem:[%s2800 + $0x70] sm:$0xff]
      %v2834 = vld [vmem:[%s2800 + $0x1] sm:$0xff]
      %v2835 = vld [vmem:[%s2800 + $0x11] sm:$0xff]
      %v2836 = vld [vmem:[%s2800 + $0x21] sm:$0xff]
      %v2837 = vld [vmem:[%s2800 + $0x31] sm:$0xff]
      %v2838 = vld [vmem:[%s2800 + $0x41] sm:$0xff]
      %v2839 = vld [vmem:[%s2800 + $0x51] sm:$0xff]
      %v2840 = vld [vmem:[%s2800 + $0x61] sm:$0xff]
      %v2841 = vld [vmem:[%s2800 + $0x71] sm:$0xff]
      %v2842 = vld [vmem:[%s3] sm:$0xff]
      %v2843 = vld [vmem:[%s3 + $0x8] sm:$0xff]
      %v2844 = vld [vmem:[%s3 + $0x10] sm:$0xff]
      %v2845 = vld [vmem:[%s3 + $0x18] sm:$0xff]
      %v2847 = vsel %vm2772, %v2818, 0
      %v2850 = vsel %vm2772, %v2819, 0
      %v2853 = vsel %vm2772, %v2820, 0
      %v2856 = vsel %vm2772, %v2821, 0
      %v2859 = vsel %vm2772, %v2822, 0
      %v2862 = vsel %vm2772, %v2823, 0
      %v2865 = vsel %vm2772, %v2824, 0
      %v2868 = vsel %vm2772, %v2825, 0
      %2870 = vmatprep.subr.mxu0 0.0
      %2871 = vmatpush1.msra.mxu0 %v2843
      %2872 = vmatprep.subr.mxu0 0.0
      %2873 = vmatpush1.msra.mxu0 0.0
      %2874 = vmatprep.subr.mxu0 0.0
      %2875 = vmatpush1.msra.mxu0 0.0
      %2876 = vmatprep.subr.mxu0 0.0
      %2877 = vmatpush1.msra.mxu0 0.0
      %2878 = vmatprep.subr.mxu0 0.0
      %2879 = vmatpush1.msra.mxu0 0.0
      %2880 = vmatprep.subr.mxu0 0.0
      %2881 = vmatpush1.msra.mxu0 0.0
      %2882 = vmatprep.subr.mxu0 0.0
      %2883 = vmatpush1.msra.mxu0 0.0
      %2884 = vmatprep.subr.mxu0 0.0
      %2885 = vmatpush1.msra.mxu0 0.0
      %2886 = vmatprep.subr.mxu0 0.0
      %2887 = vmatpush1.msra.mxu0 0.0
      %2888 = vmatprep.subr.mxu0 0.0
      %2889 = vmatpush1.msra.mxu0 0.0
      %2890 = vmatprep.subr.mxu0 0.0
      %2891 = vmatpush1.msra.mxu0 0.0
      %2892 = vmatprep.subr.mxu0 0.0
      %2893 = vmatpush1.msra.mxu0 0.0
      %2894 = vmatprep.subr.mxu0 0.0
      %2895 = vmatpush1.msra.mxu0 0.0
      %2896 = vmatprep.subr.mxu0 0.0
      %2897 = vmatpush1.msra.mxu0 0.0
      %2898 = vmatprep.subr.mxu0 0.0
      %2899 = vmatpush1.msra.mxu0 0.0
      %2900 = vmatprep.subr.mxu0 0.0
      %2901 = vmatpush1.msra.mxu0 0.0
      %2902 = vmatprep.subr.mxu0 0.0
      %2903 = vmatpush1.msra.mxu0 0.0
      %2904 = vmatprep.subr.mxu0 0.0
      %2905 = vmatpush1.msra.mxu0 0.0
      %2906 = vmatprep.subr.mxu0 0.0
      %2907 = vmatpush1.msra.mxu0 0.0
      %2908 = vmatprep.subr.mxu0 0.0
      %2909 = vmatpush1.msra.mxu0 0.0
      %2910 = vmatprep.subr.mxu0 0.0
      %2911 = vmatpush1.msra.mxu0 0.0
      %2912 = vmatprep.subr.mxu0 0.0
      %2913 = vmatpush1.msra.mxu0 0.0
      %2914 = vmatprep.subr.mxu0 0.0
      %2915 = vmatpush1.msra.mxu0 0.0
      %2916 = vmatprep.subr.mxu0 0.0
      %2917 = vmatpush1.msra.mxu0 0.0
      %2918 = vmatprep.subr.mxu0 0.0
      %2919 = vmatpush1.msra.mxu0 0.0
      %2920 = vmatprep.subr.mxu0 0.0
      %2921 = vmatpush1.msra.mxu0 0.0
      %2922 = vmatprep.subr.mxu0 0.0
      %2923 = vmatpush1.msra.mxu0 0.0
      %2924 = vmatprep.subr.mxu0 0.0
      %2925 = vmatpush1.msra.mxu0 0.0
      %2926 = vmatprep.subr.mxu0 0.0
      %2927 = vmatpush1.msra.mxu0 0.0
      %2928 = vmatprep.subr.mxu0 0.0
      %2929 = vmatpush1.msra.mxu0 0.0
      %2930 = vmatprep.subr.mxu0 0.0
      %2931 = vmatpush1.msra.mxu0 0.0
      %2932 = vmatprep.subr.mxu0 0.0
      %2933 = vmatpush1.msra.mxu0 0.0
      %2934 = vmatprep.mubr.f32.mxu0 0.0
      %2935 = vmatmul.mubr.f32.gmra.mrb[0].mxu0 %v2847
      %v2936 = vpop.f32.mrb[0].mxu0
      %v2937 = vadd.f32 0.0, %v2936
      %v2938 = vpop.f32.mrb[0].mxu0
      %2939 = vmatprep.mubr.f32.mxu0 0.0
      %2940 = vmatmul.mubr.f32.gmra.mrb[0].mxu0 %v2850
      %v2941 = vpop.f32.mrb[0].mxu0
      %v2942 = vadd.f32 0.0, %v2941
      %v2943 = vpop.f32.mrb[0].mxu0
      %2944 = vmatprep.mubr.f32.mxu0 0.0
      %2945 = vmatmul.mubr.f32.gmra.mrb[0].mxu0 %v2853
      %v2946 = vpop.f32.mrb[0].mxu0
      %v2947 = vadd.f32 0.0, %v2946
      %v2948 = vpop.f32.mrb[0].mxu0
      %2949 = vmatprep.mubr.f32.mxu0 0.0
      %2950 = vmatmul.mubr.f32.gmra.mrb[0].mxu0 %v2856
      %v2951 = vpop.f32.mrb[0].mxu0
      %v2952 = vadd.f32 0.0, %v2951
      %v2953 = vpop.f32.mrb[0].mxu0
      %2954 = vmatprep.mubr.f32.mxu0 0.0
      %2955 = vmatmul.mubr.f32.gmra.mrb[0].mxu0 %v2859
      %v2956 = vpop.f32.mrb[0].mxu0
      %v2957 = vadd.f32 0.0, %v2956
      %v2958 = vpop.f32.mrb[0].mxu0
      %2959 = vmatprep.mubr.f32.mxu0 0.0
      %2960 = vmatmul.mubr.f32.gmra.mrb[0].mxu0 %v2862
      %v2961 = vpop.f32.mrb[0].mxu0
      %v2962 = vadd.f32 0.0, %v2961
      %v2963 = vpop.f32.mrb[0].mxu0
      %2964 = vmatprep.mubr.f32.mxu0 0.0
      %2965 = vmatmul.mubr.f32.gmra.mrb[0].mxu0 %v2865
      %v2966 = vpop.f32.mrb[0].mxu0
      %v2967 = vadd.f32 0.0, %v2966
      %v2968 = vpop.f32.mrb[0].mxu0
      %2969 = vmatprep.mubr.f32.mxu0 0.0
      %2970 = vmatmul.mubr.f32.gmra.mrb[0].mxu0 %v2868
      %v2971 = vpop.f32.mrb[0].mxu0
      %v2972 = vadd.f32 0.0, %v2971
      %v2973 = vpop.f32.mrb[0].mxu0
      %2974 = vdwg.mxu0
      %v2976 = vsel %vm2772, %v2810, 0
      %v2979 = vsel %vm2772, %v2811, 0
      %v2982 = vsel %vm2772, %v2812, 0
      %v2985 = vsel %vm2772, %v2813, 0
      %v2988 = vsel %vm2772, %v2814, 0
      %v2991 = vsel %vm2772, %v2815, 0
      %v2994 = vsel %vm2772, %v2816, 0
      %v2997 = vsel %vm2772, %v2817, 0
      %2999 = vmatprep.subr.mxu0 0.0
      %3000 = vmatpush1.msra.mxu0 %v2842
      %3001 = vmatprep.subr.mxu0 0.0
      %3002 = vmatpush1.msra.mxu0 0.0
      %3003 = vmatprep.subr.mxu0 0.0
      %3004 = vmatpush1.msra.mxu0 0.0
      %3005 = vmatprep.subr.mxu0 0.0
      %3006 = vmatpush1.msra.mxu0 0.0
      %3007 = vmatprep.subr.mxu0 0.0
      %3008 = vmatpush1.msra.mxu0 0.0
      %3009 = vmatprep.subr.mxu0 0.0
      %3010 = vmatpush1.msra.mxu0 0.0
      %3011 = vmatprep.subr.mxu0 0.0
      %3012 = vmatpush1.msra.mxu0 0.0
      %3013 = vmatprep.subr.mxu0 0.0
      %3014 = vmatpush1.msra.mxu0 0.0
      %3015 = vmatprep.subr.mxu0 0.0
      %3016 = vmatpush1.msra.mxu0 0.0
      %3017 = vmatprep.subr.mxu0 0.0
      %3018 = vmatpush1.msra.mxu0 0.0
      %3019 = vmatprep.subr.mxu0 0.0
      %3020 = vmatpush1.msra.mxu0 0.0
      %3021 = vmatprep.subr.mxu0 0.0
      %3022 = vmatpush1.msra.mxu0 0.0
      %3023 = vmatprep.subr.mxu0 0.0
      %3024 = vmatpush1.msra.mxu0 0.0
      %3025 = vmatprep.subr.mxu0 0.0
      %3026 = vmatpush1.msra.mxu0 0.0
      %3027 = vmatprep.subr.mxu0 0.0
      %3028 = vmatpush1.msra.mxu0 0.0
      %3029 = vmatprep.subr.mxu0 0.0
      %3030 = vmatpush1.msra.mxu0 0.0
      %3031 = vmatprep.subr.mxu0 0.0
      %3032 = vmatpush1.msra.mxu0 0.0
      %3033 = vmatprep.subr.mxu0 0.0
      %3034 = vmatpush1.msra.mxu0 0.0
      %3035 = vmatprep.subr.mxu0 0.0
      %3036 = vmatpush1.msra.mxu0 0.0
      %3037 = vmatprep.subr.mxu0 0.0
      %3038 = vmatpush1.msra.mxu0 0.0
      %3039 = vmatprep.subr.mxu0 0.0
      %3040 = vmatpush1.msra.mxu0 0.0
      %3041 = vmatprep.subr.mxu0 0.0
      %3042 = vmatpush1.msra.mxu0 0.0
      %3043 = vmatprep.subr.mxu0 0.0
      %3044 = vmatpush1.msra.mxu0 0.0
      %3045 = vmatprep.subr.mxu0 0.0
      %3046 = vmatpush1.msra.mxu0 0.0
      %3047 = vmatprep.subr.mxu0 0.0
      %3048 = vmatpush1.msra.mxu0 0.0
      %3049 = vmatprep.subr.mxu0 0.0
      %3050 = vmatpush1.msra.mxu0 0.0
      %3051 = vmatprep.subr.mxu0 0.0
      %3052 = vmatpush1.msra.mxu0 0.0
      %3053 = vmatprep.subr.mxu0 0.0
      %3054 = vmatpush1.msra.mxu0 0.0
      %3055 = vmatprep.subr.mxu0 0.0
      %3056 = vmatpush1.msra.mxu0 0.0
      %3057 = vmatprep.subr.mxu0 0.0
      %3058 = vmatpush1.msra.mxu0 0.0
      %3059 = vmatprep.subr.mxu0 0.0
      %3060 = vmatpush1.msra.mxu0 0.0
      %3061 = vmatprep.subr.mxu0 0.0
      %3062 = vmatpush1.msra.mxu0 0.0
      %3063 = vmatprep.mubr.f32.mxu0 0.0
      %3064 = vmatmul.mubr.f32.gmra.mrb[0].mxu0 %v2976
      %v3065 = vpop.f32.mrb[0].mxu0
      %v3066 = vadd.f32 %v2937, %v3065
      %v3067 = vpop.f32.mrb[0].mxu0
      %3068 = vmatprep.mubr.f32.mxu0 0.0
      %3069 = vmatmul.mubr.f32.gmra.mrb[0].mxu0 %v2979
      %v3070 = vpop.f32.mrb[0].mxu0
      %v3071 = vadd.f32 %v2942, %v3070
      %v3072 = vpop.f32.mrb[0].mxu0
      %3073 = vmatprep.mubr.f32.mxu0 0.0
      %3074 = vmatmul.mubr.f32.gmra.mrb[0].mxu0 %v2982
      %v3075 = vpop.f32.mrb[0].mxu0
      %v3076 = vadd.f32 %v2947, %v3075
      %v3077 = vpop.f32.mrb[0].mxu0
      %3078 = vmatprep.mubr.f32.mxu0 0.0
      %3079 = vmatmul.mubr.f32.gmra.mrb[0].mxu0 %v2985
      %v3080 = vpop.f32.mrb[0].mxu0
      %v3081 = vadd.f32 %v2952, %v3080
      %v3082 = vpop.f32.mrb[0].mxu0
      %3083 = vmatprep.mubr.f32.mxu0 0.0
      %3084 = vmatmul.mubr.f32.gmra.mrb[0].mxu0 %v2988
      %v3085 = vpop.f32.mrb[0].mxu0
      %v3086 = vadd.f32 %v2957, %v3085
      %v3087 = vpop.f32.mrb[0].mxu0
      %3088 = vmatprep.mubr.f32.mxu0 0.0
      %3089 = vmatmul.mubr.f32.gmra.mrb[0].mxu0 %v2991
      %v3090 = vpop.f32.mrb[0].mxu0
      %v3091 = vadd.f32 %v2962, %v3090
      %v3092 = vpop.f32.mrb[0].mxu0
      %3093 = vmatprep.mubr.f32.mxu0 0.0
      %3094 = vmatmul.mubr.f32.gmra.mrb[0].mxu0 %v2994
      %v3095 = vpop.f32.mrb[0].mxu0
      %v3096 = vadd.f32 %v2967, %v3095
      %v3097 = vpop.f32.mrb[0].mxu0
      %3098 = vmatprep.mubr.f32.mxu0 0.0
      %3099 = vmatmul.mubr.f32.gmra.mrb[0].mxu0 %v2997
      %v3100 = vpop.f32.mrb[0].mxu0
      %v3101 = vadd.f32 %v2972, %v3100
      %v3102 = vpop.f32.mrb[0].mxu0
      %3103 = vdwg.mxu0
      %v3105 = vsel %vm2772, %v2826, 0
      %v3108 = vsel %vm2772, %v2827, 0
      %v3111 = vsel %vm2772, %v2828, 0
      %v3114 = vsel %vm2772, %v2829, 0
      %v3117 = vsel %vm2772, %v2830, 0
      %v3120 = vsel %vm2772, %v2831, 0
      %v3123 = vsel %vm2772, %v2832, 0
      %v3126 = vsel %vm2772, %v2833, 0
      %3128 = vmatprep.subr.mxu0 0.0
      %3129 = vmatpush1.msra.mxu0 %v2844
      %3130 = vmatprep.subr.mxu0 0.0
      %3131 = vmatpush1.msra.mxu0 0.0
      %3132 = vmatprep.subr.mxu0 0.0
      %3133 = vmatpush1.msra.mxu0 0.0
      %3134 = vmatprep.subr.mxu0 0.0
      %3135 = vmatpush1.msra.mxu0 0.0
      %3136 = vmatprep.subr.mxu0 0.0
      %3137 = vmatpush1.msra.mxu0 0.0
      %3138 = vmatprep.subr.mxu0 0.0
      %3139 = vmatpush1.msra.mxu0 0.0
      %3140 = vmatprep.subr.mxu0 0.0
      %3141 = vmatpush1.msra.mxu0 0.0
      %3142 = vmatprep.subr.mxu0 0.0
      %3143 = vmatpush1.msra.mxu0 0.0
      %3144 = vmatprep.subr.mxu0 0.0
      %3145 = vmatpush1.msra.mxu0 0.0
      %3146 = vmatprep.subr.mxu0 0.0
      %3147 = vmatpush1.msra.mxu0 0.0
      %3148 = vmatprep.subr.mxu0 0.0
      %3149 = vmatpush1.msra.mxu0 0.0
      %3150 = vmatprep.subr.mxu0 0.0
      %3151 = vmatpush1.msra.mxu0 0.0
      %3152 = vmatprep.subr.mxu0 0.0
      %3153 = vmatpush1.msra.mxu0 0.0
      %3154 = vmatprep.subr.mxu0 0.0
      %3155 = vmatpush1.msra.mxu0 0.0
      %3156 = vmatprep.subr.mxu0 0.0
      %3157 = vmatpush1.msra.mxu0 0.0
      %3158 = vmatprep.subr.mxu0 0.0
      %3159 = vmatpush1.msra.mxu0 0.0
      %3160 = vmatprep.subr.mxu0 0.0
      %3161 = vmatpush1.msra.mxu0 0.0
      %3162 = vmatprep.subr.mxu0 0.0
      %3163 = vmatpush1.msra.mxu0 0.0
      %3164 = vmatprep.subr.mxu0 0.0
      %3165 = vmatpush1.msra.mxu0 0.0
      %3166 = vmatprep.subr.mxu0 0.0
      %3167 = vmatpush1.msra.mxu0 0.0
      %3168 = vmatprep.subr.mxu0 0.0
      %3169 = vmatpush1.msra.mxu0 0.0
      %3170 = vmatprep.subr.mxu0 0.0
      %3171 = vmatpush1.msra.mxu0 0.0
      %3172 = vmatprep.subr.mxu0 0.0
      %3173 = vmatpush1.msra.mxu0 0.0
      %3174 = vmatprep.subr.mxu0 0.0
      %3175 = vmatpush1.msra.mxu0 0.0
      %3176 = vmatprep.subr.mxu0 0.0
      %3177 = vmatpush1.msra.mxu0 0.0
      %3178 = vmatprep.subr.mxu0 0.0
      %3179 = vmatpush1.msra.mxu0 0.0
      %3180 = vmatprep.subr.mxu0 0.0
      %3181 = vmatpush1.msra.mxu0 0.0
      %3182 = vmatprep.subr.mxu0 0.0
      %3183 = vmatpush1.msra.mxu0 0.0
      %3184 = vmatprep.subr.mxu0 0.0
      %3185 = vmatpush1.msra.mxu0 0.0
      %3186 = vmatprep.subr.mxu0 0.0
      %3187 = vmatpush1.msra.mxu0 0.0
      %3188 = vmatprep.subr.mxu0 0.0
      %3189 = vmatpush1.msra.mxu0 0.0
      %3190 = vmatprep.subr.mxu0 0.0
      %3191 = vmatpush1.msra.mxu0 0.0
      %3192 = vmatprep.mubr.f32.mxu0 0.0
      %3193 = vmatmul.mubr.f32.gmra.mrb[0].mxu0 %v3105
      %v3194 = vpop.f32.mrb[0].mxu0
      %v3195 = vadd.f32 0.0, %v3194
      %v3196 = vpop.f32.mrb[0].mxu0
      %3197 = vmatprep.mubr.f32.mxu0 0.0
      %3198 = vmatmul.mubr.f32.gmra.mrb[0].mxu0 %v3108
      %v3199 = vpop.f32.mrb[0].mxu0
      %v3200 = vadd.f32 0.0, %v3199
      %v3201 = vpop.f32.mrb[0].mxu0
      %3202 = vmatprep.mubr.f32.mxu0 0.0
      %3203 = vmatmul.mubr.f32.gmra.mrb[0].mxu0 %v3111
      %v3204 = vpop.f32.mrb[0].mxu0
      %v3205 = vadd.f32 0.0, %v3204
      %v3206 = vpop.f32.mrb[0].mxu0
      %3207 = vmatprep.mubr.f32.mxu0 0.0
      %3208 = vmatmul.mubr.f32.gmra.mrb[0].mxu0 %v3114
      %v3209 = vpop.f32.mrb[0].mxu0
      %v3210 = vadd.f32 0.0, %v3209
      %v3211 = vpop.f32.mrb[0].mxu0
      %3212 = vmatprep.mubr.f32.mxu0 0.0
      %3213 = vmatmul.mubr.f32.gmra.mrb[0].mxu0 %v3117
      %v3214 = vpop.f32.mrb[0].mxu0
      %v3215 = vadd.f32 0.0, %v3214
      %v3216 = vpop.f32.mrb[0].mxu0
      %3217 = vmatprep.mubr.f32.mxu0 0.0
      %3218 = vmatmul.mubr.f32.gmra.mrb[0].mxu0 %v3120
      %v3219 = vpop.f32.mrb[0].mxu0
      %v3220 = vadd.f32 0.0, %v3219
      %v3221 = vpop.f32.mrb[0].mxu0
      %3222 = vmatprep.mubr.f32.mxu0 0.0
      %3223 = vmatmul.mubr.f32.gmra.mrb[0].mxu0 %v3123
      %v3224 = vpop.f32.mrb[0].mxu0
      %v3225 = vadd.f32 0.0, %v3224
      %v3226 = vpop.f32.mrb[0].mxu0
      %3227 = vmatprep.mubr.f32.mxu0 0.0
      %3228 = vmatmul.mubr.f32.gmra.mrb[0].mxu0 %v3126
      %v3229 = vpop.f32.mrb[0].mxu0
      %v3230 = vadd.f32 0.0, %v3229
      %v3231 = vpop.f32.mrb[0].mxu0
      %3232 = vdwg.mxu0
      %v3233 = vadd.f32 %v3066, %v3195
      %v3234 = vadd.f32 %v3071, %v3200
      %v3235 = vadd.f32 %v3076, %v3205
      %v3236 = vadd.f32 %v3081, %v3210
      %v3237 = vadd.f32 %v3086, %v3215
      %v3238 = vadd.f32 %v3091, %v3220
      %v3239 = vadd.f32 %v3096, %v3225
      %v3240 = vadd.f32 %v3101, %v3230
      %v3242 = vsel %vm2772, %v2834, 0
      %v3245 = vsel %vm2772, %v2835, 0
      %v3248 = vsel %vm2772, %v2836, 0
      %v3251 = vsel %vm2772, %v2837, 0
      %v3254 = vsel %vm2772, %v2838, 0
      %v3257 = vsel %vm2772, %v2839, 0
      %v3260 = vsel %vm2772, %v2840, 0
      %v3263 = vsel %vm2772, %v2841, 0
      %3265 = vmatprep.subr.mxu0 0.0
      %3266 = vmatpush1.msra.mxu0 %v2845
      %3267 = vmatprep.subr.mxu0 0.0
      %3268 = vmatpush1.msra.mxu0 0.0
      %3269 = vmatprep.subr.mxu0 0.0
      %3270 = vmatpush1.msra.mxu0 0.0
      %3271 = vmatprep.subr.mxu0 0.0
      %3272 = vmatpush1.msra.mxu0 0.0
      %3273 = vmatprep.subr.mxu0 0.0
      %3274 = vmatpush1.msra.mxu0 0.0
      %3275 = vmatprep.subr.mxu0 0.0
      %3276 = vmatpush1.msra.mxu0 0.0
      %3277 = vmatprep.subr.mxu0 0.0
      %3278 = vmatpush1.msra.mxu0 0.0
      %3279 = vmatprep.subr.mxu0 0.0
      %3280 = vmatpush1.msra.mxu0 0.0
      %3281 = vmatprep.subr.mxu0 0.0
      %3282 = vmatpush1.msra.mxu0 0.0
      %3283 = vmatprep.subr.mxu0 0.0
      %3284 = vmatpush1.msra.mxu0 0.0
      %3285 = vmatprep.subr.mxu0 0.0
      %3286 = vmatpush1.msra.mxu0 0.0
      %3287 = vmatprep.subr.mxu0 0.0
      %3288 = vmatpush1.msra.mxu0 0.0
      %3289 = vmatprep.subr.mxu0 0.0
      %3290 = vmatpush1.msra.mxu0 0.0
      %3291 = vmatprep.subr.mxu0 0.0
      %3292 = vmatpush1.msra.mxu0 0.0
      %3293 = vmatprep.subr.mxu0 0.0
      %3294 = vmatpush1.msra.mxu0 0.0
      %3295 = vmatprep.subr.mxu0 0.0
      %3296 = vmatpush1.msra.mxu0 0.0
      %3297 = vmatprep.subr.mxu0 0.0
      %3298 = vmatpush1.msra.mxu0 0.0
      %3299 = vmatprep.subr.mxu0 0.0
      %3300 = vmatpush1.msra.mxu0 0.0
      %3301 = vmatprep.subr.mxu0 0.0
      %3302 = vmatpush1.msra.mxu0 0.0
      %3303 = vmatprep.subr.mxu0 0.0
      %3304 = vmatpush1.msra.mxu0 0.0
      %3305 = vmatprep.subr.mxu0 0.0
      %3306 = vmatpush1.msra.mxu0 0.0
      %3307 = vmatprep.subr.mxu0 0.0
      %3308 = vmatpush1.msra.mxu0 0.0
      %3309 = vmatprep.subr.mxu0 0.0
      %3310 = vmatpush1.msra.mxu0 0.0
      %3311 = vmatprep.subr.mxu0 0.0
      %3312 = vmatpush1.msra.mxu0 0.0
      %3313 = vmatprep.subr.mxu0 0.0
      %3314 = vmatpush1.msra.mxu0 0.0
      %3315 = vmatprep.subr.mxu0 0.0
      %3316 = vmatpush1.msra.mxu0 0.0
      %3317 = vmatprep.subr.mxu0 0.0
      %3318 = vmatpush1.msra.mxu0 0.0
      %3319 = vmatprep.subr.mxu0 0.0
      %3320 = vmatpush1.msra.mxu0 0.0
      %3321 = vmatprep.subr.mxu0 0.0
      %3322 = vmatpush1.msra.mxu0 0.0
      %3323 = vmatprep.subr.mxu0 0.0
      %3324 = vmatpush1.msra.mxu0 0.0
      %3325 = vmatprep.subr.mxu0 0.0
      %3326 = vmatpush1.msra.mxu0 0.0
      %3327 = vmatprep.subr.mxu0 0.0
      %3328 = vmatpush1.msra.mxu0 0.0
      %3329 = vmatprep.mubr.f32.mxu0 0.0
      %3330 = vmatmul.mubr.f32.gmra.mrb[0].mxu0 %v3242
      %v3331 = vpop.f32.mrb[0].mxu0
      %v3332 = vadd.f32 0.0, %v3331
      %v3333 = vpop.f32.mrb[0].mxu0
      %3334 = vmatprep.mubr.f32.mxu0 0.0
      %3335 = vmatmul.mubr.f32.gmra.mrb[0].mxu0 %v3245
      %v3336 = vpop.f32.mrb[0].mxu0
      %v3337 = vadd.f32 0.0, %v3336
      %v3338 = vpop.f32.mrb[0].mxu0
      %3339 = vmatprep.mubr.f32.mxu0 0.0
      %3340 = vmatmul.mubr.f32.gmra.mrb[0].mxu0 %v3248
      %v3341 = vpop.f32.mrb[0].mxu0
      %v3342 = vadd.f32 0.0, %v3341
      %v3343 = vpop.f32.mrb[0].mxu0
      %3344 = vmatprep.mubr.f32.mxu0 0.0
      %3345 = vmatmul.mubr.f32.gmra.mrb[0].mxu0 %v3251
      %v3346 = vpop.f32.mrb[0].mxu0
      %v3347 = vadd.f32 0.0, %v3346
      %v3348 = vpop.f32.mrb[0].mxu0
      %3349 = vmatprep.mubr.f32.mxu0 0.0
      %3350 = vmatmul.mubr.f32.gmra.mrb[0].mxu0 %v3254
      %v3351 = vpop.f32.mrb[0].mxu0
      %v3352 = vadd.f32 0.0, %v3351
      %v3353 = vpop.f32.mrb[0].mxu0
      %3354 = vmatprep.mubr.f32.mxu0 0.0
      %3355 = vmatmul.mubr.f32.gmra.mrb[0].mxu0 %v3257
      %v3356 = vpop.f32.mrb[0].mxu0
      %v3357 = vadd.f32 0.0, %v3356
      %v3358 = vpop.f32.mrb[0].mxu0
      %3359 = vmatprep.mubr.f32.mxu0 0.0
      %3360 = vmatmul.mubr.f32.gmra.mrb[0].mxu0 %v3260
      %v3361 = vpop.f32.mrb[0].mxu0
      %v3362 = vadd.f32 0.0, %v3361
      %v3363 = vpop.f32.mrb[0].mxu0
      %3364 = vmatprep.mubr.f32.mxu0 0.0
      %3365 = vmatmul.mubr.f32.gmra.mrb[0].mxu0 %v3263
      %v3366 = vpop.f32.mrb[0].mxu0
      %v3367 = vadd.f32 0.0, %v3366
      %v3368 = vpop.f32.mrb[0].mxu0
      %3369 = vdwg.mxu0
      %v3370 = vadd.f32 %v3233, %v3332
      %v3371 = vadd.f32 %v3234, %v3337
      %v3372 = vadd.f32 %v3235, %v3342
      %v3373 = vadd.f32 %v3236, %v3347
      %v3374 = vadd.f32 %v3237, %v3352
      %v3375 = vadd.f32 %v3238, %v3357
      %v3376 = vadd.f32 %v3239, %v3362
      %v3377 = vadd.f32 %v3240, %v3367
      %v3379 = vlaneseq
      %v3380 = vshrl.u32 %v3379, 7
      %v3381 = vsub.s32 0, %v3380
      %v3382 = vrot.slane %v2809, %v3381
      %v3384 = vadd.f32 %v3370, %v3382
      %v3385 = vadd.f32 %v3371, %v3382
      %v3386 = vadd.f32 %v3372, %v3382
      %v3387 = vadd.f32 %v3373, %v3382
      %v3388 = vadd.f32 %v3374, %v3382
      %v3389 = vadd.f32 %v3375, %v3382
      %v3390 = vadd.f32 %v3376, %v3382
      %v3391 = vadd.f32 %v3377, %v3382
      %v3392 = vsel %vm367, %v3384, 0.0
      %v3393 = vsel %vm367, %v3385, 0.0
      %v3394 = vadd.f32 %v3392, %v3393
      %v3395 = vsel %vm367, %v3386, 0.0
      %v3396 = vadd.f32 %v3394, %v3395
      %v3397 = vsel %vm367, %v3387, 0.0
      %v3398 = vadd.f32 %v3396, %v3397
      %v3399 = vsel %vm367, %v3388, 0.0
      %v3400 = vadd.f32 %v3398, %v3399
      %v3401 = vsel %vm367, %v3389, 0.0
      %v3402 = vadd.f32 %v3400, %v3401
      %v3403 = vsel %vm367, %v3390, 0.0
      %v3404 = vadd.f32 %v3402, %v3403
      %v3405 = vsel %vm367, %v3391, 0.0
      %v3406 = vadd.f32 %v3404, %v3405
      %v3407 = vrot.slane %v3406, 4
      %v3408 = vadd.f32 %v3406, %v3407
      %v3409 = vrot.slane %v3408, 2
      %v3410 = vadd.f32 %v3408, %v3409
      %v3411 = vrot.slane %v3410, 1
      %v3412 = vadd.f32 %v3410, %v3411
      %v3413 = vadd.f32 %v3412, 0.0
      %v3414 = vmul.f32 %v3384, %v3384
      %v3415 = vmul.f32 %v3385, %v3385
      %v3416 = vmul.f32 %v3386, %v3386
      %v3417 = vmul.f32 %v3387, %v3387
      %v3418 = vmul.f32 %v3388, %v3388
      %v3419 = vmul.f32 %v3389, %v3389
      %v3420 = vmul.f32 %v3390, %v3390
      %v3421 = vmul.f32 %v3391, %v3391
      %v3422 = vsel %vm367, %v3414, 0.0
      %v3423 = vsel %vm367, %v3415, 0.0
      %v3424 = vadd.f32 %v3422, %v3423
      %v3425 = vsel %vm367, %v3416, 0.0
      %v3426 = vadd.f32 %v3424, %v3425
      %v3427 = vsel %vm367, %v3417, 0.0
      %v3428 = vadd.f32 %v3426, %v3427
      %v3429 = vsel %vm367, %v3418, 0.0
      %v3430 = vadd.f32 %v3428, %v3429
      %v3431 = vsel %vm367, %v3419, 0.0
      %v3432 = vadd.f32 %v3430, %v3431
      %v3433 = vsel %vm367, %v3420, 0.0
      %v3434 = vadd.f32 %v3432, %v3433
      %v3435 = vsel %vm367, %v3421, 0.0
      %v3436 = vadd.f32 %v3434, %v3435
      %v3437 = vrot.slane %v3436, 4
      %v3438 = vadd.f32 %v3436, %v3437
      %v3439 = vrot.slane %v3438, 2
      %v3440 = vadd.f32 %v3438, %v3439
      %v3441 = vrot.slane %v3440, 1
      %v3442 = vadd.f32 %v3440, %v3441
      %v3443 = vadd.f32 %v3442, 0.0
      %3444 = vst.msk [vmem:[%s224] sm:$0xff] %vm367, %v3384
      %3445 = vst.msk [vmem:[%s224 + $0x8] sm:$0xff] %vm367, %v3385
      %3446 = vst.msk [vmem:[%s224 + $0x10] sm:$0xff] %vm367, %v3386
      %3447 = vst.msk [vmem:[%s224 + $0x18] sm:$0xff] %vm367, %v3387
      %3448 = vst.msk [vmem:[%s224 + $0x20] sm:$0xff] %vm367, %v3388
      %3449 = vst.msk [vmem:[%s224 + $0x28] sm:$0xff] %vm367, %v3389
      %3450 = vst.msk [vmem:[%s224 + $0x30] sm:$0xff] %vm367, %v3390
      %3451 = vst.msk [vmem:[%s224 + $0x38] sm:$0xff] %vm367, %v3391
      %v3452 = vld [vmem:[#allocation2 + $0x1] sm:$0xff]
      %v3453 = vld [vmem:[#allocation2 + $0x11] sm:$0xff]
      %v3454 = vld [vmem:[#allocation2 + $0x21] sm:$0xff]
      %v3455 = vld [vmem:[#allocation2 + $0x31] sm:$0xff]
      %v3456 = vld [vmem:[#allocation2 + $0x41] sm:$0xff]
      %v3457 = vld [vmem:[#allocation2 + $0x51] sm:$0xff]
      %v3458 = vld [vmem:[#allocation2 + $0x61] sm:$0xff]
      %v3459 = vld [vmem:[#allocation2 + $0x71] sm:$0xff]
      %v3460 = vld [vmem:[#allocation2 + $0x2] sm:$0xff]
      %v3461 = vld [vmem:[#allocation2 + $0x12] sm:$0xff]
      %v3462 = vld [vmem:[#allocation2 + $0x22] sm:$0xff]
      %v3463 = vld [vmem:[#allocation2 + $0x32] sm:$0xff]
      %v3464 = vld [vmem:[#allocation2 + $0x42] sm:$0xff]
      %v3465 = vld [vmem:[#allocation2 + $0x52] sm:$0xff]
      %v3466 = vld [vmem:[#allocation2 + $0x62] sm:$0xff]
      %v3467 = vld [vmem:[#allocation2 + $0x72] sm:$0xff]
      %v3468 = vld [vmem:[%s2800 + $0x1] sm:$0xff]
      %v3469 = vld [vmem:[%s2800 + $0x11] sm:$0xff]
      %v3470 = vld [vmem:[%s2800 + $0x21] sm:$0xff]
      %v3471 = vld [vmem:[%s2800 + $0x31] sm:$0xff]
      %v3472 = vld [vmem:[%s2800 + $0x41] sm:$0xff]
      %v3473 = vld [vmem:[%s2800 + $0x51] sm:$0xff]
      %v3474 = vld [vmem:[%s2800 + $0x61] sm:$0xff]
      %v3475 = vld [vmem:[%s2800 + $0x71] sm:$0xff]
      %v3476 = vld [vmem:[%s2800 + $0x2] sm:$0xff]
      %v3477 = vld [vmem:[%s2800 + $0x12] sm:$0xff]
      %v3478 = vld [vmem:[%s2800 + $0x22] sm:$0xff]
      %v3479 = vld [vmem:[%s2800 + $0x32] sm:$0xff]
      %v3480 = vld [vmem:[%s2800 + $0x42] sm:$0xff]
      %v3481 = vld [vmem:[%s2800 + $0x52] sm:$0xff]
      %v3482 = vld [vmem:[%s2800 + $0x62] sm:$0xff]
      %v3483 = vld [vmem:[%s2800 + $0x72] sm:$0xff]
      %s3484 = scalar_lea.vmem %s3, 32
      %v3485 = vld [vmem:[%s3484] sm:$0xff]
      %v3486 = vld [vmem:[%s3484 + $0x8] sm:$0xff]
      %v3487 = vld [vmem:[%s3484 + $0x10] sm:$0xff]
      %v3488 = vld [vmem:[%s3484 + $0x18] sm:$0xff]
      %v3490 = vsel %vm2772, %v3460, 0
      %v3493 = vsel %vm2772, %v3461, 0
      %v3496 = vsel %vm2772, %v3462, 0
      %v3499 = vsel %vm2772, %v3463, 0
      %v3502 = vsel %vm2772, %v3464, 0
      %v3505 = vsel %vm2772, %v3465, 0
      %v3508 = vsel %vm2772, %v3466, 0
      %v3511 = vsel %vm2772, %v3467, 0
      %3513 = vmatprep.subr.mxu0 0.0
      %3514 = vmatpush1.msra.mxu0 %v3486
      %3515 = vmatprep.subr.mxu0 0.0
      %3516 = vmatpush1.msra.mxu0 0.0
      %3517 = vmatprep.subr.mxu0 0.0
      %3518 = vmatpush1.msra.mxu0 0.0
      %3519 = vmatprep.subr.mxu0 0.0
      %3520 = vmatpush1.msra.mxu0 0.0
      %3521 = vmatprep.subr.mxu0 0.0
      %3522 = vmatpush1.msra.mxu0 0.0
      %3523 = vmatprep.subr.mxu0 0.0
      %3524 = vmatpush1.msra.mxu0 0.0
      %3525 = vmatprep.subr.mxu0 0.0
      %3526 = vmatpush1.msra.mxu0 0.0
      %3527 = vmatprep.subr.mxu0 0.0
      %3528 = vmatpush1.msra.mxu0 0.0
      %3529 = vmatprep.subr.mxu0 0.0
      %3530 = vmatpush1.msra.mxu0 0.0
      %3531 = vmatprep.subr.mxu0 0.0
      %3532 = vmatpush1.msra.mxu0 0.0
      %3533 = vmatprep.subr.mxu0 0.0
      %3534 = vmatpush1.msra.mxu0 0.0
      %3535 = vmatprep.subr.mxu0 0.0
      %3536 = vmatpush1.msra.mxu0 0.0
      %3537 = vmatprep.subr.mxu0 0.0
      %3538 = vmatpush1.msra.mxu0 0.0
      %3539 = vmatprep.subr.mxu0 0.0
      %3540 = vmatpush1.msra.mxu0 0.0
      %3541 = vmatprep.subr.mxu0 0.0
      %3542 = vmatpush1.msra.mxu0 0.0
      %3543 = vmatprep.subr.mxu0 0.0
      %3544 = vmatpush1.msra.mxu0 0.0
      %3545 = vmatprep.subr.mxu0 0.0
      %3546 = vmatpush1.msra.mxu0 0.0
      %3547 = vmatprep.subr.mxu0 0.0
      %3548 = vmatpush1.msra.mxu0 0.0
      %3549 = vmatprep.subr.mxu0 0.0
      %3550 = vmatpush1.msra.mxu0 0.0
      %3551 = vmatprep.subr.mxu0 0.0
      %3552 = vmatpush1.msra.mxu0 0.0
      %3553 = vmatprep.subr.mxu0 0.0
      %3554 = vmatpush1.msra.mxu0 0.0
      %3555 = vmatprep.subr.mxu0 0.0
      %3556 = vmatpush1.msra.mxu0 0.0
      %3557 = vmatprep.subr.mxu0 0.0
      %3558 = vmatpush1.msra.mxu0 0.0
      %3559 = vmatprep.subr.mxu0 0.0
      %3560 = vmatpush1.msra.mxu0 0.0
      %3561 = vmatprep.subr.mxu0 0.0
      %3562 = vmatpush1.msra.mxu0 0.0
      %3563 = vmatprep.subr.mxu0 0.0
      %3564 = vmatpush1.msra.mxu0 0.0
      %3565 = vmatprep.subr.mxu0 0.0
      %3566 = vmatpush1.msra.mxu0 0.0
      %3567 = vmatprep.subr.mxu0 0.0
      %3568 = vmatpush1.msra.mxu0 0.0
      %3569 = vmatprep.subr.mxu0 0.0
      %3570 = vmatpush1.msra.mxu0 0.0
      %3571 = vmatprep.subr.mxu0 0.0
      %3572 = vmatpush1.msra.mxu0 0.0
      %3573 = vmatprep.subr.mxu0 0.0
      %3574 = vmatpush1.msra.mxu0 0.0
      %3575 = vmatprep.subr.mxu0 0.0
      %3576 = vmatpush1.msra.mxu0 0.0
      %3577 = vmatprep.mubr.f32.mxu0 0.0
      %3578 = vmatmul.mubr.f32.gmra.mrb[0].mxu0 %v3490
      %v3579 = vpop.f32.mrb[0].mxu0
      %v3580 = vadd.f32 0.0, %v3579
      %v3581 = vpop.f32.mrb[0].mxu0
      %3582 = vmatprep.mubr.f32.mxu0 0.0
      %3583 = vmatmul.mubr.f32.gmra.mrb[0].mxu0 %v3493
      %v3584 = vpop.f32.mrb[0].mxu0
      %v3585 = vadd.f32 0.0, %v3584
      %v3586 = vpop.f32.mrb[0].mxu0
      %3587 = vmatprep.mubr.f32.mxu0 0.0
      %3588 = vmatmul.mubr.f32.gmra.mrb[0].mxu0 %v3496
      %v3589 = vpop.f32.mrb[0].mxu0
      %v3590 = vadd.f32 0.0, %v3589
      %v3591 = vpop.f32.mrb[0].mxu0
      %3592 = vmatprep.mubr.f32.mxu0 0.0
      %3593 = vmatmul.mubr.f32.gmra.mrb[0].mxu0 %v3499
      %v3594 = vpop.f32.mrb[0].mxu0
      %v3595 = vadd.f32 0.0, %v3594
      %v3596 = vpop.f32.mrb[0].mxu0
      %3597 = vmatprep.mubr.f32.mxu0 0.0
      %3598 = vmatmul.mubr.f32.gmra.mrb[0].mxu0 %v3502
      %v3599 = vpop.f32.mrb[0].mxu0
      %v3600 = vadd.f32 0.0, %v3599
      %v3601 = vpop.f32.mrb[0].mxu0
      %3602 = vmatprep.mubr.f32.mxu0 0.0
      %3603 = vmatmul.mubr.f32.gmra.mrb[0].mxu0 %v3505
      %v3604 = vpop.f32.mrb[0].mxu0
      %v3605 = vadd.f32 0.0, %v3604
      %v3606 = vpop.f32.mrb[0].mxu0
      %3607 = vmatprep.mubr.f32.mxu0 0.0
      %3608 = vmatmul.mubr.f32.gmra.mrb[0].mxu0 %v3508
      %v3609 = vpop.f32.mrb[0].mxu0
      %v3610 = vadd.f32 0.0, %v3609
      %v3611 = vpop.f32.mrb[0].mxu0
      %3612 = vmatprep.mubr.f32.mxu0 0.0
      %3613 = vmatmul.mubr.f32.gmra.mrb[0].mxu0 %v3511
      %v3614 = vpop.f32.mrb[0].mxu0
      %v3615 = vadd.f32 0.0, %v3614
      %v3616 = vpop.f32.mrb[0].mxu0
      %3617 = vdwg.mxu0
      %v3619 = vsel %vm2772, %v3452, 0
      %v3622 = vsel %vm2772, %v3453, 0
      %v3625 = vsel %vm2772, %v3454, 0
      %v3628 = vsel %vm2772, %v3455, 0
      %v3631 = vsel %vm2772, %v3456, 0
      %v3634 = vsel %vm2772, %v3457, 0
      %v3637 = vsel %vm2772, %v3458, 0
      %v3640 = vsel %vm2772, %v3459, 0
      %3642 = vmatprep.subr.mxu0 0.0
      %3643 = vmatpush1.msra.mxu0 %v3485
      %3644 = vmatprep.subr.mxu0 0.0
      %3645 = vmatpush1.msra.mxu0 0.0
      %3646 = vmatprep.subr.mxu0 0.0
      %3647 = vmatpush1.msra.mxu0 0.0
      %3648 = vmatprep.subr.mxu0 0.0
      %3649 = vmatpush1.msra.mxu0 0.0
      %3650 = vmatprep.subr.mxu0 0.0
      %3651 = vmatpush1.msra.mxu0 0.0
      %3652 = vmatprep.subr.mxu0 0.0
      %3653 = vmatpush1.msra.mxu0 0.0
      %3654 = vmatprep.subr.mxu0 0.0
      %3655 = vmatpush1.msra.mxu0 0.0
      %3656 = vmatprep.subr.mxu0 0.0
      %3657 = vmatpush1.msra.mxu0 0.0
      %3658 = vmatprep.subr.mxu0 0.0
      %3659 = vmatpush1.msra.mxu0 0.0
      %3660 = vmatprep.subr.mxu0 0.0
      %3661 = vmatpush1.msra.mxu0 0.0
      %3662 = vmatprep.subr.mxu0 0.0
      %3663 = vmatpush1.msra.mxu0 0.0
      %3664 = vmatprep.subr.mxu0 0.0
      %3665 = vmatpush1.msra.mxu0 0.0
      %3666 = vmatprep.subr.mxu0 0.0
      %3667 = vmatpush1.msra.mxu0 0.0
      %3668 = vmatprep.subr.mxu0 0.0
      %3669 = vmatpush1.msra.mxu0 0.0
      %3670 = vmatprep.subr.mxu0 0.0
      %3671 = vmatpush1.msra.mxu0 0.0
      %3672 = vmatprep.subr.mxu0 0.0
      %3673 = vmatpush1.msra.mxu0 0.0
      %3674 = vmatprep.subr.mxu0 0.0
      %3675 = vmatpush1.msra.mxu0 0.0
      %3676 = vmatprep.subr.mxu0 0.0
      %3677 = vmatpush1.msra.mxu0 0.0
      %3678 = vmatprep.subr.mxu0 0.0
      %3679 = vmatpush1.msra.mxu0 0.0
      %3680 = vmatprep.subr.mxu0 0.0
      %3681 = vmatpush1.msra.mxu0 0.0
      %3682 = vmatprep.subr.mxu0 0.0
      %3683 = vmatpush1.msra.mxu0 0.0
      %3684 = vmatprep.subr.mxu0 0.0
      %3685 = vmatpush1.msra.mxu0 0.0
      %3686 = vmatprep.subr.mxu0 0.0
      %3687 = vmatpush1.msra.mxu0 0.0
      %3688 = vmatprep.subr.mxu0 0.0
      %3689 = vmatpush1.msra.mxu0 0.0
      %3690 = vmatprep.subr.mxu0 0.0
      %3691 = vmatpush1.msra.mxu0 0.0
      %3692 = vmatprep.subr.mxu0 0.0
      %3693 = vmatpush1.msra.mxu0 0.0
      %3694 = vmatprep.subr.mxu0 0.0
      %3695 = vmatpush1.msra.mxu0 0.0
      %3696 = vmatprep.subr.mxu0 0.0
      %3697 = vmatpush1.msra.mxu0 0.0
      %3698 = vmatprep.subr.mxu0 0.0
      %3699 = vmatpush1.msra.mxu0 0.0
      %3700 = vmatprep.subr.mxu0 0.0
      %3701 = vmatpush1.msra.mxu0 0.0
      %3702 = vmatprep.subr.mxu0 0.0
      %3703 = vmatpush1.msra.mxu0 0.0
      %3704 = vmatprep.subr.mxu0 0.0
      %3705 = vmatpush1.msra.mxu0 0.0
      %3706 = vmatprep.mubr.f32.mxu0 0.0
      %3707 = vmatmul.mubr.f32.gmra.mrb[0].mxu0 %v3619
      %v3708 = vpop.f32.mrb[0].mxu0
      %v3709 = vadd.f32 %v3580, %v3708
      %v3710 = vpop.f32.mrb[0].mxu0
      %3711 = vmatprep.mubr.f32.mxu0 0.0
      %3712 = vmatmul.mubr.f32.gmra.mrb[0].mxu0 %v3622
      %v3713 = vpop.f32.mrb[0].mxu0
      %v3714 = vadd.f32 %v3585, %v3713
      %v3715 = vpop.f32.mrb[0].mxu0
      %3716 = vmatprep.mubr.f32.mxu0 0.0
      %3717 = vmatmul.mubr.f32.gmra.mrb[0].mxu0 %v3625
      %v3718 = vpop.f32.mrb[0].mxu0
      %v3719 = vadd.f32 %v3590, %v3718
      %v3720 = vpop.f32.mrb[0].mxu0
      %3721 = vmatprep.mubr.f32.mxu0 0.0
      %3722 = vmatmul.mubr.f32.gmra.mrb[0].mxu0 %v3628
      %v3723 = vpop.f32.mrb[0].mxu0
      %v3724 = vadd.f32 %v3595, %v3723
      %v3725 = vpop.f32.mrb[0].mxu0
      %3726 = vmatprep.mubr.f32.mxu0 0.0
      %3727 = vmatmul.mubr.f32.gmra.mrb[0].mxu0 %v3631
      %v3728 = vpop.f32.mrb[0].mxu0
      %v3729 = vadd.f32 %v3600, %v3728
      %v3730 = vpop.f32.mrb[0].mxu0
      %3731 = vmatprep.mubr.f32.mxu0 0.0
      %3732 = vmatmul.mubr.f32.gmra.mrb[0].mxu0 %v3634
      %v3733 = vpop.f32.mrb[0].mxu0
      %v3734 = vadd.f32 %v3605, %v3733
      %v3735 = vpop.f32.mrb[0].mxu0
      %3736 = vmatprep.mubr.f32.mxu0 0.0
      %3737 = vmatmul.mubr.f32.gmra.mrb[0].mxu0 %v3637
      %v3738 = vpop.f32.mrb[0].mxu0
      %v3739 = vadd.f32 %v3610, %v3738
      %v3740 = vpop.f32.mrb[0].mxu0
      %3741 = vmatprep.mubr.f32.mxu0 0.0
      %3742 = vmatmul.mubr.f32.gmra.mrb[0].mxu0 %v3640
      %v3743 = vpop.f32.mrb[0].mxu0
      %v3744 = vadd.f32 %v3615, %v3743
      %v3745 = vpop.f32.mrb[0].mxu0
      %3746 = vdwg.mxu0
      %v3748 = vsel %vm2772, %v3468, 0
      %v3751 = vsel %vm2772, %v3469, 0
      %v3754 = vsel %vm2772, %v3470, 0
      %v3757 = vsel %vm2772, %v3471, 0
      %v3760 = vsel %vm2772, %v3472, 0
      %v3763 = vsel %vm2772, %v3473, 0
      %v3766 = vsel %vm2772, %v3474, 0
      %v3769 = vsel %vm2772, %v3475, 0
      %3771 = vmatprep.subr.mxu0 0.0
      %3772 = vmatpush1.msra.mxu0 %v3487
      %3773 = vmatprep.subr.mxu0 0.0
      %3774 = vmatpush1.msra.mxu0 0.0
      %3775 = vmatprep.subr.mxu0 0.0
      %3776 = vmatpush1.msra.mxu0 0.0
      %3777 = vmatprep.subr.mxu0 0.0
      %3778 = vmatpush1.msra.mxu0 0.0
      %3779 = vmatprep.subr.mxu0 0.0
      %3780 = vmatpush1.msra.mxu0 0.0
      %3781 = vmatprep.subr.mxu0 0.0
      %3782 = vmatpush1.msra.mxu0 0.0
      %3783 = vmatprep.subr.mxu0 0.0
      %3784 = vmatpush1.msra.mxu0 0.0
      %3785 = vmatprep.subr.mxu0 0.0
      %3786 = vmatpush1.msra.mxu0 0.0
      %3787 = vmatprep.subr.mxu0 0.0
      %3788 = vmatpush1.msra.mxu0 0.0
      %3789 = vmatprep.subr.mxu0 0.0
      %3790 = vmatpush1.msra.mxu0 0.0
      %3791 = vmatprep.subr.mxu0 0.0
      %3792 = vmatpush1.msra.mxu0 0.0
      %3793 = vmatprep.subr.mxu0 0.0
      %3794 = vmatpush1.msra.mxu0 0.0
      %3795 = vmatprep.subr.mxu0 0.0
      %3796 = vmatpush1.msra.mxu0 0.0
      %3797 = vmatprep.subr.mxu0 0.0
      %3798 = vmatpush1.msra.mxu0 0.0
      %3799 = vmatprep.subr.mxu0 0.0
      %3800 = vmatpush1.msra.mxu0 0.0
      %3801 = vmatprep.subr.mxu0 0.0
      %3802 = vmatpush1.msra.mxu0 0.0
      %3803 = vmatprep.subr.mxu0 0.0
      %3804 = vmatpush1.msra.mxu0 0.0
      %3805 = vmatprep.subr.mxu0 0.0
      %3806 = vmatpush1.msra.mxu0 0.0
      %3807 = vmatprep.subr.mxu0 0.0
      %3808 = vmatpush1.msra.mxu0 0.0
      %3809 = vmatprep.subr.mxu0 0.0
      %3810 = vmatpush1.msra.mxu0 0.0
      %3811 = vmatprep.subr.mxu0 0.0
      %3812 = vmatpush1.msra.mxu0 0.0
      %3813 = vmatprep.subr.mxu0 0.0
      %3814 = vmatpush1.msra.mxu0 0.0
      %3815 = vmatprep.subr.mxu0 0.0
      %3816 = vmatpush1.msra.mxu0 0.0
      %3817 = vmatprep.subr.mxu0 0.0
      %3818 = vmatpush1.msra.mxu0 0.0
      %3819 = vmatprep.subr.mxu0 0.0
      %3820 = vmatpush1.msra.mxu0 0.0
      %3821 = vmatprep.subr.mxu0 0.0
      %3822 = vmatpush1.msra.mxu0 0.0
      %3823 = vmatprep.subr.mxu0 0.0
      %3824 = vmatpush1.msra.mxu0 0.0
      %3825 = vmatprep.subr.mxu0 0.0
      %3826 = vmatpush1.msra.mxu0 0.0
      %3827 = vmatprep.subr.mxu0 0.0
      %3828 = vmatpush1.msra.mxu0 0.0
      %3829 = vmatprep.subr.mxu0 0.0
      %3830 = vmatpush1.msra.mxu0 0.0
      %3831 = vmatprep.subr.mxu0 0.0
      %3832 = vmatpush1.msra.mxu0 0.0
      %3833 = vmatprep.subr.mxu0 0.0
      %3834 = vmatpush1.msra.mxu0 0.0
      %3835 = vmatprep.mubr.f32.mxu0 0.0
      %3836 = vmatmul.mubr.f32.gmra.mrb[0].mxu0 %v3748
      %v3837 = vpop.f32.mrb[0].mxu0
      %v3838 = vadd.f32 0.0, %v3837
      %v3839 = vpop.f32.mrb[0].mxu0
      %3840 = vmatprep.mubr.f32.mxu0 0.0
      %3841 = vmatmul.mubr.f32.gmra.mrb[0].mxu0 %v3751
      %v3842 = vpop.f32.mrb[0].mxu0
      %v3843 = vadd.f32 0.0, %v3842
      %v3844 = vpop.f32.mrb[0].mxu0
      %3845 = vmatprep.mubr.f32.mxu0 0.0
      %3846 = vmatmul.mubr.f32.gmra.mrb[0].mxu0 %v3754
      %v3847 = vpop.f32.mrb[0].mxu0
      %v3848 = vadd.f32 0.0, %v3847
      %v3849 = vpop.f32.mrb[0].mxu0
      %3850 = vmatprep.mubr.f32.mxu0 0.0
      %3851 = vmatmul.mubr.f32.gmra.mrb[0].mxu0 %v3757
      %v3852 = vpop.f32.mrb[0].mxu0
      %v3853 = vadd.f32 0.0, %v3852
      %v3854 = vpop.f32.mrb[0].mxu0
      %3855 = vmatprep.mubr.f32.mxu0 0.0
      %3856 = vmatmul.mubr.f32.gmra.mrb[0].mxu0 %v3760
      %v3857 = vpop.f32.mrb[0].mxu0
      %v3858 = vadd.f32 0.0, %v3857
      %v3859 = vpop.f32.mrb[0].mxu0
      %3860 = vmatprep.mubr.f32.mxu0 0.0
      %3861 = vmatmul.mubr.f32.gmra.mrb[0].mxu0 %v3763
      %v3862 = vpop.f32.mrb[0].mxu0
      %v3863 = vadd.f32 0.0, %v3862
      %v3864 = vpop.f32.mrb[0].mxu0
      %3865 = vmatprep.mubr.f32.mxu0 0.0
      %3866 = vmatmul.mubr.f32.gmra.mrb[0].mxu0 %v3766
      %v3867 = vpop.f32.mrb[0].mxu0
      %v3868 = vadd.f32 0.0, %v3867
      %v3869 = vpop.f32.mrb[0].mxu0
      %3870 = vmatprep.mubr.f32.mxu0 0.0
      %3871 = vmatmul.mubr.f32.gmra.mrb[0].mxu0 %v3769
      %v3872 = vpop.f32.mrb[0].mxu0
      %v3873 = vadd.f32 0.0, %v3872
      %v3874 = vpop.f32.mrb[0].mxu0
      %3875 = vdwg.mxu0
      %v3876 = vadd.f32 %v3709, %v3838
      %v3877 = vadd.f32 %v3714, %v3843
      %v3878 = vadd.f32 %v3719, %v3848
      %v3879 = vadd.f32 %v3724, %v3853
      %v3880 = vadd.f32 %v3729, %v3858
      %v3881 = vadd.f32 %v3734, %v3863
      %v3882 = vadd.f32 %v3739, %v3868
      %v3883 = vadd.f32 %v3744, %v3873
      %v3885 = vsel %vm2772, %v3476, 0
      %v3888 = vsel %vm2772, %v3477, 0
      %v3891 = vsel %vm2772, %v3478, 0
      %v3894 = vsel %vm2772, %v3479, 0
      %v3897 = vsel %vm2772, %v3480, 0
      %v3900 = vsel %vm2772, %v3481, 0
      %v3903 = vsel %vm2772, %v3482, 0
      %v3906 = vsel %vm2772, %v3483, 0
      %3908 = vmatprep.subr.mxu0 0.0
      %3909 = vmatpush1.msra.mxu0 %v3488
      %3910 = vmatprep.subr.mxu0 0.0
      %3911 = vmatpush1.msra.mxu0 0.0
      %3912 = vmatprep.subr.mxu0 0.0
      %3913 = vmatpush1.msra.mxu0 0.0
      %3914 = vmatprep.subr.mxu0 0.0
      %3915 = vmatpush1.msra.mxu0 0.0
      %3916 = vmatprep.subr.mxu0 0.0
      %3917 = vmatpush1.msra.mxu0 0.0
      %3918 = vmatprep.subr.mxu0 0.0
      %3919 = vmatpush1.msra.mxu0 0.0
      %3920 = vmatprep.subr.mxu0 0.0
      %3921 = vmatpush1.msra.mxu0 0.0
      %3922 = vmatprep.subr.mxu0 0.0
      %3923 = vmatpush1.msra.mxu0 0.0
      %3924 = vmatprep.subr.mxu0 0.0
      %3925 = vmatpush1.msra.mxu0 0.0
      %3926 = vmatprep.subr.mxu0 0.0
      %3927 = vmatpush1.msra.mxu0 0.0
      %3928 = vmatprep.subr.mxu0 0.0
      %3929 = vmatpush1.msra.mxu0 0.0
      %3930 = vmatprep.subr.mxu0 0.0
      %3931 = vmatpush1.msra.mxu0 0.0
      %3932 = vmatprep.subr.mxu0 0.0
      %3933 = vmatpush1.msra.mxu0 0.0
      %3934 = vmatprep.subr.mxu0 0.0
      %3935 = vmatpush1.msra.mxu0 0.0
      %3936 = vmatprep.subr.mxu0 0.0
      %3937 = vmatpush1.msra.mxu0 0.0
      %3938 = vmatprep.subr.mxu0 0.0
      %3939 = vmatpush1.msra.mxu0 0.0
      %3940 = vmatprep.subr.mxu0 0.0
      %3941 = vmatpush1.msra.mxu0 0.0
      %3942 = vmatprep.subr.mxu0 0.0
      %3943 = vmatpush1.msra.mxu0 0.0
      %3944 = vmatprep.subr.mxu0 0.0
      %3945 = vmatpush1.msra.mxu0 0.0
      %3946 = vmatprep.subr.mxu0 0.0
      %3947 = vmatpush1.msra.mxu0 0.0
      %3948 = vmatprep.subr.mxu0 0.0
      %3949 = vmatpush1.msra.mxu0 0.0
      %3950 = vmatprep.subr.mxu0 0.0
      %3951 = vmatpush1.msra.mxu0 0.0
      %3952 = vmatprep.subr.mxu0 0.0
      %3953 = vmatpush1.msra.mxu0 0.0
      %3954 = vmatprep.subr.mxu0 0.0
      %3955 = vmatpush1.msra.mxu0 0.0
      %3956 = vmatprep.subr.mxu0 0.0
      %3957 = vmatpush1.msra.mxu0 0.0
      %3958 = vmatprep.subr.mxu0 0.0
      %3959 = vmatpush1.msra.mxu0 0.0
      %3960 = vmatprep.subr.mxu0 0.0
      %3961 = vmatpush1.msra.mxu0 0.0
      %3962 = vmatprep.subr.mxu0 0.0
      %3963 = vmatpush1.msra.mxu0 0.0
      %3964 = vmatprep.subr.mxu0 0.0
      %3965 = vmatpush1.msra.mxu0 0.0
      %3966 = vmatprep.subr.mxu0 0.0
      %3967 = vmatpush1.msra.mxu0 0.0
      %3968 = vmatprep.subr.mxu0 0.0
      %3969 = vmatpush1.msra.mxu0 0.0
      %3970 = vmatprep.subr.mxu0 0.0
      %3971 = vmatpush1.msra.mxu0 0.0
      %3972 = vmatprep.mubr.f32.mxu0 0.0
      %3973 = vmatmul.mubr.f32.gmra.mrb[0].mxu0 %v3885
      %v3974 = vpop.f32.mrb[0].mxu0
      %v3975 = vadd.f32 0.0, %v3974
      %v3976 = vpop.f32.mrb[0].mxu0
      %3977 = vmatprep.mubr.f32.mxu0 0.0
      %3978 = vmatmul.mubr.f32.gmra.mrb[0].mxu0 %v3888
      %v3979 = vpop.f32.mrb[0].mxu0
      %v3980 = vadd.f32 0.0, %v3979
      %v3981 = vpop.f32.mrb[0].mxu0
      %3982 = vmatprep.mubr.f32.mxu0 0.0
      %3983 = vmatmul.mubr.f32.gmra.mrb[0].mxu0 %v3891
      %v3984 = vpop.f32.mrb[0].mxu0
      %v3985 = vadd.f32 0.0, %v3984
      %v3986 = vpop.f32.mrb[0].mxu0
      %3987 = vmatprep.mubr.f32.mxu0 0.0
      %3988 = vmatmul.mubr.f32.gmra.mrb[0].mxu0 %v3894
      %v3989 = vpop.f32.mrb[0].mxu0
      %v3990 = vadd.f32 0.0, %v3989
      %v3991 = vpop.f32.mrb[0].mxu0
      %3992 = vmatprep.mubr.f32.mxu0 0.0
      %3993 = vmatmul.mubr.f32.gmra.mrb[0].mxu0 %v3897
      %v3994 = vpop.f32.mrb[0].mxu0
      %v3995 = vadd.f32 0.0, %v3994
      %v3996 = vpop.f32.mrb[0].mxu0
      %3997 = vmatprep.mubr.f32.mxu0 0.0
      %3998 = vmatmul.mubr.f32.gmra.mrb[0].mxu0 %v3900
      %v3999 = vpop.f32.mrb[0].mxu0
      %v4000 = vadd.f32 0.0, %v3999
      %v4001 = vpop.f32.mrb[0].mxu0
      %4002 = vmatprep.mubr.f32.mxu0 0.0
      %4003 = vmatmul.mubr.f32.gmra.mrb[0].mxu0 %v3903
      %v4004 = vpop.f32.mrb[0].mxu0
      %v4005 = vadd.f32 0.0, %v4004
      %v4006 = vpop.f32.mrb[0].mxu0
      %4007 = vmatprep.mubr.f32.mxu0 0.0
      %4008 = vmatmul.mubr.f32.gmra.mrb[0].mxu0 %v3906
      %v4009 = vpop.f32.mrb[0].mxu0
      %v4010 = vadd.f32 0.0, %v4009
      %v4011 = vpop.f32.mrb[0].mxu0
      %4012 = vdwg.mxu0
      %v4013 = vadd.f32 %v3876, %v3975
      %v4014 = vadd.f32 %v3877, %v3980
      %v4015 = vadd.f32 %v3878, %v3985
      %v4016 = vadd.f32 %v3879, %v3990
      %v4017 = vadd.f32 %v3880, %v3995
      %v4018 = vadd.f32 %v3881, %v4000
      %v4019 = vadd.f32 %v3882, %v4005
      %v4020 = vadd.f32 %v3883, %v4010
      %v4021 = vadd.f32 %v4013, %v3382
      %v4022 = vadd.f32 %v4014, %v3382
      %v4023 = vadd.f32 %v4015, %v3382
      %v4024 = vadd.f32 %v4016, %v3382
      %v4025 = vadd.f32 %v4017, %v3382
      %v4026 = vadd.f32 %v4018, %v3382
      %v4027 = vadd.f32 %v4019, %v3382
      %v4028 = vadd.f32 %v4020, %v3382
      %v4029 = vsel %vm367, %v4021, 0.0
      %v4030 = vsel %vm367, %v4022, 0.0
      %v4031 = vadd.f32 %v4029, %v4030
      %v4032 = vsel %vm367, %v4023, 0.0
      %v4033 = vadd.f32 %v4031, %v4032
      %v4034 = vsel %vm367, %v4024, 0.0
      %v4035 = vadd.f32 %v4033, %v4034
      %v4036 = vsel %vm367, %v4025, 0.0
      %v4037 = vadd.f32 %v4035, %v4036
      %v4038 = vsel %vm367, %v4026, 0.0
      %v4039 = vadd.f32 %v4037, %v4038
      %v4040 = vsel %vm367, %v4027, 0.0
      %v4041 = vadd.f32 %v4039, %v4040
      %v4042 = vsel %vm367, %v4028, 0.0
      %v4043 = vadd.f32 %v4041, %v4042
      %v4044 = vrot.slane %v4043, 4
      %v4045 = vadd.f32 %v4043, %v4044
      %v4046 = vrot.slane %v4045, 2
      %v4047 = vadd.f32 %v4045, %v4046
      %v4048 = vrot.slane %v4047, 1
      %v4049 = vadd.f32 %v4047, %v4048
      %v4050 = vadd.f32 %v3413, %v4049
      %v4051 = vmul.f32 %v4021, %v4021
      %v4052 = vmul.f32 %v4022, %v4022
      %v4053 = vmul.f32 %v4023, %v4023
      %v4054 = vmul.f32 %v4024, %v4024
      %v4055 = vmul.f32 %v4025, %v4025
      %v4056 = vmul.f32 %v4026, %v4026
      %v4057 = vmul.f32 %v4027, %v4027
      %v4058 = vmul.f32 %v4028, %v4028
      %v4059 = vsel %vm367, %v4051, 0.0
      %v4060 = vsel %vm367, %v4052, 0.0
      %v4061 = vadd.f32 %v4059, %v4060
      %v4062 = vsel %vm367, %v4053, 0.0
      %v4063 = vadd.f32 %v4061, %v4062
      %v4064 = vsel %vm367, %v4054, 0.0
      %v4065 = vadd.f32 %v4063, %v4064
      %v4066 = vsel %vm367, %v4055, 0.0
      %v4067 = vadd.f32 %v4065, %v4066
      %v4068 = vsel %vm367, %v4056, 0.0
      %v4069 = vadd.f32 %v4067, %v4068
      %v4070 = vsel %vm367, %v4057, 0.0
      %v4071 = vadd.f32 %v4069, %v4070
      %v4072 = vsel %vm367, %v4058, 0.0
      %v4073 = vadd.f32 %v4071, %v4072
      %v4074 = vrot.slane %v4073, 4
      %v4075 = vadd.f32 %v4073, %v4074
      %v4076 = vrot.slane %v4075, 2
      %v4077 = vadd.f32 %v4075, %v4076
      %v4078 = vrot.slane %v4077, 1
      %v4079 = vadd.f32 %v4077, %v4078
      %v4080 = vadd.f32 %v3443, %v4079
      %s4081 = scalar_lea.vmem %s224, 64
      %4082 = vst.msk [vmem:[%s4081] sm:$0xff] %vm367, %v4021
      %4083 = vst.msk [vmem:[%s4081 + $0x8] sm:$0xff] %vm367, %v4022
      %4084 = vst.msk [vmem:[%s4081 + $0x10] sm:$0xff] %vm367, %v4023
      %4085 = vst.msk [vmem:[%s4081 + $0x18] sm:$0xff] %vm367, %v4024
      %4086 = vst.msk [vmem:[%s4081 + $0x20] sm:$0xff] %vm367, %v4025
      %4087 = vst.msk [vmem:[%s4081 + $0x28] sm:$0xff] %vm367, %v4026
      %4088 = vst.msk [vmem:[%s4081 + $0x30] sm:$0xff] %vm367, %v4027
      %4089 = vst.msk [vmem:[%s4081 + $0x38] sm:$0xff] %vm367, %v4028
      %v4090 = vld [vmem:[%s2800] sm:$0xff]
      %v4091 = vld [vmem:[%s2800 + $0x10] sm:$0xff]
      %v4092 = vld [vmem:[%s2800 + $0x20] sm:$0xff]
      %v4093 = vld [vmem:[%s2800 + $0x30] sm:$0xff]
      %v4094 = vld [vmem:[%s2800 + $0x40] sm:$0xff]
      %v4095 = vld [vmem:[%s2800 + $0x50] sm:$0xff]
      %v4096 = vld [vmem:[%s2800 + $0x60] sm:$0xff]
      %v4097 = vld [vmem:[%s2800 + $0x70] sm:$0xff]
      %v4098 = vld [vmem:[%s2800 + $0x1] sm:$0xff]
      %v4099 = vld [vmem:[%s2800 + $0x11] sm:$0xff]
      %v4100 = vld [vmem:[%s2800 + $0x21] sm:$0xff]
      %v4101 = vld [vmem:[%s2800 + $0x31] sm:$0xff]
      %v4102 = vld [vmem:[%s2800 + $0x41] sm:$0xff]
      %v4103 = vld [vmem:[%s2800 + $0x51] sm:$0xff]
      %v4104 = vld [vmem:[%s2800 + $0x61] sm:$0xff]
      %v4105 = vld [vmem:[%s2800 + $0x71] sm:$0xff]
      %s4106 = scalar_lea.vmem [#allocation2], 32
      %v4107 = vld [vmem:[%s4106] sm:$0xff]
      %v4108 = vld [vmem:[%s4106 + $0x10] sm:$0xff]
      %v4109 = vld [vmem:[%s4106 + $0x20] sm:$0xff]
      %v4110 = vld [vmem:[%s4106 + $0x30] sm:$0xff]
      %v4111 = vld [vmem:[%s4106 + $0x40] sm:$0xff]
      %v4112 = vld [vmem:[%s4106 + $0x50] sm:$0xff]
      %v4113 = vld [vmem:[%s4106 + $0x60] sm:$0xff]
      %v4114 = vld [vmem:[%s4106 + $0x70] sm:$0xff]
      %v4115 = vld [vmem:[%s4106 + $0x1] sm:$0xff]
      %v4116 = vld [vmem:[%s4106 + $0x11] sm:$0xff]
      %v4117 = vld [vmem:[%s4106 + $0x21] sm:$0xff]
      %v4118 = vld [vmem:[%s4106 + $0x31] sm:$0xff]
      %v4119 = vld [vmem:[%s4106 + $0x41] sm:$0xff]
      %v4120 = vld [vmem:[%s4106 + $0x51] sm:$0xff]
      %v4121 = vld [vmem:[%s4106 + $0x61] sm:$0xff]
      %v4122 = vld [vmem:[%s4106 + $0x71] sm:$0xff]
      %s4123 = scalar_lea.vmem %s3, 64
      %v4124 = vld [vmem:[%s4123] sm:$0xff]
      %v4125 = vld [vmem:[%s4123 + $0x8] sm:$0xff]
      %v4126 = vld [vmem:[%s4123 + $0x10] sm:$0xff]
      %v4127 = vld [vmem:[%s4123 + $0x18] sm:$0xff]
      %v4129 = vsel %vm2772, %v4098, 0
      %v4132 = vsel %vm2772, %v4099, 0
      %v4135 = vsel %vm2772, %v4100, 0
      %v4138 = vsel %vm2772, %v4101, 0
      %v4141 = vsel %vm2772, %v4102, 0
      %v4144 = vsel %vm2772, %v4103, 0
      %v4147 = vsel %vm2772, %v4104, 0
      %v4150 = vsel %vm2772, %v4105, 0
      %4152 = vmatprep.subr.mxu0 0.0
      %4153 = vmatpush1.msra.mxu0 %v4125
      %4154 = vmatprep.subr.mxu0 0.0
      %4155 = vmatpush1.msra.mxu0 0.0
      %4156 = vmatprep.subr.mxu0 0.0
      %4157 = vmatpush1.msra.mxu0 0.0
      %4158 = vmatprep.subr.mxu0 0.0
      %4159 = vmatpush1.msra.mxu0 0.0
      %4160 = vmatprep.subr.mxu0 0.0
      %4161 = vmatpush1.msra.mxu0 0.0
      %4162 = vmatprep.subr.mxu0 0.0
      %4163 = vmatpush1.msra.mxu0 0.0
      %4164 = vmatprep.subr.mxu0 0.0
      %4165 = vmatpush1.msra.mxu0 0.0
      %4166 = vmatprep.subr.mxu0 0.0
      %4167 = vmatpush1.msra.mxu0 0.0
      %4168 = vmatprep.subr.mxu0 0.0
      %4169 = vmatpush1.msra.mxu0 0.0
      %4170 = vmatprep.subr.mxu0 0.0
      %4171 = vmatpush1.msra.mxu0 0.0
      %4172 = vmatprep.subr.mxu0 0.0
      %4173 = vmatpush1.msra.mxu0 0.0
      %4174 = vmatprep.subr.mxu0 0.0
      %4175 = vmatpush1.msra.mxu0 0.0
      %4176 = vmatprep.subr.mxu0 0.0
      %4177 = vmatpush1.msra.mxu0 0.0
      %4178 = vmatprep.subr.mxu0 0.0
      %4179 = vmatpush1.msra.mxu0 0.0
      %4180 = vmatprep.subr.mxu0 0.0
      %4181 = vmatpush1.msra.mxu0 0.0
      %4182 = vmatprep.subr.mxu0 0.0
      %4183 = vmatpush1.msra.mxu0 0.0
      %4184 = vmatprep.subr.mxu0 0.0
      %4185 = vmatpush1.msra.mxu0 0.0
      %4186 = vmatprep.subr.mxu0 0.0
      %4187 = vmatpush1.msra.mxu0 0.0
      %4188 = vmatprep.subr.mxu0 0.0
      %4189 = vmatpush1.msra.mxu0 0.0
      %4190 = vmatprep.subr.mxu0 0.0
      %4191 = vmatpush1.msra.mxu0 0.0
      %4192 = vmatprep.subr.mxu0 0.0
      %4193 = vmatpush1.msra.mxu0 0.0
      %4194 = vmatprep.subr.mxu0 0.0
      %4195 = vmatpush1.msra.mxu0 0.0
      %4196 = vmatprep.subr.mxu0 0.0
      %4197 = vmatpush1.msra.mxu0 0.0
      %4198 = vmatprep.subr.mxu0 0.0
      %4199 = vmatpush1.msra.mxu0 0.0
      %4200 = vmatprep.subr.mxu0 0.0
      %4201 = vmatpush1.msra.mxu0 0.0
      %4202 = vmatprep.subr.mxu0 0.0
      %4203 = vmatpush1.msra.mxu0 0.0
      %4204 = vmatprep.subr.mxu0 0.0
      %4205 = vmatpush1.msra.mxu0 0.0
      %4206 = vmatprep.subr.mxu0 0.0
      %4207 = vmatpush1.msra.mxu0 0.0
      %4208 = vmatprep.subr.mxu0 0.0
      %4209 = vmatpush1.msra.mxu0 0.0
      %4210 = vmatprep.subr.mxu0 0.0
      %4211 = vmatpush1.msra.mxu0 0.0
      %4212 = vmatprep.subr.mxu0 0.0
      %4213 = vmatpush1.msra.mxu0 0.0
      %4214 = vmatprep.subr.mxu0 0.0
      %4215 = vmatpush1.msra.mxu0 0.0
      %4216 = vmatprep.mubr.f32.mxu0 0.0
      %4217 = vmatmul.mubr.f32.gmra.mrb[0].mxu0 %v4129
      %v4218 = vpop.f32.mrb[0].mxu0
      %v4219 = vadd.f32 0.0, %v4218
      %v4220 = vpop.f32.mrb[0].mxu0
      %4221 = vmatprep.mubr.f32.mxu0 0.0
      %4222 = vmatmul.mubr.f32.gmra.mrb[0].mxu0 %v4132
      %v4223 = vpop.f32.mrb[0].mxu0
      %v4224 = vadd.f32 0.0, %v4223
      %v4225 = vpop.f32.mrb[0].mxu0
      %4226 = vmatprep.mubr.f32.mxu0 0.0
      %4227 = vmatmul.mubr.f32.gmra.mrb[0].mxu0 %v4135
      %v4228 = vpop.f32.mrb[0].mxu0
      %v4229 = vadd.f32 0.0, %v4228
      %v4230 = vpop.f32.mrb[0].mxu0
      %4231 = vmatprep.mubr.f32.mxu0 0.0
      %4232 = vmatmul.mubr.f32.gmra.mrb[0].mxu0 %v4138
      %v4233 = vpop.f32.mrb[0].mxu0
      %v4234 = vadd.f32 0.0, %v4233
      %v4235 = vpop.f32.mrb[0].mxu0
      %4236 = vmatprep.mubr.f32.mxu0 0.0
      %4237 = vmatmul.mubr.f32.gmra.mrb[0].mxu0 %v4141
      %v4238 = vpop.f32.mrb[0].mxu0
      %v4239 = vadd.f32 0.0, %v4238
      %v4240 = vpop.f32.mrb[0].mxu0
      %4241 = vmatprep.mubr.f32.mxu0 0.0
      %4242 = vmatmul.mubr.f32.gmra.mrb[0].mxu0 %v4144
      %v4243 = vpop.f32.mrb[0].mxu0
      %v4244 = vadd.f32 0.0, %v4243
      %v4245 = vpop.f32.mrb[0].mxu0
      %4246 = vmatprep.mubr.f32.mxu0 0.0
      %4247 = vmatmul.mubr.f32.gmra.mrb[0].mxu0 %v4147
      %v4248 = vpop.f32.mrb[0].mxu0
      %v4249 = vadd.f32 0.0, %v4248
      %v4250 = vpop.f32.mrb[0].mxu0
      %4251 = vmatprep.mubr.f32.mxu0 0.0
      %4252 = vmatmul.mubr.f32.gmra.mrb[0].mxu0 %v4150
      %v4253 = vpop.f32.mrb[0].mxu0
      %v4254 = vadd.f32 0.0, %v4253
      %v4255 = vpop.f32.mrb[0].mxu0
      %4256 = vdwg.mxu0
      %v4258 = vsel %vm2772, %v4090, 0
      %v4261 = vsel %vm2772, %v4091, 0
      %v4264 = vsel %vm2772, %v4092, 0
      %v4267 = vsel %vm2772, %v4093, 0
      %v4270 = vsel %vm2772, %v4094, 0
      %v4273 = vsel %vm2772, %v4095, 0
      %v4276 = vsel %vm2772, %v4096, 0
      %v4279 = vsel %vm2772, %v4097, 0
      %4281 = vmatprep.subr.mxu0 0.0
      %4282 = vmatpush1.msra.mxu0 %v4124
      %4283 = vmatprep.subr.mxu0 0.0
      %4284 = vmatpush1.msra.mxu0 0.0
      %4285 = vmatprep.subr.mxu0 0.0
      %4286 = vmatpush1.msra.mxu0 0.0
      %4287 = vmatprep.subr.mxu0 0.0
      %4288 = vmatpush1.msra.mxu0 0.0
      %4289 = vmatprep.subr.mxu0 0.0
      %4290 = vmatpush1.msra.mxu0 0.0
      %4291 = vmatprep.subr.mxu0 0.0
      %4292 = vmatpush1.msra.mxu0 0.0
      %4293 = vmatprep.subr.mxu0 0.0
      %4294 = vmatpush1.msra.mxu0 0.0
      %4295 = vmatprep.subr.mxu0 0.0
      %4296 = vmatpush1.msra.mxu0 0.0
      %4297 = vmatprep.subr.mxu0 0.0
      %4298 = vmatpush1.msra.mxu0 0.0
      %4299 = vmatprep.subr.mxu0 0.0
      %4300 = vmatpush1.msra.mxu0 0.0
      %4301 = vmatprep.subr.mxu0 0.0
      %4302 = vmatpush1.msra.mxu0 0.0
      %4303 = vmatprep.subr.mxu0 0.0
      %4304 = vmatpush1.msra.mxu0 0.0
      %4305 = vmatprep.subr.mxu0 0.0
      %4306 = vmatpush1.msra.mxu0 0.0
      %4307 = vmatprep.subr.mxu0 0.0
      %4308 = vmatpush1.msra.mxu0 0.0
      %4309 = vmatprep.subr.mxu0 0.0
      %4310 = vmatpush1.msra.mxu0 0.0
      %4311 = vmatprep.subr.mxu0 0.0
      %4312 = vmatpush1.msra.mxu0 0.0
      %4313 = vmatprep.subr.mxu0 0.0
      %4314 = vmatpush1.msra.mxu0 0.0
      %4315 = vmatprep.subr.mxu0 0.0
      %4316 = vmatpush1.msra.mxu0 0.0
      %4317 = vmatprep.subr.mxu0 0.0
      %4318 = vmatpush1.msra.mxu0 0.0
      %4319 = vmatprep.subr.mxu0 0.0
      %4320 = vmatpush1.msra.mxu0 0.0
      %4321 = vmatprep.subr.mxu0 0.0
      %4322 = vmatpush1.msra.mxu0 0.0
      %4323 = vmatprep.subr.mxu0 0.0
      %4324 = vmatpush1.msra.mxu0 0.0
      %4325 = vmatprep.subr.mxu0 0.0
      %4326 = vmatpush1.msra.mxu0 0.0
      %4327 = vmatprep.subr.mxu0 0.0
      %4328 = vmatpush1.msra.mxu0 0.0
      %4329 = vmatprep.subr.mxu0 0.0
      %4330 = vmatpush1.msra.mxu0 0.0
      %4331 = vmatprep.subr.mxu0 0.0
      %4332 = vmatpush1.msra.mxu0 0.0
      %4333 = vmatprep.subr.mxu0 0.0
      %4334 = vmatpush1.msra.mxu0 0.0
      %4335 = vmatprep.subr.mxu0 0.0
      %4336 = vmatpush1.msra.mxu0 0.0
      %4337 = vmatprep.subr.mxu0 0.0
      %4338 = vmatpush1.msra.mxu0 0.0
      %4339 = vmatprep.subr.mxu0 0.0
      %4340 = vmatpush1.msra.mxu0 0.0
      %4341 = vmatprep.subr.mxu0 0.0
      %4342 = vmatpush1.msra.mxu0 0.0
      %4343 = vmatprep.subr.mxu0 0.0
      %4344 = vmatpush1.msra.mxu0 0.0
      %4345 = vmatprep.mubr.f32.mxu0 0.0
      %4346 = vmatmul.mubr.f32.gmra.mrb[0].mxu0 %v4258
      %v4347 = vpop.f32.mrb[0].mxu0
      %v4348 = vadd.f32 %v4219, %v4347
      %v4349 = vpop.f32.mrb[0].mxu0
      %4350 = vmatprep.mubr.f32.mxu0 0.0
      %4351 = vmatmul.mubr.f32.gmra.mrb[0].mxu0 %v4261
      %v4352 = vpop.f32.mrb[0].mxu0
      %v4353 = vadd.f32 %v4224, %v4352
      %v4354 = vpop.f32.mrb[0].mxu0
      %4355 = vmatprep.mubr.f32.mxu0 0.0
      %4356 = vmatmul.mubr.f32.gmra.mrb[0].mxu0 %v4264
      %v4357 = vpop.f32.mrb[0].mxu0
      %v4358 = vadd.f32 %v4229, %v4357
      %v4359 = vpop.f32.mrb[0].mxu0
      %4360 = vmatprep.mubr.f32.mxu0 0.0
      %4361 = vmatmul.mubr.f32.gmra.mrb[0].mxu0 %v4267
      %v4362 = vpop.f32.mrb[0].mxu0
      %v4363 = vadd.f32 %v4234, %v4362
      %v4364 = vpop.f32.mrb[0].mxu0
      %4365 = vmatprep.mubr.f32.mxu0 0.0
      %4366 = vmatmul.mubr.f32.gmra.mrb[0].mxu0 %v4270
      %v4367 = vpop.f32.mrb[0].mxu0
      %v4368 = vadd.f32 %v4239, %v4367
      %v4369 = vpop.f32.mrb[0].mxu0
      %4370 = vmatprep.mubr.f32.mxu0 0.0
      %4371 = vmatmul.mubr.f32.gmra.mrb[0].mxu0 %v4273
      %v4372 = vpop.f32.mrb[0].mxu0
      %v4373 = vadd.f32 %v4244, %v4372
      %v4374 = vpop.f32.mrb[0].mxu0
      %4375 = vmatprep.mubr.f32.mxu0 0.0
      %4376 = vmatmul.mubr.f32.gmra.mrb[0].mxu0 %v4276
      %v4377 = vpop.f32.mrb[0].mxu0
      %v4378 = vadd.f32 %v4249, %v4377
      %v4379 = vpop.f32.mrb[0].mxu0
      %4380 = vmatprep.mubr.f32.mxu0 0.0
      %4381 = vmatmul.mubr.f32.gmra.mrb[0].mxu0 %v4279
      %v4382 = vpop.f32.mrb[0].mxu0
      %v4383 = vadd.f32 %v4254, %v4382
      %v4384 = vpop.f32.mrb[0].mxu0
      %4385 = vdwg.mxu0
      %v4387 = vsel %vm2772, %v4107, 0
      %v4390 = vsel %vm2772, %v4108, 0
      %v4393 = vsel %vm2772, %v4109, 0
      %v4396 = vsel %vm2772, %v4110, 0
      %v4399 = vsel %vm2772, %v4111, 0
      %v4402 = vsel %vm2772, %v4112, 0
      %v4405 = vsel %vm2772, %v4113, 0
      %v4408 = vsel %vm2772, %v4114, 0
      %4410 = vmatprep.subr.mxu0 0.0
      %4411 = vmatpush1.msra.mxu0 %v4126
      %4412 = vmatprep.subr.mxu0 0.0
      %4413 = vmatpush1.msra.mxu0 0.0
      %4414 = vmatprep.subr.mxu0 0.0
      %4415 = vmatpush1.msra.mxu0 0.0
      %4416 = vmatprep.subr.mxu0 0.0
      %4417 = vmatpush1.msra.mxu0 0.0
      %4418 = vmatprep.subr.mxu0 0.0
      %4419 = vmatpush1.msra.mxu0 0.0
      %4420 = vmatprep.subr.mxu0 0.0
      %4421 = vmatpush1.msra.mxu0 0.0
      %4422 = vmatprep.subr.mxu0 0.0
      %4423 = vmatpush1.msra.mxu0 0.0
      %4424 = vmatprep.subr.mxu0 0.0
      %4425 = vmatpush1.msra.mxu0 0.0
      %4426 = vmatprep.subr.mxu0 0.0
      %4427 = vmatpush1.msra.mxu0 0.0
      %4428 = vmatprep.subr.mxu0 0.0
      %4429 = vmatpush1.msra.mxu0 0.0
      %4430 = vmatprep.subr.mxu0 0.0
      %4431 = vmatpush1.msra.mxu0 0.0
      %4432 = vmatprep.subr.mxu0 0.0
      %4433 = vmatpush1.msra.mxu0 0.0
      %4434 = vmatprep.subr.mxu0 0.0
      %4435 = vmatpush1.msra.mxu0 0.0
      %4436 = vmatprep.subr.mxu0 0.0
      %4437 = vmatpush1.msra.mxu0 0.0
      %4438 = vmatprep.subr.mxu0 0.0
      %4439 = vmatpush1.msra.mxu0 0.0
      %4440 = vmatprep.subr.mxu0 0.0
      %4441 = vmatpush1.msra.mxu0 0.0
      %4442 = vmatprep.subr.mxu0 0.0
      %4443 = vmatpush1.msra.mxu0 0.0
      %4444 = vmatprep.subr.mxu0 0.0
      %4445 = vmatpush1.msra.mxu0 0.0
      %4446 = vmatprep.subr.mxu0 0.0
      %4447 = vmatpush1.msra.mxu0 0.0
      %4448 = vmatprep.subr.mxu0 0.0
      %4449 = vmatpush1.msra.mxu0 0.0
      %4450 = vmatprep.subr.mxu0 0.0
      %4451 = vmatpush1.msra.mxu0 0.0
      %4452 = vmatprep.subr.mxu0 0.0
      %4453 = vmatpush1.msra.mxu0 0.0
      %4454 = vmatprep.subr.mxu0 0.0
      %4455 = vmatpush1.msra.mxu0 0.0
      %4456 = vmatprep.subr.mxu0 0.0
      %4457 = vmatpush1.msra.mxu0 0.0
      %4458 = vmatprep.subr.mxu0 0.0
      %4459 = vmatpush1.msra.mxu0 0.0
      %4460 = vmatprep.subr.mxu0 0.0
      %4461 = vmatpush1.msra.mxu0 0.0
      %4462 = vmatprep.subr.mxu0 0.0
      %4463 = vmatpush1.msra.mxu0 0.0
      %4464 = vmatprep.subr.mxu0 0.0
      %4465 = vmatpush1.msra.mxu0 0.0
      %4466 = vmatprep.subr.mxu0 0.0
      %4467 = vmatpush1.msra.mxu0 0.0
      %4468 = vmatprep.subr.mxu0 0.0
      %4469 = vmatpush1.msra.mxu0 0.0
      %4470 = vmatprep.subr.mxu0 0.0
      %4471 = vmatpush1.msra.mxu0 0.0
      %4472 = vmatprep.subr.mxu0 0.0
      %4473 = vmatpush1.msra.mxu0 0.0
      %4474 = vmatprep.mubr.f32.mxu0 0.0
      %4475 = vmatmul.mubr.f32.gmra.mrb[0].mxu0 %v4387
      %v4476 = vpop.f32.mrb[0].mxu0
      %v4477 = vadd.f32 0.0, %v4476
      %v4478 = vpop.f32.mrb[0].mxu0
      %4479 = vmatprep.mubr.f32.mxu0 0.0
      %4480 = vmatmul.mubr.f32.gmra.mrb[0].mxu0 %v4390
      %v4481 = vpop.f32.mrb[0].mxu0
      %v4482 = vadd.f32 0.0, %v4481
      %v4483 = vpop.f32.mrb[0].mxu0
      %4484 = vmatprep.mubr.f32.mxu0 0.0
      %4485 = vmatmul.mubr.f32.gmra.mrb[0].mxu0 %v4393
      %v4486 = vpop.f32.mrb[0].mxu0
      %v4487 = vadd.f32 0.0, %v4486
      %v4488 = vpop.f32.mrb[0].mxu0
      %4489 = vmatprep.mubr.f32.mxu0 0.0
      %4490 = vmatmul.mubr.f32.gmra.mrb[0].mxu0 %v4396
      %v4491 = vpop.f32.mrb[0].mxu0
      %v4492 = vadd.f32 0.0, %v4491
      %v4493 = vpop.f32.mrb[0].mxu0
      %4494 = vmatprep.mubr.f32.mxu0 0.0
      %4495 = vmatmul.mubr.f32.gmra.mrb[0].mxu0 %v4399
      %v4496 = vpop.f32.mrb[0].mxu0
      %v4497 = vadd.f32 0.0, %v4496
      %v4498 = vpop.f32.mrb[0].mxu0
      %4499 = vmatprep.mubr.f32.mxu0 0.0
      %4500 = vmatmul.mubr.f32.gmra.mrb[0].mxu0 %v4402
      %v4501 = vpop.f32.mrb[0].mxu0
      %v4502 = vadd.f32 0.0, %v4501
      %v4503 = vpop.f32.mrb[0].mxu0
      %4504 = vmatprep.mubr.f32.mxu0 0.0
      %4505 = vmatmul.mubr.f32.gmra.mrb[0].mxu0 %v4405
      %v4506 = vpop.f32.mrb[0].mxu0
      %v4507 = vadd.f32 0.0, %v4506
      %v4508 = vpop.f32.mrb[0].mxu0
      %4509 = vmatprep.mubr.f32.mxu0 0.0
      %4510 = vmatmul.mubr.f32.gmra.mrb[0].mxu0 %v4408
      %v4511 = vpop.f32.mrb[0].mxu0
      %v4512 = vadd.f32 0.0, %v4511
      %v4513 = vpop.f32.mrb[0].mxu0
      %4514 = vdwg.mxu0
      %v4515 = vadd.f32 %v4348, %v4477
      %v4516 = vadd.f32 %v4353, %v4482
      %v4517 = vadd.f32 %v4358, %v4487
      %v4518 = vadd.f32 %v4363, %v4492
      %v4519 = vadd.f32 %v4368, %v4497
      %v4520 = vadd.f32 %v4373, %v4502
      %v4521 = vadd.f32 %v4378, %v4507
      %v4522 = vadd.f32 %v4383, %v4512
      %v4524 = vsel %vm2772, %v4115, 0
      %v4527 = vsel %vm2772, %v4116, 0
      %v4530 = vsel %vm2772, %v4117, 0
      %v4533 = vsel %vm2772, %v4118, 0
      %v4536 = vsel %vm2772, %v4119, 0
      %v4539 = vsel %vm2772, %v4120, 0
      %v4542 = vsel %vm2772, %v4121, 0
      %v4545 = vsel %vm2772, %v4122, 0
      %4547 = vmatprep.subr.mxu0 0.0
      %4548 = vmatpush1.msra.mxu0 %v4127
      %4549 = vmatprep.subr.mxu0 0.0
      %4550 = vmatpush1.msra.mxu0 0.0
      %4551 = vmatprep.subr.mxu0 0.0
      %4552 = vmatpush1.msra.mxu0 0.0
      %4553 = vmatprep.subr.mxu0 0.0
      %4554 = vmatpush1.msra.mxu0 0.0
      %4555 = vmatprep.subr.mxu0 0.0
      %4556 = vmatpush1.msra.mxu0 0.0
      %4557 = vmatprep.subr.mxu0 0.0
      %4558 = vmatpush1.msra.mxu0 0.0
      %4559 = vmatprep.subr.mxu0 0.0
      %4560 = vmatpush1.msra.mxu0 0.0
      %4561 = vmatprep.subr.mxu0 0.0
      %4562 = vmatpush1.msra.mxu0 0.0
      %4563 = vmatprep.subr.mxu0 0.0
      %4564 = vmatpush1.msra.mxu0 0.0
      %4565 = vmatprep.subr.mxu0 0.0
      %4566 = vmatpush1.msra.mxu0 0.0
      %4567 = vmatprep.subr.mxu0 0.0
      %4568 = vmatpush1.msra.mxu0 0.0
      %4569 = vmatprep.subr.mxu0 0.0
      %4570 = vmatpush1.msra.mxu0 0.0
      %4571 = vmatprep.subr.mxu0 0.0
      %4572 = vmatpush1.msra.mxu0 0.0
      %4573 = vmatprep.subr.mxu0 0.0
      %4574 = vmatpush1.msra.mxu0 0.0
      %4575 = vmatprep.subr.mxu0 0.0
      %4576 = vmatpush1.msra.mxu0 0.0
      %4577 = vmatprep.subr.mxu0 0.0
      %4578 = vmatpush1.msra.mxu0 0.0
      %4579 = vmatprep.subr.mxu0 0.0
      %4580 = vmatpush1.msra.mxu0 0.0
      %4581 = vmatprep.subr.mxu0 0.0
      %4582 = vmatpush1.msra.mxu0 0.0
      %4583 = vmatprep.subr.mxu0 0.0
      %4584 = vmatpush1.msra.mxu0 0.0
      %4585 = vmatprep.subr.mxu0 0.0
      %4586 = vmatpush1.msra.mxu0 0.0
      %4587 = vmatprep.subr.mxu0 0.0
      %4588 = vmatpush1.msra.mxu0 0.0
      %4589 = vmatprep.subr.mxu0 0.0
      %4590 = vmatpush1.msra.mxu0 0.0
      %4591 = vmatprep.subr.mxu0 0.0
      %4592 = vmatpush1.msra.mxu0 0.0
      %4593 = vmatprep.subr.mxu0 0.0
      %4594 = vmatpush1.msra.mxu0 0.0
      %4595 = vmatprep.subr.mxu0 0.0
      %4596 = vmatpush1.msra.mxu0 0.0
      %4597 = vmatprep.subr.mxu0 0.0
      %4598 = vmatpush1.msra.mxu0 0.0
      %4599 = vmatprep.subr.mxu0 0.0
      %4600 = vmatpush1.msra.mxu0 0.0
      %4601 = vmatprep.subr.mxu0 0.0
      %4602 = vmatpush1.msra.mxu0 0.0
      %4603 = vmatprep.subr.mxu0 0.0
      %4604 = vmatpush1.msra.mxu0 0.0
      %4605 = vmatprep.subr.mxu0 0.0
      %4606 = vmatpush1.msra.mxu0 0.0
      %4607 = vmatprep.subr.mxu0 0.0
      %4608 = vmatpush1.msra.mxu0 0.0
      %4609 = vmatprep.subr.mxu0 0.0
      %4610 = vmatpush1.msra.mxu0 0.0
      %4611 = vmatprep.mubr.f32.mxu0 0.0
      %4612 = vmatmul.mubr.f32.gmra.mrb[0].mxu0 %v4524
      %v4613 = vpop.f32.mrb[0].mxu0
      %v4614 = vadd.f32 0.0, %v4613
      %v4615 = vpop.f32.mrb[0].mxu0
      %4616 = vmatprep.mubr.f32.mxu0 0.0
      %4617 = vmatmul.mubr.f32.gmra.mrb[0].mxu0 %v4527
      %v4618 = vpop.f32.mrb[0].mxu0
      %v4619 = vadd.f32 0.0, %v4618
      %v4620 = vpop.f32.mrb[0].mxu0
      %4621 = vmatprep.mubr.f32.mxu0 0.0
      %4622 = vmatmul.mubr.f32.gmra.mrb[0].mxu0 %v4530
      %v4623 = vpop.f32.mrb[0].mxu0
      %v4624 = vadd.f32 0.0, %v4623
      %v4625 = vpop.f32.mrb[0].mxu0
      %4626 = vmatprep.mubr.f32.mxu0 0.0
      %4627 = vmatmul.mubr.f32.gmra.mrb[0].mxu0 %v4533
      %v4628 = vpop.f32.mrb[0].mxu0
      %v4629 = vadd.f32 0.0, %v4628
      %v4630 = vpop.f32.mrb[0].mxu0
      %4631 = vmatprep.mubr.f32.mxu0 0.0
      %4632 = vmatmul.mubr.f32.gmra.mrb[0].mxu0 %v4536
      %v4633 = vpop.f32.mrb[0].mxu0
      %v4634 = vadd.f32 0.0, %v4633
      %v4635 = vpop.f32.mrb[0].mxu0
      %4636 = vmatprep.mubr.f32.mxu0 0.0
      %4637 = vmatmul.mubr.f32.gmra.mrb[0].mxu0 %v4539
      %v4638 = vpop.f32.mrb[0].mxu0
      %v4639 = vadd.f32 0.0, %v4638
      %v4640 = vpop.f32.mrb[0].mxu0
      %4641 = vmatprep.mubr.f32.mxu0 0.0
      %4642 = vmatmul.mubr.f32.gmra.mrb[0].mxu0 %v4542
      %v4643 = vpop.f32.mrb[0].mxu0
      %v4644 = vadd.f32 0.0, %v4643
      %v4645 = vpop.f32.mrb[0].mxu0
      %4646 = vmatprep.mubr.f32.mxu0 0.0
      %4647 = vmatmul.mubr.f32.gmra.mrb[0].mxu0 %v4545
      %v4648 = vpop.f32.mrb[0].mxu0
      %v4649 = vadd.f32 0.0, %v4648
      %v4650 = vpop.f32.mrb[0].mxu0
      %4651 = vdwg.mxu0
      %v4652 = vadd.f32 %v4515, %v4614
      %v4653 = vadd.f32 %v4516, %v4619
      %v4654 = vadd.f32 %v4517, %v4624
      %v4655 = vadd.f32 %v4518, %v4629
      %v4656 = vadd.f32 %v4519, %v4634
      %v4657 = vadd.f32 %v4520, %v4639
      %v4658 = vadd.f32 %v4521, %v4644
      %v4659 = vadd.f32 %v4522, %v4649
      %v4660 = vadd.f32 %v4652, %v3382
      %v4661 = vadd.f32 %v4653, %v3382
      %v4662 = vadd.f32 %v4654, %v3382
      %v4663 = vadd.f32 %v4655, %v3382
      %v4664 = vadd.f32 %v4656, %v3382
      %v4665 = vadd.f32 %v4657, %v3382
      %v4666 = vadd.f32 %v4658, %v3382
      %v4667 = vadd.f32 %v4659, %v3382
      %v4668 = vsel %vm367, %v4660, 0.0
      %v4669 = vsel %vm367, %v4661, 0.0
      %v4670 = vadd.f32 %v4668, %v4669
      %v4671 = vsel %vm367, %v4662, 0.0
      %v4672 = vadd.f32 %v4670, %v4671
      %v4673 = vsel %vm367, %v4663, 0.0
      %v4674 = vadd.f32 %v4672, %v4673
      %v4675 = vsel %vm367, %v4664, 0.0
      %v4676 = vadd.f32 %v4674, %v4675
      %v4677 = vsel %vm367, %v4665, 0.0
      %v4678 = vadd.f32 %v4676, %v4677
      %v4679 = vsel %vm367, %v4666, 0.0
      %v4680 = vadd.f32 %v4678, %v4679
      %v4681 = vsel %vm367, %v4667, 0.0
      %v4682 = vadd.f32 %v4680, %v4681
      %v4683 = vrot.slane %v4682, 4
      %v4684 = vadd.f32 %v4682, %v4683
      %v4685 = vrot.slane %v4684, 2
      %v4686 = vadd.f32 %v4684, %v4685
      %v4687 = vrot.slane %v4686, 1
      %v4688 = vadd.f32 %v4686, %v4687
      %v4689 = vadd.f32 %v4050, %v4688
      %v4690 = vmul.f32 %v4660, %v4660
      %v4691 = vmul.f32 %v4661, %v4661
      %v4692 = vmul.f32 %v4662, %v4662
      %v4693 = vmul.f32 %v4663, %v4663
      %v4694 = vmul.f32 %v4664, %v4664
      %v4695 = vmul.f32 %v4665, %v4665
      %v4696 = vmul.f32 %v4666, %v4666
      %v4697 = vmul.f32 %v4667, %v4667
      %v4698 = vsel %vm367, %v4690, 0.0
      %v4699 = vsel %vm367, %v4691, 0.0
      %v4700 = vadd.f32 %v4698, %v4699
      %v4701 = vsel %vm367, %v4692, 0.0
      %v4702 = vadd.f32 %v4700, %v4701
      %v4703 = vsel %vm367, %v4693, 0.0
      %v4704 = vadd.f32 %v4702, %v4703
      %v4705 = vsel %vm367, %v4694, 0.0
      %v4706 = vadd.f32 %v4704, %v4705
      %v4707 = vsel %vm367, %v4695, 0.0
      %v4708 = vadd.f32 %v4706, %v4707
      %v4709 = vsel %vm367, %v4696, 0.0
      %v4710 = vadd.f32 %v4708, %v4709
      %v4711 = vsel %vm367, %v4697, 0.0
      %v4712 = vadd.f32 %v4710, %v4711
      %v4713 = vrot.slane %v4712, 4
      %v4714 = vadd.f32 %v4712, %v4713
      %v4715 = vrot.slane %v4714, 2
      %v4716 = vadd.f32 %v4714, %v4715
      %v4717 = vrot.slane %v4716, 1
      %v4718 = vadd.f32 %v4716, %v4717
      %v4719 = vadd.f32 %v4080, %v4718
      %s4720 = scalar_lea.vmem %s224, 128
      %4721 = vst.msk [vmem:[%s4720] sm:$0xff] %vm367, %v4660
      %4722 = vst.msk [vmem:[%s4720 + $0x8] sm:$0xff] %vm367, %v4661
      %4723 = vst.msk [vmem:[%s4720 + $0x10] sm:$0xff] %vm367, %v4662
      %4724 = vst.msk [vmem:[%s4720 + $0x18] sm:$0xff] %vm367, %v4663
      %4725 = vst.msk [vmem:[%s4720 + $0x20] sm:$0xff] %vm367, %v4664
      %4726 = vst.msk [vmem:[%s4720 + $0x28] sm:$0xff] %vm367, %v4665
      %4727 = vst.msk [vmem:[%s4720 + $0x30] sm:$0xff] %vm367, %v4666
      %4728 = vst.msk [vmem:[%s4720 + $0x38] sm:$0xff] %vm367, %v4667
      %v4729 = vld [vmem:[%s2800 + $0x1] sm:$0xff]
      %v4730 = vld [vmem:[%s2800 + $0x11] sm:$0xff]
      %v4731 = vld [vmem:[%s2800 + $0x21] sm:$0xff]
      %v4732 = vld [vmem:[%s2800 + $0x31] sm:$0xff]
      %v4733 = vld [vmem:[%s2800 + $0x41] sm:$0xff]
      %v4734 = vld [vmem:[%s2800 + $0x51] sm:$0xff]
      %v4735 = vld [vmem:[%s2800 + $0x61] sm:$0xff]
      %v4736 = vld [vmem:[%s2800 + $0x71] sm:$0xff]
      %v4737 = vld [vmem:[%s2800 + $0x2] sm:$0xff]
      %v4738 = vld [vmem:[%s2800 + $0x12] sm:$0xff]
      %v4739 = vld [vmem:[%s2800 + $0x22] sm:$0xff]
      %v4740 = vld [vmem:[%s2800 + $0x32] sm:$0xff]
      %v4741 = vld [vmem:[%s2800 + $0x42] sm:$0xff]
      %v4742 = vld [vmem:[%s2800 + $0x52] sm:$0xff]
      %v4743 = vld [vmem:[%s2800 + $0x62] sm:$0xff]
      %v4744 = vld [vmem:[%s2800 + $0x72] sm:$0xff]
      %v4745 = vld [vmem:[%s4106 + $0x1] sm:$0xff]
      %v4746 = vld [vmem:[%s4106 + $0x11] sm:$0xff]
      %v4747 = vld [vmem:[%s4106 + $0x21] sm:$0xff]
      %v4748 = vld [vmem:[%s4106 + $0x31] sm:$0xff]
      %v4749 = vld [vmem:[%s4106 + $0x41] sm:$0xff]
      %v4750 = vld [vmem:[%s4106 + $0x51] sm:$0xff]
      %v4751 = vld [vmem:[%s4106 + $0x61] sm:$0xff]
      %v4752 = vld [vmem:[%s4106 + $0x71] sm:$0xff]
      %v4753 = vld [vmem:[%s4106 + $0x2] sm:$0xff]
      %v4754 = vld [vmem:[%s4106 + $0x12] sm:$0xff]
      %v4755 = vld [vmem:[%s4106 + $0x22] sm:$0xff]
      %v4756 = vld [vmem:[%s4106 + $0x32] sm:$0xff]
      %v4757 = vld [vmem:[%s4106 + $0x42] sm:$0xff]
      %v4758 = vld [vmem:[%s4106 + $0x52] sm:$0xff]
      %v4759 = vld [vmem:[%s4106 + $0x62] sm:$0xff]
      %v4760 = vld [vmem:[%s4106 + $0x72] sm:$0xff]
      %s4761 = scalar_lea.vmem %s3, 96
      %v4762 = vld [vmem:[%s4761] sm:$0xff]
      %v4763 = vld [vmem:[%s4761 + $0x8] sm:$0xff]
      %v4764 = vld [vmem:[%s4761 + $0x10] sm:$0xff]
      %v4765 = vld [vmem:[%s4761 + $0x18] sm:$0xff]
      %v4767 = vsel %vm2772, %v4737, 0
      %v4770 = vsel %vm2772, %v4738, 0
      %v4773 = vsel %vm2772, %v4739, 0
      %v4776 = vsel %vm2772, %v4740, 0
      %v4779 = vsel %vm2772, %v4741, 0
      %v4782 = vsel %vm2772, %v4742, 0
      %v4785 = vsel %vm2772, %v4743, 0
      %v4788 = vsel %vm2772, %v4744, 0
      %4790 = vmatprep.subr.mxu0 0.0
      %4791 = vmatpush1.msra.mxu0 %v4763
      %4792 = vmatprep.subr.mxu0 0.0
      %4793 = vmatpush1.msra.mxu0 0.0
      %4794 = vmatprep.subr.mxu0 0.0
      %4795 = vmatpush1.msra.mxu0 0.0
      %4796 = vmatprep.subr.mxu0 0.0
      %4797 = vmatpush1.msra.mxu0 0.0
      %4798 = vmatprep.subr.mxu0 0.0
      %4799 = vmatpush1.msra.mxu0 0.0
      %4800 = vmatprep.subr.mxu0 0.0
      %4801 = vmatpush1.msra.mxu0 0.0
      %4802 = vmatprep.subr.mxu0 0.0
      %4803 = vmatpush1.msra.mxu0 0.0
      %4804 = vmatprep.subr.mxu0 0.0
      %4805 = vmatpush1.msra.mxu0 0.0
      %4806 = vmatprep.subr.mxu0 0.0
      %4807 = vmatpush1.msra.mxu0 0.0
      %4808 = vmatprep.subr.mxu0 0.0
      %4809 = vmatpush1.msra.mxu0 0.0
      %4810 = vmatprep.subr.mxu0 0.0
      %4811 = vmatpush1.msra.mxu0 0.0
      %4812 = vmatprep.subr.mxu0 0.0
      %4813 = vmatpush1.msra.mxu0 0.0
      %4814 = vmatprep.subr.mxu0 0.0
      %4815 = vmatpush1.msra.mxu0 0.0
      %4816 = vmatprep.subr.mxu0 0.0
      %4817 = vmatpush1.msra.mxu0 0.0
      %4818 = vmatprep.subr.mxu0 0.0
      %4819 = vmatpush1.msra.mxu0 0.0
      %4820 = vmatprep.subr.mxu0 0.0
      %4821 = vmatpush1.msra.mxu0 0.0
      %4822 = vmatprep.subr.mxu0 0.0
      %4823 = vmatpush1.msra.mxu0 0.0
      %4824 = vmatprep.subr.mxu0 0.0
      %4825 = vmatpush1.msra.mxu0 0.0
      %4826 = vmatprep.subr.mxu0 0.0
      %4827 = vmatpush1.msra.mxu0 0.0
      %4828 = vmatprep.subr.mxu0 0.0
      %4829 = vmatpush1.msra.mxu0 0.0
      %4830 = vmatprep.subr.mxu0 0.0
      %4831 = vmatpush1.msra.mxu0 0.0
      %4832 = vmatprep.subr.mxu0 0.0
      %4833 = vmatpush1.msra.mxu0 0.0
      %4834 = vmatprep.subr.mxu0 0.0
      %4835 = vmatpush1.msra.mxu0 0.0
      %4836 = vmatprep.subr.mxu0 0.0
      %4837 = vmatpush1.msra.mxu0 0.0
      %4838 = vmatprep.subr.mxu0 0.0
      %4839 = vmatpush1.msra.mxu0 0.0
      %4840 = vmatprep.subr.mxu0 0.0
      %4841 = vmatpush1.msra.mxu0 0.0
      %4842 = vmatprep.subr.mxu0 0.0
      %4843 = vmatpush1.msra.mxu0 0.0
      %4844 = vmatprep.subr.mxu0 0.0
      %4845 = vmatpush1.msra.mxu0 0.0
      %4846 = vmatprep.subr.mxu0 0.0
      %4847 = vmatpush1.msra.mxu0 0.0
      %4848 = vmatprep.subr.mxu0 0.0
      %4849 = vmatpush1.msra.mxu0 0.0
      %4850 = vmatprep.subr.mxu0 0.0
      %4851 = vmatpush1.msra.mxu0 0.0
      %4852 = vmatprep.subr.mxu0 0.0
      %4853 = vmatpush1.msra.mxu0 0.0
      %4854 = vmatprep.mubr.f32.mxu0 0.0
      %4855 = vmatmul.mubr.f32.gmra.mrb[0].mxu0 %v4767
      %v4856 = vpop.f32.mrb[0].mxu0
      %v4857 = vadd.f32 0.0, %v4856
      %v4858 = vpop.f32.mrb[0].mxu0
      %4859 = vmatprep.mubr.f32.mxu0 0.0
      %4860 = vmatmul.mubr.f32.gmra.mrb[0].mxu0 %v4770
      %v4861 = vpop.f32.mrb[0].mxu0
      %v4862 = vadd.f32 0.0, %v4861
      %v4863 = vpop.f32.mrb[0].mxu0
      %4864 = vmatprep.mubr.f32.mxu0 0.0
      %4865 = vmatmul.mubr.f32.gmra.mrb[0].mxu0 %v4773
      %v4866 = vpop.f32.mrb[0].mxu0
      %v4867 = vadd.f32 0.0, %v4866
      %v4868 = vpop.f32.mrb[0].mxu0
      %4869 = vmatprep.mubr.f32.mxu0 0.0
      %4870 = vmatmul.mubr.f32.gmra.mrb[0].mxu0 %v4776
      %v4871 = vpop.f32.mrb[0].mxu0
      %v4872 = vadd.f32 0.0, %v4871
      %v4873 = vpop.f32.mrb[0].mxu0
      %4874 = vmatprep.mubr.f32.mxu0 0.0
      %4875 = vmatmul.mubr.f32.gmra.mrb[0].mxu0 %v4779
      %v4876 = vpop.f32.mrb[0].mxu0
      %v4877 = vadd.f32 0.0, %v4876
      %v4878 = vpop.f32.mrb[0].mxu0
      %4879 = vmatprep.mubr.f32.mxu0 0.0
      %4880 = vmatmul.mubr.f32.gmra.mrb[0].mxu0 %v4782
      %v4881 = vpop.f32.mrb[0].mxu0
      %v4882 = vadd.f32 0.0, %v4881
      %v4883 = vpop.f32.mrb[0].mxu0
      %4884 = vmatprep.mubr.f32.mxu0 0.0
      %4885 = vmatmul.mubr.f32.gmra.mrb[0].mxu0 %v4785
      %v4886 = vpop.f32.mrb[0].mxu0
      %v4887 = vadd.f32 0.0, %v4886
      %v4888 = vpop.f32.mrb[0].mxu0
      %4889 = vmatprep.mubr.f32.mxu0 0.0
      %4890 = vmatmul.mubr.f32.gmra.mrb[0].mxu0 %v4788
      %v4891 = vpop.f32.mrb[0].mxu0
      %v4892 = vadd.f32 0.0, %v4891
      %v4893 = vpop.f32.mrb[0].mxu0
      %4894 = vdwg.mxu0
      %v4896 = vsel %vm2772, %v4729, 0
      %v4899 = vsel %vm2772, %v4730, 0
      %v4902 = vsel %vm2772, %v4731, 0
      %v4905 = vsel %vm2772, %v4732, 0
      %v4908 = vsel %vm2772, %v4733, 0
      %v4911 = vsel %vm2772, %v4734, 0
      %v4914 = vsel %vm2772, %v4735, 0
      %v4917 = vsel %vm2772, %v4736, 0
      %4919 = vmatprep.subr.mxu0 0.0
      %4920 = vmatpush1.msra.mxu0 %v4762
      %4921 = vmatprep.subr.mxu0 0.0
      %4922 = vmatpush1.msra.mxu0 0.0
      %4923 = vmatprep.subr.mxu0 0.0
      %4924 = vmatpush1.msra.mxu0 0.0
      %4925 = vmatprep.subr.mxu0 0.0
      %4926 = vmatpush1.msra.mxu0 0.0
      %4927 = vmatprep.subr.mxu0 0.0
      %4928 = vmatpush1.msra.mxu0 0.0
      %4929 = vmatprep.subr.mxu0 0.0
      %4930 = vmatpush1.msra.mxu0 0.0
      %4931 = vmatprep.subr.mxu0 0.0
      %4932 = vmatpush1.msra.mxu0 0.0
      %4933 = vmatprep.subr.mxu0 0.0
      %4934 = vmatpush1.msra.mxu0 0.0
      %4935 = vmatprep.subr.mxu0 0.0
      %4936 = vmatpush1.msra.mxu0 0.0
      %4937 = vmatprep.subr.mxu0 0.0
      %4938 = vmatpush1.msra.mxu0 0.0
      %4939 = vmatprep.subr.mxu0 0.0
      %4940 = vmatpush1.msra.mxu0 0.0
      %4941 = vmatprep.subr.mxu0 0.0
      %4942 = vmatpush1.msra.mxu0 0.0
      %4943 = vmatprep.subr.mxu0 0.0
      %4944 = vmatpush1.msra.mxu0 0.0
      %4945 = vmatprep.subr.mxu0 0.0
      %4946 = vmatpush1.msra.mxu0 0.0
      %4947 = vmatprep.subr.mxu0 0.0
      %4948 = vmatpush1.msra.mxu0 0.0
      %4949 = vmatprep.subr.mxu0 0.0
      %4950 = vmatpush1.msra.mxu0 0.0
      %4951 = vmatprep.subr.mxu0 0.0
      %4952 = vmatpush1.msra.mxu0 0.0
      %4953 = vmatprep.subr.mxu0 0.0
      %4954 = vmatpush1.msra.mxu0 0.0
      %4955 = vmatprep.subr.mxu0 0.0
      %4956 = vmatpush1.msra.mxu0 0.0
      %4957 = vmatprep.subr.mxu0 0.0
      %4958 = vmatpush1.msra.mxu0 0.0
      %4959 = vmatprep.subr.mxu0 0.0
      %4960 = vmatpush1.msra.mxu0 0.0
      %4961 = vmatprep.subr.mxu0 0.0
      %4962 = vmatpush1.msra.mxu0 0.0
      %4963 = vmatprep.subr.mxu0 0.0
      %4964 = vmatpush1.msra.mxu0 0.0
      %4965 = vmatprep.subr.mxu0 0.0
      %4966 = vmatpush1.msra.mxu0 0.0
      %4967 = vmatprep.subr.mxu0 0.0
      %4968 = vmatpush1.msra.mxu0 0.0
      %4969 = vmatprep.subr.mxu0 0.0
      %4970 = vmatpush1.msra.mxu0 0.0
      %4971 = vmatprep.subr.mxu0 0.0
      %4972 = vmatpush1.msra.mxu0 0.0
      %4973 = vmatprep.subr.mxu0 0.0
      %4974 = vmatpush1.msra.mxu0 0.0
      %4975 = vmatprep.subr.mxu0 0.0
      %4976 = vmatpush1.msra.mxu0 0.0
      %4977 = vmatprep.subr.mxu0 0.0
      %4978 = vmatpush1.msra.mxu0 0.0
      %4979 = vmatprep.subr.mxu0 0.0
      %4980 = vmatpush1.msra.mxu0 0.0
      %4981 = vmatprep.subr.mxu0 0.0
      %4982 = vmatpush1.msra.mxu0 0.0
      %4983 = vmatprep.mubr.f32.mxu0 0.0
      %4984 = vmatmul.mubr.f32.gmra.mrb[0].mxu0 %v4896
      %v4985 = vpop.f32.mrb[0].mxu0
      %v4986 = vadd.f32 %v4857, %v4985
      %v4987 = vpop.f32.mrb[0].mxu0
      %4988 = vmatprep.mubr.f32.mxu0 0.0
      %4989 = vmatmul.mubr.f32.gmra.mrb[0].mxu0 %v4899
      %v4990 = vpop.f32.mrb[0].mxu0
      %v4991 = vadd.f32 %v4862, %v4990
      %v4992 = vpop.f32.mrb[0].mxu0
      %4993 = vmatprep.mubr.f32.mxu0 0.0
      %4994 = vmatmul.mubr.f32.gmra.mrb[0].mxu0 %v4902
      %v4995 = vpop.f32.mrb[0].mxu0
      %v4996 = vadd.f32 %v4867, %v4995
      %v4997 = vpop.f32.mrb[0].mxu0
      %4998 = vmatprep.mubr.f32.mxu0 0.0
      %4999 = vmatmul.mubr.f32.gmra.mrb[0].mxu0 %v4905
      %v5000 = vpop.f32.mrb[0].mxu0
      %v5001 = vadd.f32 %v4872, %v5000
      %v5002 = vpop.f32.mrb[0].mxu0
      %5003 = vmatprep.mubr.f32.mxu0 0.0
      %5004 = vmatmul.mubr.f32.gmra.mrb[0].mxu0 %v4908
      %v5005 = vpop.f32.mrb[0].mxu0
      %v5006 = vadd.f32 %v4877, %v5005
      %v5007 = vpop.f32.mrb[0].mxu0
      %5008 = vmatprep.mubr.f32.mxu0 0.0
      %5009 = vmatmul.mubr.f32.gmra.mrb[0].mxu0 %v4911
      %v5010 = vpop.f32.mrb[0].mxu0
      %v5011 = vadd.f32 %v4882, %v5010
      %v5012 = vpop.f32.mrb[0].mxu0
      %5013 = vmatprep.mubr.f32.mxu0 0.0
      %5014 = vmatmul.mubr.f32.gmra.mrb[0].mxu0 %v4914
      %v5015 = vpop.f32.mrb[0].mxu0
      %v5016 = vadd.f32 %v4887, %v5015
      %v5017 = vpop.f32.mrb[0].mxu0
      %5018 = vmatprep.mubr.f32.mxu0 0.0
      %5019 = vmatmul.mubr.f32.gmra.mrb[0].mxu0 %v4917
      %v5020 = vpop.f32.mrb[0].mxu0
      %v5021 = vadd.f32 %v4892, %v5020
      %v5022 = vpop.f32.mrb[0].mxu0
      %5023 = vdwg.mxu0
      %v5025 = vsel %vm2772, %v4745, 0
      %v5028 = vsel %vm2772, %v4746, 0
      %v5031 = vsel %vm2772, %v4747, 0
      %v5034 = vsel %vm2772, %v4748, 0
      %v5037 = vsel %vm2772, %v4749, 0
      %v5040 = vsel %vm2772, %v4750, 0
      %v5043 = vsel %vm2772, %v4751, 0
      %v5046 = vsel %vm2772, %v4752, 0
      %5048 = vmatprep.subr.mxu0 0.0
      %5049 = vmatpush1.msra.mxu0 %v4764
      %5050 = vmatprep.subr.mxu0 0.0
      %5051 = vmatpush1.msra.mxu0 0.0
      %5052 = vmatprep.subr.mxu0 0.0
      %5053 = vmatpush1.msra.mxu0 0.0
      %5054 = vmatprep.subr.mxu0 0.0
      %5055 = vmatpush1.msra.mxu0 0.0
      %5056 = vmatprep.subr.mxu0 0.0
      %5057 = vmatpush1.msra.mxu0 0.0
      %5058 = vmatprep.subr.mxu0 0.0
      %5059 = vmatpush1.msra.mxu0 0.0
      %5060 = vmatprep.subr.mxu0 0.0
      %5061 = vmatpush1.msra.mxu0 0.0
      %5062 = vmatprep.subr.mxu0 0.0
      %5063 = vmatpush1.msra.mxu0 0.0
      %5064 = vmatprep.subr.mxu0 0.0
      %5065 = vmatpush1.msra.mxu0 0.0
      %5066 = vmatprep.subr.mxu0 0.0
      %5067 = vmatpush1.msra.mxu0 0.0
      %5068 = vmatprep.subr.mxu0 0.0
      %5069 = vmatpush1.msra.mxu0 0.0
      %5070 = vmatprep.subr.mxu0 0.0
      %5071 = vmatpush1.msra.mxu0 0.0
      %5072 = vmatprep.subr.mxu0 0.0
      %5073 = vmatpush1.msra.mxu0 0.0
      %5074 = vmatprep.subr.mxu0 0.0
      %5075 = vmatpush1.msra.mxu0 0.0
      %5076 = vmatprep.subr.mxu0 0.0
      %5077 = vmatpush1.msra.mxu0 0.0
      %5078 = vmatprep.subr.mxu0 0.0
      %5079 = vmatpush1.msra.mxu0 0.0
      %5080 = vmatprep.subr.mxu0 0.0
      %5081 = vmatpush1.msra.mxu0 0.0
      %5082 = vmatprep.subr.mxu0 0.0
      %5083 = vmatpush1.msra.mxu0 0.0
      %5084 = vmatprep.subr.mxu0 0.0
      %5085 = vmatpush1.msra.mxu0 0.0
      %5086 = vmatprep.subr.mxu0 0.0
      %5087 = vmatpush1.msra.mxu0 0.0
      %5088 = vmatprep.subr.mxu0 0.0
      %5089 = vmatpush1.msra.mxu0 0.0
      %5090 = vmatprep.subr.mxu0 0.0
      %5091 = vmatpush1.msra.mxu0 0.0
      %5092 = vmatprep.subr.mxu0 0.0
      %5093 = vmatpush1.msra.mxu0 0.0
      %5094 = vmatprep.subr.mxu0 0.0
      %5095 = vmatpush1.msra.mxu0 0.0
      %5096 = vmatprep.subr.mxu0 0.0
      %5097 = vmatpush1.msra.mxu0 0.0
      %5098 = vmatprep.subr.mxu0 0.0
      %5099 = vmatpush1.msra.mxu0 0.0
      %5100 = vmatprep.subr.mxu0 0.0
      %5101 = vmatpush1.msra.mxu0 0.0
      %5102 = vmatprep.subr.mxu0 0.0
      %5103 = vmatpush1.msra.mxu0 0.0
      %5104 = vmatprep.subr.mxu0 0.0
      %5105 = vmatpush1.msra.mxu0 0.0
      %5106 = vmatprep.subr.mxu0 0.0
      %5107 = vmatpush1.msra.mxu0 0.0
      %5108 = vmatprep.subr.mxu0 0.0
      %5109 = vmatpush1.msra.mxu0 0.0
      %5110 = vmatprep.subr.mxu0 0.0
      %5111 = vmatpush1.msra.mxu0 0.0
      %5112 = vmatprep.mubr.f32.mxu0 0.0
      %5113 = vmatmul.mubr.f32.gmra.mrb[0].mxu0 %v5025
      %v5114 = vpop.f32.mrb[0].mxu0
      %v5115 = vadd.f32 0.0, %v5114
      %v5116 = vpop.f32.mrb[0].mxu0
      %5117 = vmatprep.mubr.f32.mxu0 0.0
      %5118 = vmatmul.mubr.f32.gmra.mrb[0].mxu0 %v5028
      %v5119 = vpop.f32.mrb[0].mxu0
      %v5120 = vadd.f32 0.0, %v5119
      %v5121 = vpop.f32.mrb[0].mxu0
      %5122 = vmatprep.mubr.f32.mxu0 0.0
      %5123 = vmatmul.mubr.f32.gmra.mrb[0].mxu0 %v5031
      %v5124 = vpop.f32.mrb[0].mxu0
      %v5125 = vadd.f32 0.0, %v5124
      %v5126 = vpop.f32.mrb[0].mxu0
      %5127 = vmatprep.mubr.f32.mxu0 0.0
      %5128 = vmatmul.mubr.f32.gmra.mrb[0].mxu0 %v5034
      %v5129 = vpop.f32.mrb[0].mxu0
      %v5130 = vadd.f32 0.0, %v5129
      %v5131 = vpop.f32.mrb[0].mxu0
      %5132 = vmatprep.mubr.f32.mxu0 0.0
      %5133 = vmatmul.mubr.f32.gmra.mrb[0].mxu0 %v5037
      %v5134 = vpop.f32.mrb[0].mxu0
      %v5135 = vadd.f32 0.0, %v5134
      %v5136 = vpop.f32.mrb[0].mxu0
      %5137 = vmatprep.mubr.f32.mxu0 0.0
      %5138 = vmatmul.mubr.f32.gmra.mrb[0].mxu0 %v5040
      %v5139 = vpop.f32.mrb[0].mxu0
      %v5140 = vadd.f32 0.0, %v5139
      %v5141 = vpop.f32.mrb[0].mxu0
      %5142 = vmatprep.mubr.f32.mxu0 0.0
      %5143 = vmatmul.mubr.f32.gmra.mrb[0].mxu0 %v5043
      %v5144 = vpop.f32.mrb[0].mxu0
      %v5145 = vadd.f32 0.0, %v5144
      %v5146 = vpop.f32.mrb[0].mxu0
      %5147 = vmatprep.mubr.f32.mxu0 0.0
      %5148 = vmatmul.mubr.f32.gmra.mrb[0].mxu0 %v5046
      %v5149 = vpop.f32.mrb[0].mxu0
      %v5150 = vadd.f32 0.0, %v5149
      %v5151 = vpop.f32.mrb[0].mxu0
      %5152 = vdwg.mxu0
      %v5153 = vadd.f32 %v4986, %v5115
      %v5154 = vadd.f32 %v4991, %v5120
      %v5155 = vadd.f32 %v4996, %v5125
      %v5156 = vadd.f32 %v5001, %v5130
      %v5157 = vadd.f32 %v5006, %v5135
      %v5158 = vadd.f32 %v5011, %v5140
      %v5159 = vadd.f32 %v5016, %v5145
      %v5160 = vadd.f32 %v5021, %v5150
      %v5162 = vsel %vm2772, %v4753, 0
      %v5165 = vsel %vm2772, %v4754, 0
      %v5168 = vsel %vm2772, %v4755, 0
      %v5171 = vsel %vm2772, %v4756, 0
      %v5174 = vsel %vm2772, %v4757, 0
      %v5177 = vsel %vm2772, %v4758, 0
      %v5180 = vsel %vm2772, %v4759, 0
      %v5183 = vsel %vm2772, %v4760, 0
      %5185 = vmatprep.subr.mxu0 0.0
      %5186 = vmatpush1.msra.mxu0 %v4765
      %5187 = vmatprep.subr.mxu0 0.0
      %5188 = vmatpush1.msra.mxu0 0.0
      %5189 = vmatprep.subr.mxu0 0.0
      %5190 = vmatpush1.msra.mxu0 0.0
      %5191 = vmatprep.subr.mxu0 0.0
      %5192 = vmatpush1.msra.mxu0 0.0
      %5193 = vmatprep.subr.mxu0 0.0
      %5194 = vmatpush1.msra.mxu0 0.0
      %5195 = vmatprep.subr.mxu0 0.0
      %5196 = vmatpush1.msra.mxu0 0.0
      %5197 = vmatprep.subr.mxu0 0.0
      %5198 = vmatpush1.msra.mxu0 0.0
      %5199 = vmatprep.subr.mxu0 0.0
      %5200 = vmatpush1.msra.mxu0 0.0
      %5201 = vmatprep.subr.mxu0 0.0
      %5202 = vmatpush1.msra.mxu0 0.0
      %5203 = vmatprep.subr.mxu0 0.0
      %5204 = vmatpush1.msra.mxu0 0.0
      %5205 = vmatprep.subr.mxu0 0.0
      %5206 = vmatpush1.msra.mxu0 0.0
      %5207 = vmatprep.subr.mxu0 0.0
      %5208 = vmatpush1.msra.mxu0 0.0
      %5209 = vmatprep.subr.mxu0 0.0
      %5210 = vmatpush1.msra.mxu0 0.0
      %5211 = vmatprep.subr.mxu0 0.0
      %5212 = vmatpush1.msra.mxu0 0.0
      %5213 = vmatprep.subr.mxu0 0.0
      %5214 = vmatpush1.msra.mxu0 0.0
      %5215 = vmatprep.subr.mxu0 0.0
      %5216 = vmatpush1.msra.mxu0 0.0
      %5217 = vmatprep.subr.mxu0 0.0
      %5218 = vmatpush1.msra.mxu0 0.0
      %5219 = vmatprep.subr.mxu0 0.0
      %5220 = vmatpush1.msra.mxu0 0.0
      %5221 = vmatprep.subr.mxu0 0.0
      %5222 = vmatpush1.msra.mxu0 0.0
      %5223 = vmatprep.subr.mxu0 0.0
      %5224 = vmatpush1.msra.mxu0 0.0
      %5225 = vmatprep.subr.mxu0 0.0
      %5226 = vmatpush1.msra.mxu0 0.0
      %5227 = vmatprep.subr.mxu0 0.0
      %5228 = vmatpush1.msra.mxu0 0.0
      %5229 = vmatprep.subr.mxu0 0.0
      %5230 = vmatpush1.msra.mxu0 0.0
      %5231 = vmatprep.subr.mxu0 0.0
      %5232 = vmatpush1.msra.mxu0 0.0
      %5233 = vmatprep.subr.mxu0 0.0
      %5234 = vmatpush1.msra.mxu0 0.0
      %5235 = vmatprep.subr.mxu0 0.0
      %5236 = vmatpush1.msra.mxu0 0.0
      %5237 = vmatprep.subr.mxu0 0.0
      %5238 = vmatpush1.msra.mxu0 0.0
      %5239 = vmatprep.subr.mxu0 0.0
      %5240 = vmatpush1.msra.mxu0 0.0
      %5241 = vmatprep.subr.mxu0 0.0
      %5242 = vmatpush1.msra.mxu0 0.0
      %5243 = vmatprep.subr.mxu0 0.0
      %5244 = vmatpush1.msra.mxu0 0.0
      %5245 = vmatprep.subr.mxu0 0.0
      %5246 = vmatpush1.msra.mxu0 0.0
      %5247 = vmatprep.subr.mxu0 0.0
      %5248 = vmatpush1.msra.mxu0 0.0
      %5249 = vmatprep.mubr.f32.mxu0 0.0
      %5250 = vmatmul.mubr.f32.gmra.mrb[0].mxu0 %v5162
      %v5251 = vpop.f32.mrb[0].mxu0
      %v5252 = vadd.f32 0.0, %v5251
      %v5253 = vpop.f32.mrb[0].mxu0
      %5254 = vmatprep.mubr.f32.mxu0 0.0
      %5255 = vmatmul.mubr.f32.gmra.mrb[0].mxu0 %v5165
      %v5256 = vpop.f32.mrb[0].mxu0
      %v5257 = vadd.f32 0.0, %v5256
      %v5258 = vpop.f32.mrb[0].mxu0
      %5259 = vmatprep.mubr.f32.mxu0 0.0
      %5260 = vmatmul.mubr.f32.gmra.mrb[0].mxu0 %v5168
      %v5261 = vpop.f32.mrb[0].mxu0
      %v5262 = vadd.f32 0.0, %v5261
      %v5263 = vpop.f32.mrb[0].mxu0
      %5264 = vmatprep.mubr.f32.mxu0 0.0
      %5265 = vmatmul.mubr.f32.gmra.mrb[0].mxu0 %v5171
      %v5266 = vpop.f32.mrb[0].mxu0
      %v5267 = vadd.f32 0.0, %v5266
      %v5268 = vpop.f32.mrb[0].mxu0
      %5269 = vmatprep.mubr.f32.mxu0 0.0
      %5270 = vmatmul.mubr.f32.gmra.mrb[0].mxu0 %v5174
      %v5271 = vpop.f32.mrb[0].mxu0
      %v5272 = vadd.f32 0.0, %v5271
      %v5273 = vpop.f32.mrb[0].mxu0
      %5274 = vmatprep.mubr.f32.mxu0 0.0
      %5275 = vmatmul.mubr.f32.gmra.mrb[0].mxu0 %v5177
      %v5276 = vpop.f32.mrb[0].mxu0
      %v5277 = vadd.f32 0.0, %v5276
      %v5278 = vpop.f32.mrb[0].mxu0
      %5279 = vmatprep.mubr.f32.mxu0 0.0
      %5280 = vmatmul.mubr.f32.gmra.mrb[0].mxu0 %v5180
      %v5281 = vpop.f32.mrb[0].mxu0
      %v5282 = vadd.f32 0.0, %v5281
      %v5283 = vpop.f32.mrb[0].mxu0
      %5284 = vmatprep.mubr.f32.mxu0 0.0
      %5285 = vmatmul.mubr.f32.gmra.mrb[0].mxu0 %v5183
      %v5286 = vpop.f32.mrb[0].mxu0
      %v5287 = vadd.f32 0.0, %v5286
      %v5288 = vpop.f32.mrb[0].mxu0
      %5289 = vdwg.mxu0
      %v5290 = vadd.f32 %v5153, %v5252
      %v5291 = vadd.f32 %v5154, %v5257
      %v5292 = vadd.f32 %v5155, %v5262
      %v5293 = vadd.f32 %v5156, %v5267
      %v5294 = vadd.f32 %v5157, %v5272
      %v5295 = vadd.f32 %v5158, %v5277
      %v5296 = vadd.f32 %v5159, %v5282
      %v5297 = vadd.f32 %v5160, %v5287
      %v5298 = vadd.f32 %v5290, %v3382
      %v5299 = vadd.f32 %v5291, %v3382
      %v5300 = vadd.f32 %v5292, %v3382
      %v5301 = vadd.f32 %v5293, %v3382
      %v5302 = vadd.f32 %v5294, %v3382
      %v5303 = vadd.f32 %v5295, %v3382
      %v5304 = vadd.f32 %v5296, %v3382
      %v5305 = vadd.f32 %v5297, %v3382
      %v5306 = vsel %vm367, %v5298, 0.0
      %v5307 = vsel %vm367, %v5299, 0.0
      %v5308 = vadd.f32 %v5306, %v5307
      %v5309 = vsel %vm367, %v5300, 0.0
      %v5310 = vadd.f32 %v5308, %v5309
      %v5311 = vsel %vm367, %v5301, 0.0
      %v5312 = vadd.f32 %v5310, %v5311
      %v5313 = vsel %vm367, %v5302, 0.0
      %v5314 = vadd.f32 %v5312, %v5313
      %v5315 = vsel %vm367, %v5303, 0.0
      %v5316 = vadd.f32 %v5314, %v5315
      %v5317 = vsel %vm367, %v5304, 0.0
      %v5318 = vadd.f32 %v5316, %v5317
      %v5319 = vsel %vm367, %v5305, 0.0
      %v5320 = vadd.f32 %v5318, %v5319
      %v5321 = vrot.slane %v5320, 4
      %v5322 = vadd.f32 %v5320, %v5321
      %v5323 = vrot.slane %v5322, 2
      %v5324 = vadd.f32 %v5322, %v5323
      %v5325 = vrot.slane %v5324, 1
      %v5326 = vadd.f32 %v5324, %v5325
      %v5327 = vadd.f32 %v4689, %v5326
      %v5328 = vmul.f32 %v5298, %v5298
      %v5329 = vmul.f32 %v5299, %v5299
      %v5330 = vmul.f32 %v5300, %v5300
      %v5331 = vmul.f32 %v5301, %v5301
      %v5332 = vmul.f32 %v5302, %v5302
      %v5333 = vmul.f32 %v5303, %v5303
      %v5334 = vmul.f32 %v5304, %v5304
      %v5335 = vmul.f32 %v5305, %v5305
      %v5336 = vsel %vm367, %v5328, 0.0
      %v5337 = vsel %vm367, %v5329, 0.0
      %v5338 = vadd.f32 %v5336, %v5337
      %v5339 = vsel %vm367, %v5330, 0.0
      %v5340 = vadd.f32 %v5338, %v5339
      %v5341 = vsel %vm367, %v5331, 0.0
      %v5342 = vadd.f32 %v5340, %v5341
      %v5343 = vsel %vm367, %v5332, 0.0
      %v5344 = vadd.f32 %v5342, %v5343
      %v5345 = vsel %vm367, %v5333, 0.0
      %v5346 = vadd.f32 %v5344, %v5345
      %v5347 = vsel %vm367, %v5334, 0.0
      %v5348 = vadd.f32 %v5346, %v5347
      %v5349 = vsel %vm367, %v5335, 0.0
      %v5350 = vadd.f32 %v5348, %v5349
      %v5351 = vrot.slane %v5350, 4
      %v5352 = vadd.f32 %v5350, %v5351
      %v5353 = vrot.slane %v5352, 2
      %v5354 = vadd.f32 %v5352, %v5353
      %v5355 = vrot.slane %v5354, 1
      %v5356 = vadd.f32 %v5354, %v5355
      %v5357 = vadd.f32 %v4719, %v5356
      %s5358 = scalar_lea.vmem %s224, 192
      %5359 = vst.msk [vmem:[%s5358] sm:$0xff] %vm367, %v5298
      %5360 = vst.msk [vmem:[%s5358 + $0x8] sm:$0xff] %vm367, %v5299
      %5361 = vst.msk [vmem:[%s5358 + $0x10] sm:$0xff] %vm367, %v5300
      %5362 = vst.msk [vmem:[%s5358 + $0x18] sm:$0xff] %vm367, %v5301
      %5363 = vst.msk [vmem:[%s5358 + $0x20] sm:$0xff] %vm367, %v5302
      %5364 = vst.msk [vmem:[%s5358 + $0x28] sm:$0xff] %vm367, %v5303
      %5365 = vst.msk [vmem:[%s5358 + $0x30] sm:$0xff] %vm367, %v5304
      %5366 = vst.msk [vmem:[%s5358 + $0x38] sm:$0xff] %vm367, %v5305
      %v5367 = vrcp.pop 256.0
      %v5368 = vmul.f32 %v5327, %v5367
      %v5369 = vmul.f32 %v5357, %v5367
      %v5370 = vmul.f32 %v5368, %v5368
      %v5371 = vsub.f32 %v5369, %v5370
      %v5372 = vmax.f32 %v5371, 0.0
      %v5373 = vadd.f32 %v5372, 1e-05
      %v5374 = vrsqrt.pop %v5373
      %v5375 = vld [vmem:[%s224] sm:$0xff]
      %v5376 = vld [vmem:[%s224 + $0x8] sm:$0xff]
      %v5377 = vld [vmem:[%s224 + $0x10] sm:$0xff]
      %v5378 = vld [vmem:[%s224 + $0x18] sm:$0xff]
      %v5379 = vld [vmem:[%s224 + $0x20] sm:$0xff]
      %v5380 = vld [vmem:[%s224 + $0x28] sm:$0xff]
      %v5381 = vld [vmem:[%s224 + $0x30] sm:$0xff]
      %v5382 = vld [vmem:[%s224 + $0x38] sm:$0xff]
      %v5383 = vsub.f32 %v5375, %v5368
      %v5384 = vsub.f32 %v5376, %v5368
      %v5385 = vsub.f32 %v5377, %v5368
      %v5386 = vsub.f32 %v5378, %v5368
      %v5387 = vsub.f32 %v5379, %v5368
      %v5388 = vsub.f32 %v5380, %v5368
      %v5389 = vsub.f32 %v5381, %v5368
      %v5390 = vsub.f32 %v5382, %v5368
      %v5391 = vmul.f32 %v5383, %v5374
      %v5392 = vmul.f32 %v5384, %v5374
      %v5393 = vmul.f32 %v5385, %v5374
      %v5394 = vmul.f32 %v5386, %v5374
      %v5395 = vmul.f32 %v5387, %v5374
      %v5396 = vmul.f32 %v5388, %v5374
      %v5397 = vmul.f32 %v5389, %v5374
      %v5398 = vmul.f32 %v5390, %v5374
      %5399 = vst.msk [vmem:[%s224] sm:$0xff] %vm367, %v5391
      %5400 = vst.msk [vmem:[%s224 + $0x8] sm:$0xff] %vm367, %v5392
      %5401 = vst.msk [vmem:[%s224 + $0x10] sm:$0xff] %vm367, %v5393
      %5402 = vst.msk [vmem:[%s224 + $0x18] sm:$0xff] %vm367, %v5394
      %5403 = vst.msk [vmem:[%s224 + $0x20] sm:$0xff] %vm367, %v5395
      %5404 = vst.msk [vmem:[%s224 + $0x28] sm:$0xff] %vm367, %v5396
      %5405 = vst.msk [vmem:[%s224 + $0x30] sm:$0xff] %vm367, %v5397
      %5406 = vst.msk [vmem:[%s224 + $0x38] sm:$0xff] %vm367, %v5398
      %v5407 = vld [vmem:[%s4081] sm:$0xff]
      %v5408 = vld [vmem:[%s4081 + $0x8] sm:$0xff]
      %v5409 = vld [vmem:[%s4081 + $0x10] sm:$0xff]
      %v5410 = vld [vmem:[%s4081 + $0x18] sm:$0xff]
      %v5411 = vld [vmem:[%s4081 + $0x20] sm:$0xff]
      %v5412 = vld [vmem:[%s4081 + $0x28] sm:$0xff]
      %v5413 = vld [vmem:[%s4081 + $0x30] sm:$0xff]
      %v5414 = vld [vmem:[%s4081 + $0x38] sm:$0xff]
      %v5415 = vsub.f32 %v5407, %v5368
      %v5416 = vsub.f32 %v5408, %v5368
      %v5417 = vsub.f32 %v5409, %v5368
      %v5418 = vsub.f32 %v5410, %v5368
      %v5419 = vsub.f32 %v5411, %v5368
      %v5420 = vsub.f32 %v5412, %v5368
      %v5421 = vsub.f32 %v5413, %v5368
      %v5422 = vsub.f32 %v5414, %v5368
      %v5423 = vmul.f32 %v5415, %v5374
      %v5424 = vmul.f32 %v5416, %v5374
      %v5425 = vmul.f32 %v5417, %v5374
      %v5426 = vmul.f32 %v5418, %v5374
      %v5427 = vmul.f32 %v5419, %v5374
      %v5428 = vmul.f32 %v5420, %v5374
      %v5429 = vmul.f32 %v5421, %v5374
      %v5430 = vmul.f32 %v5422, %v5374
      %5431 = vst.msk [vmem:[%s4081] sm:$0xff] %vm367, %v5423
      %5432 = vst.msk [vmem:[%s4081 + $0x8] sm:$0xff] %vm367, %v5424
      %5433 = vst.msk [vmem:[%s4081 + $0x10] sm:$0xff] %vm367, %v5425
      %5434 = vst.msk [vmem:[%s4081 + $0x18] sm:$0xff] %vm367, %v5426
      %5435 = vst.msk [vmem:[%s4081 + $0x20] sm:$0xff] %vm367, %v5427
      %5436 = vst.msk [vmem:[%s4081 + $0x28] sm:$0xff] %vm367, %v5428
      %5437 = vst.msk [vmem:[%s4081 + $0x30] sm:$0xff] %vm367, %v5429
      %5438 = vst.msk [vmem:[%s4081 + $0x38] sm:$0xff] %vm367, %v5430
      %v5439 = vld [vmem:[%s4720] sm:$0xff]
      %v5440 = vld [vmem:[%s4720 + $0x8] sm:$0xff]
      %v5441 = vld [vmem:[%s4720 + $0x10] sm:$0xff]
      %v5442 = vld [vmem:[%s4720 + $0x18] sm:$0xff]
      %v5443 = vld [vmem:[%s4720 + $0x20] sm:$0xff]
      %v5444 = vld [vmem:[%s4720 + $0x28] sm:$0xff]
      %v5445 = vld [vmem:[%s4720 + $0x30] sm:$0xff]
      %v5446 = vld [vmem:[%s4720 + $0x38] sm:$0xff]
      %v5447 = vsub.f32 %v5439, %v5368
      %v5448 = vsub.f32 %v5440, %v5368
      %v5449 = vsub.f32 %v5441, %v5368
      %v5450 = vsub.f32 %v5442, %v5368
      %v5451 = vsub.f32 %v5443, %v5368
      %v5452 = vsub.f32 %v5444, %v5368
      %v5453 = vsub.f32 %v5445, %v5368
      %v5454 = vsub.f32 %v5446, %v5368
      %v5455 = vmul.f32 %v5447, %v5374
      %v5456 = vmul.f32 %v5448, %v5374
      %v5457 = vmul.f32 %v5449, %v5374
      %v5458 = vmul.f32 %v5450, %v5374
      %v5459 = vmul.f32 %v5451, %v5374
      %v5460 = vmul.f32 %v5452, %v5374
      %v5461 = vmul.f32 %v5453, %v5374
      %v5462 = vmul.f32 %v5454, %v5374
      %5463 = vst.msk [vmem:[%s4720] sm:$0xff] %vm367, %v5455
      %5464 = vst.msk [vmem:[%s4720 + $0x8] sm:$0xff] %vm367, %v5456
      %5465 = vst.msk [vmem:[%s4720 + $0x10] sm:$0xff] %vm367, %v5457
      %5466 = vst.msk [vmem:[%s4720 + $0x18] sm:$0xff] %vm367, %v5458
      %5467 = vst.msk [vmem:[%s4720 + $0x20] sm:$0xff] %vm367, %v5459
      %5468 = vst.msk [vmem:[%s4720 + $0x28] sm:$0xff] %vm367, %v5460
      %5469 = vst.msk [vmem:[%s4720 + $0x30] sm:$0xff] %vm367, %v5461
      %5470 = vst.msk [vmem:[%s4720 + $0x38] sm:$0xff] %vm367, %v5462
      %v5471 = vld [vmem:[%s5358] sm:$0xff]
      %v5472 = vld [vmem:[%s5358 + $0x8] sm:$0xff]
      %v5473 = vld [vmem:[%s5358 + $0x10] sm:$0xff]
      %v5474 = vld [vmem:[%s5358 + $0x18] sm:$0xff]
      %v5475 = vld [vmem:[%s5358 + $0x20] sm:$0xff]
      %v5476 = vld [vmem:[%s5358 + $0x28] sm:$0xff]
      %v5477 = vld [vmem:[%s5358 + $0x30] sm:$0xff]
      %v5478 = vld [vmem:[%s5358 + $0x38] sm:$0xff]
      %v5479 = vsub.f32 %v5471, %v5368
      %v5480 = vsub.f32 %v5472, %v5368
      %v5481 = vsub.f32 %v5473, %v5368
      %v5482 = vsub.f32 %v5474, %v5368
      %v5483 = vsub.f32 %v5475, %v5368
      %v5484 = vsub.f32 %v5476, %v5368
      %v5485 = vsub.f32 %v5477, %v5368
      %v5486 = vsub.f32 %v5478, %v5368
      %v5487 = vmul.f32 %v5479, %v5374
      %v5488 = vmul.f32 %v5480, %v5374
      %v5489 = vmul.f32 %v5481, %v5374
      %v5490 = vmul.f32 %v5482, %v5374
      %v5491 = vmul.f32 %v5483, %v5374
      %v5492 = vmul.f32 %v5484, %v5374
      %v5493 = vmul.f32 %v5485, %v5374
      %v5494 = vmul.f32 %v5486, %v5374
      %5495 = vst.msk [vmem:[%s5358] sm:$0xff] %vm367, %v5487
      %5496 = vst.msk [vmem:[%s5358 + $0x8] sm:$0xff] %vm367, %v5488
      %5497 = vst.msk [vmem:[%s5358 + $0x10] sm:$0xff] %vm367, %v5489
      %5498 = vst.msk [vmem:[%s5358 + $0x18] sm:$0xff] %vm367, %v5490
      %5499 = vst.msk [vmem:[%s5358 + $0x20] sm:$0xff] %vm367, %v5491
      %5500 = vst.msk [vmem:[%s5358 + $0x28] sm:$0xff] %vm367, %v5492
      %5501 = vst.msk [vmem:[%s5358 + $0x30] sm:$0xff] %vm367, %v5493
      %5502 = vst.msk [vmem:[%s5358 + $0x38] sm:$0xff] %vm367, %v5494
      %p5503 = scmp.lt.s32.totalorder %s16, 1
      %s5504 = scalar_select %p5503, %s16, 1
      %s5505 = smul.addr %s5504, 32
      %s5506 = smul.addr %s5505, 8
      %s5507 = scalar_lea.vmem %s5, %s5506
      // Predicated region
      $region41: #{unet_innermost_block.1} parent=39 // pred_check
        %p5508 = pneg %p144
      $region42: #{unet_innermost_block.1} parent=39 // pred_check_branch
        %5510 = sbr.rel (%p5508) target = $region44
      $region43: #{unet_innermost_block.1} parent=39 // pred_region
        _
      $region44: #{unet_innermost_block.1} parent=39 // pred_fallthru
        _
    $region40: #{unet_innermost_block.1} parent=5 // pred_fallthru
      _
    %p5511 = scmp.le.s32.totalorder 2, %s11
    // Predicated region
    $region45: #{unet_innermost_block.1} parent=5 // pred_check
      %p5512 = pneg %p5511
    $region46: #{unet_innermost_block.1} parent=5 // pred_check_branch
      %5514 = sbr.rel (%p5512) target = $region48
    $region47: #{unet_innermost_block.1} parent=5 // pred_region
      %s5515 = ssub.s32 %s11, 2
      // Predicated region
      $region49: #{unet_innermost_block.1} parent=47 // pred_check
        %p5516 = pneg %p150
      $region50: #{unet_innermost_block.1} parent=47 // pred_check_branch
        %5518 = sbr.rel (%p5516) target = $region52
      $region51: #{unet_innermost_block.1} parent=47 // pred_region
        %p5519 = scmp.lt.s32.totalorder %s17, 1
        %s5520 = scalar_select %p5519, %s17, 1
        %s5521 = smul.addr %s5520, 32
        %s5522 = smul.addr %s5521, 8
        %s5523 = scalar_lea.vmem %s5, %s5522
      $region52: #{unet_innermost_block.1} parent=47 // pred_fallthru
        _
    $region48: #{unet_innermost_block.1} parent=5 // pred_fallthru
      _
  $region6: #{unet_innermost_block.1} parent=0 // loop_footer
    %s15 = sadd.s32 1, %s11
  $region7: #{unet_innermost_block.1} parent=0 // loop_footer_branch
    %10 = sbr.rel target = $region3
  $region8: #{unet_innermost_block.1} parent=0 // loop_exit
    _

</llo_original>
